<compile_context>
chip_gen: v6e
topology: v6e:2x2x1
jax: 0.10.0
libtpu: 0.0.40
codegen_flags: <defaults>
</compile_context>

<pallas_src>
import functools

import jax
import jax.numpy as jnp
from jax.experimental import pallas as pl
from jax.experimental.pallas import tpu as pltpu


# ----------------------------------------------------------------------------
# Shared helper: "same" KxK cross-correlation taps via pltpu.roll + edge masks
# ----------------------------------------------------------------------------
def _shift_acc(x, weight_fn, K, H, HS, U):
    """sum_t weight_fn(t) * shift_t(x) over the K*K taps of a zero-padded 'same'
    cross-correlation.  x is (HS, U) with HS = k*H independent (H, U) problems
    stacked along sublanes (k in {1, 2}); weight_fn(t) returns a scalar or an
    (HS, 1) per-row weight column.  Shifts use pltpu.roll (np.roll semantics,
    non-negative static shifts); wrapped elements are zeroed with iota masks so
    the result equals a zero-padded window shift."""
    P = (K - 1) // 2
    loc = jax.lax.broadcasted_iota(jnp.int32, (HS, 1), 0) % H  # row index within each problem
    col = jax.lax.broadcasted_iota(jnp.int32, (1, U), 1)
    acc = jnp.zeros((HS, U), jnp.float32)
    for di in range(K):
        oi = di - P
        r = x if oi == 0 else pltpu.roll(x, shift=(-oi) % HS, axis=0)
        if oi != 0:
            r = jnp.where((loc + oi >= 0) & (loc + oi < H), r, 0.0)
        for dj in range(K):
            oj = dj - P
            c = r if oj == 0 else pltpu.roll(r, shift=(-oj) % U, axis=1)
            if oj != 0:
                c = jnp.where((col + oj >= 0) & (col + oj < U), c, 0.0)
            acc = acc + weight_fn(di * K + dj) * c
    return acc


# ----------------------------------------------------------------------------
# Kernel A: layer-0 Ltmp (L == 0, so only conv1(mask*x) + biases + part3)
# ----------------------------------------------------------------------------
def _make_first_kernel(H, U, K):
    def kernel(mx_ref, mask_ref, y1_ref, w_ref, b_ref,
               cw1_ref, cb1_ref, cb2_ref, th_ref, ltmp_ref):
        th = th_ref[0]
        mx = mx_ref[...]
        conv1 = _shift_acc(mx, lambda t: cw1_ref[t], K, H, H, U)
        part3 = mask_ref[...] * y1_ref[...] * (w_ref[...] * th) + b_ref[...]
        # L == 0 at the first layer's input: conv2(0) contributes only its bias cb2.
        ltmp_ref[...] = conv1 + cb1_ref[0] + cb2_ref[0] + part3
    return kernel


def ltmp_first_call(mx, mask, y1, W, B, cw1, cb1, cb2, th_arr, H, U, K):
    vmem = lambda shape: pl.BlockSpec(shape, lambda i: (0, 0))
    smem = lambda: pl.BlockSpec(memory_space=pltpu.MemorySpace.SMEM)
    return pl.pallas_call(
        _make_first_kernel(H, U, K),
        out_shape=jax.ShapeDtypeStruct((H, U), jnp.float32),
        grid=(1,),
        in_specs=[vmem((H, U))] * 5 + [smem() for _ in range(4)],
        out_specs=vmem((H, U)),
    )(mx, mask, y1, W, B, cw1, cb1, cb2, th_arr)


# ----------------------------------------------------------------------------
# Kernel B: fused [SVT of previous layer + y1 dual update + current layer Ltmp]
# ----------------------------------------------------------------------------
def _make_fused_kernel(H, U, K):
    def kernel(um_ref, s_ref, vt_ref, mx_ref, mask_ref, y1_ref, w_ref, b_ref,
               cw1_ref, cb1_ref, cw2_ref, cb2_ref, thp_ref, thc_ref,
               ltmp_ref, y1o_ref):
        th_prev = thp_ref[0]
        th_cur = thc_ref[0]

        # --- SVT reconstruction of previous layer's L (MXU) ---------------------
        # singular values are sorted descending and non-negative, so max(S) == S[0]
        s = s_ref[...]                                      # (1, H)
        s_max = jnp.max(s, axis=-1, keepdims=True)          # (1, 1)
        s_thr = jnp.maximum(s - th_prev * s_max, 0.0)       # relu(S - th*S[0])
        L = jnp.dot(um_ref[...] * s_thr, vt_ref[...],       # U*diag(s) @ V^T
                    preferred_element_type=jnp.float32)     # (H, U)

        # --- dual update of previous layer --------------------------------------
        mx = mx_ref[...]
        mask = mask_ref[...]
        mL = mask * L
        y1_new = y1_ref[...] + (1.0 / th_prev) * (mx - mL)
        y1o_ref[...] = y1_new

        # --- current layer's Ltmp: shared-shift masked convs + elementwise combine
        # stack mask*x and mask*L along sublanes so each (di,dj) shift is done once
        stack = jnp.concatenate([mx, mL], axis=0)           # (2H, U)
        row = jax.lax.broadcasted_iota(jnp.int32, (2 * H, 1), 0)
        top = (row < H).astype(jnp.float32)                 # 1 on mx half, 0 on mL half
        bot = 1.0 - top

        def wcol(t):                                        # per-row weight column
            return cw1_ref[t] * top + cw2_ref[t] * bot

        acc2 = _shift_acc(stack, wcol, K, H, 2 * H, U)      # (2H, U)
        conv_sum = acc2[:H] + acc2[H:]                      # conv1(mx) + conv2(mL), no biases

        part3 = mask * y1_new * (w_ref[...] * th_cur) + b_ref[...]
        ltmp_ref[...] = L + conv_sum + cb1_ref[0] + cb2_ref[0] + part3
    return kernel


def fused_svt_ltmp_call(Um, s, Vt, mx, mask, y1, W, B,
                        cw1, cb1, cw2, cb2, th_prev, th_cur, H, U, K):
    vmem = lambda shape: pl.BlockSpec(shape, lambda i: (0, 0))
    smem = lambda: pl.BlockSpec(memory_space=pltpu.MemorySpace.SMEM)
    return pl.pallas_call(
        _make_fused_kernel(H, U, K),
        out_shape=(jax.ShapeDtypeStruct((H, U), jnp.float32),   # Ltmp (next SVD input)
                   jax.ShapeDtypeStruct((H, U), jnp.float32)),  # updated y1
        grid=(1,),
        in_specs=[vmem((H, H)), vmem((1, H)), vmem((H, U)),
                  vmem((H, U)), vmem((H, U)), vmem((H, U)),
                  vmem((H, U)), vmem((H, U))] + [smem() for _ in range(6)],
        out_specs=(vmem((H, U)), vmem((H, U))),
        input_output_aliases={5: 1},                            # y1 updated in place
    )(Um, s, Vt, mx, mask, y1, W, B, cw1, cb1, cw2, cb2, th_prev, th_cur)


# ----------------------------------------------------------------------------
# Kernel C: final SVT reconstruction + y1 dual update (last layer)
# ----------------------------------------------------------------------------
def _make_final_kernel(H, U):
    def kernel(um_ref, s_ref, vt_ref, mx_ref, mask_ref, y1_ref, th_ref,
               l_ref, y1o_ref):
        th = th_ref[0]
        s = s_ref[...]
        s_max = jnp.max(s, axis=-1, keepdims=True)
        s_thr = jnp.maximum(s - th * s_max, 0.0)
        L = jnp.dot(um_ref[...] * s_thr, vt_ref[...],
                    preferred_element_type=jnp.float32)
        l_ref[...] = L
        y1o_ref[...] = y1_ref[...] + (1.0 / th) * (mx_ref[...] - mask_ref[...] * L)
    return kernel


def svt_final_call(Um, s, Vt, mx, mask, y1, th_arr, H, U):
    vmem = lambda shape: pl.BlockSpec(shape, lambda i: (0, 0))
    smem = pl.BlockSpec(memory_space=pltpu.MemorySpace.SMEM)
    return pl.pallas_call(
        _make_final_kernel(H, U),
        out_shape=(jax.ShapeDtypeStruct((H, U), jnp.float32),
                   jax.ShapeDtypeStruct((H, U), jnp.float32)),
        grid=(1,),
        in_specs=[vmem((H, H)), vmem((1, H)), vmem((H, U)),
                  vmem((H, U)), vmem((H, U)), vmem((H, U)), smem],
        out_specs=(vmem((H, U)), vmem((H, U))),
        input_output_aliases={5: 1},                            # y1 updated in place
    )(Um, s, Vt, mx, mask, y1, th_arr)


# ----------------------------------------------------------------------------
# Parameter init (deterministic) and jitted forward (glue)
# ----------------------------------------------------------------------------
def init_params(key, layers, kernels, H, U, initial_mu_inverse, initial_y1):
    params = {
        "mu_inverse": jnp.ones((layers,), jnp.float32) * initial_mu_inverse,
        "y1": jnp.ones((H, U), jnp.float32) * initial_y1,
        "cells": [],
    }
    for i in range(layers):
        K = kernels[i][0]                       # Conv2dC uses kernel[0] for both dims
        key, k1, k2, k3, k4 = jax.random.split(key, 5)
        bound = 1.0 / K                         # ~ PyTorch Conv2d init scale, 1/sqrt(K*K)
        cell = {
            "conv1_w": jax.random.uniform(k1, (K, K), jnp.float32, -bound, bound),
            "conv1_b": jax.random.uniform(k2, (1,), jnp.float32, -bound, bound),
            "conv2_w": jax.random.uniform(k3, (K, K), jnp.float32, -bound, bound),
            "conv2_b": jax.random.uniform(k4, (1,), jnp.float32, -bound, bound),
            # conv3 exists in the PyTorch module but is never used in forward().
            # TODO(synk): PyTorch hard-codes W,B as (150,300); sized (H,U) here so the
            # elementwise product in part3 is well-defined at the small test shape.
            "W": jnp.ones((H, U), jnp.float32),
            "B": jnp.zeros((H, U), jnp.float32),
        }
        params["cells"].append(cell)
    return params


@functools.partial(jax.jit, static_argnums=(2, 3))
def unfolded_net_forward(params, x0, coef_mu_inverse, kernel_sizes):
    x0 = x0.astype(jnp.float32)                  # data[0]
    H, U = x0.shape
    assert H <= U, "svtC path (reduced SVD) assumes H <= U, as in the original use"
    nlayers = len(kernel_sizes)

    # Layer-invariant quantities, computed once (hoisted per perf review).
    # NOTE: mask = (x0 != 0) treats exact-zero observations as missing, matching the
    # PyTorch module's entries_mask convention.
    mask_bool = x0 != 0
    mask = mask_bool.astype(jnp.float32)
    mx = mask * x0                               # torch.where(entries_mask, x, 0)
    y1 = params["y1"]
    ths = jax.nn.sigmoid(params["mu_inverse"]) * coef_mu_inverse   # (layers,)

    cells = params["cells"]

    # layer 0: Ltmp only (its L input is zeros)
    K0 = kernel_sizes[0][0]
    c0 = cells[0]
    Ltmp = ltmp_first_call(mx, mask, y1, c0["W"], c0["B"],
                           c0["conv1_w"].reshape(-1), c0["conv1_b"], c0["conv2_b"],
                           ths[0:1], H, U, K0)

    # layers 1..N-1: SVD on Ltmp, then fused [SVT_{i-1} + y1 update + Ltmp_i]
    for i in range(1, nlayers):
        # TODO(synk): torch.svd factorization has no Pallas equivalent (done via XLA);
        # thresholding + reconstruction + dual update happen inside the fused kernel.
        Um, S, Vh = jnp.linalg.svd(Ltmp, full_matrices=False)   # (H,H), (H,), (H,U)
        ci = cells[i]
        Ki = kernel_sizes[i][0]
        Ltmp, y1 = fused_svt_ltmp_call(
            Um, S.reshape(1, H), Vh, mx, mask, y1, ci["W"], ci["B"],
            ci["conv1_w"].reshape(-1), ci["conv1_b"],
            ci["conv2_w"].reshape(-1), ci["conv2_b"],
            ths[i - 1:i], ths[i:i + 1], H, U, Ki)

    # last layer: SVD, then final SVT + y1 update
    Um, S, Vh = jnp.linalg.svd(Ltmp, full_matrices=False)
    L, y1 = svt_final_call(Um, S.reshape(1, H), Vh, mx, mask, y1,
                           ths[nlayers - 1:nlayers], H, U)

    data = jnp.stack([x0, L], axis=0)
    return [data, mask_bool, y1]


if __name__ == "__main__":
    # Small demo shape: U=128 keeps the lane dimension dense (full 128-lane vregs,
    # unmasked stores); H=16 keeps sublane slicing tile-aligned; H <= U as required
    # by the reduced-SVD svtC path.  (The production (150,300) shape would be padded
    # to lane multiples of 128; a batch of matrices would get a leading 'parallel'
    # grid axis to use both TensorCores on v7x -- not applicable to this unbatched
    # module at test size.)
    H, U = 16, 128
    layers = 3
    kernels = ((3, 3),) * layers
    coef_mu_inverse = 0.35
    initial_mu_inverse = 2.0
    initial_y1 = 0.1

    key = jax.random.PRNGKey(0)
    key, kx, km, kp = jax.random.split(key, 4)
    full = jax.random.normal(kx, (H, U), jnp.float32)
    obs_mask = jax.random.bernoulli(km, 0.5, (H, U))
    x0 = jnp.where(obs_mask, full, 0.0)          # zeros mark missing entries

    params = init_params(kp, layers, kernels, H, U, initial_mu_inverse, initial_y1)

    data, entries_mask, y1_out = unfolded_net_forward(params, x0, coef_mu_inverse, kernels)
    jax.block_until_ready(data)
    jax.block_until_ready(y1_out)
    assert data.shape == (2, H, U) and y1_out.shape == (H, U)
    assert entries_mask.dtype == jnp.bool_
    print("KERNEL_OK")
</pallas_src>

<mosaic_0001>
module attributes {stable_mosaic.version = 11 : i64} {
  func.func @kernel(%arg0: i32, %arg1: memref<16x128xf32, #tpu.memory_space<vmem>>, %arg2: memref<16x128xf32, #tpu.memory_space<vmem>>, %arg3: memref<16x128xf32, #tpu.memory_space<vmem>>, %arg4: memref<16x128xf32, #tpu.memory_space<vmem>>, %arg5: memref<16x128xf32, #tpu.memory_space<vmem>>, %arg6: memref<9xf32, #tpu.memory_space<smem>>, %arg7: memref<1xf32, #tpu.memory_space<smem>>, %arg8: memref<1xf32, #tpu.memory_space<smem>>, %arg9: memref<1xf32, #tpu.memory_space<smem>>, %arg10: memref<16x128xf32, #tpu.memory_space<vmem>>) attributes {dimension_semantics = [#tpu.dimension_semantics<arbitrary>], iteration_bounds = array<i64: 1>, scalar_prefetch = 0 : i64, scratch_operands = 0 : i64, tpu.core_type = #tpu.core_type<tc>, window_params = [{pipeline_mode = #tpu.pipeline_mode<synchronous>, transform_indices = @transform_0, window_bounds = array<i64: 16, 128>}, {pipeline_mode = #tpu.pipeline_mode<synchronous>, transform_indices = @transform_1, window_bounds = array<i64: 16, 128>}, {pipeline_mode = #tpu.pipeline_mode<synchronous>, transform_indices = @transform_2, window_bounds = array<i64: 16, 128>}, {pipeline_mode = #tpu.pipeline_mode<synchronous>, transform_indices = @transform_3, window_bounds = array<i64: 16, 128>}, {pipeline_mode = #tpu.pipeline_mode<synchronous>, transform_indices = @transform_4, window_bounds = array<i64: 16, 128>}, {transform_indices = @transform_5, window_bounds = array<i64: 9>}, {transform_indices = @transform_6, window_bounds = array<i64: 1>}, {transform_indices = @transform_7, window_bounds = array<i64: 1>}, {transform_indices = @transform_8, window_bounds = array<i64: 1>}, {pipeline_mode = #tpu.pipeline_mode<synchronous>, transform_indices = @transform_9, window_bounds = array<i64: 16, 128>}]} {
    %c0 = arith.constant 0 : index
    %0 = memref.load %arg9[%c0] : memref<1xf32, #tpu.memory_space<smem>>
    %c0_0 = arith.constant 0 : index
    %c0_1 = arith.constant 0 : index
    %1 = vector.load %arg1[%c0_0, %c0_1] : memref<16x128xf32, #tpu.memory_space<vmem>>, vector<16x128xf32>
    %2 = tpu.iota {dimensions = array<i32: 0>} : vector<16x1xi32>
    %c16_i32 = arith.constant 16 : i32
    %c0_i32 = arith.constant 0 : i32
    %3 = arith.cmpi eq, %c16_i32, %c0_i32 : i32
    %c1_i32 = arith.constant 1 : i32
    %4 = arith.select %3, %c1_i32, %c16_i32 : i32
    %5 = vector.broadcast %4 : i32 to vector<16x1xi32>
    %6 = arith.remsi %2, %5 : vector<16x1xi32>
    %c0_i32_2 = arith.constant 0 : i32
    %7 = vector.broadcast %c0_i32_2 : i32 to vector<16x1xi32>
    %8 = arith.cmpi ne, %6, %7 : vector<16x1xi32>
    %c0_i32_3 = arith.constant 0 : i32
    %9 = vector.broadcast %c0_i32_3 : i32 to vector<16x1xi32>
    %10 = arith.cmpi slt, %6, %9 : vector<16x1xi32>
    %c0_i32_4 = arith.constant 0 : i32
    %11 = arith.cmpi slt, %4, %c0_i32_4 : i32
    %12 = vector.broadcast %11 : i1 to vector<16x1xi1>
    %13 = vector.broadcast %12 : vector<16x1xi1> to vector<16x1xi1>
    %14 = arith.xori %10, %13 : vector<16x1xi1>
    %15 = arith.andi %14, %8 : vector<16x1xi1>
    %16 = vector.broadcast %4 : i32 to vector<16x1xi32>
    %17 = arith.addi %6, %16 : vector<16x1xi32>
    %18 = arith.select %15, %17, %6 : vector<16x1xi1>, vector<16x1xi32>
    %19 = tpu.iota {dimensions = array<i32: 1>} : vector<1x128xi32>
    %cst = arith.constant 0.000000e+00 : f32
    %20 = vector.broadcast %cst : f32 to vector<16x128xf32>
    %c1_i32_5 = arith.constant 1 : i32
    %21 = tpu.dynamic_rotate %1 by %c1_i32_5 dim 0 : vector<16x128xf32>, i32 -> vector<16x128xf32>
    %c-1_i32 = arith.constant -1 : i32
    %22 = vector.broadcast %c-1_i32 : i32 to vector<16x1xi32>
    %23 = arith.addi %18, %22 : vector<16x1xi32>
    %c0_i32_6 = arith.constant 0 : i32
    %24 = vector.broadcast %c0_i32_6 : i32 to vector<16x1xi32>
    %25 = arith.cmpi sge, %23, %24 : vector<16x1xi32>
    %c-1_i32_7 = arith.constant -1 : i32
    %26 = vector.broadcast %c-1_i32_7 : i32 to vector<16x1xi32>
    %27 = arith.addi %18, %26 : vector<16x1xi32>
    %c16_i32_8 = arith.constant 16 : i32
    %28 = vector.broadcast %c16_i32_8 : i32 to vector<16x1xi32>
    %29 = arith.cmpi slt, %27, %28 : vector<16x1xi32>
    %30 = arith.andi %25, %29 : vector<16x1xi1>
    %cst_9 = arith.constant 0.000000e+00 : f32
    %31 = vector.shape_cast %30 : vector<16x1xi1> to vector<16x1xi1>
    %32 = vector.broadcast %31 : vector<16x1xi1> to vector<16x128xi1>
    %33 = vector.broadcast %cst_9 : f32 to vector<16x128xf32>
    %34 = arith.select %32, %21, %33 : vector<16x128xi1>, vector<16x128xf32>
    %c1_i32_10 = arith.constant 1 : i32
    %35 = tpu.dynamic_rotate %34 by %c1_i32_10 dim 1 : vector<16x128xf32>, i32 -> vector<16x128xf32>
    %c-1_i32_11 = arith.constant -1 : i32
    %36 = vector.broadcast %c-1_i32_11 : i32 to vector<1x128xi32>
    %37 = arith.addi %19, %36 : vector<1x128xi32>
    %c0_i32_12 = arith.constant 0 : i32
    %38 = vector.broadcast %c0_i32_12 : i32 to vector<1x128xi32>
    %39 = arith.cmpi sge, %37, %38 : vector<1x128xi32>
    %c-1_i32_13 = arith.constant -1 : i32
    %40 = vector.broadcast %c-1_i32_13 : i32 to vector<1x128xi32>
    %41 = arith.addi %19, %40 : vector<1x128xi32>
    %c128_i32 = arith.constant 128 : i32
    %42 = vector.broadcast %c128_i32 : i32 to vector<1x128xi32>
    %43 = arith.cmpi slt, %41, %42 : vector<1x128xi32>
    %44 = arith.andi %39, %43 : vector<1x128xi1>
    %cst_14 = arith.constant 0.000000e+00 : f32
    %45 = vector.shape_cast %44 : vector<1x128xi1> to vector<1x128xi1>
    %46 = vector.broadcast %45 : vector<1x128xi1> to vector<16x128xi1>
    %47 = vector.broadcast %cst_14 : f32 to vector<16x128xf32>
    %48 = arith.select %46, %35, %47 : vector<16x128xi1>, vector<16x128xf32>
    %c0_15 = arith.constant 0 : index
    %49 = memref.load %arg6[%c0_15] : memref<9xf32, #tpu.memory_space<smem>>
    %50 = vector.broadcast %49 : f32 to vector<16x128xf32>
    %51 = arith.mulf %50, %48 : vector<16x128xf32>
    %52 = arith.addf %20, %51 : vector<16x128xf32>
    %c1 = arith.constant 1 : index
    %53 = memref.load %arg6[%c1] : memref<9xf32, #tpu.memory_space<smem>>
    %54 = vector.broadcast %53 : f32 to vector<16x128xf32>
    %55 = arith.mulf %54, %34 : vector<16x128xf32>
    %56 = arith.addf %52, %55 : vector<16x128xf32>
    %c127_i32 = arith.constant 127 : i32
    %57 = tpu.dynamic_rotate %34 by %c127_i32 dim 1 : vector<16x128xf32>, i32 -> vector<16x128xf32>
    %c1_i32_16 = arith.constant 1 : i32
    %58 = vector.broadcast %c1_i32_16 : i32 to vector<1x128xi32>
    %59 = arith.addi %19, %58 : vector<1x128xi32>
    %c0_i32_17 = arith.constant 0 : i32
    %60 = vector.broadcast %c0_i32_17 : i32 to vector<1x128xi32>
    %61 = arith.cmpi sge, %59, %60 : vector<1x128xi32>
    %c1_i32_18 = arith.constant 1 : i32
    %62 = vector.broadcast %c1_i32_18 : i32 to vector<1x128xi32>
    %63 = arith.addi %19, %62 : vector<1x128xi32>
    %c128_i32_19 = arith.constant 128 : i32
    %64 = vector.broadcast %c128_i32_19 : i32 to vector<1x128xi32>
    %65 = arith.cmpi slt, %63, %64 : vector<1x128xi32>
    %66 = arith.andi %61, %65 : vector<1x128xi1>
    %cst_20 = arith.constant 0.000000e+00 : f32
    %67 = vector.shape_cast %66 : vector<1x128xi1> to vector<1x128xi1>
    %68 = vector.broadcast %67 : vector<1x128xi1> to vector<16x128xi1>
    %69 = vector.broadcast %cst_20 : f32 to vector<16x128xf32>
    %70 = arith.select %68, %57, %69 : vector<16x128xi1>, vector<16x128xf32>
    %c2 = arith.constant 2 : index
    %71 = memref.load %arg6[%c2] : memref<9xf32, #tpu.memory_space<smem>>
    %72 = vector.broadcast %71 : f32 to vector<16x128xf32>
    %73 = arith.mulf %72, %70 : vector<16x128xf32>
    %74 = arith.addf %56, %73 : vector<16x128xf32>
    %c1_i32_21 = arith.constant 1 : i32
    %75 = tpu.dynamic_rotate %1 by %c1_i32_21 dim 1 : vector<16x128xf32>, i32 -> vector<16x128xf32>
    %c-1_i32_22 = arith.constant -1 : i32
    %76 = vector.broadcast %c-1_i32_22 : i32 to vector<1x128xi32>
    %77 = arith.addi %19, %76 : vector<1x128xi32>
    %c0_i32_23 = arith.constant 0 : i32
    %78 = vector.broadcast %c0_i32_23 : i32 to vector<1x128xi32>
    %79 = arith.cmpi sge, %77, %78 : vector<1x128xi32>
    %c-1_i32_24 = arith.constant -1 : i32
    %80 = vector.broadcast %c-1_i32_24 : i32 to vector<1x128xi32>
    %81 = arith.addi %19, %80 : vector<1x128xi32>
    %c128_i32_25 = arith.constant 128 : i32
    %82 = vector.broadcast %c128_i32_25 : i32 to vector<1x128xi32>
    %83 = arith.cmpi slt, %81, %82 : vector<1x128xi32>
    %84 = arith.andi %79, %83 : vector<1x128xi1>
    %cst_26 = arith.constant 0.000000e+00 : f32
    %85 = vector.shape_cast %84 : vector<1x128xi1> to vector<1x128xi1>
    %86 = vector.broadcast %85 : vector<1x128xi1> to vector<16x128xi1>
    %87 = vector.broadcast %cst_26 : f32 to vector<16x128xf32>
    %88 = arith.select %86, %75, %87 : vector<16x128xi1>, vector<16x128xf32>
    %c3 = arith.constant 3 : index
    %89 = memref.load %arg6[%c3] : memref<9xf32, #tpu.memory_space<smem>>
    %90 = vector.broadcast %89 : f32 to vector<16x128xf32>
    %91 = arith.mulf %90, %88 : vector<16x128xf32>
    %92 = arith.addf %74, %91 : vector<16x128xf32>
    %c4 = arith.constant 4 : index
    %93 = memref.load %arg6[%c4] : memref<9xf32, #tpu.memory_space<smem>>
    %94 = vector.broadcast %93 : f32 to vector<16x128xf32>
    %95 = arith.mulf %94, %1 : vector<16x128xf32>
    %96 = arith.addf %92, %95 : vector<16x128xf32>
    %c127_i32_27 = arith.constant 127 : i32
    %97 = tpu.dynamic_rotate %1 by %c127_i32_27 dim 1 : vector<16x128xf32>, i32 -> vector<16x128xf32>
    %c1_i32_28 = arith.constant 1 : i32
    %98 = vector.broadcast %c1_i32_28 : i32 to vector<1x128xi32>
    %99 = arith.addi %19, %98 : vector<1x128xi32>
    %c0_i32_29 = arith.constant 0 : i32
    %100 = vector.broadcast %c0_i32_29 : i32 to vector<1x128xi32>
    %101 = arith.cmpi sge, %99, %100 : vector<1x128xi32>
    %c1_i32_30 = arith.constant 1 : i32
    %102 = vector.broadcast %c1_i32_30 : i32 to vector<1x128xi32>
    %103 = arith.addi %19, %102 : vector<1x128xi32>
    %c128_i32_31 = arith.constant 128 : i32
    %104 = vector.broadcast %c128_i32_31 : i32 to vector<1x128xi32>
    %105 = arith.cmpi slt, %103, %104 : vector<1x128xi32>
    %106 = arith.andi %101, %105 : vector<1x128xi1>
    %cst_32 = arith.constant 0.000000e+00 : f32
    %107 = vector.shape_cast %106 : vector<1x128xi1> to vector<1x128xi1>
    %108 = vector.broadcast %107 : vector<1x128xi1> to vector<16x128xi1>
    %109 = vector.broadcast %cst_32 : f32 to vector<16x128xf32>
    %110 = arith.select %108, %97, %109 : vector<16x128xi1>, vector<16x128xf32>
    %c5 = arith.constant 5 : index
    %111 = memref.load %arg6[%c5] : memref<9xf32, #tpu.memory_space<smem>>
    %112 = vector.broadcast %111 : f32 to vector<16x128xf32>
    %113 = arith.mulf %112, %110 : vector<16x128xf32>
    %114 = arith.addf %96, %113 : vector<16x128xf32>
    %c15_i32 = arith.constant 15 : i32
    %115 = tpu.dynamic_rotate %1 by %c15_i32 dim 0 : vector<16x128xf32>, i32 -> vector<16x128xf32>
    %c1_i32_33 = arith.constant 1 : i32
    %116 = vector.broadcast %c1_i32_33 : i32 to vector<16x1xi32>
    %117 = arith.addi %18, %116 : vector<16x1xi32>
    %c0_i32_34 = arith.constant 0 : i32
    %118 = vector.broadcast %c0_i32_34 : i32 to vector<16x1xi32>
    %119 = arith.cmpi sge, %117, %118 : vector<16x1xi32>
    %c1_i32_35 = arith.constant 1 : i32
    %120 = vector.broadcast %c1_i32_35 : i32 to vector<16x1xi32>
    %121 = arith.addi %18, %120 : vector<16x1xi32>
    %c16_i32_36 = arith.constant 16 : i32
    %122 = vector.broadcast %c16_i32_36 : i32 to vector<16x1xi32>
    %123 = arith.cmpi slt, %121, %122 : vector<16x1xi32>
    %124 = arith.andi %119, %123 : vector<16x1xi1>
    %cst_37 = arith.constant 0.000000e+00 : f32
    %125 = vector.shape_cast %124 : vector<16x1xi1> to vector<16x1xi1>
    %126 = vector.broadcast %125 : vector<16x1xi1> to vector<16x128xi1>
    %127 = vector.broadcast %cst_37 : f32 to vector<16x128xf32>
    %128 = arith.select %126, %115, %127 : vector<16x128xi1>, vector<16x128xf32>
    %c1_i32_38 = arith.constant 1 : i32
    %129 = tpu.dynamic_rotate %128 by %c1_i32_38 dim 1 : vector<16x128xf32>, i32 -> vector<16x128xf32>
    %c-1_i32_39 = arith.constant -1 : i32
    %130 = vector.broadcast %c-1_i32_39 : i32 to vector<1x128xi32>
    %131 = arith.addi %19, %130 : vector<1x128xi32>
    %c0_i32_40 = arith.constant 0 : i32
    %132 = vector.broadcast %c0_i32_40 : i32 to vector<1x128xi32>
    %133 = arith.cmpi sge, %131, %132 : vector<1x128xi32>
    %c-1_i32_41 = arith.constant -1 : i32
    %134 = vector.broadcast %c-1_i32_41 : i32 to vector<1x128xi32>
    %135 = arith.addi %19, %134 : vector<1x128xi32>
    %c128_i32_42 = arith.constant 128 : i32
    %136 = vector.broadcast %c128_i32_42 : i32 to vector<1x128xi32>
    %137 = arith.cmpi slt, %135, %136 : vector<1x128xi32>
    %138 = arith.andi %133, %137 : vector<1x128xi1>
    %cst_43 = arith.constant 0.000000e+00 : f32
    %139 = vector.shape_cast %138 : vector<1x128xi1> to vector<1x128xi1>
    %140 = vector.broadcast %139 : vector<1x128xi1> to vector<16x128xi1>
    %141 = vector.broadcast %cst_43 : f32 to vector<16x128xf32>
    %142 = arith.select %140, %129, %141 : vector<16x128xi1>, vector<16x128xf32>
    %c6 = arith.constant 6 : index
    %143 = memref.load %arg6[%c6] : memref<9xf32, #tpu.memory_space<smem>>
    %144 = vector.broadcast %143 : f32 to vector<16x128xf32>
    %145 = arith.mulf %144, %142 : vector<16x128xf32>
    %146 = arith.addf %114, %145 : vector<16x128xf32>
    %c7 = arith.constant 7 : index
    %147 = memref.load %arg6[%c7] : memref<9xf32, #tpu.memory_space<smem>>
    %148 = vector.broadcast %147 : f32 to vector<16x128xf32>
    %149 = arith.mulf %148, %128 : vector<16x128xf32>
    %150 = arith.addf %146, %149 : vector<16x128xf32>
    %c127_i32_44 = arith.constant 127 : i32
    %151 = tpu.dynamic_rotate %128 by %c127_i32_44 dim 1 : vector<16x128xf32>, i32 -> vector<16x128xf32>
    %c1_i32_45 = arith.constant 1 : i32
    %152 = vector.broadcast %c1_i32_45 : i32 to vector<1x128xi32>
    %153 = arith.addi %19, %152 : vector<1x128xi32>
    %c0_i32_46 = arith.constant 0 : i32
    %154 = vector.broadcast %c0_i32_46 : i32 to vector<1x128xi32>
    %155 = arith.cmpi sge, %153, %154 : vector<1x128xi32>
    %c1_i32_47 = arith.constant 1 : i32
    %156 = vector.broadcast %c1_i32_47 : i32 to vector<1x128xi32>
    %157 = arith.addi %19, %156 : vector<1x128xi32>
    %c128_i32_48 = arith.constant 128 : i32
    %158 = vector.broadcast %c128_i32_48 : i32 to vector<1x128xi32>
    %159 = arith.cmpi slt, %157, %158 : vector<1x128xi32>
    %160 = arith.andi %155, %159 : vector<1x128xi1>
    %cst_49 = arith.constant 0.000000e+00 : f32
    %161 = vector.shape_cast %160 : vector<1x128xi1> to vector<1x128xi1>
    %162 = vector.broadcast %161 : vector<1x128xi1> to vector<16x128xi1>
    %163 = vector.broadcast %cst_49 : f32 to vector<16x128xf32>
    %164 = arith.select %162, %151, %163 : vector<16x128xi1>, vector<16x128xf32>
    %c8 = arith.constant 8 : index
    %165 = memref.load %arg6[%c8] : memref<9xf32, #tpu.memory_space<smem>>
    %166 = vector.broadcast %165 : f32 to vector<16x128xf32>
    %167 = arith.mulf %166, %164 : vector<16x128xf32>
    %168 = arith.addf %150, %167 : vector<16x128xf32>
    %c0_50 = arith.constant 0 : index
    %c0_51 = arith.constant 0 : index
    %169 = vector.load %arg2[%c0_50, %c0_51] : memref<16x128xf32, #tpu.memory_space<vmem>>, vector<16x128xf32>
    %c0_52 = arith.constant 0 : index
    %c0_53 = arith.constant 0 : index
    %170 = vector.load %arg3[%c0_52, %c0_53] : memref<16x128xf32, #tpu.memory_space<vmem>>, vector<16x128xf32>
    %171 = arith.mulf %169, %170 : vector<16x128xf32>
    %c0_54 = arith.constant 0 : index
    %c0_55 = arith.constant 0 : index
    %172 = vector.load %arg4[%c0_54, %c0_55] : memref<16x128xf32, #tpu.memory_space<vmem>>, vector<16x128xf32>
    %173 = vector.broadcast %0 : f32 to vector<16x128xf32>
    %174 = arith.mulf %172, %173 : vector<16x128xf32>
    %175 = arith.mulf %171, %174 : vector<16x128xf32>
    %c0_56 = arith.constant 0 : index
    %c0_57 = arith.constant 0 : index
    %176 = vector.load %arg5[%c0_56, %c0_57] : memref<16x128xf32, #tpu.memory_space<vmem>>, vector<16x128xf32>
    %177 = arith.addf %175, %176 : vector<16x128xf32>
    %c0_58 = arith.constant 0 : index
    %178 = memref.load %arg7[%c0_58] : memref<1xf32, #tpu.memory_space<smem>>
    %179 = vector.broadcast %178 : f32 to vector<16x128xf32>
    %180 = arith.addf %168, %179 : vector<16x128xf32>
    %c0_59 = arith.constant 0 : index
    %181 = memref.load %arg8[%c0_59] : memref<1xf32, #tpu.memory_space<smem>>
    %182 = vector.broadcast %181 : f32 to vector<16x128xf32>
    %183 = arith.addf %180, %182 : vector<16x128xf32>
    %184 = arith.addf %183, %177 : vector<16x128xf32>
    %c0_60 = arith.constant 0 : index
    %c0_61 = arith.constant 0 : index
    %185 = vector.load %arg10[%c0_60, %c0_61] : memref<16x128xf32, #tpu.memory_space<vmem>>, vector<16x128xf32>
    tpu.vector_store %arg10[%c0_60, %c0_61], %184 {strides = array<i32>} : memref<16x128xf32, #tpu.memory_space<vmem>>, vector<16x128xf32>,
    return
  }
  func.func @transform_0(%arg0: i32) -> (i32, i32) {
    %c0_i32 = arith.constant 0 : i32
    %c0_i32_0 = arith.constant 0 : i32
    %c0_i32_1 = arith.constant 0 : i32
    return %c0_i32, %c0_i32_0 : i32, i32
  }
  func.func @transform_1(%arg0: i32) -> (i32, i32) {
    %c0_i32 = arith.constant 0 : i32
    %c0_i32_0 = arith.constant 0 : i32
    %c0_i32_1 = arith.constant 0 : i32
    return %c0_i32, %c0_i32_0 : i32, i32
  }
  func.func @transform_2(%arg0: i32) -> (i32, i32) {
    %c0_i32 = arith.constant 0 : i32
    %c0_i32_0 = arith.constant 0 : i32
    %c0_i32_1 = arith.constant 0 : i32
    return %c0_i32, %c0_i32_0 : i32, i32
  }
  func.func @transform_3(%arg0: i32) -> (i32, i32) {
    %c0_i32 = arith.constant 0 : i32
    %c0_i32_0 = arith.constant 0 : i32
    %c0_i32_1 = arith.constant 0 : i32
    return %c0_i32, %c0_i32_0 : i32, i32
  }
  func.func @transform_4(%arg0: i32) -> (i32, i32) {
    %c0_i32 = arith.constant 0 : i32
    %c0_i32_0 = arith.constant 0 : i32
    %c0_i32_1 = arith.constant 0 : i32
    return %c0_i32, %c0_i32_0 : i32, i32
  }
  func.func @transform_5(%arg0: i32) -> i32 {
    %c0_i32 = arith.constant 0 : i32
    %c0_i32_0 = arith.constant 0 : i32
    return %c0_i32 : i32
  }
  func.func @transform_6(%arg0: i32) -> i32 {
    %c0_i32 = arith.constant 0 : i32
    %c0_i32_0 = arith.constant 0 : i32
    return %c0_i32 : i32
  }
  func.func @transform_7(%arg0: i32) -> i32 {
    %c0_i32 = arith.constant 0 : i32
    %c0_i32_0 = arith.constant 0 : i32
    return %c0_i32 : i32
  }
  func.func @transform_8(%arg0: i32) -> i32 {
    %c0_i32 = arith.constant 0 : i32
    %c0_i32_0 = arith.constant 0 : i32
    return %c0_i32 : i32
  }
  func.func @transform_9(%arg0: i32) -> (i32, i32) {
    %c0_i32 = arith.constant 0 : i32
    %c0_i32_0 = arith.constant 0 : i32
    %c0_i32_1 = arith.constant 0 : i32
    return %c0_i32, %c0_i32_0 : i32, i32
  }
}

module attributes {stable_mosaic.version = 11 : i64} {
  func.func @kernel(%arg0: i32, %arg1: memref<16x16xf32, #tpu.memory_space<vmem>>, %arg2: memref<1x16xf32, #tpu.memory_space<vmem>>, %arg3: memref<16x128xf32, #tpu.memory_space<vmem>>, %arg4: memref<16x128xf32, #tpu.memory_space<vmem>>, %arg5: memref<16x128xf32, #tpu.memory_space<vmem>>, %arg6: memref<16x128xf32, #tpu.memory_space<vmem>>, %arg7: memref<1xf32, #tpu.memory_space<smem>>, %arg8: memref<16x128xf32, #tpu.memory_space<vmem>>, %arg9: memref<16x128xf32, #tpu.memory_space<vmem>>) attributes {dimension_semantics = [#tpu.dimension_semantics<arbitrary>], iteration_bounds = array<i64: 1>, scalar_prefetch = 0 : i64, scratch_operands = 0 : i64, tpu.core_type = #tpu.core_type<tc>, window_params = [{pipeline_mode = #tpu.pipeline_mode<synchronous>, transform_indices = @transform_0, window_bounds = array<i64: 16, 16>}, {pipeline_mode = #tpu.pipeline_mode<synchronous>, transform_indices = @transform_1, window_bounds = array<i64: 1, 16>}, {pipeline_mode = #tpu.pipeline_mode<synchronous>, transform_indices = @transform_2, window_bounds = array<i64: 16, 128>}, {pipeline_mode = #tpu.pipeline_mode<synchronous>, transform_indices = @transform_3, window_bounds = array<i64: 16, 128>}, {pipeline_mode = #tpu.pipeline_mode<synchronous>, transform_indices = @transform_4, window_bounds = array<i64: 16, 128>}, {pipeline_mode = #tpu.pipeline_mode<synchronous>, transform_indices = @transform_5, window_bounds = array<i64: 16, 128>}, {transform_indices = @transform_6, window_bounds = array<i64: 1>}, {pipeline_mode = #tpu.pipeline_mode<synchronous>, transform_indices = @transform_7, window_bounds = array<i64: 16, 128>}, {pipeline_mode = #tpu.pipeline_mode<synchronous>, transform_indices = @transform_8, window_bounds = array<i64: 16, 128>}]} {
    %c0 = arith.constant 0 : index
    %0 = memref.load %arg7[%c0] : memref<1xf32, #tpu.memory_space<smem>>
    %c0_0 = arith.constant 0 : index
    %c0_1 = arith.constant 0 : index
    %1 = vector.load %arg2[%c0_0, %c0_1] : memref<1x16xf32, #tpu.memory_space<vmem>>, vector<1x16xf32>
    %cst = arith.constant dense<0xFF800000> : vector<1xf32>
    %2 = vector.multi_reduction <maximumf>, %1, %cst [1] : vector<1x16xf32> to vector<1xf32>
    %3 = vector.shape_cast %2 : vector<1xf32> to vector<1x1xf32>
    %4 = vector.broadcast %0 : f32 to vector<1x1xf32>
    %5 = arith.mulf %4, %3 : vector<1x1xf32>
    %6 = vector.broadcast %5 : vector<1x1xf32> to vector<1x16xf32>
    %7 = arith.subf %1, %6 : vector<1x16xf32>
    %cst_2 = arith.constant 0.000000e+00 : f32
    %8 = vector.broadcast %cst_2 : f32 to vector<1x16xf32>
    %9 = arith.maximumf %7, %8 : vector<1x16xf32>
    %c0_3 = arith.constant 0 : index
    %c0_4 = arith.constant 0 : index
    %10 = vector.load %arg1[%c0_3, %c0_4] : memref<16x16xf32, #tpu.memory_space<vmem>>, vector<16x16xf32>
    %11 = vector.broadcast %9 : vector<1x16xf32> to vector<16x16xf32>
    %12 = arith.mulf %10, %11 : vector<16x16xf32>
    %c0_5 = arith.constant 0 : index
    %c0_6 = arith.constant 0 : index
    %13 = vector.load %arg3[%c0_5, %c0_6] : memref<16x128xf32, #tpu.memory_space<vmem>>, vector<16x128xf32>
    %cst_7 = arith.constant dense<0.000000e+00> : vector<16x128xf32>
    %14 = tpu.matmul %12, %13, %cst_7 {dimension_numbers = #tpu.dot_dimension_numbers<[1], [0], [0], [1], [0, 0, 1, 1], [], []>} : vector<16x16xf32>, vector<16x128xf32>, vector<16x128xf32> -> vector<16x128xf32>
    %c0_8 = arith.constant 0 : index
    %c0_9 = arith.constant 0 : index
    %15 = vector.load %arg8[%c0_8, %c0_9] : memref<16x128xf32, #tpu.memory_space<vmem>>, vector<16x128xf32>
    tpu.vector_store %arg8[%c0_8, %c0_9], %14 {strides = array<i32>} : memref<16x128xf32, #tpu.memory_space<vmem>>, vector<16x128xf32>,
    %c0_10 = arith.constant 0 : index
    %c0_11 = arith.constant 0 : index
    %16 = vector.load %arg6[%c0_10, %c0_11] : memref<16x128xf32, #tpu.memory_space<vmem>>, vector<16x128xf32>
    %cst_12 = arith.constant 1.000000e+00 : f32
    %17 = arith.divf %cst_12, %0 : f32
    %c0_13 = arith.constant 0 : index
    %c0_14 = arith.constant 0 : index
    %18 = vector.load %arg4[%c0_13, %c0_14] : memref<16x128xf32, #tpu.memory_space<vmem>>, vector<16x128xf32>
    %c0_15 = arith.constant 0 : index
    %c0_16 = arith.constant 0 : index
    %19 = vector.load %arg5[%c0_15, %c0_16] : memref<16x128xf32, #tpu.memory_space<vmem>>, vector<16x128xf32>
    %20 = arith.mulf %19, %14 : vector<16x128xf32>
    %21 = arith.subf %18, %20 : vector<16x128xf32>
    %22 = vector.broadcast %17 : f32 to vector<16x128xf32>
    %23 = arith.mulf %22, %21 : vector<16x128xf32>
    %24 = arith.addf %16, %23 : vector<16x128xf32>
    %c0_17 = arith.constant 0 : index
    %c0_18 = arith.constant 0 : index
    %25 = vector.load %arg9[%c0_17, %c0_18] : memref<16x128xf32, #tpu.memory_space<vmem>>, vector<16x128xf32>
    tpu.vector_store %arg9[%c0_17, %c0_18], %24 {strides = array<i32>} : memref<16x128xf32, #tpu.memory_space<vmem>>, vector<16x128xf32>,
    return
  }
  func.func @transform_0(%arg0: i32) -> (i32, i32) {
    %c0_i32 = arith.constant 0 : i32
    %c0_i32_0 = arith.constant 0 : i32
    %c0_i32_1 = arith.constant 0 : i32
    return %c0_i32, %c0_i32_0 : i32, i32
  }
  func.func @transform_1(%arg0: i32) -> (i32, i32) {
    %c0_i32 = arith.constant 0 : i32
    %c0_i32_0 = arith.constant 0 : i32
    %c0_i32_1 = arith.constant 0 : i32
    return %c0_i32, %c0_i32_0 : i32, i32
  }
  func.func @transform_2(%arg0: i32) -> (i32, i32) {
    %c0_i32 = arith.constant 0 : i32
    %c0_i32_0 = arith.constant 0 : i32
    %c0_i32_1 = arith.constant 0 : i32
    return %c0_i32, %c0_i32_0 : i32, i32
  }
  func.func @transform_3(%arg0: i32) -> (i32, i32) {
    %c0_i32 = arith.constant 0 : i32
    %c0_i32_0 = arith.constant 0 : i32
    %c0_i32_1 = arith.constant 0 : i32
    return %c0_i32, %c0_i32_0 : i32, i32
  }
  func.func @transform_4(%arg0: i32) -> (i32, i32) {
    %c0_i32 = arith.constant 0 : i32
    %c0_i32_0 = arith.constant 0 : i32
    %c0_i32_1 = arith.constant 0 : i32
    return %c0_i32, %c0_i32_0 : i32, i32
  }
  func.func @transform_5(%arg0: i32) -> (i32, i32) {
    %c0_i32 = arith.constant 0 : i32
    %c0_i32_0 = arith.constant 0 : i32
    %c0_i32_1 = arith.constant 0 : i32
    return %c0_i32, %c0_i32_0 : i32, i32
  }
  func.func @transform_6(%arg0: i32) -> i32 {
    %c0_i32 = arith.constant 0 : i32
    %c0_i32_0 = arith.constant 0 : i32
    return %c0_i32 : i32
  }
  func.func @transform_7(%arg0: i32) -> (i32, i32) {
    %c0_i32 = arith.constant 0 : i32
    %c0_i32_0 = arith.constant 0 : i32
    %c0_i32_1 = arith.constant 0 : i32
    return %c0_i32, %c0_i32_0 : i32, i32
  }
  func.func @transform_8(%arg0: i32) -> (i32, i32) {
    %c0_i32 = arith.constant 0 : i32
    %c0_i32_0 = arith.constant 0 : i32
    %c0_i32_1 = arith.constant 0 : i32
    return %c0_i32, %c0_i32_0 : i32, i32
  }
}

module attributes {stable_mosaic.version = 11 : i64} {
  func.func @kernel(%arg0: i32, %arg1: memref<16x16xf32, #tpu.memory_space<vmem>>, %arg2: memref<1x16xf32, #tpu.memory_space<vmem>>, %arg3: memref<16x128xf32, #tpu.memory_space<vmem>>, %arg4: memref<16x128xf32, #tpu.memory_space<vmem>>, %arg5: memref<16x128xf32, #tpu.memory_space<vmem>>, %arg6: memref<16x128xf32, #tpu.memory_space<vmem>>, %arg7: memref<16x128xf32, #tpu.memory_space<vmem>>, %arg8: memref<16x128xf32, #tpu.memory_space<vmem>>, %arg9: memref<9xf32, #tpu.memory_space<smem>>, %arg10: memref<1xf32, #tpu.memory_space<smem>>, %arg11: memref<9xf32, #tpu.memory_space<smem>>, %arg12: memref<1xf32, #tpu.memory_space<smem>>, %arg13: memref<1xf32, #tpu.memory_space<smem>>, %arg14: memref<1xf32, #tpu.memory_space<smem>>, %arg15: memref<16x128xf32, #tpu.memory_space<vmem>>, %arg16: memref<16x128xf32, #tpu.memory_space<vmem>>) attributes {dimension_semantics = [#tpu.dimension_semantics<arbitrary>], iteration_bounds = array<i64: 1>, scalar_prefetch = 0 : i64, scratch_operands = 0 : i64, tpu.core_type = #tpu.core_type<tc>, window_params = [{pipeline_mode = #tpu.pipeline_mode<synchronous>, transform_indices = @transform_0, window_bounds = array<i64: 16, 16>}, {pipeline_mode = #tpu.pipeline_mode<synchronous>, transform_indices = @transform_1, window_bounds = array<i64: 1, 16>}, {pipeline_mode = #tpu.pipeline_mode<synchronous>, transform_indices = @transform_2, window_bounds = array<i64: 16, 128>}, {pipeline_mode = #tpu.pipeline_mode<synchronous>, transform_indices = @transform_3, window_bounds = array<i64: 16, 128>}, {pipeline_mode = #tpu.pipeline_mode<synchronous>, transform_indices = @transform_4, window_bounds = array<i64: 16, 128>}, {pipeline_mode = #tpu.pipeline_mode<synchronous>, transform_indices = @transform_5, window_bounds = array<i64: 16, 128>}, {pipeline_mode = #tpu.pipeline_mode<synchronous>, transform_indices = @transform_6, window_bounds = array<i64: 16, 128>}, {pipeline_mode = #tpu.pipeline_mode<synchronous>, transform_indices = @transform_7, window_bounds = array<i64: 16, 128>}, {transform_indices = @transform_8, window_bounds = array<i64: 9>}, {transform_indices = @transform_9, window_bounds = array<i64: 1>}, {transform_indices = @transform_10, window_bounds = array<i64: 9>}, {transform_indices = @transform_11, window_bounds = array<i64: 1>}, {transform_indices = @transform_12, window_bounds = array<i64: 1>}, {transform_indices = @transform_13, window_bounds = array<i64: 1>}, {pipeline_mode = #tpu.pipeline_mode<synchronous>, transform_indices = @transform_14, window_bounds = array<i64: 16, 128>}, {pipeline_mode = #tpu.pipeline_mode<synchronous>, transform_indices = @transform_15, window_bounds = array<i64: 16, 128>}]} {
    %c0 = arith.constant 0 : index
    %0 = memref.load %arg13[%c0] : memref<1xf32, #tpu.memory_space<smem>>
    %c0_0 = arith.constant 0 : index
    %1 = memref.load %arg14[%c0_0] : memref<1xf32, #tpu.memory_space<smem>>
    %c0_1 = arith.constant 0 : index
    %c0_2 = arith.constant 0 : index
    %2 = vector.load %arg2[%c0_1, %c0_2] : memref<1x16xf32, #tpu.memory_space<vmem>>, vector<1x16xf32>
    %cst = arith.constant dense<0xFF800000> : vector<1xf32>
    %3 = vector.multi_reduction <maximumf>, %2, %cst [1] : vector<1x16xf32> to vector<1xf32>
    %4 = vector.shape_cast %3 : vector<1xf32> to vector<1x1xf32>
    %5 = vector.broadcast %0 : f32 to vector<1x1xf32>
    %6 = arith.mulf %5, %4 : vector<1x1xf32>
    %7 = vector.broadcast %6 : vector<1x1xf32> to vector<1x16xf32>
    %8 = arith.subf %2, %7 : vector<1x16xf32>
    %cst_3 = arith.constant 0.000000e+00 : f32
    %9 = vector.broadcast %cst_3 : f32 to vector<1x16xf32>
    %10 = arith.maximumf %8, %9 : vector<1x16xf32>
    %c0_4 = arith.constant 0 : index
    %c0_5 = arith.constant 0 : index
    %11 = vector.load %arg1[%c0_4, %c0_5] : memref<16x16xf32, #tpu.memory_space<vmem>>, vector<16x16xf32>
    %12 = vector.broadcast %10 : vector<1x16xf32> to vector<16x16xf32>
    %13 = arith.mulf %11, %12 : vector<16x16xf32>
    %c0_6 = arith.constant 0 : index
    %c0_7 = arith.constant 0 : index
    %14 = vector.load %arg3[%c0_6, %c0_7] : memref<16x128xf32, #tpu.memory_space<vmem>>, vector<16x128xf32>
    %cst_8 = arith.constant dense<0.000000e+00> : vector<16x128xf32>
    %15 = tpu.matmul %13, %14, %cst_8 {dimension_numbers = #tpu.dot_dimension_numbers<[1], [0], [0], [1], [0, 0, 1, 1], [], []>} : vector<16x16xf32>, vector<16x128xf32>, vector<16x128xf32> -> vector<16x128xf32>
    %c0_9 = arith.constant 0 : index
    %c0_10 = arith.constant 0 : index
    %16 = vector.load %arg4[%c0_9, %c0_10] : memref<16x128xf32, #tpu.memory_space<vmem>>, vector<16x128xf32>
    %c0_11 = arith.constant 0 : index
    %c0_12 = arith.constant 0 : index
    %17 = vector.load %arg5[%c0_11, %c0_12] : memref<16x128xf32, #tpu.memory_space<vmem>>, vector<16x128xf32>
    %18 = arith.mulf %17, %15 : vector<16x128xf32>
    %c0_13 = arith.constant 0 : index
    %c0_14 = arith.constant 0 : index
    %19 = vector.load %arg6[%c0_13, %c0_14] : memref<16x128xf32, #tpu.memory_space<vmem>>, vector<16x128xf32>
    %cst_15 = arith.constant 1.000000e+00 : f32
    %20 = arith.divf %cst_15, %0 : f32
    %21 = arith.subf %16, %18 : vector<16x128xf32>
    %22 = vector.broadcast %20 : f32 to vector<16x128xf32>
    %23 = arith.mulf %22, %21 : vector<16x128xf32>
    %24 = arith.addf %19, %23 : vector<16x128xf32>
    %c0_16 = arith.constant 0 : index
    %c0_17 = arith.constant 0 : index
    %25 = vector.load %arg16[%c0_16, %c0_17] : memref<16x128xf32, #tpu.memory_space<vmem>>, vector<16x128xf32>
    tpu.vector_store %arg16[%c0_16, %c0_17], %24 {strides = array<i32>} : memref<16x128xf32, #tpu.memory_space<vmem>>, vector<16x128xf32>,
    %26 = tpu.concatenate %16, %18 in 0 : vector<16x128xf32>, vector<16x128xf32> -> vector<32x128xf32>
    %27 = tpu.iota {dimensions = array<i32: 0>} : vector<32x1xi32>
    %c16_i32 = arith.constant 16 : i32
    %28 = vector.broadcast %c16_i32 : i32 to vector<32x1xi32>
    %29 = arith.cmpi slt, %27, %28 : vector<32x1xi32>
    %30 = arith.extui %29 : vector<32x1xi1> to vector<32x1xi32>
    %31 = arith.sitofp %30 : vector<32x1xi32> to vector<32x1xf32>
    %cst_18 = arith.constant 1.000000e+00 : f32
    %32 = vector.broadcast %cst_18 : f32 to vector<32x1xf32>
    %33 = arith.subf %32, %31 : vector<32x1xf32>
    %34 = tpu.iota {dimensions = array<i32: 0>} : vector<32x1xi32>
    %c16_i32_19 = arith.constant 16 : i32
    %c0_i32 = arith.constant 0 : i32
    %35 = arith.cmpi eq, %c16_i32_19, %c0_i32 : i32
    %c1_i32 = arith.constant 1 : i32
    %36 = arith.select %35, %c1_i32, %c16_i32_19 : i32
    %37 = vector.broadcast %36 : i32 to vector<32x1xi32>
    %38 = arith.remsi %34, %37 : vector<32x1xi32>
    %c0_i32_20 = arith.constant 0 : i32
    %39 = vector.broadcast %c0_i32_20 : i32 to vector<32x1xi32>
    %40 = arith.cmpi ne, %38, %39 : vector<32x1xi32>
    %c0_i32_21 = arith.constant 0 : i32
    %41 = vector.broadcast %c0_i32_21 : i32 to vector<32x1xi32>
    %42 = arith.cmpi slt, %38, %41 : vector<32x1xi32>
    %c0_i32_22 = arith.constant 0 : i32
    %43 = arith.cmpi slt, %36, %c0_i32_22 : i32
    %44 = vector.broadcast %43 : i1 to vector<32x1xi1>
    %45 = vector.broadcast %44 : vector<32x1xi1> to vector<32x1xi1>
    %46 = arith.xori %42, %45 : vector<32x1xi1>
    %47 = arith.andi %46, %40 : vector<32x1xi1>
    %48 = vector.broadcast %36 : i32 to vector<32x1xi32>
    %49 = arith.addi %38, %48 : vector<32x1xi32>
    %50 = arith.select %47, %49, %38 : vector<32x1xi1>, vector<32x1xi32>
    %51 = tpu.iota {dimensions = array<i32: 1>} : vector<1x128xi32>
    %cst_23 = arith.constant 0.000000e+00 : f32
    %52 = vector.broadcast %cst_23 : f32 to vector<32x128xf32>
    %c1_i32_24 = arith.constant 1 : i32
    %53 = tpu.dynamic_rotate %26 by %c1_i32_24 dim 0 : vector<32x128xf32>, i32 -> vector<32x128xf32>
    %c-1_i32 = arith.constant -1 : i32
    %54 = vector.broadcast %c-1_i32 : i32 to vector<32x1xi32>
    %55 = arith.addi %50, %54 : vector<32x1xi32>
    %c0_i32_25 = arith.constant 0 : i32
    %56 = vector.broadcast %c0_i32_25 : i32 to vector<32x1xi32>
    %57 = arith.cmpi sge, %55, %56 : vector<32x1xi32>
    %c-1_i32_26 = arith.constant -1 : i32
    %58 = vector.broadcast %c-1_i32_26 : i32 to vector<32x1xi32>
    %59 = arith.addi %50, %58 : vector<32x1xi32>
    %c16_i32_27 = arith.constant 16 : i32
    %60 = vector.broadcast %c16_i32_27 : i32 to vector<32x1xi32>
    %61 = arith.cmpi slt, %59, %60 : vector<32x1xi32>
    %62 = arith.andi %57, %61 : vector<32x1xi1>
    %cst_28 = arith.constant 0.000000e+00 : f32
    %63 = vector.shape_cast %62 : vector<32x1xi1> to vector<32x1xi1>
    %64 = vector.broadcast %63 : vector<32x1xi1> to vector<32x128xi1>
    %65 = vector.broadcast %cst_28 : f32 to vector<32x128xf32>
    %66 = arith.select %64, %53, %65 : vector<32x128xi1>, vector<32x128xf32>
    %c1_i32_29 = arith.constant 1 : i32
    %67 = tpu.dynamic_rotate %66 by %c1_i32_29 dim 1 : vector<32x128xf32>, i32 -> vector<32x128xf32>
    %c-1_i32_30 = arith.constant -1 : i32
    %68 = vector.broadcast %c-1_i32_30 : i32 to vector<1x128xi32>
    %69 = arith.addi %51, %68 : vector<1x128xi32>
    %c0_i32_31 = arith.constant 0 : i32
    %70 = vector.broadcast %c0_i32_31 : i32 to vector<1x128xi32>
    %71 = arith.cmpi sge, %69, %70 : vector<1x128xi32>
    %c-1_i32_32 = arith.constant -1 : i32
    %72 = vector.broadcast %c-1_i32_32 : i32 to vector<1x128xi32>
    %73 = arith.addi %51, %72 : vector<1x128xi32>
    %c128_i32 = arith.constant 128 : i32
    %74 = vector.broadcast %c128_i32 : i32 to vector<1x128xi32>
    %75 = arith.cmpi slt, %73, %74 : vector<1x128xi32>
    %76 = arith.andi %71, %75 : vector<1x128xi1>
    %cst_33 = arith.constant 0.000000e+00 : f32
    %77 = vector.shape_cast %76 : vector<1x128xi1> to vector<1x128xi1>
    %78 = vector.broadcast %77 : vector<1x128xi1> to vector<32x128xi1>
    %79 = vector.broadcast %cst_33 : f32 to vector<32x128xf32>
    %80 = arith.select %78, %67, %79 : vector<32x128xi1>, vector<32x128xf32>
    %c0_34 = arith.constant 0 : index
    %81 = memref.load %arg9[%c0_34] : memref<9xf32, #tpu.memory_space<smem>>
    %82 = vector.broadcast %81 : f32 to vector<32x1xf32>
    %83 = arith.mulf %82, %31 : vector<32x1xf32>
    %c0_35 = arith.constant 0 : index
    %84 = memref.load %arg11[%c0_35] : memref<9xf32, #tpu.memory_space<smem>>
    %85 = vector.broadcast %84 : f32 to vector<32x1xf32>
    %86 = arith.mulf %85, %33 : vector<32x1xf32>
    %87 = arith.addf %83, %86 : vector<32x1xf32>
    %88 = vector.broadcast %87 : vector<32x1xf32> to vector<32x128xf32>
    %89 = arith.mulf %88, %80 : vector<32x128xf32>
    %90 = arith.addf %52, %89 : vector<32x128xf32>
    %c1 = arith.constant 1 : index
    %91 = memref.load %arg9[%c1] : memref<9xf32, #tpu.memory_space<smem>>
    %92 = vector.broadcast %91 : f32 to vector<32x1xf32>
    %93 = arith.mulf %92, %31 : vector<32x1xf32>
    %c1_36 = arith.constant 1 : index
    %94 = memref.load %arg11[%c1_36] : memref<9xf32, #tpu.memory_space<smem>>
    %95 = vector.broadcast %94 : f32 to vector<32x1xf32>
    %96 = arith.mulf %95, %33 : vector<32x1xf32>
    %97 = arith.addf %93, %96 : vector<32x1xf32>
    %98 = vector.broadcast %97 : vector<32x1xf32> to vector<32x128xf32>
    %99 = arith.mulf %98, %66 : vector<32x128xf32>
    %100 = arith.addf %90, %99 : vector<32x128xf32>
    %c127_i32 = arith.constant 127 : i32
    %101 = tpu.dynamic_rotate %66 by %c127_i32 dim 1 : vector<32x128xf32>, i32 -> vector<32x128xf32>
    %c1_i32_37 = arith.constant 1 : i32
    %102 = vector.broadcast %c1_i32_37 : i32 to vector<1x128xi32>
    %103 = arith.addi %51, %102 : vector<1x128xi32>
    %c0_i32_38 = arith.constant 0 : i32
    %104 = vector.broadcast %c0_i32_38 : i32 to vector<1x128xi32>
    %105 = arith.cmpi sge, %103, %104 : vector<1x128xi32>
    %c1_i32_39 = arith.constant 1 : i32
    %106 = vector.broadcast %c1_i32_39 : i32 to vector<1x128xi32>
    %107 = arith.addi %51, %106 : vector<1x128xi32>
    %c128_i32_40 = arith.constant 128 : i32
    %108 = vector.broadcast %c128_i32_40 : i32 to vector<1x128xi32>
    %109 = arith.cmpi slt, %107, %108 : vector<1x128xi32>
    %110 = arith.andi %105, %109 : vector<1x128xi1>
    %cst_41 = arith.constant 0.000000e+00 : f32
    %111 = vector.shape_cast %110 : vector<1x128xi1> to vector<1x128xi1>
    %112 = vector.broadcast %111 : vector<1x128xi1> to vector<32x128xi1>
    %113 = vector.broadcast %cst_41 : f32 to vector<32x128xf32>
    %114 = arith.select %112, %101, %113 : vector<32x128xi1>, vector<32x128xf32>
    %c2 = arith.constant 2 : index
    %115 = memref.load %arg9[%c2] : memref<9xf32, #tpu.memory_space<smem>>
    %116 = vector.broadcast %115 : f32 to vector<32x1xf32>
    %117 = arith.mulf %116, %31 : vector<32x1xf32>
    %c2_42 = arith.constant 2 : index
    %118 = memref.load %arg11[%c2_42] : memref<9xf32, #tpu.memory_space<smem>>
    %119 = vector.broadcast %118 : f32 to vector<32x1xf32>
    %120 = arith.mulf %119, %33 : vector<32x1xf32>
    %121 = arith.addf %117, %120 : vector<32x1xf32>
    %122 = vector.broadcast %121 : vector<32x1xf32> to vector<32x128xf32>
    %123 = arith.mulf %122, %114 : vector<32x128xf32>
    %124 = arith.addf %100, %123 : vector<32x128xf32>
    %c1_i32_43 = arith.constant 1 : i32
    %125 = tpu.dynamic_rotate %26 by %c1_i32_43 dim 1 : vector<32x128xf32>, i32 -> vector<32x128xf32>
    %c-1_i32_44 = arith.constant -1 : i32
    %126 = vector.broadcast %c-1_i32_44 : i32 to vector<1x128xi32>
    %127 = arith.addi %51, %126 : vector<1x128xi32>
    %c0_i32_45 = arith.constant 0 : i32
    %128 = vector.broadcast %c0_i32_45 : i32 to vector<1x128xi32>
    %129 = arith.cmpi sge, %127, %128 : vector<1x128xi32>
    %c-1_i32_46 = arith.constant -1 : i32
    %130 = vector.broadcast %c-1_i32_46 : i32 to vector<1x128xi32>
    %131 = arith.addi %51, %130 : vector<1x128xi32>
    %c128_i32_47 = arith.constant 128 : i32
    %132 = vector.broadcast %c128_i32_47 : i32 to vector<1x128xi32>
    %133 = arith.cmpi slt, %131, %132 : vector<1x128xi32>
    %134 = arith.andi %129, %133 : vector<1x128xi1>
    %cst_48 = arith.constant 0.000000e+00 : f32
    %135 = vector.shape_cast %134 : vector<1x128xi1> to vector<1x128xi1>
    %136 = vector.broadcast %135 : vector<1x128xi1> to vector<32x128xi1>
    %137 = vector.broadcast %cst_48 : f32 to vector<32x128xf32>
    %138 = arith.select %136, %125, %137 : vector<32x128xi1>, vector<32x128xf32>
    %c3 = arith.constant 3 : index
    %139 = memref.load %arg9[%c3] : memref<9xf32, #tpu.memory_space<smem>>
    %140 = vector.broadcast %139 : f32 to vector<32x1xf32>
    %141 = arith.mulf %140, %31 : vector<32x1xf32>
    %c3_49 = arith.constant 3 : index
    %142 = memref.load %arg11[%c3_49] : memref<9xf32, #tpu.memory_space<smem>>
    %143 = vector.broadcast %142 : f32 to vector<32x1xf32>
    %144 = arith.mulf %143, %33 : vector<32x1xf32>
    %145 = arith.addf %141, %144 : vector<32x1xf32>
    %146 = vector.broadcast %145 : vector<32x1xf32> to vector<32x128xf32>
    %147 = arith.mulf %146, %138 : vector<32x128xf32>
    %148 = arith.addf %124, %147 : vector<32x128xf32>
    %c4 = arith.constant 4 : index
    %149 = memref.load %arg9[%c4] : memref<9xf32, #tpu.memory_space<smem>>
    %150 = vector.broadcast %149 : f32 to vector<32x1xf32>
    %151 = arith.mulf %150, %31 : vector<32x1xf32>
    %c4_50 = arith.constant 4 : index
    %152 = memref.load %arg11[%c4_50] : memref<9xf32, #tpu.memory_space<smem>>
    %153 = vector.broadcast %152 : f32 to vector<32x1xf32>
    %154 = arith.mulf %153, %33 : vector<32x1xf32>
    %155 = arith.addf %151, %154 : vector<32x1xf32>
    %156 = vector.broadcast %155 : vector<32x1xf32> to vector<32x128xf32>
    %157 = arith.mulf %156, %26 : vector<32x128xf32>
    %158 = arith.addf %148, %157 : vector<32x128xf32>
    %c127_i32_51 = arith.constant 127 : i32
    %159 = tpu.dynamic_rotate %26 by %c127_i32_51 dim 1 : vector<32x128xf32>, i32 -> vector<32x128xf32>
    %c1_i32_52 = arith.constant 1 : i32
    %160 = vector.broadcast %c1_i32_52 : i32 to vector<1x128xi32>
    %161 = arith.addi %51, %160 : vector<1x128xi32>
    %c0_i32_53 = arith.constant 0 : i32
    %162 = vector.broadcast %c0_i32_53 : i32 to vector<1x128xi32>
    %163 = arith.cmpi sge, %161, %162 : vector<1x128xi32>
    %c1_i32_54 = arith.constant 1 : i32
    %164 = vector.broadcast %c1_i32_54 : i32 to vector<1x128xi32>
    %165 = arith.addi %51, %164 : vector<1x128xi32>
    %c128_i32_55 = arith.constant 128 : i32
    %166 = vector.broadcast %c128_i32_55 : i32 to vector<1x128xi32>
    %167 = arith.cmpi slt, %165, %166 : vector<1x128xi32>
    %168 = arith.andi %163, %167 : vector<1x128xi1>
    %cst_56 = arith.constant 0.000000e+00 : f32
    %169 = vector.shape_cast %168 : vector<1x128xi1> to vector<1x128xi1>
    %170 = vector.broadcast %169 : vector<1x128xi1> to vector<32x128xi1>
    %171 = vector.broadcast %cst_56 : f32 to vector<32x128xf32>
    %172 = arith.select %170, %159, %171 : vector<32x128xi1>, vector<32x128xf32>
    %c5 = arith.constant 5 : index
    %173 = memref.load %arg9[%c5] : memref<9xf32, #tpu.memory_space<smem>>
    %174 = vector.broadcast %173 : f32 to vector<32x1xf32>
    %175 = arith.mulf %174, %31 : vector<32x1xf32>
    %c5_57 = arith.constant 5 : index
    %176 = memref.load %arg11[%c5_57] : memref<9xf32, #tpu.memory_space<smem>>
    %177 = vector.broadcast %176 : f32 to vector<32x1xf32>
    %178 = arith.mulf %177, %33 : vector<32x1xf32>
    %179 = arith.addf %175, %178 : vector<32x1xf32>
    %180 = vector.broadcast %179 : vector<32x1xf32> to vector<32x128xf32>
    %181 = arith.mulf %180, %172 : vector<32x128xf32>
    %182 = arith.addf %158, %181 : vector<32x128xf32>
    %c31_i32 = arith.constant 31 : i32
    %183 = tpu.dynamic_rotate %26 by %c31_i32 dim 0 : vector<32x128xf32>, i32 -> vector<32x128xf32>
    %c1_i32_58 = arith.constant 1 : i32
    %184 = vector.broadcast %c1_i32_58 : i32 to vector<32x1xi32>
    %185 = arith.addi %50, %184 : vector<32x1xi32>
    %c0_i32_59 = arith.constant 0 : i32
    %186 = vector.broadcast %c0_i32_59 : i32 to vector<32x1xi32>
    %187 = arith.cmpi sge, %185, %186 : vector<32x1xi32>
    %c1_i32_60 = arith.constant 1 : i32
    %188 = vector.broadcast %c1_i32_60 : i32 to vector<32x1xi32>
    %189 = arith.addi %50, %188 : vector<32x1xi32>
    %c16_i32_61 = arith.constant 16 : i32
    %190 = vector.broadcast %c16_i32_61 : i32 to vector<32x1xi32>
    %191 = arith.cmpi slt, %189, %190 : vector<32x1xi32>
    %192 = arith.andi %187, %191 : vector<32x1xi1>
    %cst_62 = arith.constant 0.000000e+00 : f32
    %193 = vector.shape_cast %192 : vector<32x1xi1> to vector<32x1xi1>
    %194 = vector.broadcast %193 : vector<32x1xi1> to vector<32x128xi1>
    %195 = vector.broadcast %cst_62 : f32 to vector<32x128xf32>
    %196 = arith.select %194, %183, %195 : vector<32x128xi1>, vector<32x128xf32>
    %c1_i32_63 = arith.constant 1 : i32
    %197 = tpu.dynamic_rotate %196 by %c1_i32_63 dim 1 : vector<32x128xf32>, i32 -> vector<32x128xf32>
    %c-1_i32_64 = arith.constant -1 : i32
    %198 = vector.broadcast %c-1_i32_64 : i32 to vector<1x128xi32>
    %199 = arith.addi %51, %198 : vector<1x128xi32>
    %c0_i32_65 = arith.constant 0 : i32
    %200 = vector.broadcast %c0_i32_65 : i32 to vector<1x128xi32>
    %201 = arith.cmpi sge, %199, %200 : vector<1x128xi32>
    %c-1_i32_66 = arith.constant -1 : i32
    %202 = vector.broadcast %c-1_i32_66 : i32 to vector<1x128xi32>
    %203 = arith.addi %51, %202 : vector<1x128xi32>
    %c128_i32_67 = arith.constant 128 : i32
    %204 = vector.broadcast %c128_i32_67 : i32 to vector<1x128xi32>
    %205 = arith.cmpi slt, %203, %204 : vector<1x128xi32>
    %206 = arith.andi %201, %205 : vector<1x128xi1>
    %cst_68 = arith.constant 0.000000e+00 : f32
    %207 = vector.shape_cast %206 : vector<1x128xi1> to vector<1x128xi1>
    %208 = vector.broadcast %207 : vector<1x128xi1> to vector<32x128xi1>
    %209 = vector.broadcast %cst_68 : f32 to vector<32x128xf32>
    %210 = arith.select %208, %197, %209 : vector<32x128xi1>, vector<32x128xf32>
    %c6 = arith.constant 6 : index
    %211 = memref.load %arg9[%c6] : memref<9xf32, #tpu.memory_space<smem>>
    %212 = vector.broadcast %211 : f32 to vector<32x1xf32>
    %213 = arith.mulf %212, %31 : vector<32x1xf32>
    %c6_69 = arith.constant 6 : index
    %214 = memref.load %arg11[%c6_69] : memref<9xf32, #tpu.memory_space<smem>>
    %215 = vector.broadcast %214 : f32 to vector<32x1xf32>
    %216 = arith.mulf %215, %33 : vector<32x1xf32>
    %217 = arith.addf %213, %216 : vector<32x1xf32>
    %218 = vector.broadcast %217 : vector<32x1xf32> to vector<32x128xf32>
    %219 = arith.mulf %218, %210 : vector<32x128xf32>
    %220 = arith.addf %182, %219 : vector<32x128xf32>
    %c7 = arith.constant 7 : index
    %221 = memref.load %arg9[%c7] : memref<9xf32, #tpu.memory_space<smem>>
    %222 = vector.broadcast %221 : f32 to vector<32x1xf32>
    %223 = arith.mulf %222, %31 : vector<32x1xf32>
    %c7_70 = arith.constant 7 : index
    %224 = memref.load %arg11[%c7_70] : memref<9xf32, #tpu.memory_space<smem>>
    %225 = vector.broadcast %224 : f32 to vector<32x1xf32>
    %226 = arith.mulf %225, %33 : vector<32x1xf32>
    %227 = arith.addf %223, %226 : vector<32x1xf32>
    %228 = vector.broadcast %227 : vector<32x1xf32> to vector<32x128xf32>
    %229 = arith.mulf %228, %196 : vector<32x128xf32>
    %230 = arith.addf %220, %229 : vector<32x128xf32>
    %c127_i32_71 = arith.constant 127 : i32
    %231 = tpu.dynamic_rotate %196 by %c127_i32_71 dim 1 : vector<32x128xf32>, i32 -> vector<32x128xf32>
    %c1_i32_72 = arith.constant 1 : i32
    %232 = vector.broadcast %c1_i32_72 : i32 to vector<1x128xi32>
    %233 = arith.addi %51, %232 : vector<1x128xi32>
    %c0_i32_73 = arith.constant 0 : i32
    %234 = vector.broadcast %c0_i32_73 : i32 to vector<1x128xi32>
    %235 = arith.cmpi sge, %233, %234 : vector<1x128xi32>
    %c1_i32_74 = arith.constant 1 : i32
    %236 = vector.broadcast %c1_i32_74 : i32 to vector<1x128xi32>
    %237 = arith.addi %51, %236 : vector<1x128xi32>
    %c128_i32_75 = arith.constant 128 : i32
    %238 = vector.broadcast %c128_i32_75 : i32 to vector<1x128xi32>
    %239 = arith.cmpi slt, %237, %238 : vector<1x128xi32>
    %240 = arith.andi %235, %239 : vector<1x128xi1>
    %cst_76 = arith.constant 0.000000e+00 : f32
    %241 = vector.shape_cast %240 : vector<1x128xi1> to vector<1x128xi1>
    %242 = vector.broadcast %241 : vector<1x128xi1> to vector<32x128xi1>
    %243 = vector.broadcast %cst_76 : f32 to vector<32x128xf32>
    %244 = arith.select %242, %231, %243 : vector<32x128xi1>, vector<32x128xf32>
    %c8 = arith.constant 8 : index
    %245 = memref.load %arg9[%c8] : memref<9xf32, #tpu.memory_space<smem>>
    %246 = vector.broadcast %245 : f32 to vector<32x1xf32>
    %247 = arith.mulf %246, %31 : vector<32x1xf32>
    %c8_77 = arith.constant 8 : index
    %248 = memref.load %arg11[%c8_77] : memref<9xf32, #tpu.memory_space<smem>>
    %249 = vector.broadcast %248 : f32 to vector<32x1xf32>
    %250 = arith.mulf %249, %33 : vector<32x1xf32>
    %251 = arith.addf %247, %250 : vector<32x1xf32>
    %252 = vector.broadcast %251 : vector<32x1xf32> to vector<32x128xf32>
    %253 = arith.mulf %252, %244 : vector<32x128xf32>
    %254 = arith.addf %230, %253 : vector<32x128xf32>
    %255 = vector.extract_strided_slice %254 {offsets = [0, 0], sizes = [16, 128], strides = [1, 1]} : vector<32x128xf32> to vector<16x128xf32>
    %256 = vector.extract_strided_slice %254 {offsets = [16, 0], sizes = [16, 128], strides = [1, 1]} : vector<32x128xf32> to vector<16x128xf32>
    %257 = arith.addf %255, %256 : vector<16x128xf32>
    %258 = arith.mulf %17, %24 : vector<16x128xf32>
    %c0_78 = arith.constant 0 : index
    %c0_79 = arith.constant 0 : index
    %259 = vector.load %arg7[%c0_78, %c0_79] : memref<16x128xf32, #tpu.memory_space<vmem>>, vector<16x128xf32>
    %260 = vector.broadcast %1 : f32 to vector<16x128xf32>
    %261 = arith.mulf %259, %260 : vector<16x128xf32>
    %262 = arith.mulf %258, %261 : vector<16x128xf32>
    %c0_80 = arith.constant 0 : index
    %c0_81 = arith.constant 0 : index
    %263 = vector.load %arg8[%c0_80, %c0_81] : memref<16x128xf32, #tpu.memory_space<vmem>>, vector<16x128xf32>
    %264 = arith.addf %262, %263 : vector<16x128xf32>
    %265 = arith.addf %15, %257 : vector<16x128xf32>
    %c0_82 = arith.constant 0 : index
    %266 = memref.load %arg10[%c0_82] : memref<1xf32, #tpu.memory_space<smem>>
    %267 = vector.broadcast %266 : f32 to vector<16x128xf32>
    %268 = arith.addf %265, %267 : vector<16x128xf32>
    %c0_83 = arith.constant 0 : index
    %269 = memref.load %arg12[%c0_83] : memref<1xf32, #tpu.memory_space<smem>>
    %270 = vector.broadcast %269 : f32 to vector<16x128xf32>
    %271 = arith.addf %268, %270 : vector<16x128xf32>
    %272 = arith.addf %271, %264 : vector<16x128xf32>
    %c0_84 = arith.constant 0 : index
    %c0_85 = arith.constant 0 : index
    %273 = vector.load %arg15[%c0_84, %c0_85] : memref<16x128xf32, #tpu.memory_space<vmem>>, vector<16x128xf32>
    tpu.vector_store %arg15[%c0_84, %c0_85], %272 {strides = array<i32>} : memref<16x128xf32, #tpu.memory_space<vmem>>, vector<16x128xf32>,
    return
  }
  func.func @transform_0(%arg0: i32) -> (i32, i32) {
    %c0_i32 = arith.constant 0 : i32
    %c0_i32_0 = arith.constant 0 : i32
    %c0_i32_1 = arith.constant 0 : i32
    return %c0_i32, %c0_i32_0 : i32, i32
  }
  func.func @transform_1(%arg0: i32) -> (i32, i32) {
    %c0_i32 = arith.constant 0 : i32
    %c0_i32_0 = arith.constant 0 : i32
    %c0_i32_1 = arith.constant 0 : i32
    return %c0_i32, %c0_i32_0 : i32, i32
  }
  func.func @transform_2(%arg0: i32) -> (i32, i32) {
    %c0_i32 = arith.constant 0 : i32
    %c0_i32_0 = arith.constant 0 : i32
    %c0_i32_1 = arith.constant 0 : i32
    return %c0_i32, %c0_i32_0 : i32, i32
  }
  func.func @transform_3(%arg0: i32) -> (i32, i32) {
    %c0_i32 = arith.constant 0 : i32
    %c0_i32_0 = arith.constant 0 : i32
    %c0_i32_1 = arith.constant 0 : i32
    return %c0_i32, %c0_i32_0 : i32, i32
  }
  func.func @transform_4(%arg0: i32) -> (i32, i32) {
    %c0_i32 = arith.constant 0 : i32
    %c0_i32_0 = arith.constant 0 : i32
    %c0_i32_1 = arith.constant 0 : i32
    return %c0_i32, %c0_i32_0 : i32, i32
  }
  func.func @transform_5(%arg0: i32) -> (i32, i32) {
    %c0_i32 = arith.constant 0 : i32
    %c0_i32_0 = arith.constant 0 : i32
    %c0_i32_1 = arith.constant 0 : i32
    return %c0_i32, %c0_i32_0 : i32, i32
  }
  func.func @transform_6(%arg0: i32) -> (i32, i32) {
    %c0_i32 = arith.constant 0 : i32
    %c0_i32_0 = arith.constant 0 : i32
    %c0_i32_1 = arith.constant 0 : i32
    return %c0_i32, %c0_i32_0 : i32, i32
  }
  func.func @transform_7(%arg0: i32) -> (i32, i32) {
    %c0_i32 = arith.constant 0 : i32
    %c0_i32_0 = arith.constant 0 : i32
    %c0_i32_1 = arith.constant 0 : i32
    return %c0_i32, %c0_i32_0 : i32, i32
  }
  func.func @transform_8(%arg0: i32) -> i32 {
    %c0_i32 = arith.constant 0 : i32
    %c0_i32_0 = arith.constant 0 : i32
    return %c0_i32 : i32
  }
  func.func @transform_9(%arg0: i32) -> i32 {
    %c0_i32 = arith.constant 0 : i32
    %c0_i32_0 = arith.constant 0 : i32
    return %c0_i32 : i32
  }
  func.func @transform_10(%arg0: i32) -> i32 {
    %c0_i32 = arith.constant 0 : i32
    %c0_i32_0 = arith.constant 0 : i32
    return %c0_i32 : i32
  }
  func.func @transform_11(%arg0: i32) -> i32 {
    %c0_i32 = arith.constant 0 : i32
    %c0_i32_0 = arith.constant 0 : i32
    return %c0_i32 : i32
  }
  func.func @transform_12(%arg0: i32) -> i32 {
    %c0_i32 = arith.constant 0 : i32
    %c0_i32_0 = arith.constant 0 : i32
    return %c0_i32 : i32
  }
  func.func @transform_13(%arg0: i32) -> i32 {
    %c0_i32 = arith.constant 0 : i32
    %c0_i32_0 = arith.constant 0 : i32
    return %c0_i32 : i32
  }
  func.func @transform_14(%arg0: i32) -> (i32, i32) {
    %c0_i32 = arith.constant 0 : i32
    %c0_i32_0 = arith.constant 0 : i32
    %c0_i32_1 = arith.constant 0 : i32
    return %c0_i32, %c0_i32_0 : i32, i32
  }
  func.func @transform_15(%arg0: i32) -> (i32, i32) {
    %c0_i32 = arith.constant 0 : i32
    %c0_i32_0 = arith.constant 0 : i32
    %c0_i32_1 = arith.constant 0 : i32
    return %c0_i32, %c0_i32_0 : i32, i32
  }
}

</mosaic_0001>

<llo_original>
// kernel: custom-call.96
$region0: #{custom-call.96}
  %s0 = inlined_call_operand.vmem [shape: f32[128,16], index: 0, kind: input, shape index: {}]
  %s1 = inlined_call_operand.vmem [shape: f32[128,16], index: 1, kind: output, shape index: {0}]
  %s2 = inlined_call_operand.vmem [shape: f32[16], index: 2, kind: output, shape index: {1}]
  %3 = xla_tuple %s1, %s2
  $region1: #{custom-call.96} parent=0
    #allocation0 [shape = 'u8[65536]{0}', space=vmem, size = 0x10000, scoped, tag = 'operand span for operand 0']
    #allocation1 [shape = 'u8[65536]{0}', space=vmem, size = 0x10000, scoped, tag = 'operand span for operand 1']
    #allocation2 [shape = 'u8[4096]{0}', space=vmem, size = 0x1000, scoped, tag = 'operand span for operand 2']
    #allocation3 [shape = 'u8[512]{0}', space=vmem, size = 0x400, scoped, tag = 'packed  for operand 2']
    #allocation4 [shape = 'f32[128,128]{1,0}', space=vmem, size = 0x10000, scoped, tag = 'scratch for Householder reflectors']
    // Predicated region
    $region2: #{custom-call.96} parent=1 // pred_check
      _
    $region3: #{custom-call.96} parent=1 // pred_check_branch
      %5 = sbr.rel (0) target = $region5
    $region4: #{custom-call.96} parent=1 // pred_region
      // Predicated region
      $region6: #{custom-call.96} parent=4 // pred_check
        _
      $region7: #{custom-call.96} parent=4 // pred_check_branch
        %7 = sbr.rel (0) target = $region9
      $region8: #{custom-call.96} parent=4 // pred_region
        // Predicated region
        $region21: #{custom-call.96} parent=8 // pred_check
          _
        $region22: #{custom-call.96} parent=8 // pred_check_branch
          %53 = sbr.rel (0) target = $region24
        $region23: #{custom-call.96} parent=8 // pred_region
          loop: start=0, step=1, limit=1
          $region25: #{custom-call.96} parent=23 // loop_pre_header
            _
          $region26: #{custom-call.96} parent=23 // loop_header
            %s55 = sphi 0, %s59
            %p56 = scmp.ge.s32.totalorder %s55, 1
            %s60 = sphi %s0, %s0
            %s61 = sphi [#allocation0], [#allocation0]
          $region27: #{custom-call.96} parent=23 // loop_header_branch
            %58 = sbr.rel (%p56) target = $region31
          $region28: #{custom-call.96} parent=23 // loop_body
            %v62 = vld [vmem:[%s60] sm:$0xff]
            %63 = vst [vmem:[%s61] sm:$0xff] %v62
            %v64 = vld [vmem:[%s60 + $0x8] sm:$0xff]
            %65 = vst [vmem:[%s61 + $0x8] sm:$0xff] %v64
            %v66 = vld [vmem:[%s60 + $0x10] sm:$0xff]
            %67 = vst [vmem:[%s61 + $0x10] sm:$0xff] %v66
            %v68 = vld [vmem:[%s60 + $0x18] sm:$0xff]
            %69 = vst [vmem:[%s61 + $0x18] sm:$0xff] %v68
            %v70 = vld [vmem:[%s60 + $0x20] sm:$0xff]
            %71 = vst [vmem:[%s61 + $0x20] sm:$0xff] %v70
            %v72 = vld [vmem:[%s60 + $0x28] sm:$0xff]
            %73 = vst [vmem:[%s61 + $0x28] sm:$0xff] %v72
            %v74 = vld [vmem:[%s60 + $0x30] sm:$0xff]
            %75 = vst [vmem:[%s61 + $0x30] sm:$0xff] %v74
            %v76 = vld [vmem:[%s60 + $0x38] sm:$0xff]
            %77 = vst [vmem:[%s61 + $0x38] sm:$0xff] %v76
            %v78 = vld [vmem:[%s60 + $0x40] sm:$0xff]
            %79 = vst [vmem:[%s61 + $0x40] sm:$0xff] %v78
            %v80 = vld [vmem:[%s60 + $0x48] sm:$0xff]
            %81 = vst [vmem:[%s61 + $0x48] sm:$0xff] %v80
            %v82 = vld [vmem:[%s60 + $0x50] sm:$0xff]
            %83 = vst [vmem:[%s61 + $0x50] sm:$0xff] %v82
            %v84 = vld [vmem:[%s60 + $0x58] sm:$0xff]
            %85 = vst [vmem:[%s61 + $0x58] sm:$0xff] %v84
            %v86 = vld [vmem:[%s60 + $0x60] sm:$0xff]
            %87 = vst [vmem:[%s61 + $0x60] sm:$0xff] %v86
            %v88 = vld [vmem:[%s60 + $0x68] sm:$0xff]
            %89 = vst [vmem:[%s61 + $0x68] sm:$0xff] %v88
            %v90 = vld [vmem:[%s60 + $0x70] sm:$0xff]
            %91 = vst [vmem:[%s61 + $0x70] sm:$0xff] %v90
            %v92 = vld [vmem:[%s60 + $0x78] sm:$0xff]
            %93 = vst [vmem:[%s61 + $0x78] sm:$0xff] %v92
          $region29: #{custom-call.96} parent=23 // loop_footer
            %s59 = sadd.s32 1, %s55
          $region30: #{custom-call.96} parent=23 // loop_footer_branch
            %54 = sbr.rel target = $region26
          $region31: #{custom-call.96} parent=23 // loop_exit
            _
        $region24: #{custom-call.96} parent=8 // pred_fallthru
          _
        // Predicated region
        $region32: #{custom-call.96} parent=8 // pred_check
          _
        $region33: #{custom-call.96} parent=8 // pred_check_branch
          %95 = sbr.rel target = $region35
        $region34: #{custom-call.96} parent=8 // pred_region
          _
        $region35: #{custom-call.96} parent=8 // pred_fallthru
          _
      $region9: #{custom-call.96} parent=4 // pred_fallthru
        _
      // Predicated region
      $region10: #{custom-call.96} parent=4 // pred_check
        _
      $region11: #{custom-call.96} parent=4 // pred_check_branch
        %9 = sbr.rel target = $region13
      $region12: #{custom-call.96} parent=4 // pred_region
        %s11 = ssub.s32 256, 1
        loop: start=0, step=1, limit=1
        $region14: #{custom-call.96} parent=12 // loop_pre_header
          _
        $region15: #{custom-call.96} parent=12 // loop_header
          %s13 = sphi 0, %s17
          %p14 = scmp.ge.s32.totalorder %s13, 1
          %s18 = sphi %s0, %s0
          %s19 = sphi [#allocation0], [#allocation0]
        $region16: #{custom-call.96} parent=12 // loop_header_branch
          %16 = sbr.rel (%p14) target = $region20
        $region17: #{custom-call.96} parent=12 // loop_body
          %v20 = vld [vmem:[%s18] sm:%s11]
          %21 = vst [vmem:[%s19] sm:%s11] %v20
          %v22 = vld [vmem:[%s18 + $0x8] sm:%s11]
          %23 = vst [vmem:[%s19 + $0x8] sm:%s11] %v22
          %v24 = vld [vmem:[%s18 + $0x10] sm:%s11]
          %25 = vst [vmem:[%s19 + $0x10] sm:%s11] %v24
          %v26 = vld [vmem:[%s18 + $0x18] sm:%s11]
          %27 = vst [vmem:[%s19 + $0x18] sm:%s11] %v26
          %v28 = vld [vmem:[%s18 + $0x20] sm:%s11]
          %29 = vst [vmem:[%s19 + $0x20] sm:%s11] %v28
          %v30 = vld [vmem:[%s18 + $0x28] sm:%s11]
          %31 = vst [vmem:[%s19 + $0x28] sm:%s11] %v30
          %v32 = vld [vmem:[%s18 + $0x30] sm:%s11]
          %33 = vst [vmem:[%s19 + $0x30] sm:%s11] %v32
          %v34 = vld [vmem:[%s18 + $0x38] sm:%s11]
          %35 = vst [vmem:[%s19 + $0x38] sm:%s11] %v34
          %v36 = vld [vmem:[%s18 + $0x40] sm:%s11]
          %37 = vst [vmem:[%s19 + $0x40] sm:%s11] %v36
          %v38 = vld [vmem:[%s18 + $0x48] sm:%s11]
          %39 = vst [vmem:[%s19 + $0x48] sm:%s11] %v38
          %v40 = vld [vmem:[%s18 + $0x50] sm:%s11]
          %41 = vst [vmem:[%s19 + $0x50] sm:%s11] %v40
          %v42 = vld [vmem:[%s18 + $0x58] sm:%s11]
          %43 = vst [vmem:[%s19 + $0x58] sm:%s11] %v42
          %v44 = vld [vmem:[%s18 + $0x60] sm:%s11]
          %45 = vst [vmem:[%s19 + $0x60] sm:%s11] %v44
          %v46 = vld [vmem:[%s18 + $0x68] sm:%s11]
          %47 = vst [vmem:[%s19 + $0x68] sm:%s11] %v46
          %v48 = vld [vmem:[%s18 + $0x70] sm:%s11]
          %49 = vst [vmem:[%s19 + $0x70] sm:%s11] %v48
          %v50 = vld [vmem:[%s18 + $0x78] sm:%s11]
          %51 = vst [vmem:[%s19 + $0x78] sm:%s11] %v50
        $region18: #{custom-call.96} parent=12 // loop_footer
          %s17 = sadd.s32 1, %s13
        $region19: #{custom-call.96} parent=12 // loop_footer_branch
          %12 = sbr.rel target = $region15
        $region20: #{custom-call.96} parent=12 // loop_exit
          _
      $region13: #{custom-call.96} parent=4 // pred_fallthru
        _
    $region5: #{custom-call.96} parent=1 // pred_fallthru
      _
    %96 = vnop
    %v97 = vld [vmem:[#allocation0] sm:$0xff]
    %98 = vst [vmem:[#allocation1] sm:$0xff] %v97
    %s99 = scalar_lea.vmem [#allocation1], 8
    %s100 = scalar_lea.vmem [#allocation0], 8
    %v101 = vld [vmem:[%s100] sm:$0xff]
    %102 = vst [vmem:[%s99] sm:$0xff] %v101
    %s103 = scalar_lea.vmem [#allocation1], 16
    %s104 = scalar_lea.vmem [#allocation0], 16
    %v105 = vld [vmem:[%s104] sm:$0xff]
    %106 = vst [vmem:[%s103] sm:$0xff] %v105
    %s107 = scalar_lea.vmem [#allocation1], 24
    %s108 = scalar_lea.vmem [#allocation0], 24
    %v109 = vld [vmem:[%s108] sm:$0xff]
    %110 = vst [vmem:[%s107] sm:$0xff] %v109
    %s111 = scalar_lea.vmem [#allocation1], 32
    %s112 = scalar_lea.vmem [#allocation0], 32
    %v113 = vld [vmem:[%s112] sm:$0xff]
    %114 = vst [vmem:[%s111] sm:$0xff] %v113
    %s115 = scalar_lea.vmem [#allocation1], 40
    %s116 = scalar_lea.vmem [#allocation0], 40
    %v117 = vld [vmem:[%s116] sm:$0xff]
    %118 = vst [vmem:[%s115] sm:$0xff] %v117
    %s119 = scalar_lea.vmem [#allocation1], 48
    %s120 = scalar_lea.vmem [#allocation0], 48
    %v121 = vld [vmem:[%s120] sm:$0xff]
    %122 = vst [vmem:[%s119] sm:$0xff] %v121
    %s123 = scalar_lea.vmem [#allocation1], 56
    %s124 = scalar_lea.vmem [#allocation0], 56
    %v125 = vld [vmem:[%s124] sm:$0xff]
    %126 = vst [vmem:[%s123] sm:$0xff] %v125
    %s127 = scalar_lea.vmem [#allocation1], 64
    %s128 = scalar_lea.vmem [#allocation0], 64
    %v129 = vld [vmem:[%s128] sm:$0xff]
    %130 = vst [vmem:[%s127] sm:$0xff] %v129
    %s131 = scalar_lea.vmem [#allocation1], 72
    %s132 = scalar_lea.vmem [#allocation0], 72
    %v133 = vld [vmem:[%s132] sm:$0xff]
    %134 = vst [vmem:[%s131] sm:$0xff] %v133
    %s135 = scalar_lea.vmem [#allocation1], 80
    %s136 = scalar_lea.vmem [#allocation0], 80
    %v137 = vld [vmem:[%s136] sm:$0xff]
    %138 = vst [vmem:[%s135] sm:$0xff] %v137
    %s139 = scalar_lea.vmem [#allocation1], 88
    %s140 = scalar_lea.vmem [#allocation0], 88
    %v141 = vld [vmem:[%s140] sm:$0xff]
    %142 = vst [vmem:[%s139] sm:$0xff] %v141
    %s143 = scalar_lea.vmem [#allocation1], 96
    %s144 = scalar_lea.vmem [#allocation0], 96
    %v145 = vld [vmem:[%s144] sm:$0xff]
    %146 = vst [vmem:[%s143] sm:$0xff] %v145
    %s147 = scalar_lea.vmem [#allocation1], 104
    %s148 = scalar_lea.vmem [#allocation0], 104
    %v149 = vld [vmem:[%s148] sm:$0xff]
    %150 = vst [vmem:[%s147] sm:$0xff] %v149
    %s151 = scalar_lea.vmem [#allocation1], 112
    %s152 = scalar_lea.vmem [#allocation0], 112
    %v153 = vld [vmem:[%s152] sm:$0xff]
    %154 = vst [vmem:[%s151] sm:$0xff] %v153
    %s155 = scalar_lea.vmem [#allocation1], 120
    %s156 = scalar_lea.vmem [#allocation0], 120
    %v157 = vld [vmem:[%s156] sm:$0xff]
    %158 = vst [vmem:[%s155] sm:$0xff] %v157
    %159 = vst [vmem:[#allocation2] sm:$0x1] 0.0
    loop: start=0, step=1, limit=16
    $region36: #{custom-call.96} parent=1 // loop_pre_header
      _
    $region37: #{custom-call.96} parent=1 // loop_header
      %s161 = sphi 0, %s165
      %p162 = scmp.ge.s32.totalorder %s161, 16
    $region38: #{custom-call.96} parent=1 // loop_header_branch
      %164 = sbr.rel (%p162) target = $region42
    $region39: #{custom-call.96} parent=1 // loop_body
      %v166 = vld [vmem:[#allocation1] sm:$0xff]
      %v167 = vlaneseq
      %v168 = vshrl.u32 %v167, 7
      %v170 = vstv %s161
      %vm171 = vcmp.gt.s32.totalorder %v168, %v170
      %v172 = vsel %vm171, %v166, 0.0
      %v173 = vmul.f32 %v172, %v172
      %s174 = scalar_lea.vmem [#allocation1], 8
      %v175 = vld [vmem:[%s174] sm:$0xff]
      %v176 = vlaneseq
      %v177 = vshrl.u32 %v176, 7
      %v178 = vadd.s32 %v177, 8
      %v179 = vstv %s161
      %vm180 = vcmp.gt.s32.totalorder %v178, %v179
      %v181 = vsel %vm180, %v175, 0.0
      %v182 = vmul.f32 %v181, %v181
      %v183 = vadd.f32 %v173, %v182
      %s184 = scalar_lea.vmem [#allocation1], 16
      %v185 = vld [vmem:[%s184] sm:$0xff]
      %v186 = vlaneseq
      %v187 = vshrl.u32 %v186, 7
      %v188 = vadd.s32 %v187, 16
      %v189 = vstv %s161
      %vm190 = vcmp.gt.s32.totalorder %v188, %v189
      %v191 = vsel %vm190, %v185, 0.0
      %v192 = vmul.f32 %v191, %v191
      %v193 = vadd.f32 %v183, %v192
      %s194 = scalar_lea.vmem [#allocation1], 24
      %v195 = vld [vmem:[%s194] sm:$0xff]
      %v196 = vlaneseq
      %v197 = vshrl.u32 %v196, 7
      %v198 = vadd.s32 %v197, 24
      %v199 = vstv %s161
      %vm200 = vcmp.gt.s32.totalorder %v198, %v199
      %v201 = vsel %vm200, %v195, 0.0
      %v202 = vmul.f32 %v201, %v201
      %v203 = vadd.f32 %v193, %v202
      %s204 = scalar_lea.vmem [#allocation1], 32
      %v205 = vld [vmem:[%s204] sm:$0xff]
      %v206 = vlaneseq
      %v207 = vshrl.u32 %v206, 7
      %v208 = vadd.s32 %v207, 32
      %v209 = vstv %s161
      %vm210 = vcmp.gt.s32.totalorder %v208, %v209
      %v211 = vsel %vm210, %v205, 0.0
      %v212 = vmul.f32 %v211, %v211
      %v213 = vadd.f32 %v203, %v212
      %s214 = scalar_lea.vmem [#allocation1], 40
      %v215 = vld [vmem:[%s214] sm:$0xff]
      %v216 = vlaneseq
      %v217 = vshrl.u32 %v216, 7
      %v218 = vadd.s32 %v217, 40
      %v219 = vstv %s161
      %vm220 = vcmp.gt.s32.totalorder %v218, %v219
      %v221 = vsel %vm220, %v215, 0.0
      %v222 = vmul.f32 %v221, %v221
      %v223 = vadd.f32 %v213, %v222
      %s224 = scalar_lea.vmem [#allocation1], 48
      %v225 = vld [vmem:[%s224] sm:$0xff]
      %v226 = vlaneseq
      %v227 = vshrl.u32 %v226, 7
      %v228 = vadd.s32 %v227, 48
      %v229 = vstv %s161
      %vm230 = vcmp.gt.s32.totalorder %v228, %v229
      %v231 = vsel %vm230, %v225, 0.0
      %v232 = vmul.f32 %v231, %v231
      %v233 = vadd.f32 %v223, %v232
      %s234 = scalar_lea.vmem [#allocation1], 56
      %v235 = vld [vmem:[%s234] sm:$0xff]
      %v236 = vlaneseq
      %v237 = vshrl.u32 %v236, 7
      %v238 = vadd.s32 %v237, 56
      %v239 = vstv %s161
      %vm240 = vcmp.gt.s32.totalorder %v238, %v239
      %v241 = vsel %vm240, %v235, 0.0
      %v242 = vmul.f32 %v241, %v241
      %v243 = vadd.f32 %v233, %v242
      %s244 = scalar_lea.vmem [#allocation1], 64
      %v245 = vld [vmem:[%s244] sm:$0xff]
      %v246 = vlaneseq
      %v247 = vshrl.u32 %v246, 7
      %v248 = vadd.s32 %v247, 64
      %v249 = vstv %s161
      %vm250 = vcmp.gt.s32.totalorder %v248, %v249
      %v251 = vsel %vm250, %v245, 0.0
      %v252 = vmul.f32 %v251, %v251
      %v253 = vadd.f32 %v243, %v252
      %s254 = scalar_lea.vmem [#allocation1], 72
      %v255 = vld [vmem:[%s254] sm:$0xff]
      %v256 = vlaneseq
      %v257 = vshrl.u32 %v256, 7
      %v258 = vadd.s32 %v257, 72
      %v259 = vstv %s161
      %vm260 = vcmp.gt.s32.totalorder %v258, %v259
      %v261 = vsel %vm260, %v255, 0.0
      %v262 = vmul.f32 %v261, %v261
      %v263 = vadd.f32 %v253, %v262
      %s264 = scalar_lea.vmem [#allocation1], 80
      %v265 = vld [vmem:[%s264] sm:$0xff]
      %v266 = vlaneseq
      %v267 = vshrl.u32 %v266, 7
      %v268 = vadd.s32 %v267, 80
      %v269 = vstv %s161
      %vm270 = vcmp.gt.s32.totalorder %v268, %v269
      %v271 = vsel %vm270, %v265, 0.0
      %v272 = vmul.f32 %v271, %v271
      %v273 = vadd.f32 %v263, %v272
      %s274 = scalar_lea.vmem [#allocation1], 88
      %v275 = vld [vmem:[%s274] sm:$0xff]
      %v276 = vlaneseq
      %v277 = vshrl.u32 %v276, 7
      %v278 = vadd.s32 %v277, 88
      %v279 = vstv %s161
      %vm280 = vcmp.gt.s32.totalorder %v278, %v279
      %v281 = vsel %vm280, %v275, 0.0
      %v282 = vmul.f32 %v281, %v281
      %v283 = vadd.f32 %v273, %v282
      %s284 = scalar_lea.vmem [#allocation1], 96
      %v285 = vld [vmem:[%s284] sm:$0xff]
      %v286 = vlaneseq
      %v287 = vshrl.u32 %v286, 7
      %v288 = vadd.s32 %v287, 96
      %v289 = vstv %s161
      %vm290 = vcmp.gt.s32.totalorder %v288, %v289
      %v291 = vsel %vm290, %v285, 0.0
      %v292 = vmul.f32 %v291, %v291
      %v293 = vadd.f32 %v283, %v292
      %s294 = scalar_lea.vmem [#allocation1], 104
      %v295 = vld [vmem:[%s294] sm:$0xff]
      %v296 = vlaneseq
      %v297 = vshrl.u32 %v296, 7
      %v298 = vadd.s32 %v297, 104
      %v299 = vstv %s161
      %vm300 = vcmp.gt.s32.totalorder %v298, %v299
      %v301 = vsel %vm300, %v295, 0.0
      %v302 = vmul.f32 %v301, %v301
      %v303 = vadd.f32 %v293, %v302
      %s304 = scalar_lea.vmem [#allocation1], 112
      %v305 = vld [vmem:[%s304] sm:$0xff]
      %v306 = vlaneseq
      %v307 = vshrl.u32 %v306, 7
      %v308 = vadd.s32 %v307, 112
      %v309 = vstv %s161
      %vm310 = vcmp.gt.s32.totalorder %v308, %v309
      %v311 = vsel %vm310, %v305, 0.0
      %v312 = vmul.f32 %v311, %v311
      %v313 = vadd.f32 %v303, %v312
      %s314 = scalar_lea.vmem [#allocation1], 120
      %v315 = vld [vmem:[%s314] sm:$0xff]
      %v316 = vlaneseq
      %v317 = vshrl.u32 %v316, 7
      %v318 = vadd.s32 %v317, 120
      %v319 = vstv %s161
      %vm320 = vcmp.gt.s32.totalorder %v318, %v319
      %vm321 = vcmp.lt.s32.totalorder %v318, 128
      %vm322 = vmand %vm320, %vm321
      %v323 = vsel %vm322, %v315, 0.0
      %v324 = vmul.f32 %v323, %v323
      %v325 = vadd.f32 %v313, %v324
      %v326 = vrot.slane %v325, 4
      %v327 = vadd.f32 %v325, %v326
      %v328 = vrot.slane %v327, 2
      %v329 = vadd.f32 %v327, %v328
      %v330 = vrot.slane %v329, 1
      %v331 = vadd.f32 %v329, %v330
      %v332 = vrsqrt.pop %v331
      %v333 = vmul.f32 %v331, %v332
      %vm334 = vcmp.eq.f32.partialorder %v331, inf
      %v335 = vsel %vm334, %v331, %v333
      %vm336 = vcmp.eq.f32.partialorder %v331, 0.0
      %v337 = vand.u32 %v331, 2147483648
      %v338 = vsel %vm336, %v337, %v335
      %vm339 = vcmp.eq.f32.partialorder %v331, 0.0
      %s340 = sshrl.u32 %s161, 3
      %s341 = sand.u32 %s161, 7
      %s342 = smul.addr %s340, 8
      %s343 = sadd.s32 %s341, %s342
      %s344 = scalar_lea.vmem [#allocation1], %s343
      %v345 = vld [vmem:[%s344] ss:$0 sm:$0xff]
      %v346 = vand.u32 2147483647, %v345
      %v347 = vmax.f32 %v346, 0.0
      %v348 = vand.u32 2147483647, %v338
      %v349 = vmax.f32 %v347, %v348
      %v350 = vrcp.pop %v349
      %v351 = vmul.f32 %v346, %v350
      %v352 = vmul.f32 %v351, %v351
      %v353 = vrcp.pop %v349
      %v354 = vmul.f32 0.0, %v353
      %v355 = vmul.f32 %v354, %v354
      %v356 = vadd.f32 %v352, %v355
      %v357 = vrcp.pop %v349
      %v358 = vmul.f32 %v348, %v357
      %v359 = vmul.f32 %v358, %v358
      %v360 = vadd.f32 %v356, %v359
      %vm361 = vcmp.eq.f32.partialorder %v349, 0.0
      %v362 = vrsqrt.pop %v360
      %v363 = vmul.f32 %v360, %v362
      %vm364 = vcmp.eq.f32.partialorder %v360, inf
      %v365 = vsel %vm364, %v360, %v363
      %vm366 = vcmp.eq.f32.partialorder %v360, 0.0
      %v367 = vand.u32 %v360, 2147483648
      %v368 = vsel %vm366, %v367, %v365
      %v369 = vmul.f32 %v349, %v368
      %v370 = vsel %vm361, 0.0, %v369
      %vm371 = vcmp.lt.f32.partialorder %v345, 0.0
      %v372 = vxor.u32 %v370, 2147483648
      %v373 = vsel %vm371, %v370, %v372
      %v374 = vsub.f32 %v373, %v345
      %v375 = vrcp.pop %v373
      %v376 = vmul.f32 %v374, %v375
      %v377 = vsel %vm339, %v345, %v373
      %v378 = vsel %vm339, 0.0, %v376
      %v379 = vsub.f32 %v345, %v377
      %s380 = smov [#allocation1]
      %v381 = vlaneseq
      %v382 = vshrl.u32 %v381, 7
      %v383 = vmov %v382
      %v384 = vld [vmem:[%s380] sm:$0xff]
      %v386 = vstv %s161
      %vm387 = vcmp.gt.s32.totalorder %v383, %v386
      %v388 = vsel %vm387, %v384, 0.0
      %v389 = vrcp.pop %v379
      %v390 = vmul.f32 %v388, %v389
      %v391 = vsel %vm339, 0.0, %v390
      %v392 = vstv %s161
      %v393 = vlaneseq
      %v394 = vand.u32 %v393, 127
      %vm395 = vcmp.eq.s32.totalorder %v394, %v392
      %v396 = vsel %vm395, %v391, 0.0
      %397 = vadd.xlane.f32.xlu0 %v396
      %v398 = vpop.xlane.xlu0 %397
      %399 = vst [vmem:[#allocation4] sm:$0xff] %v398
      %s400 = scalar_lea.vmem %s380, 8
      %v401 = vld [vmem:[%s400] sm:$0xff]
      %v402 = vadd.s32 %v383, 8
      %v403 = vstv %s161
      %vm404 = vcmp.gt.s32.totalorder %v402, %v403
      %v405 = vsel %vm404, %v401, 0.0
      %v406 = vrcp.pop %v379
      %v407 = vmul.f32 %v405, %v406
      %v408 = vsel %vm339, 0.0, %v407
      %v409 = vstv %s161
      %v410 = vlaneseq
      %v411 = vand.u32 %v410, 127
      %vm412 = vcmp.eq.s32.totalorder %v411, %v409
      %v413 = vsel %vm412, %v408, 0.0
      %414 = vadd.xlane.f32.xlu0 %v413
      %v415 = vpop.xlane.xlu0 %414
      %s416 = scalar_lea.vmem [#allocation4], 8
      %417 = vst [vmem:[%s416] sm:$0xff] %v415
      %s418 = scalar_lea.vmem %s380, 16
      %v419 = vld [vmem:[%s418] sm:$0xff]
      %v420 = vadd.s32 %v383, 16
      %v421 = vstv %s161
      %vm422 = vcmp.gt.s32.totalorder %v420, %v421
      %v423 = vsel %vm422, %v419, 0.0
      %v424 = vrcp.pop %v379
      %v425 = vmul.f32 %v423, %v424
      %v426 = vsel %vm339, 0.0, %v425
      %v427 = vstv %s161
      %v428 = vlaneseq
      %v429 = vand.u32 %v428, 127
      %vm430 = vcmp.eq.s32.totalorder %v429, %v427
      %v431 = vsel %vm430, %v426, 0.0
      %432 = vadd.xlane.f32.xlu0 %v431
      %v433 = vpop.xlane.xlu0 %432
      %s434 = scalar_lea.vmem [#allocation4], 16
      %435 = vst [vmem:[%s434] sm:$0xff] %v433
      %s436 = scalar_lea.vmem %s380, 24
      %v437 = vld [vmem:[%s436] sm:$0xff]
      %v438 = vadd.s32 %v383, 24
      %v439 = vstv %s161
      %vm440 = vcmp.gt.s32.totalorder %v438, %v439
      %v441 = vsel %vm440, %v437, 0.0
      %v442 = vrcp.pop %v379
      %v443 = vmul.f32 %v441, %v442
      %v444 = vsel %vm339, 0.0, %v443
      %v445 = vstv %s161
      %v446 = vlaneseq
      %v447 = vand.u32 %v446, 127
      %vm448 = vcmp.eq.s32.totalorder %v447, %v445
      %v449 = vsel %vm448, %v444, 0.0
      %450 = vadd.xlane.f32.xlu0 %v449
      %v451 = vpop.xlane.xlu0 %450
      %s452 = scalar_lea.vmem [#allocation4], 24
      %453 = vst [vmem:[%s452] sm:$0xff] %v451
      %s454 = scalar_lea.vmem %s380, 32
      %v455 = vld [vmem:[%s454] sm:$0xff]
      %v456 = vadd.s32 %v383, 32
      %v457 = vstv %s161
      %vm458 = vcmp.gt.s32.totalorder %v456, %v457
      %v459 = vsel %vm458, %v455, 0.0
      %v460 = vrcp.pop %v379
      %v461 = vmul.f32 %v459, %v460
      %v462 = vsel %vm339, 0.0, %v461
      %v463 = vstv %s161
      %v464 = vlaneseq
      %v465 = vand.u32 %v464, 127
      %vm466 = vcmp.eq.s32.totalorder %v465, %v463
      %v467 = vsel %vm466, %v462, 0.0
      %468 = vadd.xlane.f32.xlu0 %v467
      %v469 = vpop.xlane.xlu0 %468
      %s470 = scalar_lea.vmem [#allocation4], 32
      %471 = vst [vmem:[%s470] sm:$0xff] %v469
      %s472 = scalar_lea.vmem %s380, 40
      %v473 = vld [vmem:[%s472] sm:$0xff]
      %v474 = vadd.s32 %v383, 40
      %v475 = vstv %s161
      %vm476 = vcmp.gt.s32.totalorder %v474, %v475
      %v477 = vsel %vm476, %v473, 0.0
      %v478 = vrcp.pop %v379
      %v479 = vmul.f32 %v477, %v478
      %v480 = vsel %vm339, 0.0, %v479
      %v481 = vstv %s161
      %v482 = vlaneseq
      %v483 = vand.u32 %v482, 127
      %vm484 = vcmp.eq.s32.totalorder %v483, %v481
      %v485 = vsel %vm484, %v480, 0.0
      %486 = vadd.xlane.f32.xlu0 %v485
      %v487 = vpop.xlane.xlu0 %486
      %s488 = scalar_lea.vmem [#allocation4], 40
      %489 = vst [vmem:[%s488] sm:$0xff] %v487
      %s490 = scalar_lea.vmem %s380, 48
      %v491 = vld [vmem:[%s490] sm:$0xff]
      %v492 = vadd.s32 %v383, 48
      %v493 = vstv %s161
      %vm494 = vcmp.gt.s32.totalorder %v492, %v493
      %v495 = vsel %vm494, %v491, 0.0
      %v496 = vrcp.pop %v379
      %v497 = vmul.f32 %v495, %v496
      %v498 = vsel %vm339, 0.0, %v497
      %v499 = vstv %s161
      %v500 = vlaneseq
      %v501 = vand.u32 %v500, 127
      %vm502 = vcmp.eq.s32.totalorder %v501, %v499
      %v503 = vsel %vm502, %v498, 0.0
      %504 = vadd.xlane.f32.xlu0 %v503
      %v505 = vpop.xlane.xlu0 %504
      %s506 = scalar_lea.vmem [#allocation4], 48
      %507 = vst [vmem:[%s506] sm:$0xff] %v505
      %s508 = scalar_lea.vmem %s380, 56
      %v509 = vld [vmem:[%s508] sm:$0xff]
      %v510 = vadd.s32 %v383, 56
      %v511 = vstv %s161
      %vm512 = vcmp.gt.s32.totalorder %v510, %v511
      %v513 = vsel %vm512, %v509, 0.0
      %v514 = vrcp.pop %v379
      %v515 = vmul.f32 %v513, %v514
      %v516 = vsel %vm339, 0.0, %v515
      %v517 = vstv %s161
      %v518 = vlaneseq
      %v519 = vand.u32 %v518, 127
      %vm520 = vcmp.eq.s32.totalorder %v519, %v517
      %v521 = vsel %vm520, %v516, 0.0
      %522 = vadd.xlane.f32.xlu0 %v521
      %v523 = vpop.xlane.xlu0 %522
      %s524 = scalar_lea.vmem [#allocation4], 56
      %525 = vst [vmem:[%s524] sm:$0xff] %v523
      %s526 = scalar_lea.vmem %s380, 64
      %v527 = vld [vmem:[%s526] sm:$0xff]
      %v528 = vadd.s32 %v383, 64
      %v529 = vstv %s161
      %vm530 = vcmp.gt.s32.totalorder %v528, %v529
      %v531 = vsel %vm530, %v527, 0.0
      %v532 = vrcp.pop %v379
      %v533 = vmul.f32 %v531, %v532
      %v534 = vsel %vm339, 0.0, %v533
      %v535 = vstv %s161
      %v536 = vlaneseq
      %v537 = vand.u32 %v536, 127
      %vm538 = vcmp.eq.s32.totalorder %v537, %v535
      %v539 = vsel %vm538, %v534, 0.0
      %540 = vadd.xlane.f32.xlu0 %v539
      %v541 = vpop.xlane.xlu0 %540
      %s542 = scalar_lea.vmem [#allocation4], 64
      %543 = vst [vmem:[%s542] sm:$0xff] %v541
      %s544 = scalar_lea.vmem %s380, 72
      %v545 = vld [vmem:[%s544] sm:$0xff]
      %v546 = vadd.s32 %v383, 72
      %v547 = vstv %s161
      %vm548 = vcmp.gt.s32.totalorder %v546, %v547
      %v549 = vsel %vm548, %v545, 0.0
      %v550 = vrcp.pop %v379
      %v551 = vmul.f32 %v549, %v550
      %v552 = vsel %vm339, 0.0, %v551
      %v553 = vstv %s161
      %v554 = vlaneseq
      %v555 = vand.u32 %v554, 127
      %vm556 = vcmp.eq.s32.totalorder %v555, %v553
      %v557 = vsel %vm556, %v552, 0.0
      %558 = vadd.xlane.f32.xlu0 %v557
      %v559 = vpop.xlane.xlu0 %558
      %s560 = scalar_lea.vmem [#allocation4], 72
      %561 = vst [vmem:[%s560] sm:$0xff] %v559
      %s562 = scalar_lea.vmem %s380, 80
      %v563 = vld [vmem:[%s562] sm:$0xff]
      %v564 = vadd.s32 %v383, 80
      %v565 = vstv %s161
      %vm566 = vcmp.gt.s32.totalorder %v564, %v565
      %v567 = vsel %vm566, %v563, 0.0
      %v568 = vrcp.pop %v379
      %v569 = vmul.f32 %v567, %v568
      %v570 = vsel %vm339, 0.0, %v569
      %v571 = vstv %s161
      %v572 = vlaneseq
      %v573 = vand.u32 %v572, 127
      %vm574 = vcmp.eq.s32.totalorder %v573, %v571
      %v575 = vsel %vm574, %v570, 0.0
      %576 = vadd.xlane.f32.xlu0 %v575
      %v577 = vpop.xlane.xlu0 %576
      %s578 = scalar_lea.vmem [#allocation4], 80
      %579 = vst [vmem:[%s578] sm:$0xff] %v577
      %s580 = scalar_lea.vmem %s380, 88
      %v581 = vld [vmem:[%s580] sm:$0xff]
      %v582 = vadd.s32 %v383, 88
      %v583 = vstv %s161
      %vm584 = vcmp.gt.s32.totalorder %v582, %v583
      %v585 = vsel %vm584, %v581, 0.0
      %v586 = vrcp.pop %v379
      %v587 = vmul.f32 %v585, %v586
      %v588 = vsel %vm339, 0.0, %v587
      %v589 = vstv %s161
      %v590 = vlaneseq
      %v591 = vand.u32 %v590, 127
      %vm592 = vcmp.eq.s32.totalorder %v591, %v589
      %v593 = vsel %vm592, %v588, 0.0
      %594 = vadd.xlane.f32.xlu0 %v593
      %v595 = vpop.xlane.xlu0 %594
      %s596 = scalar_lea.vmem [#allocation4], 88
      %597 = vst [vmem:[%s596] sm:$0xff] %v595
      %s598 = scalar_lea.vmem %s380, 96
      %v599 = vld [vmem:[%s598] sm:$0xff]
      %v600 = vadd.s32 %v383, 96
      %v601 = vstv %s161
      %vm602 = vcmp.gt.s32.totalorder %v600, %v601
      %v603 = vsel %vm602, %v599, 0.0
      %v604 = vrcp.pop %v379
      %v605 = vmul.f32 %v603, %v604
      %v606 = vsel %vm339, 0.0, %v605
      %v607 = vstv %s161
      %v608 = vlaneseq
      %v609 = vand.u32 %v608, 127
      %vm610 = vcmp.eq.s32.totalorder %v609, %v607
      %v611 = vsel %vm610, %v606, 0.0
      %612 = vadd.xlane.f32.xlu0 %v611
      %v613 = vpop.xlane.xlu0 %612
      %s614 = scalar_lea.vmem [#allocation4], 96
      %615 = vst [vmem:[%s614] sm:$0xff] %v613
      %s616 = scalar_lea.vmem %s380, 104
      %v617 = vld [vmem:[%s616] sm:$0xff]
      %v618 = vadd.s32 %v383, 104
      %v619 = vstv %s161
      %vm620 = vcmp.gt.s32.totalorder %v618, %v619
      %v621 = vsel %vm620, %v617, 0.0
      %v622 = vrcp.pop %v379
      %v623 = vmul.f32 %v621, %v622
      %v624 = vsel %vm339, 0.0, %v623
      %v625 = vstv %s161
      %v626 = vlaneseq
      %v627 = vand.u32 %v626, 127
      %vm628 = vcmp.eq.s32.totalorder %v627, %v625
      %v629 = vsel %vm628, %v624, 0.0
      %630 = vadd.xlane.f32.xlu0 %v629
      %v631 = vpop.xlane.xlu0 %630
      %s632 = scalar_lea.vmem [#allocation4], 104
      %633 = vst [vmem:[%s632] sm:$0xff] %v631
      %s634 = scalar_lea.vmem %s380, 112
      %v635 = vld [vmem:[%s634] sm:$0xff]
      %v636 = vadd.s32 %v383, 112
      %v637 = vstv %s161
      %vm638 = vcmp.gt.s32.totalorder %v636, %v637
      %v639 = vsel %vm638, %v635, 0.0
      %v640 = vrcp.pop %v379
      %v641 = vmul.f32 %v639, %v640
      %v642 = vsel %vm339, 0.0, %v641
      %v643 = vstv %s161
      %v644 = vlaneseq
      %v645 = vand.u32 %v644, 127
      %vm646 = vcmp.eq.s32.totalorder %v645, %v643
      %v647 = vsel %vm646, %v642, 0.0
      %648 = vadd.xlane.f32.xlu0 %v647
      %v649 = vpop.xlane.xlu0 %648
      %s650 = scalar_lea.vmem [#allocation4], 112
      %651 = vst [vmem:[%s650] sm:$0xff] %v649
      %s652 = scalar_lea.vmem %s380, 120
      %v653 = vld [vmem:[%s652] sm:$0xff]
      %v654 = vadd.s32 %v383, 120
      %v655 = vstv %s161
      %vm656 = vcmp.gt.s32.totalorder %v654, %v655
      %vm657 = vcmp.lt.s32.totalorder %v654, 128
      %vm658 = vmand %vm656, %vm657
      %v659 = vsel %vm658, %v653, 0.0
      %v660 = vrcp.pop %v379
      %v661 = vmul.f32 %v659, %v660
      %v662 = vsel %vm339, 0.0, %v661
      %v663 = vstv %s161
      %v664 = vlaneseq
      %v665 = vand.u32 %v664, 127
      %vm666 = vcmp.eq.s32.totalorder %v665, %v663
      %v667 = vsel %vm666, %v662, 0.0
      %668 = vadd.xlane.f32.xlu0 %v667
      %v669 = vpop.xlane.xlu0 %668
      %s670 = scalar_lea.vmem [#allocation4], 120
      %671 = vst [vmem:[%s670] sm:$0xff] %v669
      %s672 = scalar_lea.vmem [#allocation4], %s161
      %673 = vst [vmem:[%s672] sm:$0x1] 1.0
      %v674 = vstv %s161
      %v675 = vlaneseq
      %v676 = vand.u32 %v675, 127
      %vm677 = vcmp.eq.s32.totalorder %v676, %v674
      %v678 = vsel %vm677, %v378, 0.0
      %679 = vadd.xlane.f32.xlu0 %v678
      %v680 = vpop.xlane.xlu0 %679
      %v681 = vstv %s161
      %v682 = vlaneseq
      %v683 = vand.u32 %v682, 127
      %vm684 = vcmp.eq.s32.totalorder %v683, %v681
      %v685 = vld [vmem:[#allocation2] ss:$0 sm:$0xff]
      %v686 = vsel %vm684, %v680, %v685
      %687 = vst [vmem:[#allocation2] sm:$0x1] %v686
      %s688 = smov [#allocation1]
      %s689 = smov [#allocation4]
      %v690 = vlaneseq
      %v691 = vshrl.u32 %v690, 7
      %v692 = vmov %v691
      %v694 = vld [vmem:[%s689] sm:$0xff]
      %v695 = vld [vmem:[%s688] sm:$0xff]
      %v696 = vmul.f32 %v694, %v695
      %v697 = vadd.s32 %v692, 8
      %s698 = scalar_lea.vmem %s689, 8
      %v699 = vld [vmem:[%s698] sm:$0xff]
      %s700 = scalar_lea.vmem %s688, 8
      %v701 = vld [vmem:[%s700] sm:$0xff]
      %v702 = vmul.f32 %v699, %v701
      %v703 = vadd.f32 %v696, %v702
      %v704 = vadd.s32 %v692, 16
      %s705 = scalar_lea.vmem %s689, 16
      %v706 = vld [vmem:[%s705] sm:$0xff]
      %s707 = scalar_lea.vmem %s688, 16
      %v708 = vld [vmem:[%s707] sm:$0xff]
      %v709 = vmul.f32 %v706, %v708
      %v710 = vadd.f32 %v703, %v709
      %v711 = vadd.s32 %v692, 24
      %s712 = scalar_lea.vmem %s689, 24
      %v713 = vld [vmem:[%s712] sm:$0xff]
      %s714 = scalar_lea.vmem %s688, 24
      %v715 = vld [vmem:[%s714] sm:$0xff]
      %v716 = vmul.f32 %v713, %v715
      %v717 = vadd.f32 %v710, %v716
      %v718 = vadd.s32 %v692, 32
      %s719 = scalar_lea.vmem %s689, 32
      %v720 = vld [vmem:[%s719] sm:$0xff]
      %s721 = scalar_lea.vmem %s688, 32
      %v722 = vld [vmem:[%s721] sm:$0xff]
      %v723 = vmul.f32 %v720, %v722
      %v724 = vadd.f32 %v717, %v723
      %v725 = vadd.s32 %v692, 40
      %s726 = scalar_lea.vmem %s689, 40
      %v727 = vld [vmem:[%s726] sm:$0xff]
      %s728 = scalar_lea.vmem %s688, 40
      %v729 = vld [vmem:[%s728] sm:$0xff]
      %v730 = vmul.f32 %v727, %v729
      %v731 = vadd.f32 %v724, %v730
      %v732 = vadd.s32 %v692, 48
      %s733 = scalar_lea.vmem %s689, 48
      %v734 = vld [vmem:[%s733] sm:$0xff]
      %s735 = scalar_lea.vmem %s688, 48
      %v736 = vld [vmem:[%s735] sm:$0xff]
      %v737 = vmul.f32 %v734, %v736
      %v738 = vadd.f32 %v731, %v737
      %v739 = vadd.s32 %v692, 56
      %s740 = scalar_lea.vmem %s689, 56
      %v741 = vld [vmem:[%s740] sm:$0xff]
      %s742 = scalar_lea.vmem %s688, 56
      %v743 = vld [vmem:[%s742] sm:$0xff]
      %v744 = vmul.f32 %v741, %v743
      %v745 = vadd.f32 %v738, %v744
      %v746 = vadd.s32 %v692, 64
      %s747 = scalar_lea.vmem %s689, 64
      %v748 = vld [vmem:[%s747] sm:$0xff]
      %s749 = scalar_lea.vmem %s688, 64
      %v750 = vld [vmem:[%s749] sm:$0xff]
      %v751 = vmul.f32 %v748, %v750
      %v752 = vadd.f32 %v745, %v751
      %v753 = vadd.s32 %v692, 72
      %s754 = scalar_lea.vmem %s689, 72
      %v755 = vld [vmem:[%s754] sm:$0xff]
      %s756 = scalar_lea.vmem %s688, 72
      %v757 = vld [vmem:[%s756] sm:$0xff]
      %v758 = vmul.f32 %v755, %v757
      %v759 = vadd.f32 %v752, %v758
      %v760 = vadd.s32 %v692, 80
      %s761 = scalar_lea.vmem %s689, 80
      %v762 = vld [vmem:[%s761] sm:$0xff]
      %s763 = scalar_lea.vmem %s688, 80
      %v764 = vld [vmem:[%s763] sm:$0xff]
      %v765 = vmul.f32 %v762, %v764
      %v766 = vadd.f32 %v759, %v765
      %v767 = vadd.s32 %v692, 88
      %s768 = scalar_lea.vmem %s689, 88
      %v769 = vld [vmem:[%s768] sm:$0xff]
      %s770 = scalar_lea.vmem %s688, 88
      %v771 = vld [vmem:[%s770] sm:$0xff]
      %v772 = vmul.f32 %v769, %v771
      %v773 = vadd.f32 %v766, %v772
      %v774 = vadd.s32 %v692, 96
      %s775 = scalar_lea.vmem %s689, 96
      %v776 = vld [vmem:[%s775] sm:$0xff]
      %s777 = scalar_lea.vmem %s688, 96
      %v778 = vld [vmem:[%s777] sm:$0xff]
      %v779 = vmul.f32 %v776, %v778
      %v780 = vadd.f32 %v773, %v779
      %v781 = vadd.s32 %v692, 104
      %s782 = scalar_lea.vmem %s689, 104
      %v783 = vld [vmem:[%s782] sm:$0xff]
      %s784 = scalar_lea.vmem %s688, 104
      %v785 = vld [vmem:[%s784] sm:$0xff]
      %v786 = vmul.f32 %v783, %v785
      %v787 = vadd.f32 %v780, %v786
      %v788 = vadd.s32 %v692, 112
      %s789 = scalar_lea.vmem %s689, 112
      %v790 = vld [vmem:[%s789] sm:$0xff]
      %s791 = scalar_lea.vmem %s688, 112
      %v792 = vld [vmem:[%s791] sm:$0xff]
      %v793 = vmul.f32 %v790, %v792
      %v794 = vadd.f32 %v787, %v793
      %v795 = vadd.s32 %v692, 120
      %s796 = scalar_lea.vmem %s689, 120
      %v797 = vld [vmem:[%s796] sm:$0xff]
      %s798 = scalar_lea.vmem %s688, 120
      %v799 = vld [vmem:[%s798] sm:$0xff]
      %v800 = vmul.f32 %v797, %v799
      %vm801 = vcmp.lt.s32.totalorder %v795, 128
      %v802 = vsel %vm801, %v800, 0.0
      %v803 = vadd.f32 %v794, %v802
      %v804 = vrot.slane %v803, 4
      %v805 = vadd.f32 %v803, %v804
      %v806 = vrot.slane %v805, 2
      %v807 = vadd.f32 %v805, %v806
      %v808 = vrot.slane %v807, 1
      %v809 = vadd.f32 %v807, %v808
      %s810 = smov %s688
      %s811 = smov %s689
      %v812 = vlaneseq
      %v813 = vshrl.u32 %v812, 7
      %v814 = vmov %v813
      %v815 = vmul.f32 %v809, %v680
      %v817 = vlaneseq
      %v818 = vand.u32 %v817, 127
      %v819 = vld [vmem:[%s811] sm:$0xff]
      %v820 = vmul.f32 %v819, %v815
      %v821 = vld [vmem:[%s810] sm:$0xff]
      %v822 = vstv %s161
      %vm823 = vcmp.gt.s32.totalorder %v818, %v822
      %v824 = vsub.f32 %v821, %v820
      %v825 = vsel %vm823, %v824, %v821
      %v826 = vstv %s161
      %v827 = vlaneseq
      %v828 = vand.u32 %v827, 127
      %vm829 = vcmp.eq.s32.totalorder %v828, %v826
      %v830 = vstv %s161
      %vm831 = vcmp.ge.s32.totalorder %v814, %v830
      %vm832 = vmand %vm829, %vm831
      %v833 = vsel %vm832, %v819, %v825
      %834 = vst [vmem:[%s810] sm:$0xff] %v833
      %v835 = vadd.s32 %v814, 8
      %v836 = vlaneseq
      %v837 = vand.u32 %v836, 127
      %s838 = scalar_lea.vmem %s811, 8
      %v839 = vld [vmem:[%s838] sm:$0xff]
      %v840 = vmul.f32 %v839, %v815
      %s841 = scalar_lea.vmem %s810, 8
      %v842 = vld [vmem:[%s841] sm:$0xff]
      %v843 = vstv %s161
      %vm844 = vcmp.gt.s32.totalorder %v837, %v843
      %v845 = vsub.f32 %v842, %v840
      %v846 = vsel %vm844, %v845, %v842
      %v847 = vstv %s161
      %v848 = vlaneseq
      %v849 = vand.u32 %v848, 127
      %vm850 = vcmp.eq.s32.totalorder %v849, %v847
      %v851 = vstv %s161
      %vm852 = vcmp.ge.s32.totalorder %v835, %v851
      %vm853 = vmand %vm850, %vm852
      %v854 = vsel %vm853, %v839, %v846
      %855 = vst [vmem:[%s841] sm:$0xff] %v854
      %v856 = vadd.s32 %v814, 16
      %v857 = vlaneseq
      %v858 = vand.u32 %v857, 127
      %s859 = scalar_lea.vmem %s811, 16
      %v860 = vld [vmem:[%s859] sm:$0xff]
      %v861 = vmul.f32 %v860, %v815
      %s862 = scalar_lea.vmem %s810, 16
      %v863 = vld [vmem:[%s862] sm:$0xff]
      %v864 = vstv %s161
      %vm865 = vcmp.gt.s32.totalorder %v858, %v864
      %v866 = vsub.f32 %v863, %v861
      %v867 = vsel %vm865, %v866, %v863
      %v868 = vstv %s161
      %v869 = vlaneseq
      %v870 = vand.u32 %v869, 127
      %vm871 = vcmp.eq.s32.totalorder %v870, %v868
      %v872 = vstv %s161
      %vm873 = vcmp.ge.s32.totalorder %v856, %v872
      %vm874 = vmand %vm871, %vm873
      %v875 = vsel %vm874, %v860, %v867
      %876 = vst [vmem:[%s862] sm:$0xff] %v875
      %v877 = vadd.s32 %v814, 24
      %v878 = vlaneseq
      %v879 = vand.u32 %v878, 127
      %s880 = scalar_lea.vmem %s811, 24
      %v881 = vld [vmem:[%s880] sm:$0xff]
      %v882 = vmul.f32 %v881, %v815
      %s883 = scalar_lea.vmem %s810, 24
      %v884 = vld [vmem:[%s883] sm:$0xff]
      %v885 = vstv %s161
      %vm886 = vcmp.gt.s32.totalorder %v879, %v885
      %v887 = vsub.f32 %v884, %v882
      %v888 = vsel %vm886, %v887, %v884
      %v889 = vstv %s161
      %v890 = vlaneseq
      %v891 = vand.u32 %v890, 127
      %vm892 = vcmp.eq.s32.totalorder %v891, %v889
      %v893 = vstv %s161
      %vm894 = vcmp.ge.s32.totalorder %v877, %v893
      %vm895 = vmand %vm892, %vm894
      %v896 = vsel %vm895, %v881, %v888
      %897 = vst [vmem:[%s883] sm:$0xff] %v896
      %v898 = vadd.s32 %v814, 32
      %v899 = vlaneseq
      %v900 = vand.u32 %v899, 127
      %s901 = scalar_lea.vmem %s811, 32
      %v902 = vld [vmem:[%s901] sm:$0xff]
      %v903 = vmul.f32 %v902, %v815
      %s904 = scalar_lea.vmem %s810, 32
      %v905 = vld [vmem:[%s904] sm:$0xff]
      %v906 = vstv %s161
      %vm907 = vcmp.gt.s32.totalorder %v900, %v906
      %v908 = vsub.f32 %v905, %v903
      %v909 = vsel %vm907, %v908, %v905
      %v910 = vstv %s161
      %v911 = vlaneseq
      %v912 = vand.u32 %v911, 127
      %vm913 = vcmp.eq.s32.totalorder %v912, %v910
      %v914 = vstv %s161
      %vm915 = vcmp.ge.s32.totalorder %v898, %v914
      %vm916 = vmand %vm913, %vm915
      %v917 = vsel %vm916, %v902, %v909
      %918 = vst [vmem:[%s904] sm:$0xff] %v917
      %v919 = vadd.s32 %v814, 40
      %v920 = vlaneseq
      %v921 = vand.u32 %v920, 127
      %s922 = scalar_lea.vmem %s811, 40
      %v923 = vld [vmem:[%s922] sm:$0xff]
      %v924 = vmul.f32 %v923, %v815
      %s925 = scalar_lea.vmem %s810, 40
      %v926 = vld [vmem:[%s925] sm:$0xff]
      %v927 = vstv %s161
      %vm928 = vcmp.gt.s32.totalorder %v921, %v927
      %v929 = vsub.f32 %v926, %v924
      %v930 = vsel %vm928, %v929, %v926
      %v931 = vstv %s161
      %v932 = vlaneseq
      %v933 = vand.u32 %v932, 127
      %vm934 = vcmp.eq.s32.totalorder %v933, %v931
      %v935 = vstv %s161
      %vm936 = vcmp.ge.s32.totalorder %v919, %v935
      %vm937 = vmand %vm934, %vm936
      %v938 = vsel %vm937, %v923, %v930
      %939 = vst [vmem:[%s925] sm:$0xff] %v938
      %v940 = vadd.s32 %v814, 48
      %v941 = vlaneseq
      %v942 = vand.u32 %v941, 127
      %s943 = scalar_lea.vmem %s811, 48
      %v944 = vld [vmem:[%s943] sm:$0xff]
      %v945 = vmul.f32 %v944, %v815
      %s946 = scalar_lea.vmem %s810, 48
      %v947 = vld [vmem:[%s946] sm:$0xff]
      %v948 = vstv %s161
      %vm949 = vcmp.gt.s32.totalorder %v942, %v948
      %v950 = vsub.f32 %v947, %v945
      %v951 = vsel %vm949, %v950, %v947
      %v952 = vstv %s161
      %v953 = vlaneseq
      %v954 = vand.u32 %v953, 127
      %vm955 = vcmp.eq.s32.totalorder %v954, %v952
      %v956 = vstv %s161
      %vm957 = vcmp.ge.s32.totalorder %v940, %v956
      %vm958 = vmand %vm955, %vm957
      %v959 = vsel %vm958, %v944, %v951
      %960 = vst [vmem:[%s946] sm:$0xff] %v959
      %v961 = vadd.s32 %v814, 56
      %v962 = vlaneseq
      %v963 = vand.u32 %v962, 127
      %s964 = scalar_lea.vmem %s811, 56
      %v965 = vld [vmem:[%s964] sm:$0xff]
      %v966 = vmul.f32 %v965, %v815
      %s967 = scalar_lea.vmem %s810, 56
      %v968 = vld [vmem:[%s967] sm:$0xff]
      %v969 = vstv %s161
      %vm970 = vcmp.gt.s32.totalorder %v963, %v969
      %v971 = vsub.f32 %v968, %v966
      %v972 = vsel %vm970, %v971, %v968
      %v973 = vstv %s161
      %v974 = vlaneseq
      %v975 = vand.u32 %v974, 127
      %vm976 = vcmp.eq.s32.totalorder %v975, %v973
      %v977 = vstv %s161
      %vm978 = vcmp.ge.s32.totalorder %v961, %v977
      %vm979 = vmand %vm976, %vm978
      %v980 = vsel %vm979, %v965, %v972
      %981 = vst [vmem:[%s967] sm:$0xff] %v980
      %v982 = vadd.s32 %v814, 64
      %v983 = vlaneseq
      %v984 = vand.u32 %v983, 127
      %s985 = scalar_lea.vmem %s811, 64
      %v986 = vld [vmem:[%s985] sm:$0xff]
      %v987 = vmul.f32 %v986, %v815
      %s988 = scalar_lea.vmem %s810, 64
      %v989 = vld [vmem:[%s988] sm:$0xff]
      %v990 = vstv %s161
      %vm991 = vcmp.gt.s32.totalorder %v984, %v990
      %v992 = vsub.f32 %v989, %v987
      %v993 = vsel %vm991, %v992, %v989
      %v994 = vstv %s161
      %v995 = vlaneseq
      %v996 = vand.u32 %v995, 127
      %vm997 = vcmp.eq.s32.totalorder %v996, %v994
      %v998 = vstv %s161
      %vm999 = vcmp.ge.s32.totalorder %v982, %v998
      %vm1000 = vmand %vm997, %vm999
      %v1001 = vsel %vm1000, %v986, %v993
      %1002 = vst [vmem:[%s988] sm:$0xff] %v1001
      %v1003 = vadd.s32 %v814, 72
      %v1004 = vlaneseq
      %v1005 = vand.u32 %v1004, 127
      %s1006 = scalar_lea.vmem %s811, 72
      %v1007 = vld [vmem:[%s1006] sm:$0xff]
      %v1008 = vmul.f32 %v1007, %v815
      %s1009 = scalar_lea.vmem %s810, 72
      %v1010 = vld [vmem:[%s1009] sm:$0xff]
      %v1011 = vstv %s161
      %vm1012 = vcmp.gt.s32.totalorder %v1005, %v1011
      %v1013 = vsub.f32 %v1010, %v1008
      %v1014 = vsel %vm1012, %v1013, %v1010
      %v1015 = vstv %s161
      %v1016 = vlaneseq
      %v1017 = vand.u32 %v1016, 127
      %vm1018 = vcmp.eq.s32.totalorder %v1017, %v1015
      %v1019 = vstv %s161
      %vm1020 = vcmp.ge.s32.totalorder %v1003, %v1019
      %vm1021 = vmand %vm1018, %vm1020
      %v1022 = vsel %vm1021, %v1007, %v1014
      %1023 = vst [vmem:[%s1009] sm:$0xff] %v1022
      %v1024 = vadd.s32 %v814, 80
      %v1025 = vlaneseq
      %v1026 = vand.u32 %v1025, 127
      %s1027 = scalar_lea.vmem %s811, 80
      %v1028 = vld [vmem:[%s1027] sm:$0xff]
      %v1029 = vmul.f32 %v1028, %v815
      %s1030 = scalar_lea.vmem %s810, 80
      %v1031 = vld [vmem:[%s1030] sm:$0xff]
      %v1032 = vstv %s161
      %vm1033 = vcmp.gt.s32.totalorder %v1026, %v1032
      %v1034 = vsub.f32 %v1031, %v1029
      %v1035 = vsel %vm1033, %v1034, %v1031
      %v1036 = vstv %s161
      %v1037 = vlaneseq
      %v1038 = vand.u32 %v1037, 127
      %vm1039 = vcmp.eq.s32.totalorder %v1038, %v1036
      %v1040 = vstv %s161
      %vm1041 = vcmp.ge.s32.totalorder %v1024, %v1040
      %vm1042 = vmand %vm1039, %vm1041
      %v1043 = vsel %vm1042, %v1028, %v1035
      %1044 = vst [vmem:[%s1030] sm:$0xff] %v1043
      %v1045 = vadd.s32 %v814, 88
      %v1046 = vlaneseq
      %v1047 = vand.u32 %v1046, 127
      %s1048 = scalar_lea.vmem %s811, 88
      %v1049 = vld [vmem:[%s1048] sm:$0xff]
      %v1050 = vmul.f32 %v1049, %v815
      %s1051 = scalar_lea.vmem %s810, 88
      %v1052 = vld [vmem:[%s1051] sm:$0xff]
      %v1053 = vstv %s161
      %vm1054 = vcmp.gt.s32.totalorder %v1047, %v1053
      %v1055 = vsub.f32 %v1052, %v1050
      %v1056 = vsel %vm1054, %v1055, %v1052
      %v1057 = vstv %s161
      %v1058 = vlaneseq
      %v1059 = vand.u32 %v1058, 127
      %vm1060 = vcmp.eq.s32.totalorder %v1059, %v1057
      %v1061 = vstv %s161
      %vm1062 = vcmp.ge.s32.totalorder %v1045, %v1061
      %vm1063 = vmand %vm1060, %vm1062
      %v1064 = vsel %vm1063, %v1049, %v1056
      %1065 = vst [vmem:[%s1051] sm:$0xff] %v1064
      %v1066 = vadd.s32 %v814, 96
      %v1067 = vlaneseq
      %v1068 = vand.u32 %v1067, 127
      %s1069 = scalar_lea.vmem %s811, 96
      %v1070 = vld [vmem:[%s1069] sm:$0xff]
      %v1071 = vmul.f32 %v1070, %v815
      %s1072 = scalar_lea.vmem %s810, 96
      %v1073 = vld [vmem:[%s1072] sm:$0xff]
      %v1074 = vstv %s161
      %vm1075 = vcmp.gt.s32.totalorder %v1068, %v1074
      %v1076 = vsub.f32 %v1073, %v1071
      %v1077 = vsel %vm1075, %v1076, %v1073
      %v1078 = vstv %s161
      %v1079 = vlaneseq
      %v1080 = vand.u32 %v1079, 127
      %vm1081 = vcmp.eq.s32.totalorder %v1080, %v1078
      %v1082 = vstv %s161
      %vm1083 = vcmp.ge.s32.totalorder %v1066, %v1082
      %vm1084 = vmand %vm1081, %vm1083
      %v1085 = vsel %vm1084, %v1070, %v1077
      %1086 = vst [vmem:[%s1072] sm:$0xff] %v1085
      %v1087 = vadd.s32 %v814, 104
      %v1088 = vlaneseq
      %v1089 = vand.u32 %v1088, 127
      %s1090 = scalar_lea.vmem %s811, 104
      %v1091 = vld [vmem:[%s1090] sm:$0xff]
      %v1092 = vmul.f32 %v1091, %v815
      %s1093 = scalar_lea.vmem %s810, 104
      %v1094 = vld [vmem:[%s1093] sm:$0xff]
      %v1095 = vstv %s161
      %vm1096 = vcmp.gt.s32.totalorder %v1089, %v1095
      %v1097 = vsub.f32 %v1094, %v1092
      %v1098 = vsel %vm1096, %v1097, %v1094
      %v1099 = vstv %s161
      %v1100 = vlaneseq
      %v1101 = vand.u32 %v1100, 127
      %vm1102 = vcmp.eq.s32.totalorder %v1101, %v1099
      %v1103 = vstv %s161
      %vm1104 = vcmp.ge.s32.totalorder %v1087, %v1103
      %vm1105 = vmand %vm1102, %vm1104
      %v1106 = vsel %vm1105, %v1091, %v1098
      %1107 = vst [vmem:[%s1093] sm:$0xff] %v1106
      %v1108 = vadd.s32 %v814, 112
      %v1109 = vlaneseq
      %v1110 = vand.u32 %v1109, 127
      %s1111 = scalar_lea.vmem %s811, 112
      %v1112 = vld [vmem:[%s1111] sm:$0xff]
      %v1113 = vmul.f32 %v1112, %v815
      %s1114 = scalar_lea.vmem %s810, 112
      %v1115 = vld [vmem:[%s1114] sm:$0xff]
      %v1116 = vstv %s161
      %vm1117 = vcmp.gt.s32.totalorder %v1110, %v1116
      %v1118 = vsub.f32 %v1115, %v1113
      %v1119 = vsel %vm1117, %v1118, %v1115
      %v1120 = vstv %s161
      %v1121 = vlaneseq
      %v1122 = vand.u32 %v1121, 127
      %vm1123 = vcmp.eq.s32.totalorder %v1122, %v1120
      %v1124 = vstv %s161
      %vm1125 = vcmp.ge.s32.totalorder %v1108, %v1124
      %vm1126 = vmand %vm1123, %vm1125
      %v1127 = vsel %vm1126, %v1112, %v1119
      %1128 = vst [vmem:[%s1114] sm:$0xff] %v1127
      %v1129 = vadd.s32 %v814, 120
      %v1130 = vlaneseq
      %v1131 = vand.u32 %v1130, 127
      %s1132 = scalar_lea.vmem %s811, 120
      %v1133 = vld [vmem:[%s1132] sm:$0xff]
      %v1134 = vmul.f32 %v1133, %v815
      %s1135 = scalar_lea.vmem %s810, 120
      %v1136 = vld [vmem:[%s1135] sm:$0xff]
      %v1137 = vstv %s161
      %vm1138 = vcmp.gt.s32.totalorder %v1131, %v1137
      %v1139 = vsub.f32 %v1136, %v1134
      %v1140 = vsel %vm1138, %v1139, %v1136
      %v1141 = vstv %s161
      %v1142 = vlaneseq
      %v1143 = vand.u32 %v1142, 127
      %vm1144 = vcmp.eq.s32.totalorder %v1143, %v1141
      %v1145 = vstv %s161
      %vm1146 = vcmp.ge.s32.totalorder %v1129, %v1145
      %vm1147 = vmand %vm1144, %vm1146
      %v1148 = vsel %vm1147, %v1133, %v1140
      %1149 = vst [vmem:[%s1135] sm:$0xff] %v1148
      %s1150 = scalar_lea.vmem %s810, %s161
      %v1151 = vld [vmem:[%s1150] ss:$0 sm:$0xff]
      %v1152 = vstv %s161
      %v1153 = vlaneseq
      %v1154 = vand.u32 %v1153, 127
      %vm1155 = vcmp.eq.s32.totalorder %v1154, %v1152
      %v1156 = vsel %vm1155, %v377, %v1151
      %1157 = vst [vmem:[%s1150] sm:$0x1] %v1156
    $region40: #{custom-call.96} parent=1 // loop_footer
      %s165 = sadd.s32 1, %s161
    $region41: #{custom-call.96} parent=1 // loop_footer_branch
      %160 = sbr.rel target = $region37
    $region42: #{custom-call.96} parent=1 // loop_exit
      _
    %s1159 = sshll.u32 1, 1
    %s1160 = ssub.s32 %s1159, 1
    %v1162 = vld [vmem:[#allocation2] sm:%s1160]
    %s1163 = sshll.u32 1, 1
    %s1164 = ssub.s32 %s1163, 1
    %1165 = vst [vmem:[#allocation3] sm:%s1164] %v1162
    // Predicated region
    $region43: #{custom-call.96} parent=1 // pred_check
      _
    $region44: #{custom-call.96} parent=1 // pred_check_branch
      %1167 = sbr.rel (0) target = $region46
    $region45: #{custom-call.96} parent=1 // pred_region
      // Predicated region
      $region47: #{custom-call.96} parent=45 // pred_check
        _
      $region48: #{custom-call.96} parent=45 // pred_check_branch
        %1169 = sbr.rel (0) target = $region50
      $region49: #{custom-call.96} parent=45 // pred_region
        // Predicated region
        $region62: #{custom-call.96} parent=49 // pred_check
          _
        $region63: #{custom-call.96} parent=49 // pred_check_branch
          %1215 = sbr.rel (0) target = $region65
        $region64: #{custom-call.96} parent=49 // pred_region
          loop: start=0, step=1, limit=1
          $region66: #{custom-call.96} parent=64 // loop_pre_header
            _
          $region67: #{custom-call.96} parent=64 // loop_header
            %s1217 = sphi 0, %s1221
            %p1218 = scmp.ge.s32.totalorder %s1217, 1
            %s1222 = sphi [#allocation1], [#allocation1]
            %s1223 = sphi %s1, %s1
          $region68: #{custom-call.96} parent=64 // loop_header_branch
            %1220 = sbr.rel (%p1218) target = $region72
          $region69: #{custom-call.96} parent=64 // loop_body
            %v1224 = vld [vmem:[%s1222] sm:$0xff]
            %1225 = vst [vmem:[%s1223] sm:$0xff] %v1224
            %v1226 = vld [vmem:[%s1222 + $0x8] sm:$0xff]
            %1227 = vst [vmem:[%s1223 + $0x8] sm:$0xff] %v1226
            %v1228 = vld [vmem:[%s1222 + $0x10] sm:$0xff]
            %1229 = vst [vmem:[%s1223 + $0x10] sm:$0xff] %v1228
            %v1230 = vld [vmem:[%s1222 + $0x18] sm:$0xff]
            %1231 = vst [vmem:[%s1223 + $0x18] sm:$0xff] %v1230
            %v1232 = vld [vmem:[%s1222 + $0x20] sm:$0xff]
            %1233 = vst [vmem:[%s1223 + $0x20] sm:$0xff] %v1232
            %v1234 = vld [vmem:[%s1222 + $0x28] sm:$0xff]
            %1235 = vst [vmem:[%s1223 + $0x28] sm:$0xff] %v1234
            %v1236 = vld [vmem:[%s1222 + $0x30] sm:$0xff]
            %1237 = vst [vmem:[%s1223 + $0x30] sm:$0xff] %v1236
            %v1238 = vld [vmem:[%s1222 + $0x38] sm:$0xff]
            %1239 = vst [vmem:[%s1223 + $0x38] sm:$0xff] %v1238
            %v1240 = vld [vmem:[%s1222 + $0x40] sm:$0xff]
            %1241 = vst [vmem:[%s1223 + $0x40] sm:$0xff] %v1240
            %v1242 = vld [vmem:[%s1222 + $0x48] sm:$0xff]
            %1243 = vst [vmem:[%s1223 + $0x48] sm:$0xff] %v1242
            %v1244 = vld [vmem:[%s1222 + $0x50] sm:$0xff]
            %1245 = vst [vmem:[%s1223 + $0x50] sm:$0xff] %v1244
            %v1246 = vld [vmem:[%s1222 + $0x58] sm:$0xff]
            %1247 = vst [vmem:[%s1223 + $0x58] sm:$0xff] %v1246
            %v1248 = vld [vmem:[%s1222 + $0x60] sm:$0xff]
            %1249 = vst [vmem:[%s1223 + $0x60] sm:$0xff] %v1248
            %v1250 = vld [vmem:[%s1222 + $0x68] sm:$0xff]
            %1251 = vst [vmem:[%s1223 + $0x68] sm:$0xff] %v1250
            %v1252 = vld [vmem:[%s1222 + $0x70] sm:$0xff]
            %1253 = vst [vmem:[%s1223 + $0x70] sm:$0xff] %v1252
            %v1254 = vld [vmem:[%s1222 + $0x78] sm:$0xff]
            %1255 = vst [vmem:[%s1223 + $0x78] sm:$0xff] %v1254
          $region70: #{custom-call.96} parent=64 // loop_footer
            %s1221 = sadd.s32 1, %s1217
          $region71: #{custom-call.96} parent=64 // loop_footer_branch
            %1216 = sbr.rel target = $region67
          $region72: #{custom-call.96} parent=64 // loop_exit
            _
        $region65: #{custom-call.96} parent=49 // pred_fallthru
          _
        // Predicated region
        $region73: #{custom-call.96} parent=49 // pred_check
          _
        $region74: #{custom-call.96} parent=49 // pred_check_branch
          %1257 = sbr.rel target = $region76
        $region75: #{custom-call.96} parent=49 // pred_region
          _
        $region76: #{custom-call.96} parent=49 // pred_fallthru
          _
      $region50: #{custom-call.96} parent=45 // pred_fallthru
        _
      // Predicated region
      $region51: #{custom-call.96} parent=45 // pred_check
        _
      $region52: #{custom-call.96} parent=45 // pred_check_branch
        %1171 = sbr.rel target = $region54
      $region53: #{custom-call.96} parent=45 // pred_region
        %s1173 = ssub.s32 256, 1
        loop: start=0, step=1, limit=1
        $region55: #{custom-call.96} parent=53 // loop_pre_header
          _
        $region56: #{custom-call.96} parent=53 // loop_header
          %s1175 = sphi 0, %s1179
          %p1176 = scmp.ge.s32.totalorder %s1175, 1
          %s1180 = sphi [#allocation1], [#allocation1]
          %s1181 = sphi %s1, %s1
        $region57: #{custom-call.96} parent=53 // loop_header_branch
          %1178 = sbr.rel (%p1176) target = $region61
        $region58: #{custom-call.96} parent=53 // loop_body
          %v1182 = vld [vmem:[%s1180] sm:%s1173]
          %1183 = vst [vmem:[%s1181] sm:%s1173] %v1182
          %v1184 = vld [vmem:[%s1180 + $0x8] sm:%s1173]
          %1185 = vst [vmem:[%s1181 + $0x8] sm:%s1173] %v1184
          %v1186 = vld [vmem:[%s1180 + $0x10] sm:%s1173]
          %1187 = vst [vmem:[%s1181 + $0x10] sm:%s1173] %v1186
          %v1188 = vld [vmem:[%s1180 + $0x18] sm:%s1173]
          %1189 = vst [vmem:[%s1181 + $0x18] sm:%s1173] %v1188
          %v1190 = vld [vmem:[%s1180 + $0x20] sm:%s1173]
          %1191 = vst [vmem:[%s1181 + $0x20] sm:%s1173] %v1190
          %v1192 = vld [vmem:[%s1180 + $0x28] sm:%s1173]
          %1193 = vst [vmem:[%s1181 + $0x28] sm:%s1173] %v1192
          %v1194 = vld [vmem:[%s1180 + $0x30] sm:%s1173]
          %1195 = vst [vmem:[%s1181 + $0x30] sm:%s1173] %v1194
          %v1196 = vld [vmem:[%s1180 + $0x38] sm:%s1173]
          %1197 = vst [vmem:[%s1181 + $0x38] sm:%s1173] %v1196
          %v1198 = vld [vmem:[%s1180 + $0x40] sm:%s1173]
          %1199 = vst [vmem:[%s1181 + $0x40] sm:%s1173] %v1198
          %v1200 = vld [vmem:[%s1180 + $0x48] sm:%s1173]
          %1201 = vst [vmem:[%s1181 + $0x48] sm:%s1173] %v1200
          %v1202 = vld [vmem:[%s1180 + $0x50] sm:%s1173]
          %1203 = vst [vmem:[%s1181 + $0x50] sm:%s1173] %v1202
          %v1204 = vld [vmem:[%s1180 + $0x58] sm:%s1173]
          %1205 = vst [vmem:[%s1181 + $0x58] sm:%s1173] %v1204
          %v1206 = vld [vmem:[%s1180 + $0x60] sm:%s1173]
          %1207 = vst [vmem:[%s1181 + $0x60] sm:%s1173] %v1206
          %v1208 = vld [vmem:[%s1180 + $0x68] sm:%s1173]
          %1209 = vst [vmem:[%s1181 + $0x68] sm:%s1173] %v1208
          %v1210 = vld [vmem:[%s1180 + $0x70] sm:%s1173]
          %1211 = vst [vmem:[%s1181 + $0x70] sm:%s1173] %v1210
          %v1212 = vld [vmem:[%s1180 + $0x78] sm:%s1173]
          %1213 = vst [vmem:[%s1181 + $0x78] sm:%s1173] %v1212
        $region59: #{custom-call.96} parent=53 // loop_footer
          %s1179 = sadd.s32 1, %s1175
        $region60: #{custom-call.96} parent=53 // loop_footer_branch
          %1174 = sbr.rel target = $region56
        $region61: #{custom-call.96} parent=53 // loop_exit
          _
      $region54: #{custom-call.96} parent=45 // pred_fallthru
        _
    $region46: #{custom-call.96} parent=1 // pred_fallthru
      _
    %1258 = vnop
    // Predicated region
    $region77: #{custom-call.96} parent=1 // pred_check
      _
    $region78: #{custom-call.96} parent=1 // pred_check_branch
      %1260 = sbr.rel (0) target = $region80
    $region79: #{custom-call.96} parent=1 // pred_region
      // Predicated region
      $region81: #{custom-call.96} parent=79 // pred_check
        _
      $region82: #{custom-call.96} parent=79 // pred_check_branch
        %1262 = sbr.rel (0) target = $region84
      $region83: #{custom-call.96} parent=79 // pred_region
        // Predicated region
        $region85: #{custom-call.96} parent=83 // pred_check
          _
        $region86: #{custom-call.96} parent=83 // pred_check_branch
          %1264 = sbr.rel target = $region88
        $region87: #{custom-call.96} parent=83 // pred_region
          // Predicated region
          $region100: #{custom-call.96} parent=87 // pred_check
            _
          $region101: #{custom-call.96} parent=87 // pred_check_branch
            %1280 = sbr.rel (0) target = $region103
          $region102: #{custom-call.96} parent=87 // pred_region
            %s1282 = ssub.s32 2, 1
            loop: start=0, step=1, limit=1
            $region104: #{custom-call.96} parent=102 // loop_pre_header
              _
            $region105: #{custom-call.96} parent=102 // loop_header
              %s1284 = sphi 0, %s1288
              %p1285 = scmp.ge.s32.totalorder %s1284, 1
              %s1289 = sphi [#allocation3], [#allocation3]
              %s1290 = sphi %s2, %s2
            $region106: #{custom-call.96} parent=102 // loop_header_branch
              %1287 = sbr.rel (%p1285) target = $region110
            $region107: #{custom-call.96} parent=102 // loop_body
              %v1291 = vld [vmem:[%s1289] sm:%s1282]
              %1292 = vst [vmem:[%s1290] sm:%s1282] %v1291
            $region108: #{custom-call.96} parent=102 // loop_footer
              %s1288 = sadd.s32 1, %s1284
            $region109: #{custom-call.96} parent=102 // loop_footer_branch
              %1283 = sbr.rel target = $region105
            $region110: #{custom-call.96} parent=102 // loop_exit
              _
          $region103: #{custom-call.96} parent=87 // pred_fallthru
            _
        $region88: #{custom-call.96} parent=83 // pred_fallthru
          _
        // Predicated region
        $region89: #{custom-call.96} parent=83 // pred_check
          _
        $region90: #{custom-call.96} parent=83 // pred_check_branch
          %1266 = sbr.rel (0) target = $region92
        $region91: #{custom-call.96} parent=83 // pred_region
          %s1268 = ssub.s32 2, 1
          loop: start=0, step=1, limit=1
          $region93: #{custom-call.96} parent=91 // loop_pre_header
            _
          $region94: #{custom-call.96} parent=91 // loop_header
            %s1270 = sphi 0, %s1274
            %p1271 = scmp.ge.s32.totalorder %s1270, 1
            %s1275 = sphi [#allocation3], [#allocation3]
            %s1276 = sphi %s2, %s2
          $region95: #{custom-call.96} parent=91 // loop_header_branch
            %1273 = sbr.rel (%p1271) target = $region99
          $region96: #{custom-call.96} parent=91 // loop_body
            %v1277 = vld [vmem:[%s1275] sm:%s1268]
            %1278 = vst [vmem:[%s1276] sm:%s1268] %v1277
          $region97: #{custom-call.96} parent=91 // loop_footer
            %s1274 = sadd.s32 1, %s1270
          $region98: #{custom-call.96} parent=91 // loop_footer_branch
            %1269 = sbr.rel target = $region94
          $region99: #{custom-call.96} parent=91 // loop_exit
            _
        $region92: #{custom-call.96} parent=83 // pred_fallthru
          _
      $region84: #{custom-call.96} parent=79 // pred_fallthru
        _
      %1293 = vnop
    $region80: #{custom-call.96} parent=1 // pred_fallthru
      _
    // Predicated region
    $region111: #{custom-call.96} parent=1 // pred_check
      _
    $region112: #{custom-call.96} parent=1 // pred_check_branch
      %1295 = sbr.rel (0) target = $region114
    $region113: #{custom-call.96} parent=1 // pred_region
      _
    $region114: #{custom-call.96} parent=1 // pred_fallthru
      _

// kernel: custom-call.97
$region0: #{custom-call.97}
  %s0 = inlined_call_operand.vmem [shape: f32[16,16], index: 0, kind: input, shape index: {}]
  %s1 = inlined_call_operand.vmem [shape: f32[16,16], index: 1, kind: output, shape index: {}]
  $region1: #{custom-call.97} parent=0
    #allocation0 [shape = 'u8[8192]{0}', space=vmem, size = 0x2000, scoped, tag = 'operand span for operand 0']
    #allocation1 [shape = 'u8[8192]{0}', space=vmem, size = 0x2000, scoped, tag = 'operand span for operand 1']
    %p3 = scmp.gt.s32.totalorder 16, 0
    // Predicated region
    $region2: #{custom-call.97} parent=1 // pred_check
      %p4 = pneg %p3
    $region3: #{custom-call.97} parent=1 // pred_check_branch
      %6 = sbr.rel (%p4) target = $region5
    $region4: #{custom-call.97} parent=1 // pred_region
      %s7 = sshra.s32 16, 3
      %p8 = scmp.gt.s32.totalorder %s7, 0
      // Predicated region
      $region6: #{custom-call.97} parent=4 // pred_check
        %p9 = pneg %p8
      $region7: #{custom-call.97} parent=4 // pred_check_branch
        %11 = sbr.rel (%p9) target = $region9
      $region8: #{custom-call.97} parent=4 // pred_region
        %s12 = ssub.s32 %s7, 1
        %s13 = smul.u32 %s12, 128
        %s14 = sshra.s32 %s13, 4
        %s15 = scalar_lea.vmem %s0, %s14
        %v16 = vld [vmem:[%s0] sm:$0xff]
        // While loop
        $region10: #{custom-call.97} parent=8 // loop_pre_header
          _
        $region11: #{custom-call.97} parent=8 // loop_header
          %s17 = sphi %s0, %s39
          %s18 = sphi [#allocation0], %s40
          %v19 = vphi %v16, %v41
          %s20 = ssub.s32 %s15, 64
          %p21 = scmp.gt.s32.totalorder %s17, %s20
        $region12: #{custom-call.97} parent=8 // loop_header_branch
          %23 = sbr.rel (%p21) target = $region16
        $region13: #{custom-call.97} parent=8 // loop_body
          %24 = vst [vmem:[%s18] sm:$0xff] %v19
          %v25 = vld [vmem:[%s17 + $0x8] sm:$0xff]
          %26 = vst [vmem:[%s18 + $0x8] sm:$0xff] %v25
          %v27 = vld [vmem:[%s17 + $0x10] sm:$0xff]
          %28 = vst [vmem:[%s18 + $0x10] sm:$0xff] %v27
          %v29 = vld [vmem:[%s17 + $0x18] sm:$0xff]
          %30 = vst [vmem:[%s18 + $0x18] sm:$0xff] %v29
          %v31 = vld [vmem:[%s17 + $0x20] sm:$0xff]
          %32 = vst [vmem:[%s18 + $0x20] sm:$0xff] %v31
          %v33 = vld [vmem:[%s17 + $0x28] sm:$0xff]
          %34 = vst [vmem:[%s18 + $0x28] sm:$0xff] %v33
          %v35 = vld [vmem:[%s17 + $0x30] sm:$0xff]
          %36 = vst [vmem:[%s18 + $0x30] sm:$0xff] %v35
          %v37 = vld [vmem:[%s17 + $0x38] sm:$0xff]
          %38 = vst [vmem:[%s18 + $0x38] sm:$0xff] %v37
        $region14: #{custom-call.97} parent=8 // loop_footer
          %s39 = scalar_lea.vmem %s17, 64
          %s40 = scalar_lea.vmem %s18, 64
          %v41 = vld [vmem:[%s17 + $0x40] sm:$0xff]
        $region15: #{custom-call.97} parent=8 // loop_footer_branch
          %42 = sbr.rel target = $region11
        $region16: #{custom-call.97} parent=8 // loop_exit
          _
        // While loop
        $region17: #{custom-call.97} parent=8 // loop_pre_header
          _
        $region18: #{custom-call.97} parent=8 // loop_header
          %s43 = sphi %s17, %s51
          %s44 = sphi %s18, %s52
          %v45 = vphi %v19, %v45
          %p46 = scmp.gt.s32.totalorder %s43, %s15
        $region19: #{custom-call.97} parent=8 // loop_header_branch
          %48 = sbr.rel (%p46) target = $region23
        $region20: #{custom-call.97} parent=8 // loop_body
          %v49 = vld [vmem:[%s43] sm:$0xff]
          %50 = vst [vmem:[%s44] sm:$0xff] %v49
        $region21: #{custom-call.97} parent=8 // loop_footer
          %s51 = scalar_lea.vmem %s43, 8
          %s52 = scalar_lea.vmem %s44, 8
        $region22: #{custom-call.97} parent=8 // loop_footer_branch
          %53 = sbr.rel target = $region18
        $region23: #{custom-call.97} parent=8 // loop_exit
          _
      $region9: #{custom-call.97} parent=4 // pred_fallthru
        _
      %s54 = sand.u32 16, 7
      %s55 = sshll.u32 1, %s54
      %s56 = ssub.s32 %s55, 1
      %s57 = smul.u32 %s7, 128
      %s58 = sshra.s32 %s57, 4
      %s59 = scalar_lea.vmem [#allocation0], %s58
      %s60 = smul.u32 %s7, 128
      %s61 = sshra.s32 %s60, 4
      %s62 = scalar_lea.vmem %s0, %s61
      %v63 = vld [vmem:[%s62] sm:%s56]
      %64 = vst [vmem:[%s59] sm:%s56] %v63
    $region5: #{custom-call.97} parent=1 // pred_fallthru
      _
    %v65 = vlaneseq
    %v66 = vand.u32 %v65, 127
    %v67 = vlaneseq
    %v68 = vshrl.u32 %v67, 7
    %vm70 = vcmp.eq.s32.totalorder %v66, %v68
    %v71 = vld [vmem:[#allocation0] sm:$0xff]
    %v72 = vlaneseq
    %v73 = vand.u32 %v72, 127
    %vm74 = vcmp.eq.s32.totalorder %v73, 0
    %v75 = vsel %vm74, %v71, 1.0
    %v76 = vsel %vm70, %v75, 0.0
    %v77 = vlaneseq
    %v78 = vand.u32 %v77, 127
    %v79 = vlaneseq
    %v80 = vshrl.u32 %v79, 7
    %v81 = vadd.s32 %v80, 8
    %vm82 = vcmp.eq.s32.totalorder %v78, %v81
    %v83 = vsel %vm82, 1.0, 0.0
    %s84 = scalar_lea.vmem [#allocation0], 1
    %v85 = vld [vmem:[%s84] ss:$0 sm:$0xff]
    %vm86 = vcmask 130048
    %v87 = vsel %vm86, %v85, 0.0
    %v88 = vlaneseq
    %v89 = vand.u32 %v88, 127
    %vm90 = vcmp.eq.s32.totalorder %v89, 1
    %v91 = vmul.f32 %v87, %v76
    %92 = vadd.xlane.f32.xlu0 %v91
    %v93 = vpop.xlane.xlu0 %92
    %v94 = vsel %vm90, %v93, %v76
    %s95 = scalar_lea.vmem [#allocation0], 2
    %v96 = vld [vmem:[%s95] ss:$0 sm:$0xff]
    %vm97 = vcmask 130048
    %v98 = vsel %vm97, %v96, 0.0
    %v99 = vlaneseq
    %v100 = vand.u32 %v99, 127
    %vm101 = vcmp.eq.s32.totalorder %v100, 2
    %v102 = vmul.f32 %v98, %v94
    %103 = vadd.xlane.f32.xlu0 %v102
    %v104 = vpop.xlane.xlu0 %103
    %v105 = vsel %vm101, %v104, %v94
    %s106 = scalar_lea.vmem [#allocation0], 3
    %v107 = vld [vmem:[%s106] ss:$0 sm:$0xff]
    %vm108 = vcmask 130048
    %v109 = vsel %vm108, %v107, 0.0
    %v110 = vlaneseq
    %v111 = vand.u32 %v110, 127
    %vm112 = vcmp.eq.s32.totalorder %v111, 3
    %v113 = vmul.f32 %v109, %v105
    %114 = vadd.xlane.f32.xlu0 %v113
    %v115 = vpop.xlane.xlu0 %114
    %v116 = vsel %vm112, %v115, %v105
    %s117 = scalar_lea.vmem [#allocation0], 4
    %v118 = vld [vmem:[%s117] ss:$0 sm:$0xff]
    %vm119 = vcmask 130048
    %v120 = vsel %vm119, %v118, 0.0
    %v121 = vlaneseq
    %v122 = vand.u32 %v121, 127
    %vm123 = vcmp.eq.s32.totalorder %v122, 4
    %v124 = vmul.f32 %v120, %v116
    %125 = vadd.xlane.f32.xlu0 %v124
    %v126 = vpop.xlane.xlu0 %125
    %v127 = vsel %vm123, %v126, %v116
    %s128 = scalar_lea.vmem [#allocation0], 5
    %v129 = vld [vmem:[%s128] ss:$0 sm:$0xff]
    %vm130 = vcmask 130048
    %v131 = vsel %vm130, %v129, 0.0
    %v132 = vlaneseq
    %v133 = vand.u32 %v132, 127
    %vm134 = vcmp.eq.s32.totalorder %v133, 5
    %v135 = vmul.f32 %v131, %v127
    %136 = vadd.xlane.f32.xlu0 %v135
    %v137 = vpop.xlane.xlu0 %136
    %v138 = vsel %vm134, %v137, %v127
    %s139 = scalar_lea.vmem [#allocation0], 6
    %v140 = vld [vmem:[%s139] ss:$0 sm:$0xff]
    %vm141 = vcmask 130048
    %v142 = vsel %vm141, %v140, 0.0
    %v143 = vlaneseq
    %v144 = vand.u32 %v143, 127
    %vm145 = vcmp.eq.s32.totalorder %v144, 6
    %v146 = vmul.f32 %v142, %v138
    %147 = vadd.xlane.f32.xlu0 %v146
    %v148 = vpop.xlane.xlu0 %147
    %v149 = vsel %vm145, %v148, %v138
    %s150 = scalar_lea.vmem [#allocation0], 7
    %v151 = vld [vmem:[%s150] ss:$0 sm:$0xff]
    %vm152 = vcmask 130048
    %v153 = vsel %vm152, %v151, 0.0
    %v154 = vlaneseq
    %v155 = vand.u32 %v154, 127
    %vm156 = vcmp.eq.s32.totalorder %v155, 7
    %v157 = vmul.f32 %v153, %v149
    %158 = vadd.xlane.f32.xlu0 %v157
    %v159 = vpop.xlane.xlu0 %158
    %v160 = vsel %vm156, %v159, %v149
    %s161 = scalar_lea.vmem [#allocation0], 8
    %v162 = vld [vmem:[%s161] ss:$0 sm:$0xff]
    %vm163 = vcmask 130048
    %v164 = vsel %vm163, %v162, 0.0
    %v165 = vlaneseq
    %v166 = vand.u32 %v165, 127
    %vm167 = vcmp.eq.s32.totalorder %v166, 8
    %v168 = vmul.f32 %v164, %v160
    %169 = vadd.xlane.f32.xlu0 %v168
    %v170 = vpop.xlane.xlu0 %169
    %v171 = vsel %vm167, %v170, %v160
    %v172 = vmul.f32 %v164, %v83
    %173 = vadd.xlane.f32.xlu0 %v172
    %v174 = vpop.xlane.xlu0 %173
    %v175 = vsel %vm167, %v174, %v83
    %s176 = scalar_lea.vmem [#allocation0], 9
    %v177 = vld [vmem:[%s176] ss:$0 sm:$0xff]
    %vm178 = vcmask 130048
    %v179 = vsel %vm178, %v177, 0.0
    %v180 = vlaneseq
    %v181 = vand.u32 %v180, 127
    %vm182 = vcmp.eq.s32.totalorder %v181, 9
    %v183 = vmul.f32 %v179, %v171
    %184 = vadd.xlane.f32.xlu0 %v183
    %v185 = vpop.xlane.xlu0 %184
    %v186 = vsel %vm182, %v185, %v171
    %v187 = vmul.f32 %v179, %v175
    %188 = vadd.xlane.f32.xlu0 %v187
    %v189 = vpop.xlane.xlu0 %188
    %v190 = vsel %vm182, %v189, %v175
    %s191 = scalar_lea.vmem [#allocation0], 10
    %v192 = vld [vmem:[%s191] ss:$0 sm:$0xff]
    %vm193 = vcmask 130048
    %v194 = vsel %vm193, %v192, 0.0
    %v195 = vlaneseq
    %v196 = vand.u32 %v195, 127
    %vm197 = vcmp.eq.s32.totalorder %v196, 10
    %v198 = vmul.f32 %v194, %v186
    %199 = vadd.xlane.f32.xlu0 %v198
    %v200 = vpop.xlane.xlu0 %199
    %v201 = vsel %vm197, %v200, %v186
    %v202 = vmul.f32 %v194, %v190
    %203 = vadd.xlane.f32.xlu0 %v202
    %v204 = vpop.xlane.xlu0 %203
    %v205 = vsel %vm197, %v204, %v190
    %s206 = scalar_lea.vmem [#allocation0], 11
    %v207 = vld [vmem:[%s206] ss:$0 sm:$0xff]
    %vm208 = vcmask 130048
    %v209 = vsel %vm208, %v207, 0.0
    %v210 = vlaneseq
    %v211 = vand.u32 %v210, 127
    %vm212 = vcmp.eq.s32.totalorder %v211, 11
    %v213 = vmul.f32 %v209, %v201
    %214 = vadd.xlane.f32.xlu0 %v213
    %v215 = vpop.xlane.xlu0 %214
    %v216 = vsel %vm212, %v215, %v201
    %v217 = vmul.f32 %v209, %v205
    %218 = vadd.xlane.f32.xlu0 %v217
    %v219 = vpop.xlane.xlu0 %218
    %v220 = vsel %vm212, %v219, %v205
    %s221 = scalar_lea.vmem [#allocation0], 12
    %v222 = vld [vmem:[%s221] ss:$0 sm:$0xff]
    %vm223 = vcmask 130048
    %v224 = vsel %vm223, %v222, 0.0
    %v225 = vlaneseq
    %v226 = vand.u32 %v225, 127
    %vm227 = vcmp.eq.s32.totalorder %v226, 12
    %v228 = vmul.f32 %v224, %v216
    %229 = vadd.xlane.f32.xlu0 %v228
    %v230 = vpop.xlane.xlu0 %229
    %v231 = vsel %vm227, %v230, %v216
    %v232 = vmul.f32 %v224, %v220
    %233 = vadd.xlane.f32.xlu0 %v232
    %v234 = vpop.xlane.xlu0 %233
    %v235 = vsel %vm227, %v234, %v220
    %s236 = scalar_lea.vmem [#allocation0], 13
    %v237 = vld [vmem:[%s236] ss:$0 sm:$0xff]
    %vm238 = vcmask 130048
    %v239 = vsel %vm238, %v237, 0.0
    %v240 = vlaneseq
    %v241 = vand.u32 %v240, 127
    %vm242 = vcmp.eq.s32.totalorder %v241, 13
    %v243 = vmul.f32 %v239, %v231
    %244 = vadd.xlane.f32.xlu0 %v243
    %v245 = vpop.xlane.xlu0 %244
    %v246 = vsel %vm242, %v245, %v231
    %v247 = vmul.f32 %v239, %v235
    %248 = vadd.xlane.f32.xlu0 %v247
    %v249 = vpop.xlane.xlu0 %248
    %v250 = vsel %vm242, %v249, %v235
    %s251 = scalar_lea.vmem [#allocation0], 14
    %v252 = vld [vmem:[%s251] ss:$0 sm:$0xff]
    %vm253 = vcmask 130048
    %v254 = vsel %vm253, %v252, 0.0
    %v255 = vlaneseq
    %v256 = vand.u32 %v255, 127
    %vm257 = vcmp.eq.s32.totalorder %v256, 14
    %v258 = vmul.f32 %v254, %v246
    %259 = vadd.xlane.f32.xlu0 %v258
    %v260 = vpop.xlane.xlu0 %259
    %v261 = vsel %vm257, %v260, %v246
    %v262 = vmul.f32 %v254, %v250
    %263 = vadd.xlane.f32.xlu0 %v262
    %v264 = vpop.xlane.xlu0 %263
    %v265 = vsel %vm257, %v264, %v250
    %s266 = scalar_lea.vmem [#allocation0], 15
    %v267 = vld [vmem:[%s266] ss:$0 sm:$0xff]
    %vm268 = vcmask 130048
    %v269 = vsel %vm268, %v267, 0.0
    %v270 = vlaneseq
    %v271 = vand.u32 %v270, 127
    %vm272 = vcmp.eq.s32.totalorder %v271, 15
    %v273 = vmul.f32 %v269, %v261
    %274 = vadd.xlane.f32.xlu0 %v273
    %v275 = vpop.xlane.xlu0 %274
    %v276 = vsel %vm272, %v275, %v261
    %v277 = vmul.f32 %v269, %v265
    %278 = vadd.xlane.f32.xlu0 %v277
    %v279 = vpop.xlane.xlu0 %278
    %v280 = vsel %vm272, %v279, %v265
    %281 = vst [vmem:[#allocation1] sm:$0xff] %v276
    %s282 = scalar_lea.vmem [#allocation1], 8
    %283 = vst [vmem:[%s282] sm:$0xff] %v280
    %p285 = scmp.gt.s32.totalorder 16, 0
    // Predicated region
    $region24: #{custom-call.97} parent=1 // pred_check
      %p286 = pneg %p285
    $region25: #{custom-call.97} parent=1 // pred_check_branch
      %288 = sbr.rel (%p286) target = $region27
    $region26: #{custom-call.97} parent=1 // pred_region
      %s289 = sshra.s32 16, 3
      %p290 = scmp.gt.s32.totalorder %s289, 0
      // Predicated region
      $region28: #{custom-call.97} parent=26 // pred_check
        %p291 = pneg %p290
      $region29: #{custom-call.97} parent=26 // pred_check_branch
        %293 = sbr.rel (%p291) target = $region31
      $region30: #{custom-call.97} parent=26 // pred_region
        %s294 = ssub.s32 %s289, 1
        %s295 = smul.u32 %s294, 128
        %s296 = sshra.s32 %s295, 4
        %s297 = scalar_lea.vmem [#allocation1], %s296
        %v298 = vld [vmem:[#allocation1] sm:$0xff]
        // While loop
        $region32: #{custom-call.97} parent=30 // loop_pre_header
          _
        $region33: #{custom-call.97} parent=30 // loop_header
          %s299 = sphi [#allocation1], %s321
          %s300 = sphi %s1, %s322
          %v301 = vphi %v298, %v323
          %s302 = ssub.s32 %s297, 64
          %p303 = scmp.gt.s32.totalorder %s299, %s302
        $region34: #{custom-call.97} parent=30 // loop_header_branch
          %305 = sbr.rel (%p303) target = $region38
        $region35: #{custom-call.97} parent=30 // loop_body
          %306 = vst [vmem:[%s300] sm:$0xff] %v301
          %v307 = vld [vmem:[%s299 + $0x8] sm:$0xff]
          %308 = vst [vmem:[%s300 + $0x8] sm:$0xff] %v307
          %v309 = vld [vmem:[%s299 + $0x10] sm:$0xff]
          %310 = vst [vmem:[%s300 + $0x10] sm:$0xff] %v309
          %v311 = vld [vmem:[%s299 + $0x18] sm:$0xff]
          %312 = vst [vmem:[%s300 + $0x18] sm:$0xff] %v311
          %v313 = vld [vmem:[%s299 + $0x20] sm:$0xff]
          %314 = vst [vmem:[%s300 + $0x20] sm:$0xff] %v313
          %v315 = vld [vmem:[%s299 + $0x28] sm:$0xff]
          %316 = vst [vmem:[%s300 + $0x28] sm:$0xff] %v315
          %v317 = vld [vmem:[%s299 + $0x30] sm:$0xff]
          %318 = vst [vmem:[%s300 + $0x30] sm:$0xff] %v317
          %v319 = vld [vmem:[%s299 + $0x38] sm:$0xff]
          %320 = vst [vmem:[%s300 + $0x38] sm:$0xff] %v319
        $region36: #{custom-call.97} parent=30 // loop_footer
          %s321 = scalar_lea.vmem %s299, 64
          %s322 = scalar_lea.vmem %s300, 64
          %v323 = vld [vmem:[%s299 + $0x40] sm:$0xff]
        $region37: #{custom-call.97} parent=30 // loop_footer_branch
          %324 = sbr.rel target = $region33
        $region38: #{custom-call.97} parent=30 // loop_exit
          _
        // While loop
        $region39: #{custom-call.97} parent=30 // loop_pre_header
          _
        $region40: #{custom-call.97} parent=30 // loop_header
          %s325 = sphi %s299, %s333
          %s326 = sphi %s300, %s334
          %v327 = vphi %v301, %v327
          %p328 = scmp.gt.s32.totalorder %s325, %s297
        $region41: #{custom-call.97} parent=30 // loop_header_branch
          %330 = sbr.rel (%p328) target = $region45
        $region42: #{custom-call.97} parent=30 // loop_body
          %v331 = vld [vmem:[%s325] sm:$0xff]
          %332 = vst [vmem:[%s326] sm:$0xff] %v331
        $region43: #{custom-call.97} parent=30 // loop_footer
          %s333 = scalar_lea.vmem %s325, 8
          %s334 = scalar_lea.vmem %s326, 8
        $region44: #{custom-call.97} parent=30 // loop_footer_branch
          %335 = sbr.rel target = $region40
        $region45: #{custom-call.97} parent=30 // loop_exit
          _
      $region31: #{custom-call.97} parent=26 // pred_fallthru
        _
      %s336 = sand.u32 16, 7
      %s337 = sshll.u32 1, %s336
      %s338 = ssub.s32 %s337, 1
      %s339 = smul.u32 %s289, 128
      %s340 = sshra.s32 %s339, 4
      %s341 = scalar_lea.vmem %s1, %s340
      %s342 = smul.u32 %s289, 128
      %s343 = sshra.s32 %s342, 4
      %s344 = scalar_lea.vmem [#allocation1], %s343
      %v345 = vld [vmem:[%s344] sm:%s338]
      %346 = vst [vmem:[%s341] sm:%s338] %v345
    $region27: #{custom-call.97} parent=1 // pred_fallthru
      _

// kernel: unfolded_net_forward.4
$region0: #{unfolded_net_forward.4}
  #allocation0 [shape = 'u32[]', space=smem, size = 0x4, offset = 0x4, fixed_abs, tag = 'smem constant byte address 0x4 - core index']
  #allocation1 [shape = 'u32[144,128]{1,0:T(1,128)}', space=vmem, size = 0x12000, scoped, tag = 'internal scratch']
  #allocation2 [shape = 'f32[1]{0:T(128)S(6)}', space=smem, size = 0x200, scoped, tag = 'scoped memory for unfolded_net_forward.4']
  #allocation3 [shape = 'f32[1]{0:T(128)S(6)}', space=smem, size = 0x200, scoped, tag = 'scoped memory for unfolded_net_forward.4']
  #allocation4 [shape = 'f32[1]{0:T(128)S(6)}', space=smem, size = 0x200, scoped, tag = 'scoped memory for unfolded_net_forward.4']
  %s0 = inlined_call_operand.vmem [shape: f32[16,128], index: 0, kind: input, shape index: {}]
  %s1 = inlined_call_operand.vmem [shape: f32[16,128], index: 1, kind: input, shape index: {}]
  %s2 = inlined_call_operand.vmem [shape: f32[16,128], index: 2, kind: input, shape index: {}]
  %s3 = inlined_call_operand.vmem [shape: f32[16,128], index: 3, kind: input, shape index: {}]
  %s4 = inlined_call_operand.vmem [shape: f32[16,128], index: 4, kind: input, shape index: {}]
  %s5 = inlined_call_operand.vmem [shape: f32[9], index: 5, kind: input, shape index: {}]
  %s6 = inlined_call_operand.<no memory space> [shape: f32[1], index: 6, kind: input, shape index: {}]
  %s7 = inlined_call_operand.<no memory space> [shape: f32[1], index: 7, kind: input, shape index: {}]
  %s8 = inlined_call_operand.<no memory space> [shape: f32[1], index: 8, kind: input, shape index: {}]
  %s9 = inlined_call_operand.vmem [shape: f32[16,128], index: 9, kind: output, shape index: {}]
  %s10 = sld [smem:[#allocation0]]
  $region50: #{unfolded_net_forward.4} parent=0
    _
  %s12 = ssub.s32 1, %s10
  %s13 = scalar_select 0, %s12, %s10
  %14 = sst [smem:[#allocation2]] %s6
  %15 = sst [smem:[#allocation3]] %s7
  %16 = sst [smem:[#allocation4]] %s8
  $region1: #{unfolded_net_forward.4} parent=0
    #allocation5 [shape = 'u8[512]{0}', space=smem, size = 0x200, scoped, tag = 'input window, operand 5, single buffered']
    #allocation6 [shape = 's32[1]{0}', space=sflag, size = 0x4, scoped, tag = 'scoped memory for unfolded_net_forward.4']
    %17 = vsyncpa [#allocation6], 0
    // Predicated region
    $region2: #{unfolded_net_forward.4} parent=1 // pred_check
      _
    $region3: #{unfolded_net_forward.4} parent=1 // pred_check_branch
      %19 = sbr.rel (0) target = $region5
    $region4: #{unfolded_net_forward.4} parent=1 // pred_region
      _
    $region5: #{unfolded_net_forward.4} parent=1 // pred_fallthru
      _
    // Predicated region
    $region6: #{unfolded_net_forward.4} parent=1 // pred_check
      _
    $region7: #{unfolded_net_forward.4} parent=1 // pred_check_branch
      %21 = sbr.rel (0) target = $region9
    $region8: #{unfolded_net_forward.4} parent=1 // pred_region
      _
    $region9: #{unfolded_net_forward.4} parent=1 // pred_fallthru
      _
    // Predicated region
    $region10: #{unfolded_net_forward.4} parent=1 // pred_check
      _
    $region11: #{unfolded_net_forward.4} parent=1 // pred_check_branch
      %23 = sbr.rel (0) target = $region13
    $region12: #{unfolded_net_forward.4} parent=1 // pred_region
      _
    $region13: #{unfolded_net_forward.4} parent=1 // pred_fallthru
      _
    // Predicated region
    $region14: #{unfolded_net_forward.4} parent=1 // pred_check
      _
    $region15: #{unfolded_net_forward.4} parent=1 // pred_check_branch
      %25 = sbr.rel (0) target = $region17
    $region16: #{unfolded_net_forward.4} parent=1 // pred_region
      _
    $region17: #{unfolded_net_forward.4} parent=1 // pred_fallthru
      _
    // Predicated region
    $region18: #{unfolded_net_forward.4} parent=1 // pred_check
      _
    $region19: #{unfolded_net_forward.4} parent=1 // pred_check_branch
      %27 = sbr.rel (0) target = $region21
    $region20: #{unfolded_net_forward.4} parent=1 // pred_region
      _
    $region21: #{unfolded_net_forward.4} parent=1 // pred_fallthru
      _
    // Predicated region
    $region22: #{unfolded_net_forward.4} parent=1 // pred_check
      _
    $region23: #{unfolded_net_forward.4} parent=1 // pred_check_branch
      %29 = sbr.rel (0) target = $region25
    $region24: #{unfolded_net_forward.4} parent=1 // pred_region
      %s31 = ssub.s32 16, 16
      %32 = vsyncadd [#allocation6], %s31
      %s34 = sshll.u32 %s5, 4
      %s35 = int_to_ptr.vmem [resolvable:$true] %s34
      %37 = dma.vmem_to_smem %s35, 16, [#allocation5], [#allocation6]
    $region25: #{unfolded_net_forward.4} parent=1 // pred_fallthru
      _
    // Predicated region
    $region26: #{unfolded_net_forward.4} parent=1 // pred_check
      _
    $region27: #{unfolded_net_forward.4} parent=1 // pred_check_branch
      %39 = sbr.rel (0) target = $region29
    $region28: #{unfolded_net_forward.4} parent=1 // pred_region
      _
    $region29: #{unfolded_net_forward.4} parent=1 // pred_fallthru
      _
    // Predicated region
    $region30: #{unfolded_net_forward.4} parent=1 // pred_check
      _
    $region31: #{unfolded_net_forward.4} parent=1 // pred_check_branch
      %41 = sbr.rel (0) target = $region33
    $region32: #{unfolded_net_forward.4} parent=1 // pred_region
      _
    $region33: #{unfolded_net_forward.4} parent=1 // pred_fallthru
      _
    // Predicated region
    $region34: #{unfolded_net_forward.4} parent=1 // pred_check
      _
    $region35: #{unfolded_net_forward.4} parent=1 // pred_check_branch
      %43 = sbr.rel (0) target = $region37
    $region36: #{unfolded_net_forward.4} parent=1 // pred_region
      _
    $region37: #{unfolded_net_forward.4} parent=1 // pred_fallthru
      _
    // Predicated region
    $region38: #{unfolded_net_forward.4} parent=1 // pred_check
      _
    $region39: #{unfolded_net_forward.4} parent=1 // pred_check_branch
      %45 = sbr.rel (0) target = $region41
    $region40: #{unfolded_net_forward.4} parent=1 // pred_region
      %46 = dma.done [#allocation6], 16
    $region41: #{unfolded_net_forward.4} parent=1 // pred_fallthru
      _
    %47 = sfence
    %s48 = sld [smem:[#allocation4]]
    %v49 = vld [vmem:[%s0] sm:$0xff]
    %v50 = vld [vmem:[%s0 + $0x8] sm:$0xff]
    %v51 = vlaneseq
    %v52 = vshrl.u32 %v51, 7
    %v53 = vadd.s32 %v52, 8
    %vm54 = vcmp.lt.s32.totalorder %v52, 0
    %v55 = vsub.s32 0, %v52
    %v56 = vsel %vm54, %v55, %v52
    %v57 = vshrl.u32 %v56, 4
    %v58 = vand.u32 %v56, 15
    %v59 = vsub.s32 0, %v58
    %v60 = vsel %vm54, %v59, %v58
    %vm61 = vcmp.lt.s32.totalorder %v53, 0
    %v62 = vsub.s32 0, %v53
    %v63 = vsel %vm61, %v62, %v53
    %v64 = vshrl.u32 %v63, 4
    %v65 = vand.u32 %v63, 15
    %v66 = vsub.s32 0, %v65
    %v67 = vsel %vm61, %v66, %v65
    %vm68 = vcmp.ne.s32.totalorder %v60, 0
    %vm69 = vcmp.ne.s32.totalorder %v67, 0
    %vm70 = vcmp.lt.s32.totalorder %v60, 0
    %vm71 = vcmp.lt.s32.totalorder %v67, 0
    %vm72 = vmand %vm70, %vm68
    %vm73 = vmand %vm71, %vm69
    %v74 = vadd.s32 %v60, 16
    %v75 = vadd.s32 %v67, 16
    %v76 = vsel %vm72, %v74, %v60
    %v77 = vsel %vm73, %v75, %v67
    %v78 = vlaneseq
    %v79 = vand.u32 %v78, 127
    %v80 = vrot.slane %v49, 7
    %v81 = vrot.slane %v50, 7
    %vm82 = vcmp.lt.s32.totalorder %v52, 1
    %v83 = vsel %vm82, %v80, %v81
    %v84 = vsel %vm82, %v81, %v80
    %v85 = vadd.s32 %v76, 4294967295
    %v86 = vadd.s32 %v77, 4294967295
    %vm87 = vcmp.ge.s32.totalorder %v85, 0
    %vm88 = vcmp.ge.s32.totalorder %v86, 0
    %vm89 = vcmp.lt.s32.totalorder %v85, 16
    %vm90 = vcmp.lt.s32.totalorder %v86, 16
    %vm91 = vmand %vm87, %vm89
    %vm92 = vmand %vm88, %vm90
    %v93 = vsel %vm91, 1, 0
    %v94 = vsel %vm92, 1, 0
    %vm95 = vcmp.eq.s32.totalorder %v93, 1
    %vm96 = vcmp.eq.s32.totalorder %v94, 1
    %v97 = vsel %vm95, %v84, 0.0
    %v98 = vsel %vm96, %v83, 0.0
    %99 = vrot.lane.b32.xlu0 %v97, 1
    %v100 = vpop.permute.xlu0 %99
    %101 = vrot.lane.b32.xlu0 %v98, 1
    %v102 = vpop.permute.xlu0 %101
    %v103 = vadd.s32 %v79, 4294967295
    %vm104 = vcmp.ge.s32.totalorder %v103, 0
    %vm105 = vcmp.lt.s32.totalorder %v103, 128
    %vm106 = vmand %vm104, %vm105
    %v107 = vsel %vm106, 1, 0
    %vm108 = vcmp.eq.s32.totalorder %v107, 1
    %v109 = vsel %vm108, %v100, 0.0
    %v110 = vsel %vm108, %v102, 0.0
    %s111 = sld [smem:[#allocation5]]
    %v112 = vstv %s111
    %v113 = vmul.f32 %v112, %v109
    %v114 = vmul.f32 %v112, %v110
    %v115 = vadd.f32 %v113, 0.0
    %v116 = vadd.f32 %v114, 0.0
    %s117 = sld [smem:[#allocation5 + $0x1]]
    %v118 = vstv %s117
    %v119 = vmul.f32 %v118, %v97
    %v120 = vmul.f32 %v118, %v98
    %v121 = vadd.f32 %v115, %v119
    %v122 = vadd.f32 %v116, %v120
    %123 = vrot.lane.b32.xlu0 %v97, 127
    %v124 = vpop.permute.xlu0 %123
    %125 = vrot.lane.b32.xlu0 %v98, 127
    %v126 = vpop.permute.xlu0 %125
    %v127 = vadd.s32 %v79, 1
    %vm128 = vcmp.ge.s32.totalorder %v127, 0
    %vm129 = vcmp.lt.s32.totalorder %v127, 128
    %vm130 = vmand %vm128, %vm129
    %v131 = vsel %vm130, 1, 0
    %vm132 = vcmp.eq.s32.totalorder %v131, 1
    %v133 = vsel %vm132, %v124, 0.0
    %v134 = vsel %vm132, %v126, 0.0
    %s135 = sld [smem:[#allocation5 + $0x2]]
    %v136 = vstv %s135
    %v137 = vmul.f32 %v136, %v133
    %v138 = vmul.f32 %v136, %v134
    %v139 = vadd.f32 %v121, %v137
    %v140 = vadd.f32 %v122, %v138
    %141 = vrot.lane.b32.xlu0 %v49, 1
    %v142 = vpop.permute.xlu0 %141
    %143 = vrot.lane.b32.xlu0 %v50, 1
    %v144 = vpop.permute.xlu0 %143
    %v145 = vsel %vm108, %v142, 0.0
    %v146 = vsel %vm108, %v144, 0.0
    %s147 = sld [smem:[#allocation5 + $0x3]]
    %v148 = vstv %s147
    %v149 = vmul.f32 %v148, %v145
    %v150 = vmul.f32 %v148, %v146
    %v151 = vadd.f32 %v139, %v149
    %v152 = vadd.f32 %v140, %v150
    %s153 = sld [smem:[#allocation5 + $0x4]]
    %v154 = vstv %s153
    %v155 = vmul.f32 %v154, %v49
    %v156 = vmul.f32 %v154, %v50
    %v157 = vadd.f32 %v151, %v155
    %v158 = vadd.f32 %v152, %v156
    %159 = vrot.lane.b32.xlu0 %v49, 127
    %v160 = vpop.permute.xlu0 %159
    %161 = vrot.lane.b32.xlu0 %v50, 127
    %v162 = vpop.permute.xlu0 %161
    %v163 = vsel %vm132, %v160, 0.0
    %v164 = vsel %vm132, %v162, 0.0
    %s165 = sld [smem:[#allocation5 + $0x5]]
    %v166 = vstv %s165
    %v167 = vmul.f32 %v166, %v163
    %v168 = vmul.f32 %v166, %v164
    %v169 = vadd.f32 %v157, %v167
    %v170 = vadd.f32 %v158, %v168
    %v171 = vrot.slane %v49, 1
    %v172 = vrot.slane %v50, 1
    %vm173 = vcmp.lt.s32.totalorder %v52, 7
    %v174 = vsel %vm173, %v171, %v172
    %v175 = vsel %vm173, %v172, %v171
    %v176 = vadd.s32 %v76, 1
    %v177 = vadd.s32 %v77, 1
    %vm178 = vcmp.ge.s32.totalorder %v176, 0
    %vm179 = vcmp.ge.s32.totalorder %v177, 0
    %vm180 = vcmp.lt.s32.totalorder %v176, 16
    %vm181 = vcmp.lt.s32.totalorder %v177, 16
    %vm182 = vmand %vm178, %vm180
    %vm183 = vmand %vm179, %vm181
    %v184 = vsel %vm182, 1, 0
    %v185 = vsel %vm183, 1, 0
    %vm186 = vcmp.eq.s32.totalorder %v184, 1
    %vm187 = vcmp.eq.s32.totalorder %v185, 1
    %v188 = vsel %vm186, %v174, 0.0
    %v189 = vsel %vm187, %v175, 0.0
    %190 = vrot.lane.b32.xlu0 %v188, 1
    %v191 = vpop.permute.xlu0 %190
    %192 = vrot.lane.b32.xlu0 %v189, 1
    %v193 = vpop.permute.xlu0 %192
    %v194 = vsel %vm108, %v191, 0.0
    %v195 = vsel %vm108, %v193, 0.0
    %s196 = sld [smem:[#allocation5 + $0x6]]
    %v197 = vstv %s196
    %v198 = vmul.f32 %v197, %v194
    %v199 = vmul.f32 %v197, %v195
    %v200 = vadd.f32 %v169, %v198
    %v201 = vadd.f32 %v170, %v199
    %s202 = sld [smem:[#allocation5 + $0x7]]
    %v203 = vstv %s202
    %v204 = vmul.f32 %v203, %v188
    %v205 = vmul.f32 %v203, %v189
    %v206 = vadd.f32 %v200, %v204
    %v207 = vadd.f32 %v201, %v205
    %208 = vrot.lane.b32.xlu0 %v188, 127
    %v209 = vpop.permute.xlu0 %208
    %210 = vrot.lane.b32.xlu0 %v189, 127
    %v211 = vpop.permute.xlu0 %210
    %v212 = vsel %vm132, %v209, 0.0
    %v213 = vsel %vm132, %v211, 0.0
    %s214 = sld [smem:[#allocation5 + $0x8]]
    %v215 = vstv %s214
    %v216 = vmul.f32 %v215, %v212
    %v217 = vmul.f32 %v215, %v213
    %v218 = vadd.f32 %v206, %v216
    %v219 = vadd.f32 %v207, %v217
    %v220 = vld [vmem:[%s1] sm:$0xff]
    %v221 = vld [vmem:[%s1 + $0x8] sm:$0xff]
    %v222 = vld [vmem:[%s2] sm:$0xff]
    %v223 = vld [vmem:[%s2 + $0x8] sm:$0xff]
    %v224 = vmul.f32 %v220, %v222
    %v225 = vmul.f32 %v221, %v223
    %v226 = vld [vmem:[%s3] sm:$0xff]
    %v227 = vld [vmem:[%s3 + $0x8] sm:$0xff]
    %v228 = vstv %s48
    %v229 = vmul.f32 %v226, %v228
    %v230 = vmul.f32 %v227, %v228
    %v231 = vmul.f32 %v224, %v229
    %v232 = vmul.f32 %v225, %v230
    %v233 = vld [vmem:[%s4] sm:$0xff]
    %v234 = vld [vmem:[%s4 + $0x8] sm:$0xff]
    %v235 = vadd.f32 %v231, %v233
    %v236 = vadd.f32 %v232, %v234
    %s237 = sld [smem:[#allocation2]]
    %v238 = vstv %s237
    %v239 = vadd.f32 %v218, %v238
    %v240 = vadd.f32 %v219, %v238
    %s241 = sld [smem:[#allocation3]]
    %v242 = vstv %s241
    %v243 = vadd.f32 %v239, %v242
    %v244 = vadd.f32 %v240, %v242
    %v245 = vadd.f32 %v243, %v235
    %v246 = vadd.f32 %v244, %v236
    %247 = vst [vmem:[%s9] sm:$0xff] %v245
    %248 = vst [vmem:[%s9 + $0x8] sm:$0xff] %v246
    // Predicated region
    $region42: #{unfolded_net_forward.4} parent=1 // pred_check
      _
    $region43: #{unfolded_net_forward.4} parent=1 // pred_check_branch
      %250 = sbr.rel (0) target = $region45
    $region44: #{unfolded_net_forward.4} parent=1 // pred_region
      _
    $region45: #{unfolded_net_forward.4} parent=1 // pred_fallthru
      _
    // Predicated region
    $region46: #{unfolded_net_forward.4} parent=1 // pred_check
      _
    $region47: #{unfolded_net_forward.4} parent=1 // pred_check_branch
      %252 = sbr.rel (0) target = $region49
    $region48: #{unfolded_net_forward.4} parent=1 // pred_region
      _
    $region49: #{unfolded_net_forward.4} parent=1 // pred_fallthru
      _
    %253 = vsyncpa [#allocation6], 1

// kernel: custom-call.135
$region0: #{custom-call.135}
  %s0 = inlined_call_operand.vmem [shape: f32[32,16], index: 0, kind: input, shape index: {}]
  %s1 = inlined_call_operand.vmem [shape: f32[32,16], index: 1, kind: output, shape index: {0}]
  %s2 = inlined_call_operand.vmem [shape: f32[16], index: 2, kind: output, shape index: {1}]
  %3 = xla_tuple %s1, %s2
  $region1: #{custom-call.135} parent=0
    #allocation0 [shape = 'u8[16384]{0}', space=vmem, size = 0x4000, scoped, tag = 'operand span for operand 0']
    #allocation1 [shape = 'u8[16384]{0}', space=vmem, size = 0x4000, scoped, tag = 'operand span for operand 1']
    #allocation2 [shape = 'u8[4096]{0}', space=vmem, size = 0x1000, scoped, tag = 'operand span for operand 2']
    #allocation3 [shape = 'u8[512]{0}', space=vmem, size = 0x400, scoped, tag = 'packed  for operand 2']
    #allocation4 [shape = 'f32[32,128]{1,0}', space=vmem, size = 0x4000, scoped, tag = 'scratch for Householder reflectors']
    // Predicated region
    $region2: #{custom-call.135} parent=1 // pred_check
      _
    $region3: #{custom-call.135} parent=1 // pred_check_branch
      %5 = sbr.rel (0) target = $region5
    $region4: #{custom-call.135} parent=1 // pred_region
      // Predicated region
      $region6: #{custom-call.135} parent=4 // pred_check
        _
      $region7: #{custom-call.135} parent=4 // pred_check_branch
        %7 = sbr.rel (0) target = $region9
      $region8: #{custom-call.135} parent=4 // pred_region
        // Predicated region
        $region21: #{custom-call.135} parent=8 // pred_check
          _
        $region22: #{custom-call.135} parent=8 // pred_check_branch
          %29 = sbr.rel (0) target = $region24
        $region23: #{custom-call.135} parent=8 // pred_region
          loop: start=0, step=1, limit=1
          $region25: #{custom-call.135} parent=23 // loop_pre_header
            _
          $region26: #{custom-call.135} parent=23 // loop_header
            %s31 = sphi 0, %s35
            %p32 = scmp.ge.s32.totalorder %s31, 1
            %s36 = sphi %s0, %s0
            %s37 = sphi [#allocation0], [#allocation0]
          $region27: #{custom-call.135} parent=23 // loop_header_branch
            %34 = sbr.rel (%p32) target = $region31
          $region28: #{custom-call.135} parent=23 // loop_body
            %v38 = vld [vmem:[%s36] sm:$0xff]
            %39 = vst [vmem:[%s37] sm:$0xff] %v38
            %v40 = vld [vmem:[%s36 + $0x8] sm:$0xff]
            %41 = vst [vmem:[%s37 + $0x8] sm:$0xff] %v40
            %v42 = vld [vmem:[%s36 + $0x10] sm:$0xff]
            %43 = vst [vmem:[%s37 + $0x10] sm:$0xff] %v42
            %v44 = vld [vmem:[%s36 + $0x18] sm:$0xff]
            %45 = vst [vmem:[%s37 + $0x18] sm:$0xff] %v44
          $region29: #{custom-call.135} parent=23 // loop_footer
            %s35 = sadd.s32 1, %s31
          $region30: #{custom-call.135} parent=23 // loop_footer_branch
            %30 = sbr.rel target = $region26
          $region31: #{custom-call.135} parent=23 // loop_exit
            _
        $region24: #{custom-call.135} parent=8 // pred_fallthru
          _
        // Predicated region
        $region32: #{custom-call.135} parent=8 // pred_check
          _
        $region33: #{custom-call.135} parent=8 // pred_check_branch
          %47 = sbr.rel target = $region35
        $region34: #{custom-call.135} parent=8 // pred_region
          _
        $region35: #{custom-call.135} parent=8 // pred_fallthru
          _
      $region9: #{custom-call.135} parent=4 // pred_fallthru
        _
      // Predicated region
      $region10: #{custom-call.135} parent=4 // pred_check
        _
      $region11: #{custom-call.135} parent=4 // pred_check_branch
        %9 = sbr.rel target = $region13
      $region12: #{custom-call.135} parent=4 // pred_region
        %s11 = ssub.s32 256, 1
        loop: start=0, step=1, limit=1
        $region14: #{custom-call.135} parent=12 // loop_pre_header
          _
        $region15: #{custom-call.135} parent=12 // loop_header
          %s13 = sphi 0, %s17
          %p14 = scmp.ge.s32.totalorder %s13, 1
          %s18 = sphi %s0, %s0
          %s19 = sphi [#allocation0], [#allocation0]
        $region16: #{custom-call.135} parent=12 // loop_header_branch
          %16 = sbr.rel (%p14) target = $region20
        $region17: #{custom-call.135} parent=12 // loop_body
          %v20 = vld [vmem:[%s18] sm:%s11]
          %21 = vst [vmem:[%s19] sm:%s11] %v20
          %v22 = vld [vmem:[%s18 + $0x8] sm:%s11]
          %23 = vst [vmem:[%s19 + $0x8] sm:%s11] %v22
          %v24 = vld [vmem:[%s18 + $0x10] sm:%s11]
          %25 = vst [vmem:[%s19 + $0x10] sm:%s11] %v24
          %v26 = vld [vmem:[%s18 + $0x18] sm:%s11]
          %27 = vst [vmem:[%s19 + $0x18] sm:%s11] %v26
        $region18: #{custom-call.135} parent=12 // loop_footer
          %s17 = sadd.s32 1, %s13
        $region19: #{custom-call.135} parent=12 // loop_footer_branch
          %12 = sbr.rel target = $region15
        $region20: #{custom-call.135} parent=12 // loop_exit
          _
      $region13: #{custom-call.135} parent=4 // pred_fallthru
        _
    $region5: #{custom-call.135} parent=1 // pred_fallthru
      _
    %48 = vnop
    %v49 = vld [vmem:[#allocation0] sm:$0xff]
    %50 = vst [vmem:[#allocation1] sm:$0xff] %v49
    %s51 = scalar_lea.vmem [#allocation1], 8
    %s52 = scalar_lea.vmem [#allocation0], 8
    %v53 = vld [vmem:[%s52] sm:$0xff]
    %54 = vst [vmem:[%s51] sm:$0xff] %v53
    %s55 = scalar_lea.vmem [#allocation1], 16
    %s56 = scalar_lea.vmem [#allocation0], 16
    %v57 = vld [vmem:[%s56] sm:$0xff]
    %58 = vst [vmem:[%s55] sm:$0xff] %v57
    %s59 = scalar_lea.vmem [#allocation1], 24
    %s60 = scalar_lea.vmem [#allocation0], 24
    %v61 = vld [vmem:[%s60] sm:$0xff]
    %62 = vst [vmem:[%s59] sm:$0xff] %v61
    %63 = vst [vmem:[#allocation2] sm:$0x1] 0.0
    loop: start=0, step=1, limit=16
    $region36: #{custom-call.135} parent=1 // loop_pre_header
      _
    $region37: #{custom-call.135} parent=1 // loop_header
      %s65 = sphi 0, %s69
      %p66 = scmp.ge.s32.totalorder %s65, 16
    $region38: #{custom-call.135} parent=1 // loop_header_branch
      %68 = sbr.rel (%p66) target = $region42
    $region39: #{custom-call.135} parent=1 // loop_body
      %v70 = vld [vmem:[#allocation1] sm:$0xff]
      %v71 = vlaneseq
      %v72 = vshrl.u32 %v71, 7
      %v74 = vstv %s65
      %vm75 = vcmp.gt.s32.totalorder %v72, %v74
      %v76 = vsel %vm75, %v70, 0.0
      %v77 = vmul.f32 %v76, %v76
      %s78 = scalar_lea.vmem [#allocation1], 8
      %v79 = vld [vmem:[%s78] sm:$0xff]
      %v80 = vlaneseq
      %v81 = vshrl.u32 %v80, 7
      %v82 = vadd.s32 %v81, 8
      %v83 = vstv %s65
      %vm84 = vcmp.gt.s32.totalorder %v82, %v83
      %v85 = vsel %vm84, %v79, 0.0
      %v86 = vmul.f32 %v85, %v85
      %v87 = vadd.f32 %v77, %v86
      %s88 = scalar_lea.vmem [#allocation1], 16
      %v89 = vld [vmem:[%s88] sm:$0xff]
      %v90 = vlaneseq
      %v91 = vshrl.u32 %v90, 7
      %v92 = vadd.s32 %v91, 16
      %v93 = vstv %s65
      %vm94 = vcmp.gt.s32.totalorder %v92, %v93
      %v95 = vsel %vm94, %v89, 0.0
      %v96 = vmul.f32 %v95, %v95
      %v97 = vadd.f32 %v87, %v96
      %s98 = scalar_lea.vmem [#allocation1], 24
      %v99 = vld [vmem:[%s98] sm:$0xff]
      %v100 = vlaneseq
      %v101 = vshrl.u32 %v100, 7
      %v102 = vadd.s32 %v101, 24
      %v103 = vstv %s65
      %vm104 = vcmp.gt.s32.totalorder %v102, %v103
      %vm105 = vcmp.lt.s32.totalorder %v102, 32
      %vm106 = vmand %vm104, %vm105
      %v107 = vsel %vm106, %v99, 0.0
      %v108 = vmul.f32 %v107, %v107
      %v109 = vadd.f32 %v97, %v108
      %v110 = vrot.slane %v109, 4
      %v111 = vadd.f32 %v109, %v110
      %v112 = vrot.slane %v111, 2
      %v113 = vadd.f32 %v111, %v112
      %v114 = vrot.slane %v113, 1
      %v115 = vadd.f32 %v113, %v114
      %v116 = vrsqrt.pop %v115
      %v117 = vmul.f32 %v115, %v116
      %vm118 = vcmp.eq.f32.partialorder %v115, inf
      %v119 = vsel %vm118, %v115, %v117
      %vm120 = vcmp.eq.f32.partialorder %v115, 0.0
      %v121 = vand.u32 %v115, 2147483648
      %v122 = vsel %vm120, %v121, %v119
      %vm123 = vcmp.eq.f32.partialorder %v115, 0.0
      %s124 = sshrl.u32 %s65, 3
      %s125 = sand.u32 %s65, 7
      %s126 = smul.addr %s124, 8
      %s127 = sadd.s32 %s125, %s126
      %s128 = scalar_lea.vmem [#allocation1], %s127
      %v129 = vld [vmem:[%s128] ss:$0 sm:$0xff]
      %v130 = vand.u32 2147483647, %v129
      %v131 = vmax.f32 %v130, 0.0
      %v132 = vand.u32 2147483647, %v122
      %v133 = vmax.f32 %v131, %v132
      %v134 = vrcp.pop %v133
      %v135 = vmul.f32 %v130, %v134
      %v136 = vmul.f32 %v135, %v135
      %v137 = vrcp.pop %v133
      %v138 = vmul.f32 0.0, %v137
      %v139 = vmul.f32 %v138, %v138
      %v140 = vadd.f32 %v136, %v139
      %v141 = vrcp.pop %v133
      %v142 = vmul.f32 %v132, %v141
      %v143 = vmul.f32 %v142, %v142
      %v144 = vadd.f32 %v140, %v143
      %vm145 = vcmp.eq.f32.partialorder %v133, 0.0
      %v146 = vrsqrt.pop %v144
      %v147 = vmul.f32 %v144, %v146
      %vm148 = vcmp.eq.f32.partialorder %v144, inf
      %v149 = vsel %vm148, %v144, %v147
      %vm150 = vcmp.eq.f32.partialorder %v144, 0.0
      %v151 = vand.u32 %v144, 2147483648
      %v152 = vsel %vm150, %v151, %v149
      %v153 = vmul.f32 %v133, %v152
      %v154 = vsel %vm145, 0.0, %v153
      %vm155 = vcmp.lt.f32.partialorder %v129, 0.0
      %v156 = vxor.u32 %v154, 2147483648
      %v157 = vsel %vm155, %v154, %v156
      %v158 = vsub.f32 %v157, %v129
      %v159 = vrcp.pop %v157
      %v160 = vmul.f32 %v158, %v159
      %v161 = vsel %vm123, %v129, %v157
      %v162 = vsel %vm123, 0.0, %v160
      %v163 = vsub.f32 %v129, %v161
      %s164 = smov [#allocation1]
      %v165 = vlaneseq
      %v166 = vshrl.u32 %v165, 7
      %v167 = vmov %v166
      %v168 = vld [vmem:[%s164] sm:$0xff]
      %v170 = vstv %s65
      %vm171 = vcmp.gt.s32.totalorder %v167, %v170
      %v172 = vsel %vm171, %v168, 0.0
      %v173 = vrcp.pop %v163
      %v174 = vmul.f32 %v172, %v173
      %v175 = vsel %vm123, 0.0, %v174
      %v176 = vstv %s65
      %v177 = vlaneseq
      %v178 = vand.u32 %v177, 127
      %vm179 = vcmp.eq.s32.totalorder %v178, %v176
      %v180 = vsel %vm179, %v175, 0.0
      %181 = vadd.xlane.f32.xlu0 %v180
      %v182 = vpop.xlane.xlu0 %181
      %183 = vst [vmem:[#allocation4] sm:$0xff] %v182
      %s184 = scalar_lea.vmem %s164, 8
      %v185 = vld [vmem:[%s184] sm:$0xff]
      %v186 = vadd.s32 %v167, 8
      %v187 = vstv %s65
      %vm188 = vcmp.gt.s32.totalorder %v186, %v187
      %v189 = vsel %vm188, %v185, 0.0
      %v190 = vrcp.pop %v163
      %v191 = vmul.f32 %v189, %v190
      %v192 = vsel %vm123, 0.0, %v191
      %v193 = vstv %s65
      %v194 = vlaneseq
      %v195 = vand.u32 %v194, 127
      %vm196 = vcmp.eq.s32.totalorder %v195, %v193
      %v197 = vsel %vm196, %v192, 0.0
      %198 = vadd.xlane.f32.xlu0 %v197
      %v199 = vpop.xlane.xlu0 %198
      %s200 = scalar_lea.vmem [#allocation4], 8
      %201 = vst [vmem:[%s200] sm:$0xff] %v199
      %s202 = scalar_lea.vmem %s164, 16
      %v203 = vld [vmem:[%s202] sm:$0xff]
      %v204 = vadd.s32 %v167, 16
      %v205 = vstv %s65
      %vm206 = vcmp.gt.s32.totalorder %v204, %v205
      %v207 = vsel %vm206, %v203, 0.0
      %v208 = vrcp.pop %v163
      %v209 = vmul.f32 %v207, %v208
      %v210 = vsel %vm123, 0.0, %v209
      %v211 = vstv %s65
      %v212 = vlaneseq
      %v213 = vand.u32 %v212, 127
      %vm214 = vcmp.eq.s32.totalorder %v213, %v211
      %v215 = vsel %vm214, %v210, 0.0
      %216 = vadd.xlane.f32.xlu0 %v215
      %v217 = vpop.xlane.xlu0 %216
      %s218 = scalar_lea.vmem [#allocation4], 16
      %219 = vst [vmem:[%s218] sm:$0xff] %v217
      %s220 = scalar_lea.vmem %s164, 24
      %v221 = vld [vmem:[%s220] sm:$0xff]
      %v222 = vadd.s32 %v167, 24
      %v223 = vstv %s65
      %vm224 = vcmp.gt.s32.totalorder %v222, %v223
      %vm225 = vcmp.lt.s32.totalorder %v222, 32
      %vm226 = vmand %vm224, %vm225
      %v227 = vsel %vm226, %v221, 0.0
      %v228 = vrcp.pop %v163
      %v229 = vmul.f32 %v227, %v228
      %v230 = vsel %vm123, 0.0, %v229
      %v231 = vstv %s65
      %v232 = vlaneseq
      %v233 = vand.u32 %v232, 127
      %vm234 = vcmp.eq.s32.totalorder %v233, %v231
      %v235 = vsel %vm234, %v230, 0.0
      %236 = vadd.xlane.f32.xlu0 %v235
      %v237 = vpop.xlane.xlu0 %236
      %s238 = scalar_lea.vmem [#allocation4], 24
      %239 = vst [vmem:[%s238] sm:$0xff] %v237
      %s240 = scalar_lea.vmem [#allocation4], %s65
      %241 = vst [vmem:[%s240] sm:$0x1] 1.0
      %v242 = vstv %s65
      %v243 = vlaneseq
      %v244 = vand.u32 %v243, 127
      %vm245 = vcmp.eq.s32.totalorder %v244, %v242
      %v246 = vsel %vm245, %v162, 0.0
      %247 = vadd.xlane.f32.xlu0 %v246
      %v248 = vpop.xlane.xlu0 %247
      %v249 = vstv %s65
      %v250 = vlaneseq
      %v251 = vand.u32 %v250, 127
      %vm252 = vcmp.eq.s32.totalorder %v251, %v249
      %v253 = vld [vmem:[#allocation2] ss:$0 sm:$0xff]
      %v254 = vsel %vm252, %v248, %v253
      %255 = vst [vmem:[#allocation2] sm:$0x1] %v254
      %s256 = smov [#allocation1]
      %s257 = smov [#allocation4]
      %v258 = vlaneseq
      %v259 = vshrl.u32 %v258, 7
      %v260 = vmov %v259
      %v262 = vld [vmem:[%s257] sm:$0xff]
      %v263 = vld [vmem:[%s256] sm:$0xff]
      %v264 = vmul.f32 %v262, %v263
      %v265 = vadd.s32 %v260, 8
      %s266 = scalar_lea.vmem %s257, 8
      %v267 = vld [vmem:[%s266] sm:$0xff]
      %s268 = scalar_lea.vmem %s256, 8
      %v269 = vld [vmem:[%s268] sm:$0xff]
      %v270 = vmul.f32 %v267, %v269
      %v271 = vadd.f32 %v264, %v270
      %v272 = vadd.s32 %v260, 16
      %s273 = scalar_lea.vmem %s257, 16
      %v274 = vld [vmem:[%s273] sm:$0xff]
      %s275 = scalar_lea.vmem %s256, 16
      %v276 = vld [vmem:[%s275] sm:$0xff]
      %v277 = vmul.f32 %v274, %v276
      %v278 = vadd.f32 %v271, %v277
      %v279 = vadd.s32 %v260, 24
      %s280 = scalar_lea.vmem %s257, 24
      %v281 = vld [vmem:[%s280] sm:$0xff]
      %s282 = scalar_lea.vmem %s256, 24
      %v283 = vld [vmem:[%s282] sm:$0xff]
      %v284 = vmul.f32 %v281, %v283
      %vm285 = vcmp.lt.s32.totalorder %v279, 32
      %v286 = vsel %vm285, %v284, 0.0
      %v287 = vadd.f32 %v278, %v286
      %v288 = vrot.slane %v287, 4
      %v289 = vadd.f32 %v287, %v288
      %v290 = vrot.slane %v289, 2
      %v291 = vadd.f32 %v289, %v290
      %v292 = vrot.slane %v291, 1
      %v293 = vadd.f32 %v291, %v292
      %s294 = smov %s256
      %s295 = smov %s257
      %v296 = vlaneseq
      %v297 = vshrl.u32 %v296, 7
      %v298 = vmov %v297
      %v299 = vmul.f32 %v293, %v248
      %v301 = vlaneseq
      %v302 = vand.u32 %v301, 127
      %v303 = vld [vmem:[%s295] sm:$0xff]
      %v304 = vmul.f32 %v303, %v299
      %v305 = vld [vmem:[%s294] sm:$0xff]
      %v306 = vstv %s65
      %vm307 = vcmp.gt.s32.totalorder %v302, %v306
      %v308 = vsub.f32 %v305, %v304
      %v309 = vsel %vm307, %v308, %v305
      %v310 = vstv %s65
      %v311 = vlaneseq
      %v312 = vand.u32 %v311, 127
      %vm313 = vcmp.eq.s32.totalorder %v312, %v310
      %v314 = vstv %s65
      %vm315 = vcmp.ge.s32.totalorder %v298, %v314
      %vm316 = vmand %vm313, %vm315
      %v317 = vsel %vm316, %v303, %v309
      %318 = vst [vmem:[%s294] sm:$0xff] %v317
      %v319 = vadd.s32 %v298, 8
      %v320 = vlaneseq
      %v321 = vand.u32 %v320, 127
      %s322 = scalar_lea.vmem %s295, 8
      %v323 = vld [vmem:[%s322] sm:$0xff]
      %v324 = vmul.f32 %v323, %v299
      %s325 = scalar_lea.vmem %s294, 8
      %v326 = vld [vmem:[%s325] sm:$0xff]
      %v327 = vstv %s65
      %vm328 = vcmp.gt.s32.totalorder %v321, %v327
      %v329 = vsub.f32 %v326, %v324
      %v330 = vsel %vm328, %v329, %v326
      %v331 = vstv %s65
      %v332 = vlaneseq
      %v333 = vand.u32 %v332, 127
      %vm334 = vcmp.eq.s32.totalorder %v333, %v331
      %v335 = vstv %s65
      %vm336 = vcmp.ge.s32.totalorder %v319, %v335
      %vm337 = vmand %vm334, %vm336
      %v338 = vsel %vm337, %v323, %v330
      %339 = vst [vmem:[%s325] sm:$0xff] %v338
      %v340 = vadd.s32 %v298, 16
      %v341 = vlaneseq
      %v342 = vand.u32 %v341, 127
      %s343 = scalar_lea.vmem %s295, 16
      %v344 = vld [vmem:[%s343] sm:$0xff]
      %v345 = vmul.f32 %v344, %v299
      %s346 = scalar_lea.vmem %s294, 16
      %v347 = vld [vmem:[%s346] sm:$0xff]
      %v348 = vstv %s65
      %vm349 = vcmp.gt.s32.totalorder %v342, %v348
      %v350 = vsub.f32 %v347, %v345
      %v351 = vsel %vm349, %v350, %v347
      %v352 = vstv %s65
      %v353 = vlaneseq
      %v354 = vand.u32 %v353, 127
      %vm355 = vcmp.eq.s32.totalorder %v354, %v352
      %v356 = vstv %s65
      %vm357 = vcmp.ge.s32.totalorder %v340, %v356
      %vm358 = vmand %vm355, %vm357
      %v359 = vsel %vm358, %v344, %v351
      %360 = vst [vmem:[%s346] sm:$0xff] %v359
      %v361 = vadd.s32 %v298, 24
      %v362 = vlaneseq
      %v363 = vand.u32 %v362, 127
      %s364 = scalar_lea.vmem %s295, 24
      %v365 = vld [vmem:[%s364] sm:$0xff]
      %v366 = vmul.f32 %v365, %v299
      %s367 = scalar_lea.vmem %s294, 24
      %v368 = vld [vmem:[%s367] sm:$0xff]
      %v369 = vstv %s65
      %vm370 = vcmp.gt.s32.totalorder %v363, %v369
      %v371 = vsub.f32 %v368, %v366
      %v372 = vsel %vm370, %v371, %v368
      %v373 = vstv %s65
      %v374 = vlaneseq
      %v375 = vand.u32 %v374, 127
      %vm376 = vcmp.eq.s32.totalorder %v375, %v373
      %v377 = vstv %s65
      %vm378 = vcmp.ge.s32.totalorder %v361, %v377
      %vm379 = vmand %vm376, %vm378
      %v380 = vsel %vm379, %v365, %v372
      %381 = vst [vmem:[%s367] sm:$0xff] %v380
      %s382 = scalar_lea.vmem %s294, %s65
      %v383 = vld [vmem:[%s382] ss:$0 sm:$0xff]
      %v384 = vstv %s65
      %v385 = vlaneseq
      %v386 = vand.u32 %v385, 127
      %vm387 = vcmp.eq.s32.totalorder %v386, %v384
      %v388 = vsel %vm387, %v161, %v383
      %389 = vst [vmem:[%s382] sm:$0x1] %v388
    $region40: #{custom-call.135} parent=1 // loop_footer
      %s69 = sadd.s32 1, %s65
    $region41: #{custom-call.135} parent=1 // loop_footer_branch
      %64 = sbr.rel target = $region37
    $region42: #{custom-call.135} parent=1 // loop_exit
      _
    %s391 = sshll.u32 1, 1
    %s392 = ssub.s32 %s391, 1
    %v394 = vld [vmem:[#allocation2] sm:%s392]
    %s395 = sshll.u32 1, 1
    %s396 = ssub.s32 %s395, 1
    %397 = vst [vmem:[#allocation3] sm:%s396] %v394
    // Predicated region
    $region43: #{custom-call.135} parent=1 // pred_check
      _
    $region44: #{custom-call.135} parent=1 // pred_check_branch
      %399 = sbr.rel (0) target = $region46
    $region45: #{custom-call.135} parent=1 // pred_region
      // Predicated region
      $region47: #{custom-call.135} parent=45 // pred_check
        _
      $region48: #{custom-call.135} parent=45 // pred_check_branch
        %401 = sbr.rel (0) target = $region50
      $region49: #{custom-call.135} parent=45 // pred_region
        // Predicated region
        $region62: #{custom-call.135} parent=49 // pred_check
          _
        $region63: #{custom-call.135} parent=49 // pred_check_branch
          %423 = sbr.rel (0) target = $region65
        $region64: #{custom-call.135} parent=49 // pred_region
          loop: start=0, step=1, limit=1
          $region66: #{custom-call.135} parent=64 // loop_pre_header
            _
          $region67: #{custom-call.135} parent=64 // loop_header
            %s425 = sphi 0, %s429
            %p426 = scmp.ge.s32.totalorder %s425, 1
            %s430 = sphi [#allocation1], [#allocation1]
            %s431 = sphi %s1, %s1
          $region68: #{custom-call.135} parent=64 // loop_header_branch
            %428 = sbr.rel (%p426) target = $region72
          $region69: #{custom-call.135} parent=64 // loop_body
            %v432 = vld [vmem:[%s430] sm:$0xff]
            %433 = vst [vmem:[%s431] sm:$0xff] %v432
            %v434 = vld [vmem:[%s430 + $0x8] sm:$0xff]
            %435 = vst [vmem:[%s431 + $0x8] sm:$0xff] %v434
            %v436 = vld [vmem:[%s430 + $0x10] sm:$0xff]
            %437 = vst [vmem:[%s431 + $0x10] sm:$0xff] %v436
            %v438 = vld [vmem:[%s430 + $0x18] sm:$0xff]
            %439 = vst [vmem:[%s431 + $0x18] sm:$0xff] %v438
          $region70: #{custom-call.135} parent=64 // loop_footer
            %s429 = sadd.s32 1, %s425
          $region71: #{custom-call.135} parent=64 // loop_footer_branch
            %424 = sbr.rel target = $region67
          $region72: #{custom-call.135} parent=64 // loop_exit
            _
        $region65: #{custom-call.135} parent=49 // pred_fallthru
          _
        // Predicated region
        $region73: #{custom-call.135} parent=49 // pred_check
          _
        $region74: #{custom-call.135} parent=49 // pred_check_branch
          %441 = sbr.rel target = $region76
        $region75: #{custom-call.135} parent=49 // pred_region
          _
        $region76: #{custom-call.135} parent=49 // pred_fallthru
          _
      $region50: #{custom-call.135} parent=45 // pred_fallthru
        _
      // Predicated region
      $region51: #{custom-call.135} parent=45 // pred_check
        _
      $region52: #{custom-call.135} parent=45 // pred_check_branch
        %403 = sbr.rel target = $region54
      $region53: #{custom-call.135} parent=45 // pred_region
        %s405 = ssub.s32 256, 1
        loop: start=0, step=1, limit=1
        $region55: #{custom-call.135} parent=53 // loop_pre_header
          _
        $region56: #{custom-call.135} parent=53 // loop_header
          %s407 = sphi 0, %s411
          %p408 = scmp.ge.s32.totalorder %s407, 1
          %s412 = sphi [#allocation1], [#allocation1]
          %s413 = sphi %s1, %s1
        $region57: #{custom-call.135} parent=53 // loop_header_branch
          %410 = sbr.rel (%p408) target = $region61
        $region58: #{custom-call.135} parent=53 // loop_body
          %v414 = vld [vmem:[%s412] sm:%s405]
          %415 = vst [vmem:[%s413] sm:%s405] %v414
          %v416 = vld [vmem:[%s412 + $0x8] sm:%s405]
          %417 = vst [vmem:[%s413 + $0x8] sm:%s405] %v416
          %v418 = vld [vmem:[%s412 + $0x10] sm:%s405]
          %419 = vst [vmem:[%s413 + $0x10] sm:%s405] %v418
          %v420 = vld [vmem:[%s412 + $0x18] sm:%s405]
          %421 = vst [vmem:[%s413 + $0x18] sm:%s405] %v420
        $region59: #{custom-call.135} parent=53 // loop_footer
          %s411 = sadd.s32 1, %s407
        $region60: #{custom-call.135} parent=53 // loop_footer_branch
          %406 = sbr.rel target = $region56
        $region61: #{custom-call.135} parent=53 // loop_exit
          _
      $region54: #{custom-call.135} parent=45 // pred_fallthru
        _
    $region46: #{custom-call.135} parent=1 // pred_fallthru
      _
    %442 = vnop
    // Predicated region
    $region77: #{custom-call.135} parent=1 // pred_check
      _
    $region78: #{custom-call.135} parent=1 // pred_check_branch
      %444 = sbr.rel (0) target = $region80
    $region79: #{custom-call.135} parent=1 // pred_region
      // Predicated region
      $region81: #{custom-call.135} parent=79 // pred_check
        _
      $region82: #{custom-call.135} parent=79 // pred_check_branch
        %446 = sbr.rel (0) target = $region84
      $region83: #{custom-call.135} parent=79 // pred_region
        // Predicated region
        $region85: #{custom-call.135} parent=83 // pred_check
          _
        $region86: #{custom-call.135} parent=83 // pred_check_branch
          %448 = sbr.rel target = $region88
        $region87: #{custom-call.135} parent=83 // pred_region
          // Predicated region
          $region100: #{custom-call.135} parent=87 // pred_check
            _
          $region101: #{custom-call.135} parent=87 // pred_check_branch
            %464 = sbr.rel (0) target = $region103
          $region102: #{custom-call.135} parent=87 // pred_region
            %s466 = ssub.s32 2, 1
            loop: start=0, step=1, limit=1
            $region104: #{custom-call.135} parent=102 // loop_pre_header
              _
            $region105: #{custom-call.135} parent=102 // loop_header
              %s468 = sphi 0, %s472
              %p469 = scmp.ge.s32.totalorder %s468, 1
              %s473 = sphi [#allocation3], [#allocation3]
              %s474 = sphi %s2, %s2
            $region106: #{custom-call.135} parent=102 // loop_header_branch
              %471 = sbr.rel (%p469) target = $region110
            $region107: #{custom-call.135} parent=102 // loop_body
              %v475 = vld [vmem:[%s473] sm:%s466]
              %476 = vst [vmem:[%s474] sm:%s466] %v475
            $region108: #{custom-call.135} parent=102 // loop_footer
              %s472 = sadd.s32 1, %s468
            $region109: #{custom-call.135} parent=102 // loop_footer_branch
              %467 = sbr.rel target = $region105
            $region110: #{custom-call.135} parent=102 // loop_exit
              _
          $region103: #{custom-call.135} parent=87 // pred_fallthru
            _
        $region88: #{custom-call.135} parent=83 // pred_fallthru
          _
        // Predicated region
        $region89: #{custom-call.135} parent=83 // pred_check
          _
        $region90: #{custom-call.135} parent=83 // pred_check_branch
          %450 = sbr.rel (0) target = $region92
        $region91: #{custom-call.135} parent=83 // pred_region
          %s452 = ssub.s32 2, 1
          loop: start=0, step=1, limit=1
          $region93: #{custom-call.135} parent=91 // loop_pre_header
            _
          $region94: #{custom-call.135} parent=91 // loop_header
            %s454 = sphi 0, %s458
            %p455 = scmp.ge.s32.totalorder %s454, 1
            %s459 = sphi [#allocation3], [#allocation3]
            %s460 = sphi %s2, %s2
          $region95: #{custom-call.135} parent=91 // loop_header_branch
            %457 = sbr.rel (%p455) target = $region99
          $region96: #{custom-call.135} parent=91 // loop_body
            %v461 = vld [vmem:[%s459] sm:%s452]
            %462 = vst [vmem:[%s460] sm:%s452] %v461
          $region97: #{custom-call.135} parent=91 // loop_footer
            %s458 = sadd.s32 1, %s454
          $region98: #{custom-call.135} parent=91 // loop_footer_branch
            %453 = sbr.rel target = $region94
          $region99: #{custom-call.135} parent=91 // loop_exit
            _
        $region92: #{custom-call.135} parent=83 // pred_fallthru
          _
      $region84: #{custom-call.135} parent=79 // pred_fallthru
        _
      %477 = vnop
    $region80: #{custom-call.135} parent=1 // pred_fallthru
      _
    // Predicated region
    $region111: #{custom-call.135} parent=1 // pred_check
      _
    $region112: #{custom-call.135} parent=1 // pred_check_branch
      %479 = sbr.rel (0) target = $region114
    $region113: #{custom-call.135} parent=1 // pred_region
      _
    $region114: #{custom-call.135} parent=1 // pred_fallthru
      _

// kernel: custom-call.137
$region0: #{custom-call.137}
  %s0 = inlined_call_operand.vmem [shape: f32[16,16], index: 0, kind: input, shape index: {}]
  %s1 = inlined_call_operand.vmem [shape: f32[16,16], index: 1, kind: output, shape index: {}]
  $region1: #{custom-call.137} parent=0
    #allocation0 [shape = 'u8[8192]{0}', space=vmem, size = 0x2000, scoped, tag = 'operand span for operand 0']
    #allocation1 [shape = 'u8[8192]{0}', space=vmem, size = 0x2000, scoped, tag = 'operand span for operand 1']
    // Predicated region
    $region2: #{custom-call.137} parent=1 // pred_check
      _
    $region3: #{custom-call.137} parent=1 // pred_check_branch
      %3 = sbr.rel (0) target = $region5
    $region4: #{custom-call.137} parent=1 // pred_region
      // Predicated region
      $region6: #{custom-call.137} parent=4 // pred_check
        _
      $region7: #{custom-call.137} parent=4 // pred_check_branch
        %5 = sbr.rel (0) target = $region9
      $region8: #{custom-call.137} parent=4 // pred_region
        // Predicated region
        $region21: #{custom-call.137} parent=8 // pred_check
          _
        $region22: #{custom-call.137} parent=8 // pred_check_branch
          %23 = sbr.rel (0) target = $region24
        $region23: #{custom-call.137} parent=8 // pred_region
          loop: start=0, step=1, limit=1
          $region25: #{custom-call.137} parent=23 // loop_pre_header
            _
          $region26: #{custom-call.137} parent=23 // loop_header
            %s25 = sphi 0, %s29
            %p26 = scmp.ge.s32.totalorder %s25, 1
            %s30 = sphi %s0, %s0
            %s31 = sphi [#allocation0], [#allocation0]
          $region27: #{custom-call.137} parent=23 // loop_header_branch
            %28 = sbr.rel (%p26) target = $region31
          $region28: #{custom-call.137} parent=23 // loop_body
            %v32 = vld [vmem:[%s30] sm:$0xff]
            %33 = vst [vmem:[%s31] sm:$0xff] %v32
            %v34 = vld [vmem:[%s30 + $0x8] sm:$0xff]
            %35 = vst [vmem:[%s31 + $0x8] sm:$0xff] %v34
          $region29: #{custom-call.137} parent=23 // loop_footer
            %s29 = sadd.s32 1, %s25
          $region30: #{custom-call.137} parent=23 // loop_footer_branch
            %24 = sbr.rel target = $region26
          $region31: #{custom-call.137} parent=23 // loop_exit
            _
        $region24: #{custom-call.137} parent=8 // pred_fallthru
          _
        // Predicated region
        $region32: #{custom-call.137} parent=8 // pred_check
          _
        $region33: #{custom-call.137} parent=8 // pred_check_branch
          %37 = sbr.rel target = $region35
        $region34: #{custom-call.137} parent=8 // pred_region
          _
        $region35: #{custom-call.137} parent=8 // pred_fallthru
          _
      $region9: #{custom-call.137} parent=4 // pred_fallthru
        _
      // Predicated region
      $region10: #{custom-call.137} parent=4 // pred_check
        _
      $region11: #{custom-call.137} parent=4 // pred_check_branch
        %7 = sbr.rel target = $region13
      $region12: #{custom-call.137} parent=4 // pred_region
        %s9 = ssub.s32 256, 1
        loop: start=0, step=1, limit=1
        $region14: #{custom-call.137} parent=12 // loop_pre_header
          _
        $region15: #{custom-call.137} parent=12 // loop_header
          %s11 = sphi 0, %s15
          %p12 = scmp.ge.s32.totalorder %s11, 1
          %s16 = sphi %s0, %s0
          %s17 = sphi [#allocation0], [#allocation0]
        $region16: #{custom-call.137} parent=12 // loop_header_branch
          %14 = sbr.rel (%p12) target = $region20
        $region17: #{custom-call.137} parent=12 // loop_body
          %v18 = vld [vmem:[%s16] sm:%s9]
          %19 = vst [vmem:[%s17] sm:%s9] %v18
          %v20 = vld [vmem:[%s16 + $0x8] sm:%s9]
          %21 = vst [vmem:[%s17 + $0x8] sm:%s9] %v20
        $region18: #{custom-call.137} parent=12 // loop_footer
          %s15 = sadd.s32 1, %s11
        $region19: #{custom-call.137} parent=12 // loop_footer_branch
          %10 = sbr.rel target = $region15
        $region20: #{custom-call.137} parent=12 // loop_exit
          _
      $region13: #{custom-call.137} parent=4 // pred_fallthru
        _
    $region5: #{custom-call.137} parent=1 // pred_fallthru
      _
    %38 = vnop
    %39 = vst [vmem:[#allocation1] sm:$0xff] 0.0
    %s40 = scalar_lea.vmem [#allocation1], 8
    %41 = vst [vmem:[%s40] sm:$0xff] 0.0
    %vm42 = vcmask 7168
    %v43 = vld [vmem:[#allocation1] ss:$0 sm:$0xff]
    %v44 = vld [vmem:[#allocation0] ss:$0 sm:$0xff]
    %v45 = vmul.f32 %v43, %v43
    %46 = vadd.xlane.f32.xlu0 %v45
    %v47 = vpop.xlane.xlu0 %46
    %v48 = vsub.f32 %v44, %v47
    %v49 = vrsqrt.pop %v48
    %v50 = vld [vmem:[#allocation0] sm:$0xff]
    %v51 = vld [vmem:[#allocation1] sm:$0xff]
    %v52 = vmul.f32 %v51, %v43
    %53 = vadd.xlane.f32.xlu0 %v52
    %v54 = vpop.xlane.xlu0 %53
    %v55 = vsub.f32 %v50, %v54
    %v56 = vmul.f32 %v55, %v49
    %v57 = vsel %vm42, %v56, 0.0
    %v58 = vadd.f32 %v51, %v57
    %59 = vst [vmem:[#allocation1] sm:$0xff] %v58
    %s60 = scalar_lea.vmem [#allocation0], 8
    %v61 = vld [vmem:[%s60] sm:$0xff]
    %s62 = scalar_lea.vmem [#allocation1], 8
    %v63 = vld [vmem:[%s62] sm:$0xff]
    %v64 = vmul.f32 %v63, %v43
    %65 = vadd.xlane.f32.xlu0 %v64
    %v66 = vpop.xlane.xlu0 %65
    %v67 = vsub.f32 %v61, %v66
    %v68 = vmul.f32 %v67, %v49
    %v69 = vsel %vm42, %v68, 0.0
    %v70 = vadd.f32 %v63, %v69
    %s71 = scalar_lea.vmem [#allocation1], 8
    %72 = vst [vmem:[%s71] sm:$0xff] %v70
    %vm73 = vcmask 15368
    %s74 = scalar_lea.vmem [#allocation1], 1
    %v75 = vld [vmem:[%s74] ss:$0 sm:$0xff]
    %s76 = scalar_lea.vmem [#allocation0], 1
    %v77 = vld [vmem:[%s76] ss:$0 sm:$0xff]
    %v78 = vmul.f32 %v75, %v75
    %79 = vadd.xlane.f32.xlu0 %v78
    %v80 = vpop.xlane.xlu0 %79
    %v81 = vsub.f32 %v77, %v80
    %v82 = vrsqrt.pop %v81
    %v83 = vld [vmem:[#allocation0] sm:$0xff]
    %v84 = vld [vmem:[#allocation1] sm:$0xff]
    %v85 = vmul.f32 %v84, %v75
    %86 = vadd.xlane.f32.xlu0 %v85
    %v87 = vpop.xlane.xlu0 %86
    %v88 = vsub.f32 %v83, %v87
    %v89 = vmul.f32 %v88, %v82
    %vm90 = vcmask 1047553
    %vm91 = vmand %vm73, %vm90
    %v92 = vsel %vm91, %v89, 0.0
    %v93 = vadd.f32 %v84, %v92
    %94 = vst [vmem:[#allocation1] sm:$0xff] %v93
    %s95 = scalar_lea.vmem [#allocation0], 8
    %v96 = vld [vmem:[%s95] sm:$0xff]
    %s97 = scalar_lea.vmem [#allocation1], 8
    %v98 = vld [vmem:[%s97] sm:$0xff]
    %v99 = vmul.f32 %v98, %v75
    %100 = vadd.xlane.f32.xlu0 %v99
    %v101 = vpop.xlane.xlu0 %100
    %v102 = vsub.f32 %v96, %v101
    %v103 = vmul.f32 %v102, %v82
    %v104 = vsel %vm73, %v103, 0.0
    %v105 = vadd.f32 %v98, %v104
    %s106 = scalar_lea.vmem [#allocation1], 8
    %107 = vst [vmem:[%s106] sm:$0xff] %v105
    %vm108 = vcmask 23568
    %s109 = scalar_lea.vmem [#allocation1], 2
    %v110 = vld [vmem:[%s109] ss:$0 sm:$0xff]
    %s111 = scalar_lea.vmem [#allocation0], 2
    %v112 = vld [vmem:[%s111] ss:$0 sm:$0xff]
    %v113 = vmul.f32 %v110, %v110
    %114 = vadd.xlane.f32.xlu0 %v113
    %v115 = vpop.xlane.xlu0 %114
    %v116 = vsub.f32 %v112, %v115
    %v117 = vrsqrt.pop %v116
    %v118 = vld [vmem:[#allocation0] sm:$0xff]
    %v119 = vld [vmem:[#allocation1] sm:$0xff]
    %v120 = vmul.f32 %v119, %v110
    %121 = vadd.xlane.f32.xlu0 %v120
    %v122 = vpop.xlane.xlu0 %121
    %v123 = vsub.f32 %v118, %v122
    %v124 = vmul.f32 %v123, %v117
    %vm125 = vcmask 1047554
    %vm126 = vmand %vm108, %vm125
    %v127 = vsel %vm126, %v124, 0.0
    %v128 = vadd.f32 %v119, %v127
    %129 = vst [vmem:[#allocation1] sm:$0xff] %v128
    %s130 = scalar_lea.vmem [#allocation0], 8
    %v131 = vld [vmem:[%s130] sm:$0xff]
    %s132 = scalar_lea.vmem [#allocation1], 8
    %v133 = vld [vmem:[%s132] sm:$0xff]
    %v134 = vmul.f32 %v133, %v110
    %135 = vadd.xlane.f32.xlu0 %v134
    %v136 = vpop.xlane.xlu0 %135
    %v137 = vsub.f32 %v131, %v136
    %v138 = vmul.f32 %v137, %v117
    %v139 = vsel %vm108, %v138, 0.0
    %v140 = vadd.f32 %v133, %v139
    %s141 = scalar_lea.vmem [#allocation1], 8
    %142 = vst [vmem:[%s141] sm:$0xff] %v140
    %vm143 = vcmask 31768
    %s144 = scalar_lea.vmem [#allocation1], 3
    %v145 = vld [vmem:[%s144] ss:$0 sm:$0xff]
    %s146 = scalar_lea.vmem [#allocation0], 3
    %v147 = vld [vmem:[%s146] ss:$0 sm:$0xff]
    %v148 = vmul.f32 %v145, %v145
    %149 = vadd.xlane.f32.xlu0 %v148
    %v150 = vpop.xlane.xlu0 %149
    %v151 = vsub.f32 %v147, %v150
    %v152 = vrsqrt.pop %v151
    %v153 = vld [vmem:[#allocation0] sm:$0xff]
    %v154 = vld [vmem:[#allocation1] sm:$0xff]
    %v155 = vmul.f32 %v154, %v145
    %156 = vadd.xlane.f32.xlu0 %v155
    %v157 = vpop.xlane.xlu0 %156
    %v158 = vsub.f32 %v153, %v157
    %v159 = vmul.f32 %v158, %v152
    %vm160 = vcmask 1047555
    %vm161 = vmand %vm143, %vm160
    %v162 = vsel %vm161, %v159, 0.0
    %v163 = vadd.f32 %v154, %v162
    %164 = vst [vmem:[#allocation1] sm:$0xff] %v163
    %s165 = scalar_lea.vmem [#allocation0], 8
    %v166 = vld [vmem:[%s165] sm:$0xff]
    %s167 = scalar_lea.vmem [#allocation1], 8
    %v168 = vld [vmem:[%s167] sm:$0xff]
    %v169 = vmul.f32 %v168, %v145
    %170 = vadd.xlane.f32.xlu0 %v169
    %v171 = vpop.xlane.xlu0 %170
    %v172 = vsub.f32 %v166, %v171
    %v173 = vmul.f32 %v172, %v152
    %v174 = vsel %vm143, %v173, 0.0
    %v175 = vadd.f32 %v168, %v174
    %s176 = scalar_lea.vmem [#allocation1], 8
    %177 = vst [vmem:[%s176] sm:$0xff] %v175
    %vm178 = vcmask 39968
    %s179 = scalar_lea.vmem [#allocation1], 4
    %v180 = vld [vmem:[%s179] ss:$0 sm:$0xff]
    %s181 = scalar_lea.vmem [#allocation0], 4
    %v182 = vld [vmem:[%s181] ss:$0 sm:$0xff]
    %v183 = vmul.f32 %v180, %v180
    %184 = vadd.xlane.f32.xlu0 %v183
    %v185 = vpop.xlane.xlu0 %184
    %v186 = vsub.f32 %v182, %v185
    %v187 = vrsqrt.pop %v186
    %v188 = vld [vmem:[#allocation0] sm:$0xff]
    %v189 = vld [vmem:[#allocation1] sm:$0xff]
    %v190 = vmul.f32 %v189, %v180
    %191 = vadd.xlane.f32.xlu0 %v190
    %v192 = vpop.xlane.xlu0 %191
    %v193 = vsub.f32 %v188, %v192
    %v194 = vmul.f32 %v193, %v187
    %vm195 = vcmask 1047556
    %vm196 = vmand %vm178, %vm195
    %v197 = vsel %vm196, %v194, 0.0
    %v198 = vadd.f32 %v189, %v197
    %199 = vst [vmem:[#allocation1] sm:$0xff] %v198
    %s200 = scalar_lea.vmem [#allocation0], 8
    %v201 = vld [vmem:[%s200] sm:$0xff]
    %s202 = scalar_lea.vmem [#allocation1], 8
    %v203 = vld [vmem:[%s202] sm:$0xff]
    %v204 = vmul.f32 %v203, %v180
    %205 = vadd.xlane.f32.xlu0 %v204
    %v206 = vpop.xlane.xlu0 %205
    %v207 = vsub.f32 %v201, %v206
    %v208 = vmul.f32 %v207, %v187
    %v209 = vsel %vm178, %v208, 0.0
    %v210 = vadd.f32 %v203, %v209
    %s211 = scalar_lea.vmem [#allocation1], 8
    %212 = vst [vmem:[%s211] sm:$0xff] %v210
    %vm213 = vcmask 48168
    %s214 = scalar_lea.vmem [#allocation1], 5
    %v215 = vld [vmem:[%s214] ss:$0 sm:$0xff]
    %s216 = scalar_lea.vmem [#allocation0], 5
    %v217 = vld [vmem:[%s216] ss:$0 sm:$0xff]
    %v218 = vmul.f32 %v215, %v215
    %219 = vadd.xlane.f32.xlu0 %v218
    %v220 = vpop.xlane.xlu0 %219
    %v221 = vsub.f32 %v217, %v220
    %v222 = vrsqrt.pop %v221
    %v223 = vld [vmem:[#allocation0] sm:$0xff]
    %v224 = vld [vmem:[#allocation1] sm:$0xff]
    %v225 = vmul.f32 %v224, %v215
    %226 = vadd.xlane.f32.xlu0 %v225
    %v227 = vpop.xlane.xlu0 %226
    %v228 = vsub.f32 %v223, %v227
    %v229 = vmul.f32 %v228, %v222
    %vm230 = vcmask 1047557
    %vm231 = vmand %vm213, %vm230
    %v232 = vsel %vm231, %v229, 0.0
    %v233 = vadd.f32 %v224, %v232
    %234 = vst [vmem:[#allocation1] sm:$0xff] %v233
    %s235 = scalar_lea.vmem [#allocation0], 8
    %v236 = vld [vmem:[%s235] sm:$0xff]
    %s237 = scalar_lea.vmem [#allocation1], 8
    %v238 = vld [vmem:[%s237] sm:$0xff]
    %v239 = vmul.f32 %v238, %v215
    %240 = vadd.xlane.f32.xlu0 %v239
    %v241 = vpop.xlane.xlu0 %240
    %v242 = vsub.f32 %v236, %v241
    %v243 = vmul.f32 %v242, %v222
    %v244 = vsel %vm213, %v243, 0.0
    %v245 = vadd.f32 %v238, %v244
    %s246 = scalar_lea.vmem [#allocation1], 8
    %247 = vst [vmem:[%s246] sm:$0xff] %v245
    %vm248 = vcmask 56368
    %s249 = scalar_lea.vmem [#allocation1], 6
    %v250 = vld [vmem:[%s249] ss:$0 sm:$0xff]
    %s251 = scalar_lea.vmem [#allocation0], 6
    %v252 = vld [vmem:[%s251] ss:$0 sm:$0xff]
    %v253 = vmul.f32 %v250, %v250
    %254 = vadd.xlane.f32.xlu0 %v253
    %v255 = vpop.xlane.xlu0 %254
    %v256 = vsub.f32 %v252, %v255
    %v257 = vrsqrt.pop %v256
    %v258 = vld [vmem:[#allocation0] sm:$0xff]
    %v259 = vld [vmem:[#allocation1] sm:$0xff]
    %v260 = vmul.f32 %v259, %v250
    %261 = vadd.xlane.f32.xlu0 %v260
    %v262 = vpop.xlane.xlu0 %261
    %v263 = vsub.f32 %v258, %v262
    %v264 = vmul.f32 %v263, %v257
    %vm265 = vcmask 1047558
    %vm266 = vmand %vm248, %vm265
    %v267 = vsel %vm266, %v264, 0.0
    %v268 = vadd.f32 %v259, %v267
    %269 = vst [vmem:[#allocation1] sm:$0xff] %v268
    %s270 = scalar_lea.vmem [#allocation0], 8
    %v271 = vld [vmem:[%s270] sm:$0xff]
    %s272 = scalar_lea.vmem [#allocation1], 8
    %v273 = vld [vmem:[%s272] sm:$0xff]
    %v274 = vmul.f32 %v273, %v250
    %275 = vadd.xlane.f32.xlu0 %v274
    %v276 = vpop.xlane.xlu0 %275
    %v277 = vsub.f32 %v271, %v276
    %v278 = vmul.f32 %v277, %v257
    %v279 = vsel %vm248, %v278, 0.0
    %v280 = vadd.f32 %v273, %v279
    %s281 = scalar_lea.vmem [#allocation1], 8
    %282 = vst [vmem:[%s281] sm:$0xff] %v280
    %vm283 = vcmask 64568
    %s284 = scalar_lea.vmem [#allocation1], 7
    %v285 = vld [vmem:[%s284] ss:$0 sm:$0xff]
    %s286 = scalar_lea.vmem [#allocation0], 7
    %v287 = vld [vmem:[%s286] ss:$0 sm:$0xff]
    %v288 = vmul.f32 %v285, %v285
    %289 = vadd.xlane.f32.xlu0 %v288
    %v290 = vpop.xlane.xlu0 %289
    %v291 = vsub.f32 %v287, %v290
    %v292 = vrsqrt.pop %v291
    %v293 = vld [vmem:[#allocation0] sm:$0xff]
    %v294 = vld [vmem:[#allocation1] sm:$0xff]
    %v295 = vmul.f32 %v294, %v285
    %296 = vadd.xlane.f32.xlu0 %v295
    %v297 = vpop.xlane.xlu0 %296
    %v298 = vsub.f32 %v293, %v297
    %v299 = vmul.f32 %v298, %v292
    %vm300 = vcmask 1047559
    %vm301 = vmand %vm283, %vm300
    %v302 = vsel %vm301, %v299, 0.0
    %v303 = vadd.f32 %v294, %v302
    %304 = vst [vmem:[#allocation1] sm:$0xff] %v303
    %s305 = scalar_lea.vmem [#allocation0], 8
    %v306 = vld [vmem:[%s305] sm:$0xff]
    %s307 = scalar_lea.vmem [#allocation1], 8
    %v308 = vld [vmem:[%s307] sm:$0xff]
    %v309 = vmul.f32 %v308, %v285
    %310 = vadd.xlane.f32.xlu0 %v309
    %v311 = vpop.xlane.xlu0 %310
    %v312 = vsub.f32 %v306, %v311
    %v313 = vmul.f32 %v312, %v292
    %v314 = vsel %vm283, %v313, 0.0
    %v315 = vadd.f32 %v308, %v314
    %s316 = scalar_lea.vmem [#allocation1], 8
    %317 = vst [vmem:[%s316] sm:$0xff] %v315
    %vm318 = vcmask 72768
    %s319 = scalar_lea.vmem [#allocation1], 8
    %v320 = vld [vmem:[%s319] ss:$0 sm:$0xff]
    %s321 = scalar_lea.vmem [#allocation0], 8
    %v322 = vld [vmem:[%s321] ss:$0 sm:$0xff]
    %v323 = vmul.f32 %v320, %v320
    %324 = vadd.xlane.f32.xlu0 %v323
    %v325 = vpop.xlane.xlu0 %324
    %v326 = vsub.f32 %v322, %v325
    %v327 = vrsqrt.pop %v326
    %s328 = scalar_lea.vmem [#allocation0], 8
    %v329 = vld [vmem:[%s328] sm:$0xff]
    %s330 = scalar_lea.vmem [#allocation1], 8
    %v331 = vld [vmem:[%s330] sm:$0xff]
    %v332 = vmul.f32 %v331, %v320
    %333 = vadd.xlane.f32.xlu0 %v332
    %v334 = vpop.xlane.xlu0 %333
    %v335 = vsub.f32 %v329, %v334
    %v336 = vmul.f32 %v335, %v327
    %v337 = vsel %vm318, %v336, 0.0
    %v338 = vadd.f32 %v331, %v337
    %s339 = scalar_lea.vmem [#allocation1], 8
    %340 = vst [vmem:[%s339] sm:$0xff] %v338
    %vm341 = vcmask 80968
    %s342 = scalar_lea.vmem [#allocation1], 9
    %v343 = vld [vmem:[%s342] ss:$0 sm:$0xff]
    %s344 = scalar_lea.vmem [#allocation0], 9
    %v345 = vld [vmem:[%s344] ss:$0 sm:$0xff]
    %v346 = vmul.f32 %v343, %v343
    %347 = vadd.xlane.f32.xlu0 %v346
    %v348 = vpop.xlane.xlu0 %347
    %v349 = vsub.f32 %v345, %v348
    %v350 = vrsqrt.pop %v349
    %s351 = scalar_lea.vmem [#allocation0], 8
    %v352 = vld [vmem:[%s351] sm:$0xff]
    %s353 = scalar_lea.vmem [#allocation1], 8
    %v354 = vld [vmem:[%s353] sm:$0xff]
    %v355 = vmul.f32 %v354, %v343
    %356 = vadd.xlane.f32.xlu0 %v355
    %v357 = vpop.xlane.xlu0 %356
    %v358 = vsub.f32 %v352, %v357
    %v359 = vmul.f32 %v358, %v350
    %vm360 = vcmask 1047553
    %vm361 = vmand %vm341, %vm360
    %v362 = vsel %vm361, %v359, 0.0
    %v363 = vadd.f32 %v354, %v362
    %s364 = scalar_lea.vmem [#allocation1], 8
    %365 = vst [vmem:[%s364] sm:$0xff] %v363
    %vm366 = vcmask 89168
    %s367 = scalar_lea.vmem [#allocation1], 10
    %v368 = vld [vmem:[%s367] ss:$0 sm:$0xff]
    %s369 = scalar_lea.vmem [#allocation0], 10
    %v370 = vld [vmem:[%s369] ss:$0 sm:$0xff]
    %v371 = vmul.f32 %v368, %v368
    %372 = vadd.xlane.f32.xlu0 %v371
    %v373 = vpop.xlane.xlu0 %372
    %v374 = vsub.f32 %v370, %v373
    %v375 = vrsqrt.pop %v374
    %s376 = scalar_lea.vmem [#allocation0], 8
    %v377 = vld [vmem:[%s376] sm:$0xff]
    %s378 = scalar_lea.vmem [#allocation1], 8
    %v379 = vld [vmem:[%s378] sm:$0xff]
    %v380 = vmul.f32 %v379, %v368
    %381 = vadd.xlane.f32.xlu0 %v380
    %v382 = vpop.xlane.xlu0 %381
    %v383 = vsub.f32 %v377, %v382
    %v384 = vmul.f32 %v383, %v375
    %vm385 = vcmask 1047554
    %vm386 = vmand %vm366, %vm385
    %v387 = vsel %vm386, %v384, 0.0
    %v388 = vadd.f32 %v379, %v387
    %s389 = scalar_lea.vmem [#allocation1], 8
    %390 = vst [vmem:[%s389] sm:$0xff] %v388
    %vm391 = vcmask 97368
    %s392 = scalar_lea.vmem [#allocation1], 11
    %v393 = vld [vmem:[%s392] ss:$0 sm:$0xff]
    %s394 = scalar_lea.vmem [#allocation0], 11
    %v395 = vld [vmem:[%s394] ss:$0 sm:$0xff]
    %v396 = vmul.f32 %v393, %v393
    %397 = vadd.xlane.f32.xlu0 %v396
    %v398 = vpop.xlane.xlu0 %397
    %v399 = vsub.f32 %v395, %v398
    %v400 = vrsqrt.pop %v399
    %s401 = scalar_lea.vmem [#allocation0], 8
    %v402 = vld [vmem:[%s401] sm:$0xff]
    %s403 = scalar_lea.vmem [#allocation1], 8
    %v404 = vld [vmem:[%s403] sm:$0xff]
    %v405 = vmul.f32 %v404, %v393
    %406 = vadd.xlane.f32.xlu0 %v405
    %v407 = vpop.xlane.xlu0 %406
    %v408 = vsub.f32 %v402, %v407
    %v409 = vmul.f32 %v408, %v400
    %vm410 = vcmask 1047555
    %vm411 = vmand %vm391, %vm410
    %v412 = vsel %vm411, %v409, 0.0
    %v413 = vadd.f32 %v404, %v412
    %s414 = scalar_lea.vmem [#allocation1], 8
    %415 = vst [vmem:[%s414] sm:$0xff] %v413
    %vm416 = vcmask 105568
    %s417 = scalar_lea.vmem [#allocation1], 12
    %v418 = vld [vmem:[%s417] ss:$0 sm:$0xff]
    %s419 = scalar_lea.vmem [#allocation0], 12
    %v420 = vld [vmem:[%s419] ss:$0 sm:$0xff]
    %v421 = vmul.f32 %v418, %v418
    %422 = vadd.xlane.f32.xlu0 %v421
    %v423 = vpop.xlane.xlu0 %422
    %v424 = vsub.f32 %v420, %v423
    %v425 = vrsqrt.pop %v424
    %s426 = scalar_lea.vmem [#allocation0], 8
    %v427 = vld [vmem:[%s426] sm:$0xff]
    %s428 = scalar_lea.vmem [#allocation1], 8
    %v429 = vld [vmem:[%s428] sm:$0xff]
    %v430 = vmul.f32 %v429, %v418
    %431 = vadd.xlane.f32.xlu0 %v430
    %v432 = vpop.xlane.xlu0 %431
    %v433 = vsub.f32 %v427, %v432
    %v434 = vmul.f32 %v433, %v425
    %vm435 = vcmask 1047556
    %vm436 = vmand %vm416, %vm435
    %v437 = vsel %vm436, %v434, 0.0
    %v438 = vadd.f32 %v429, %v437
    %s439 = scalar_lea.vmem [#allocation1], 8
    %440 = vst [vmem:[%s439] sm:$0xff] %v438
    %vm441 = vcmask 113768
    %s442 = scalar_lea.vmem [#allocation1], 13
    %v443 = vld [vmem:[%s442] ss:$0 sm:$0xff]
    %s444 = scalar_lea.vmem [#allocation0], 13
    %v445 = vld [vmem:[%s444] ss:$0 sm:$0xff]
    %v446 = vmul.f32 %v443, %v443
    %447 = vadd.xlane.f32.xlu0 %v446
    %v448 = vpop.xlane.xlu0 %447
    %v449 = vsub.f32 %v445, %v448
    %v450 = vrsqrt.pop %v449
    %s451 = scalar_lea.vmem [#allocation0], 8
    %v452 = vld [vmem:[%s451] sm:$0xff]
    %s453 = scalar_lea.vmem [#allocation1], 8
    %v454 = vld [vmem:[%s453] sm:$0xff]
    %v455 = vmul.f32 %v454, %v443
    %456 = vadd.xlane.f32.xlu0 %v455
    %v457 = vpop.xlane.xlu0 %456
    %v458 = vsub.f32 %v452, %v457
    %v459 = vmul.f32 %v458, %v450
    %vm460 = vcmask 1047557
    %vm461 = vmand %vm441, %vm460
    %v462 = vsel %vm461, %v459, 0.0
    %v463 = vadd.f32 %v454, %v462
    %s464 = scalar_lea.vmem [#allocation1], 8
    %465 = vst [vmem:[%s464] sm:$0xff] %v463
    %vm466 = vcmask 121968
    %s467 = scalar_lea.vmem [#allocation1], 14
    %v468 = vld [vmem:[%s467] ss:$0 sm:$0xff]
    %s469 = scalar_lea.vmem [#allocation0], 14
    %v470 = vld [vmem:[%s469] ss:$0 sm:$0xff]
    %v471 = vmul.f32 %v468, %v468
    %472 = vadd.xlane.f32.xlu0 %v471
    %v473 = vpop.xlane.xlu0 %472
    %v474 = vsub.f32 %v470, %v473
    %v475 = vrsqrt.pop %v474
    %s476 = scalar_lea.vmem [#allocation0], 8
    %v477 = vld [vmem:[%s476] sm:$0xff]
    %s478 = scalar_lea.vmem [#allocation1], 8
    %v479 = vld [vmem:[%s478] sm:$0xff]
    %v480 = vmul.f32 %v479, %v468
    %481 = vadd.xlane.f32.xlu0 %v480
    %v482 = vpop.xlane.xlu0 %481
    %v483 = vsub.f32 %v477, %v482
    %v484 = vmul.f32 %v483, %v475
    %vm485 = vcmask 1047558
    %vm486 = vmand %vm466, %vm485
    %v487 = vsel %vm486, %v484, 0.0
    %v488 = vadd.f32 %v479, %v487
    %s489 = scalar_lea.vmem [#allocation1], 8
    %490 = vst [vmem:[%s489] sm:$0xff] %v488
    %vm491 = vcmask 130168
    %s492 = scalar_lea.vmem [#allocation1], 15
    %v493 = vld [vmem:[%s492] ss:$0 sm:$0xff]
    %s494 = scalar_lea.vmem [#allocation0], 15
    %v495 = vld [vmem:[%s494] ss:$0 sm:$0xff]
    %v496 = vmul.f32 %v493, %v493
    %497 = vadd.xlane.f32.xlu0 %v496
    %v498 = vpop.xlane.xlu0 %497
    %v499 = vsub.f32 %v495, %v498
    %v500 = vrsqrt.pop %v499
    %s501 = scalar_lea.vmem [#allocation0], 8
    %v502 = vld [vmem:[%s501] sm:$0xff]
    %s503 = scalar_lea.vmem [#allocation1], 8
    %v504 = vld [vmem:[%s503] sm:$0xff]
    %v505 = vmul.f32 %v504, %v493
    %506 = vadd.xlane.f32.xlu0 %v505
    %v507 = vpop.xlane.xlu0 %506
    %v508 = vsub.f32 %v502, %v507
    %v509 = vmul.f32 %v508, %v500
    %vm510 = vcmask 1047559
    %vm511 = vmand %vm491, %vm510
    %v512 = vsel %vm511, %v509, 0.0
    %v513 = vadd.f32 %v504, %v512
    %s514 = scalar_lea.vmem [#allocation1], 8
    %515 = vst [vmem:[%s514] sm:$0xff] %v513
    // Predicated region
    $region36: #{custom-call.137} parent=1 // pred_check
      _
    $region37: #{custom-call.137} parent=1 // pred_check_branch
      %517 = sbr.rel (0) target = $region39
    $region38: #{custom-call.137} parent=1 // pred_region
      // Predicated region
      $region40: #{custom-call.137} parent=38 // pred_check
        _
      $region41: #{custom-call.137} parent=38 // pred_check_branch
        %519 = sbr.rel (0) target = $region43
      $region42: #{custom-call.137} parent=38 // pred_region
        // Predicated region
        $region55: #{custom-call.137} parent=42 // pred_check
          _
        $region56: #{custom-call.137} parent=42 // pred_check_branch
          %537 = sbr.rel (0) target = $region58
        $region57: #{custom-call.137} parent=42 // pred_region
          loop: start=0, step=1, limit=1
          $region59: #{custom-call.137} parent=57 // loop_pre_header
            _
          $region60: #{custom-call.137} parent=57 // loop_header
            %s539 = sphi 0, %s543
            %p540 = scmp.ge.s32.totalorder %s539, 1
            %s544 = sphi [#allocation1], [#allocation1]
            %s545 = sphi %s1, %s1
          $region61: #{custom-call.137} parent=57 // loop_header_branch
            %542 = sbr.rel (%p540) target = $region65
          $region62: #{custom-call.137} parent=57 // loop_body
            %v546 = vld [vmem:[%s544] sm:$0xff]
            %547 = vst [vmem:[%s545] sm:$0xff] %v546
            %v548 = vld [vmem:[%s544 + $0x8] sm:$0xff]
            %549 = vst [vmem:[%s545 + $0x8] sm:$0xff] %v548
          $region63: #{custom-call.137} parent=57 // loop_footer
            %s543 = sadd.s32 1, %s539
          $region64: #{custom-call.137} parent=57 // loop_footer_branch
            %538 = sbr.rel target = $region60
          $region65: #{custom-call.137} parent=57 // loop_exit
            _
        $region58: #{custom-call.137} parent=42 // pred_fallthru
          _
        // Predicated region
        $region66: #{custom-call.137} parent=42 // pred_check
          _
        $region67: #{custom-call.137} parent=42 // pred_check_branch
          %551 = sbr.rel target = $region69
        $region68: #{custom-call.137} parent=42 // pred_region
          _
        $region69: #{custom-call.137} parent=42 // pred_fallthru
          _
      $region43: #{custom-call.137} parent=38 // pred_fallthru
        _
      // Predicated region
      $region44: #{custom-call.137} parent=38 // pred_check
        _
      $region45: #{custom-call.137} parent=38 // pred_check_branch
        %521 = sbr.rel target = $region47
      $region46: #{custom-call.137} parent=38 // pred_region
        %s523 = ssub.s32 256, 1
        loop: start=0, step=1, limit=1
        $region48: #{custom-call.137} parent=46 // loop_pre_header
          _
        $region49: #{custom-call.137} parent=46 // loop_header
          %s525 = sphi 0, %s529
          %p526 = scmp.ge.s32.totalorder %s525, 1
          %s530 = sphi [#allocation1], [#allocation1]
          %s531 = sphi %s1, %s1
        $region50: #{custom-call.137} parent=46 // loop_header_branch
          %528 = sbr.rel (%p526) target = $region54
        $region51: #{custom-call.137} parent=46 // loop_body
          %v532 = vld [vmem:[%s530] sm:%s523]
          %533 = vst [vmem:[%s531] sm:%s523] %v532
          %v534 = vld [vmem:[%s530 + $0x8] sm:%s523]
          %535 = vst [vmem:[%s531 + $0x8] sm:%s523] %v534
        $region52: #{custom-call.137} parent=46 // loop_footer
          %s529 = sadd.s32 1, %s525
        $region53: #{custom-call.137} parent=46 // loop_footer_branch
          %524 = sbr.rel target = $region49
        $region54: #{custom-call.137} parent=46 // loop_exit
          _
      $region47: #{custom-call.137} parent=38 // pred_fallthru
        _
    $region39: #{custom-call.137} parent=1 // pred_fallthru
      _
    %552 = vnop

// kernel: custom-call.138
$region0: #{custom-call.138}
  %s0 = inlined_call_operand.vmem [shape: f32[1,16,16], index: 0, kind: input, shape index: {}]
  %s1 = inlined_call_operand.vmem [shape: f32[1,16,16], index: 1, kind: output, shape index: {}]
  $region1: #{custom-call.138} parent=0
    #allocation0 [shape = 'u8[8192]{0}', space=vmem, size = 0x2000, scoped, tag = 'operand span for operand 0']
    #allocation1 [shape = 'u8[8192]{0}', space=vmem, size = 0x2000, scoped, tag = 'operand span for operand 1']
    #allocation2 [shape = 'f32[16,16]{1,0}', space=vmem, size = 0x2000, scoped, tag = 'rescaled input a']
    // Predicated region
    $region2: #{custom-call.138} parent=1 // pred_check
      _
    $region3: #{custom-call.138} parent=1 // pred_check_branch
      %3 = sbr.rel (0) target = $region5
    $region4: #{custom-call.138} parent=1 // pred_region
      // Predicated region
      $region6: #{custom-call.138} parent=4 // pred_check
        _
      $region7: #{custom-call.138} parent=4 // pred_check_branch
        %5 = sbr.rel (0) target = $region9
      $region8: #{custom-call.138} parent=4 // pred_region
        // Predicated region
        $region21: #{custom-call.138} parent=8 // pred_check
          _
        $region22: #{custom-call.138} parent=8 // pred_check_branch
          %23 = sbr.rel (0) target = $region24
        $region23: #{custom-call.138} parent=8 // pred_region
          loop: start=0, step=1, limit=1
          $region25: #{custom-call.138} parent=23 // loop_pre_header
            _
          $region26: #{custom-call.138} parent=23 // loop_header
            %s25 = sphi 0, %s29
            %p26 = scmp.ge.s32.totalorder %s25, 1
            %s30 = sphi %s0, %s0
            %s31 = sphi [#allocation0], [#allocation0]
          $region27: #{custom-call.138} parent=23 // loop_header_branch
            %28 = sbr.rel (%p26) target = $region31
          $region28: #{custom-call.138} parent=23 // loop_body
            %v32 = vld [vmem:[%s30] sm:$0xff]
            %33 = vst [vmem:[%s31] sm:$0xff] %v32
            %v34 = vld [vmem:[%s30 + $0x8] sm:$0xff]
            %35 = vst [vmem:[%s31 + $0x8] sm:$0xff] %v34
          $region29: #{custom-call.138} parent=23 // loop_footer
            %s29 = sadd.s32 1, %s25
          $region30: #{custom-call.138} parent=23 // loop_footer_branch
            %24 = sbr.rel target = $region26
          $region31: #{custom-call.138} parent=23 // loop_exit
            _
        $region24: #{custom-call.138} parent=8 // pred_fallthru
          _
        // Predicated region
        $region32: #{custom-call.138} parent=8 // pred_check
          _
        $region33: #{custom-call.138} parent=8 // pred_check_branch
          %37 = sbr.rel target = $region35
        $region34: #{custom-call.138} parent=8 // pred_region
          _
        $region35: #{custom-call.138} parent=8 // pred_fallthru
          _
      $region9: #{custom-call.138} parent=4 // pred_fallthru
        _
      // Predicated region
      $region10: #{custom-call.138} parent=4 // pred_check
        _
      $region11: #{custom-call.138} parent=4 // pred_check_branch
        %7 = sbr.rel target = $region13
      $region12: #{custom-call.138} parent=4 // pred_region
        %s9 = ssub.s32 256, 1
        loop: start=0, step=1, limit=1
        $region14: #{custom-call.138} parent=12 // loop_pre_header
          _
        $region15: #{custom-call.138} parent=12 // loop_header
          %s11 = sphi 0, %s15
          %p12 = scmp.ge.s32.totalorder %s11, 1
          %s16 = sphi %s0, %s0
          %s17 = sphi [#allocation0], [#allocation0]
        $region16: #{custom-call.138} parent=12 // loop_header_branch
          %14 = sbr.rel (%p12) target = $region20
        $region17: #{custom-call.138} parent=12 // loop_body
          %v18 = vld [vmem:[%s16] sm:%s9]
          %19 = vst [vmem:[%s17] sm:%s9] %v18
          %v20 = vld [vmem:[%s16 + $0x8] sm:%s9]
          %21 = vst [vmem:[%s17 + $0x8] sm:%s9] %v20
        $region18: #{custom-call.138} parent=12 // loop_footer
          %s15 = sadd.s32 1, %s11
        $region19: #{custom-call.138} parent=12 // loop_footer_branch
          %10 = sbr.rel target = $region15
        $region20: #{custom-call.138} parent=12 // loop_exit
          _
      $region13: #{custom-call.138} parent=4 // pred_fallthru
        _
    $region5: #{custom-call.138} parent=1 // pred_fallthru
      _
    %38 = vnop
    %v39 = vlaneseq
    %v40 = vand.u32 %v39, 127
    %vm41 = vcmp.lt.s32.totalorder %v40, 16
    %v42 = vlaneseq
    %v43 = vshrl.u32 %v42, 7
    %vm45 = vcmp.eq.s32.totalorder %v43, %v40
    %v46 = vld [vmem:[#allocation0] sm:$0xff]
    %v47 = vsel %vm45, %v46, 0.0
    %48 = vadd.xlane.f32.xlu0 %v47
    %v49 = vpop.xlane.xlu0 %48
    %vm50 = vcmp.ge.s32.totalorder %v43, %v40
    %vm51 = vmand %vm50, %vm41
    %v52 = vsel %vm51, %v46, 0.0
    %v53 = vrcp.pop %v49
    %v54 = vmul.f32 %v52, %v53
    %55 = vst [vmem:[#allocation2] sm:$0xff] %v54
    %s56 = scalar_lea.vmem [#allocation0], 8
    %s57 = scalar_lea.vmem [#allocation2], 8
    %v58 = vlaneseq
    %v59 = vshrl.u32 %v58, 7
    %v60 = vadd.s32 %v59, 8
    %vm61 = vcmp.eq.s32.totalorder %v60, %v40
    %v62 = vld [vmem:[%s56] sm:$0xff]
    %v63 = vsel %vm61, %v62, 0.0
    %64 = vadd.xlane.f32.xlu0 %v63
    %v65 = vpop.xlane.xlu0 %64
    %vm66 = vcmp.ge.s32.totalorder %v60, %v40
    %vm67 = vmand %vm66, %vm41
    %v68 = vsel %vm67, %v62, 0.0
    %v69 = vrcp.pop %v65
    %v70 = vmul.f32 %v68, %v69
    %71 = vst [vmem:[%s57] sm:$0xff] %v70
    %v72 = vlaneseq
    %v73 = vand.u32 %v72, 127
    %v74 = vlaneseq
    %v75 = vshrl.u32 %v74, 7
    %vm77 = vcmp.eq.s32.totalorder %v73, %v75
    %v78 = vlaneseq
    %v79 = vand.u32 %v78, 127
    %vm80 = vcmp.eq.s32.totalorder %v79, 0
    %v81 = vsel %vm80, 1.0, -1.0
    %v82 = vsel %vm77, %v81, 0.0
    %v83 = vlaneseq
    %v84 = vand.u32 %v83, 127
    %v85 = vlaneseq
    %v86 = vshrl.u32 %v85, 7
    %v87 = vadd.s32 %v86, 8
    %vm88 = vcmp.eq.s32.totalorder %v84, %v87
    %v89 = vsel %vm88, -1.0, 0.0
    %s90 = scalar_lea.vmem [#allocation2], 1
    %v91 = vld [vmem:[%s90] ss:$0 sm:$0xff]
    %v92 = vxor.u32 %v91, 2147483648
    %v93 = vlaneseq
    %v94 = vand.u32 %v93, 127
    %vm95 = vcmp.eq.s32.totalorder %v94, 1
    %v96 = vmul.f32 %v92, %v82
    %97 = vadd.xlane.f32.xlu0 %v96
    %v98 = vpop.xlane.xlu0 %97
    %v99 = vsel %vm95, %v98, %v82
    %s100 = scalar_lea.vmem [#allocation2], 2
    %v101 = vld [vmem:[%s100] ss:$0 sm:$0xff]
    %v102 = vxor.u32 %v101, 2147483648
    %v103 = vlaneseq
    %v104 = vand.u32 %v103, 127
    %vm105 = vcmp.eq.s32.totalorder %v104, 2
    %v106 = vmul.f32 %v102, %v99
    %107 = vadd.xlane.f32.xlu0 %v106
    %v108 = vpop.xlane.xlu0 %107
    %v109 = vsel %vm105, %v108, %v99
    %s110 = scalar_lea.vmem [#allocation2], 3
    %v111 = vld [vmem:[%s110] ss:$0 sm:$0xff]
    %v112 = vxor.u32 %v111, 2147483648
    %v113 = vlaneseq
    %v114 = vand.u32 %v113, 127
    %vm115 = vcmp.eq.s32.totalorder %v114, 3
    %v116 = vmul.f32 %v112, %v109
    %117 = vadd.xlane.f32.xlu0 %v116
    %v118 = vpop.xlane.xlu0 %117
    %v119 = vsel %vm115, %v118, %v109
    %s120 = scalar_lea.vmem [#allocation2], 4
    %v121 = vld [vmem:[%s120] ss:$0 sm:$0xff]
    %v122 = vxor.u32 %v121, 2147483648
    %v123 = vlaneseq
    %v124 = vand.u32 %v123, 127
    %vm125 = vcmp.eq.s32.totalorder %v124, 4
    %v126 = vmul.f32 %v122, %v119
    %127 = vadd.xlane.f32.xlu0 %v126
    %v128 = vpop.xlane.xlu0 %127
    %v129 = vsel %vm125, %v128, %v119
    %s130 = scalar_lea.vmem [#allocation2], 5
    %v131 = vld [vmem:[%s130] ss:$0 sm:$0xff]
    %v132 = vxor.u32 %v131, 2147483648
    %v133 = vlaneseq
    %v134 = vand.u32 %v133, 127
    %vm135 = vcmp.eq.s32.totalorder %v134, 5
    %v136 = vmul.f32 %v132, %v129
    %137 = vadd.xlane.f32.xlu0 %v136
    %v138 = vpop.xlane.xlu0 %137
    %v139 = vsel %vm135, %v138, %v129
    %s140 = scalar_lea.vmem [#allocation2], 6
    %v141 = vld [vmem:[%s140] ss:$0 sm:$0xff]
    %v142 = vxor.u32 %v141, 2147483648
    %v143 = vlaneseq
    %v144 = vand.u32 %v143, 127
    %vm145 = vcmp.eq.s32.totalorder %v144, 6
    %v146 = vmul.f32 %v142, %v139
    %147 = vadd.xlane.f32.xlu0 %v146
    %v148 = vpop.xlane.xlu0 %147
    %v149 = vsel %vm145, %v148, %v139
    %s150 = scalar_lea.vmem [#allocation2], 7
    %v151 = vld [vmem:[%s150] ss:$0 sm:$0xff]
    %v152 = vxor.u32 %v151, 2147483648
    %v153 = vlaneseq
    %v154 = vand.u32 %v153, 127
    %vm155 = vcmp.eq.s32.totalorder %v154, 7
    %v156 = vmul.f32 %v152, %v149
    %157 = vadd.xlane.f32.xlu0 %v156
    %v158 = vpop.xlane.xlu0 %157
    %v159 = vsel %vm155, %v158, %v149
    %s160 = scalar_lea.vmem [#allocation2], 8
    %v161 = vld [vmem:[%s160] ss:$0 sm:$0xff]
    %v162 = vxor.u32 %v161, 2147483648
    %v163 = vlaneseq
    %v164 = vand.u32 %v163, 127
    %vm165 = vcmp.eq.s32.totalorder %v164, 8
    %v166 = vmul.f32 %v162, %v159
    %167 = vadd.xlane.f32.xlu0 %v166
    %v168 = vpop.xlane.xlu0 %167
    %v169 = vsel %vm165, %v168, %v159
    %v170 = vmul.f32 %v162, %v89
    %171 = vadd.xlane.f32.xlu0 %v170
    %v172 = vpop.xlane.xlu0 %171
    %v173 = vsel %vm165, %v172, %v89
    %s174 = scalar_lea.vmem [#allocation2], 9
    %v175 = vld [vmem:[%s174] ss:$0 sm:$0xff]
    %v176 = vxor.u32 %v175, 2147483648
    %v177 = vlaneseq
    %v178 = vand.u32 %v177, 127
    %vm179 = vcmp.eq.s32.totalorder %v178, 9
    %v180 = vmul.f32 %v176, %v169
    %181 = vadd.xlane.f32.xlu0 %v180
    %v182 = vpop.xlane.xlu0 %181
    %v183 = vsel %vm179, %v182, %v169
    %v184 = vmul.f32 %v176, %v173
    %185 = vadd.xlane.f32.xlu0 %v184
    %v186 = vpop.xlane.xlu0 %185
    %v187 = vsel %vm179, %v186, %v173
    %s188 = scalar_lea.vmem [#allocation2], 10
    %v189 = vld [vmem:[%s188] ss:$0 sm:$0xff]
    %v190 = vxor.u32 %v189, 2147483648
    %v191 = vlaneseq
    %v192 = vand.u32 %v191, 127
    %vm193 = vcmp.eq.s32.totalorder %v192, 10
    %v194 = vmul.f32 %v190, %v183
    %195 = vadd.xlane.f32.xlu0 %v194
    %v196 = vpop.xlane.xlu0 %195
    %v197 = vsel %vm193, %v196, %v183
    %v198 = vmul.f32 %v190, %v187
    %199 = vadd.xlane.f32.xlu0 %v198
    %v200 = vpop.xlane.xlu0 %199
    %v201 = vsel %vm193, %v200, %v187
    %s202 = scalar_lea.vmem [#allocation2], 11
    %v203 = vld [vmem:[%s202] ss:$0 sm:$0xff]
    %v204 = vxor.u32 %v203, 2147483648
    %v205 = vlaneseq
    %v206 = vand.u32 %v205, 127
    %vm207 = vcmp.eq.s32.totalorder %v206, 11
    %v208 = vmul.f32 %v204, %v197
    %209 = vadd.xlane.f32.xlu0 %v208
    %v210 = vpop.xlane.xlu0 %209
    %v211 = vsel %vm207, %v210, %v197
    %v212 = vmul.f32 %v204, %v201
    %213 = vadd.xlane.f32.xlu0 %v212
    %v214 = vpop.xlane.xlu0 %213
    %v215 = vsel %vm207, %v214, %v201
    %s216 = scalar_lea.vmem [#allocation2], 12
    %v217 = vld [vmem:[%s216] ss:$0 sm:$0xff]
    %v218 = vxor.u32 %v217, 2147483648
    %v219 = vlaneseq
    %v220 = vand.u32 %v219, 127
    %vm221 = vcmp.eq.s32.totalorder %v220, 12
    %v222 = vmul.f32 %v218, %v211
    %223 = vadd.xlane.f32.xlu0 %v222
    %v224 = vpop.xlane.xlu0 %223
    %v225 = vsel %vm221, %v224, %v211
    %v226 = vmul.f32 %v218, %v215
    %227 = vadd.xlane.f32.xlu0 %v226
    %v228 = vpop.xlane.xlu0 %227
    %v229 = vsel %vm221, %v228, %v215
    %s230 = scalar_lea.vmem [#allocation2], 13
    %v231 = vld [vmem:[%s230] ss:$0 sm:$0xff]
    %v232 = vxor.u32 %v231, 2147483648
    %v233 = vlaneseq
    %v234 = vand.u32 %v233, 127
    %vm235 = vcmp.eq.s32.totalorder %v234, 13
    %v236 = vmul.f32 %v232, %v225
    %237 = vadd.xlane.f32.xlu0 %v236
    %v238 = vpop.xlane.xlu0 %237
    %v239 = vsel %vm235, %v238, %v225
    %v240 = vmul.f32 %v232, %v229
    %241 = vadd.xlane.f32.xlu0 %v240
    %v242 = vpop.xlane.xlu0 %241
    %v243 = vsel %vm235, %v242, %v229
    %s244 = scalar_lea.vmem [#allocation2], 14
    %v245 = vld [vmem:[%s244] ss:$0 sm:$0xff]
    %v246 = vxor.u32 %v245, 2147483648
    %v247 = vlaneseq
    %v248 = vand.u32 %v247, 127
    %vm249 = vcmp.eq.s32.totalorder %v248, 14
    %v250 = vmul.f32 %v246, %v239
    %251 = vadd.xlane.f32.xlu0 %v250
    %v252 = vpop.xlane.xlu0 %251
    %v253 = vsel %vm249, %v252, %v239
    %v254 = vmul.f32 %v246, %v243
    %255 = vadd.xlane.f32.xlu0 %v254
    %v256 = vpop.xlane.xlu0 %255
    %v257 = vsel %vm249, %v256, %v243
    %s258 = scalar_lea.vmem [#allocation2], 15
    %v259 = vld [vmem:[%s258] ss:$0 sm:$0xff]
    %v260 = vxor.u32 %v259, 2147483648
    %v261 = vlaneseq
    %v262 = vand.u32 %v261, 127
    %vm263 = vcmp.eq.s32.totalorder %v262, 15
    %v264 = vmul.f32 %v260, %v253
    %265 = vadd.xlane.f32.xlu0 %v264
    %v266 = vpop.xlane.xlu0 %265
    %v267 = vsel %vm263, %v266, %v253
    %v268 = vmul.f32 %v260, %v257
    %269 = vadd.xlane.f32.xlu0 %v268
    %v270 = vpop.xlane.xlu0 %269
    %v271 = vsel %vm263, %v270, %v257
    %v272 = vrcp.pop %v49
    %v273 = vmul.f32 %v267, %v272
    %vm274 = vweird.f32 %v49
    %v275 = vsel %vm274, %v267, %v273
    %276 = vst [vmem:[#allocation1] sm:$0xff] %v275
    %v277 = vrcp.pop %v65
    %v278 = vmul.f32 %v271, %v277
    %vm279 = vweird.f32 %v65
    %v280 = vsel %vm279, %v271, %v278
    %s281 = scalar_lea.vmem [#allocation1], 8
    %282 = vst [vmem:[%s281] sm:$0xff] %v280
    // Predicated region
    $region36: #{custom-call.138} parent=1 // pred_check
      _
    $region37: #{custom-call.138} parent=1 // pred_check_branch
      %284 = sbr.rel (0) target = $region39
    $region38: #{custom-call.138} parent=1 // pred_region
      // Predicated region
      $region40: #{custom-call.138} parent=38 // pred_check
        _
      $region41: #{custom-call.138} parent=38 // pred_check_branch
        %286 = sbr.rel (0) target = $region43
      $region42: #{custom-call.138} parent=38 // pred_region
        // Predicated region
        $region55: #{custom-call.138} parent=42 // pred_check
          _
        $region56: #{custom-call.138} parent=42 // pred_check_branch
          %304 = sbr.rel (0) target = $region58
        $region57: #{custom-call.138} parent=42 // pred_region
          loop: start=0, step=1, limit=1
          $region59: #{custom-call.138} parent=57 // loop_pre_header
            _
          $region60: #{custom-call.138} parent=57 // loop_header
            %s306 = sphi 0, %s310
            %p307 = scmp.ge.s32.totalorder %s306, 1
            %s311 = sphi [#allocation1], [#allocation1]
            %s312 = sphi %s1, %s1
          $region61: #{custom-call.138} parent=57 // loop_header_branch
            %309 = sbr.rel (%p307) target = $region65
          $region62: #{custom-call.138} parent=57 // loop_body
            %v313 = vld [vmem:[%s311] sm:$0xff]
            %314 = vst [vmem:[%s312] sm:$0xff] %v313
            %v315 = vld [vmem:[%s311 + $0x8] sm:$0xff]
            %316 = vst [vmem:[%s312 + $0x8] sm:$0xff] %v315
          $region63: #{custom-call.138} parent=57 // loop_footer
            %s310 = sadd.s32 1, %s306
          $region64: #{custom-call.138} parent=57 // loop_footer_branch
            %305 = sbr.rel target = $region60
          $region65: #{custom-call.138} parent=57 // loop_exit
            _
        $region58: #{custom-call.138} parent=42 // pred_fallthru
          _
        // Predicated region
        $region66: #{custom-call.138} parent=42 // pred_check
          _
        $region67: #{custom-call.138} parent=42 // pred_check_branch
          %318 = sbr.rel target = $region69
        $region68: #{custom-call.138} parent=42 // pred_region
          _
        $region69: #{custom-call.138} parent=42 // pred_fallthru
          _
      $region43: #{custom-call.138} parent=38 // pred_fallthru
        _
      // Predicated region
      $region44: #{custom-call.138} parent=38 // pred_check
        _
      $region45: #{custom-call.138} parent=38 // pred_check_branch
        %288 = sbr.rel target = $region47
      $region46: #{custom-call.138} parent=38 // pred_region
        %s290 = ssub.s32 256, 1
        loop: start=0, step=1, limit=1
        $region48: #{custom-call.138} parent=46 // loop_pre_header
          _
        $region49: #{custom-call.138} parent=46 // loop_header
          %s292 = sphi 0, %s296
          %p293 = scmp.ge.s32.totalorder %s292, 1
          %s297 = sphi [#allocation1], [#allocation1]
          %s298 = sphi %s1, %s1
        $region50: #{custom-call.138} parent=46 // loop_header_branch
          %295 = sbr.rel (%p293) target = $region54
        $region51: #{custom-call.138} parent=46 // loop_body
          %v299 = vld [vmem:[%s297] sm:%s290]
          %300 = vst [vmem:[%s298] sm:%s290] %v299
          %v301 = vld [vmem:[%s297 + $0x8] sm:%s290]
          %302 = vst [vmem:[%s298 + $0x8] sm:%s290] %v301
        $region52: #{custom-call.138} parent=46 // loop_footer
          %s296 = sadd.s32 1, %s292
        $region53: #{custom-call.138} parent=46 // loop_footer_branch
          %291 = sbr.rel target = $region49
        $region54: #{custom-call.138} parent=46 // loop_exit
          _
      $region47: #{custom-call.138} parent=38 // pred_fallthru
        _
    $region39: #{custom-call.138} parent=1 // pred_fallthru
      _
    %319 = vnop

// kernel: custom-call.98
$region0: #{custom-call.98}
  %s0 = inlined_call_operand.vmem [shape: f32[8,8], index: 0, kind: input, shape index: {}]
  %s1 = inlined_call_operand.vmem [shape: f32[8,8], index: 1, kind: input, shape index: {}]
  %s2 = inlined_call_operand.vmem [shape: f32[8,8], index: 2, kind: input, shape index: {}]
  %s3 = inlined_call_operand.vmem [shape: f32[8,8], index: 3, kind: input, shape index: {}]
  %s4 = inlined_call_operand.vmem [shape: f32[8], index: 4, kind: output, shape index: {0}]
  %s5 = inlined_call_operand.vmem [shape: f32[8], index: 5, kind: output, shape index: {1}]
  %s6 = inlined_call_operand.vmem [shape: f32[8,8], index: 6, kind: output, shape index: {2}]
  %s7 = inlined_call_operand.vmem [shape: f32[8,8], index: 7, kind: output, shape index: {3}]
  %s8 = inlined_call_operand.vmem [shape: f32[8,8], index: 8, kind: output, shape index: {4}]
  %s9 = inlined_call_operand.vmem [shape: f32[8,8], index: 9, kind: output, shape index: {5}]
  %10 = xla_tuple %s4, %s5, %s6, %s7, %s8, %s9
  $region1: #{custom-call.98} parent=0
    #allocation0 [shape = 'u8[4096]{0}', space=vmem, size = 0x1000, scoped, tag = 'operand span for operand 0']
    #allocation1 [shape = 'u8[4096]{0}', space=vmem, size = 0x1000, scoped, tag = 'operand span for operand 1']
    #allocation2 [shape = 'u8[4096]{0}', space=vmem, size = 0x1000, scoped, tag = 'operand span for operand 2']
    #allocation3 [shape = 'u8[4096]{0}', space=vmem, size = 0x1000, scoped, tag = 'operand span for operand 3']
    #allocation4 [shape = 'u8[4096]{0}', space=vmem, size = 0x1000, scoped, tag = 'operand span for operand 4']
    #allocation5 [shape = 'u8[512]{0}', space=vmem, size = 0x400, scoped, tag = 'packed  for operand 4']
    #allocation6 [shape = 'u8[4096]{0}', space=vmem, size = 0x1000, scoped, tag = 'operand span for operand 5']
    #allocation7 [shape = 'u8[512]{0}', space=vmem, size = 0x400, scoped, tag = 'packed  for operand 5']
    #allocation8 [shape = 'u8[4096]{0}', space=vmem, size = 0x1000, scoped, tag = 'operand span for operand 6']
    #allocation9 [shape = 'u8[4096]{0}', space=vmem, size = 0x1000, scoped, tag = 'operand span for operand 7']
    #allocation10 [shape = 'u8[4096]{0}', space=vmem, size = 0x1000, scoped, tag = 'operand span for operand 8']
    #allocation11 [shape = 'u8[4096]{0}', space=vmem, size = 0x1000, scoped, tag = 'operand span for operand 9']
    #allocation12 [shape = 'f32[8,8]{1,0}', space=vmem, size = 0x1000, scoped, tag = 'a top-left matrix']
    #allocation13 [shape = 'f32[8,8]{1,0}', space=vmem, size = 0x1000, scoped, tag = 'a top-right matrix']
    #allocation14 [shape = 'f32[8,8]{1,0}', space=vmem, size = 0x1000, scoped, tag = 'a bottom-left matrix']
    #allocation15 [shape = 'f32[8,8]{1,0}', space=vmem, size = 0x1000, scoped, tag = 'a bottom-right matrix']
    %p12 = scmp.gt.s32.totalorder 8, 0
    // Predicated region
    $region2: #{custom-call.98} parent=1 // pred_check
      %p13 = pneg %p12
    $region3: #{custom-call.98} parent=1 // pred_check_branch
      %15 = sbr.rel (%p13) target = $region5
    $region4: #{custom-call.98} parent=1 // pred_region
      %s16 = sshra.s32 8, 3
      %p17 = scmp.gt.s32.totalorder %s16, 0
      // Predicated region
      $region6: #{custom-call.98} parent=4 // pred_check
        %p18 = pneg %p17
      $region7: #{custom-call.98} parent=4 // pred_check_branch
        %20 = sbr.rel (%p18) target = $region9
      $region8: #{custom-call.98} parent=4 // pred_region
        %s21 = ssub.s32 %s16, 1
        %s22 = smul.u32 %s21, 128
        %s23 = sshra.s32 %s22, 4
        %s24 = scalar_lea.vmem %s0, %s23
        %v25 = vld [vmem:[%s0] sm:$0xff]
        // While loop
        $region10: #{custom-call.98} parent=8 // loop_pre_header
          _
        $region11: #{custom-call.98} parent=8 // loop_header
          %s26 = sphi %s0, %s48
          %s27 = sphi [#allocation0], %s49
          %v28 = vphi %v25, %v50
          %s29 = ssub.s32 %s24, 64
          %p30 = scmp.gt.s32.totalorder %s26, %s29
        $region12: #{custom-call.98} parent=8 // loop_header_branch
          %32 = sbr.rel (%p30) target = $region16
        $region13: #{custom-call.98} parent=8 // loop_body
          %33 = vst [vmem:[%s27] sm:$0xff] %v28
          %v34 = vld [vmem:[%s26 + $0x8] sm:$0xff]
          %35 = vst [vmem:[%s27 + $0x8] sm:$0xff] %v34
          %v36 = vld [vmem:[%s26 + $0x10] sm:$0xff]
          %37 = vst [vmem:[%s27 + $0x10] sm:$0xff] %v36
          %v38 = vld [vmem:[%s26 + $0x18] sm:$0xff]
          %39 = vst [vmem:[%s27 + $0x18] sm:$0xff] %v38
          %v40 = vld [vmem:[%s26 + $0x20] sm:$0xff]
          %41 = vst [vmem:[%s27 + $0x20] sm:$0xff] %v40
          %v42 = vld [vmem:[%s26 + $0x28] sm:$0xff]
          %43 = vst [vmem:[%s27 + $0x28] sm:$0xff] %v42
          %v44 = vld [vmem:[%s26 + $0x30] sm:$0xff]
          %45 = vst [vmem:[%s27 + $0x30] sm:$0xff] %v44
          %v46 = vld [vmem:[%s26 + $0x38] sm:$0xff]
          %47 = vst [vmem:[%s27 + $0x38] sm:$0xff] %v46
        $region14: #{custom-call.98} parent=8 // loop_footer
          %s48 = scalar_lea.vmem %s26, 64
          %s49 = scalar_lea.vmem %s27, 64
          %v50 = vld [vmem:[%s26 + $0x40] sm:$0xff]
        $region15: #{custom-call.98} parent=8 // loop_footer_branch
          %51 = sbr.rel target = $region11
        $region16: #{custom-call.98} parent=8 // loop_exit
          _
        // While loop
        $region17: #{custom-call.98} parent=8 // loop_pre_header
          _
        $region18: #{custom-call.98} parent=8 // loop_header
          %s52 = sphi %s26, %s60
          %s53 = sphi %s27, %s61
          %v54 = vphi %v28, %v54
          %p55 = scmp.gt.s32.totalorder %s52, %s24
        $region19: #{custom-call.98} parent=8 // loop_header_branch
          %57 = sbr.rel (%p55) target = $region23
        $region20: #{custom-call.98} parent=8 // loop_body
          %v58 = vld [vmem:[%s52] sm:$0xff]
          %59 = vst [vmem:[%s53] sm:$0xff] %v58
        $region21: #{custom-call.98} parent=8 // loop_footer
          %s60 = scalar_lea.vmem %s52, 8
          %s61 = scalar_lea.vmem %s53, 8
        $region22: #{custom-call.98} parent=8 // loop_footer_branch
          %62 = sbr.rel target = $region18
        $region23: #{custom-call.98} parent=8 // loop_exit
          _
      $region9: #{custom-call.98} parent=4 // pred_fallthru
        _
      %s63 = sand.u32 8, 7
      %s64 = sshll.u32 1, %s63
      %s65 = ssub.s32 %s64, 1
      %s66 = smul.u32 %s16, 128
      %s67 = sshra.s32 %s66, 4
      %s68 = scalar_lea.vmem [#allocation0], %s67
      %s69 = smul.u32 %s16, 128
      %s70 = sshra.s32 %s69, 4
      %s71 = scalar_lea.vmem %s0, %s70
      %v72 = vld [vmem:[%s71] sm:%s65]
      %73 = vst [vmem:[%s68] sm:%s65] %v72
    $region5: #{custom-call.98} parent=1 // pred_fallthru
      _
    %p75 = scmp.gt.s32.totalorder 8, 0
    // Predicated region
    $region24: #{custom-call.98} parent=1 // pred_check
      %p76 = pneg %p75
    $region25: #{custom-call.98} parent=1 // pred_check_branch
      %78 = sbr.rel (%p76) target = $region27
    $region26: #{custom-call.98} parent=1 // pred_region
      %s79 = sshra.s32 8, 3
      %p80 = scmp.gt.s32.totalorder %s79, 0
      // Predicated region
      $region28: #{custom-call.98} parent=26 // pred_check
        %p81 = pneg %p80
      $region29: #{custom-call.98} parent=26 // pred_check_branch
        %83 = sbr.rel (%p81) target = $region31
      $region30: #{custom-call.98} parent=26 // pred_region
        %s84 = ssub.s32 %s79, 1
        %s85 = smul.u32 %s84, 128
        %s86 = sshra.s32 %s85, 4
        %s87 = scalar_lea.vmem %s1, %s86
        %v88 = vld [vmem:[%s1] sm:$0xff]
        // While loop
        $region32: #{custom-call.98} parent=30 // loop_pre_header
          _
        $region33: #{custom-call.98} parent=30 // loop_header
          %s89 = sphi %s1, %s111
          %s90 = sphi [#allocation1], %s112
          %v91 = vphi %v88, %v113
          %s92 = ssub.s32 %s87, 64
          %p93 = scmp.gt.s32.totalorder %s89, %s92
        $region34: #{custom-call.98} parent=30 // loop_header_branch
          %95 = sbr.rel (%p93) target = $region38
        $region35: #{custom-call.98} parent=30 // loop_body
          %96 = vst [vmem:[%s90] sm:$0xff] %v91
          %v97 = vld [vmem:[%s89 + $0x8] sm:$0xff]
          %98 = vst [vmem:[%s90 + $0x8] sm:$0xff] %v97
          %v99 = vld [vmem:[%s89 + $0x10] sm:$0xff]
          %100 = vst [vmem:[%s90 + $0x10] sm:$0xff] %v99
          %v101 = vld [vmem:[%s89 + $0x18] sm:$0xff]
          %102 = vst [vmem:[%s90 + $0x18] sm:$0xff] %v101
          %v103 = vld [vmem:[%s89 + $0x20] sm:$0xff]
          %104 = vst [vmem:[%s90 + $0x20] sm:$0xff] %v103
          %v105 = vld [vmem:[%s89 + $0x28] sm:$0xff]
          %106 = vst [vmem:[%s90 + $0x28] sm:$0xff] %v105
          %v107 = vld [vmem:[%s89 + $0x30] sm:$0xff]
          %108 = vst [vmem:[%s90 + $0x30] sm:$0xff] %v107
          %v109 = vld [vmem:[%s89 + $0x38] sm:$0xff]
          %110 = vst [vmem:[%s90 + $0x38] sm:$0xff] %v109
        $region36: #{custom-call.98} parent=30 // loop_footer
          %s111 = scalar_lea.vmem %s89, 64
          %s112 = scalar_lea.vmem %s90, 64
          %v113 = vld [vmem:[%s89 + $0x40] sm:$0xff]
        $region37: #{custom-call.98} parent=30 // loop_footer_branch
          %114 = sbr.rel target = $region33
        $region38: #{custom-call.98} parent=30 // loop_exit
          _
        // While loop
        $region39: #{custom-call.98} parent=30 // loop_pre_header
          _
        $region40: #{custom-call.98} parent=30 // loop_header
          %s115 = sphi %s89, %s123
          %s116 = sphi %s90, %s124
          %v117 = vphi %v91, %v117
          %p118 = scmp.gt.s32.totalorder %s115, %s87
        $region41: #{custom-call.98} parent=30 // loop_header_branch
          %120 = sbr.rel (%p118) target = $region45
        $region42: #{custom-call.98} parent=30 // loop_body
          %v121 = vld [vmem:[%s115] sm:$0xff]
          %122 = vst [vmem:[%s116] sm:$0xff] %v121
        $region43: #{custom-call.98} parent=30 // loop_footer
          %s123 = scalar_lea.vmem %s115, 8
          %s124 = scalar_lea.vmem %s116, 8
        $region44: #{custom-call.98} parent=30 // loop_footer_branch
          %125 = sbr.rel target = $region40
        $region45: #{custom-call.98} parent=30 // loop_exit
          _
      $region31: #{custom-call.98} parent=26 // pred_fallthru
        _
      %s126 = sand.u32 8, 7
      %s127 = sshll.u32 1, %s126
      %s128 = ssub.s32 %s127, 1
      %s129 = smul.u32 %s79, 128
      %s130 = sshra.s32 %s129, 4
      %s131 = scalar_lea.vmem [#allocation1], %s130
      %s132 = smul.u32 %s79, 128
      %s133 = sshra.s32 %s132, 4
      %s134 = scalar_lea.vmem %s1, %s133
      %v135 = vld [vmem:[%s134] sm:%s128]
      %136 = vst [vmem:[%s131] sm:%s128] %v135
    $region27: #{custom-call.98} parent=1 // pred_fallthru
      _
    %p138 = scmp.gt.s32.totalorder 8, 0
    // Predicated region
    $region46: #{custom-call.98} parent=1 // pred_check
      %p139 = pneg %p138
    $region47: #{custom-call.98} parent=1 // pred_check_branch
      %141 = sbr.rel (%p139) target = $region49
    $region48: #{custom-call.98} parent=1 // pred_region
      %s142 = sshra.s32 8, 3
      %p143 = scmp.gt.s32.totalorder %s142, 0
      // Predicated region
      $region50: #{custom-call.98} parent=48 // pred_check
        %p144 = pneg %p143
      $region51: #{custom-call.98} parent=48 // pred_check_branch
        %146 = sbr.rel (%p144) target = $region53
      $region52: #{custom-call.98} parent=48 // pred_region
        %s147 = ssub.s32 %s142, 1
        %s148 = smul.u32 %s147, 128
        %s149 = sshra.s32 %s148, 4
        %s150 = scalar_lea.vmem %s2, %s149
        %v151 = vld [vmem:[%s2] sm:$0xff]
        // While loop
        $region54: #{custom-call.98} parent=52 // loop_pre_header
          _
        $region55: #{custom-call.98} parent=52 // loop_header
          %s152 = sphi %s2, %s174
          %s153 = sphi [#allocation2], %s175
          %v154 = vphi %v151, %v176
          %s155 = ssub.s32 %s150, 64
          %p156 = scmp.gt.s32.totalorder %s152, %s155
        $region56: #{custom-call.98} parent=52 // loop_header_branch
          %158 = sbr.rel (%p156) target = $region60
        $region57: #{custom-call.98} parent=52 // loop_body
          %159 = vst [vmem:[%s153] sm:$0xff] %v154
          %v160 = vld [vmem:[%s152 + $0x8] sm:$0xff]
          %161 = vst [vmem:[%s153 + $0x8] sm:$0xff] %v160
          %v162 = vld [vmem:[%s152 + $0x10] sm:$0xff]
          %163 = vst [vmem:[%s153 + $0x10] sm:$0xff] %v162
          %v164 = vld [vmem:[%s152 + $0x18] sm:$0xff]
          %165 = vst [vmem:[%s153 + $0x18] sm:$0xff] %v164
          %v166 = vld [vmem:[%s152 + $0x20] sm:$0xff]
          %167 = vst [vmem:[%s153 + $0x20] sm:$0xff] %v166
          %v168 = vld [vmem:[%s152 + $0x28] sm:$0xff]
          %169 = vst [vmem:[%s153 + $0x28] sm:$0xff] %v168
          %v170 = vld [vmem:[%s152 + $0x30] sm:$0xff]
          %171 = vst [vmem:[%s153 + $0x30] sm:$0xff] %v170
          %v172 = vld [vmem:[%s152 + $0x38] sm:$0xff]
          %173 = vst [vmem:[%s153 + $0x38] sm:$0xff] %v172
        $region58: #{custom-call.98} parent=52 // loop_footer
          %s174 = scalar_lea.vmem %s152, 64
          %s175 = scalar_lea.vmem %s153, 64
          %v176 = vld [vmem:[%s152 + $0x40] sm:$0xff]
        $region59: #{custom-call.98} parent=52 // loop_footer_branch
          %177 = sbr.rel target = $region55
        $region60: #{custom-call.98} parent=52 // loop_exit
          _
        // While loop
        $region61: #{custom-call.98} parent=52 // loop_pre_header
          _
        $region62: #{custom-call.98} parent=52 // loop_header
          %s178 = sphi %s152, %s186
          %s179 = sphi %s153, %s187
          %v180 = vphi %v154, %v180
          %p181 = scmp.gt.s32.totalorder %s178, %s150
        $region63: #{custom-call.98} parent=52 // loop_header_branch
          %183 = sbr.rel (%p181) target = $region67
        $region64: #{custom-call.98} parent=52 // loop_body
          %v184 = vld [vmem:[%s178] sm:$0xff]
          %185 = vst [vmem:[%s179] sm:$0xff] %v184
        $region65: #{custom-call.98} parent=52 // loop_footer
          %s186 = scalar_lea.vmem %s178, 8
          %s187 = scalar_lea.vmem %s179, 8
        $region66: #{custom-call.98} parent=52 // loop_footer_branch
          %188 = sbr.rel target = $region62
        $region67: #{custom-call.98} parent=52 // loop_exit
          _
      $region53: #{custom-call.98} parent=48 // pred_fallthru
        _
      %s189 = sand.u32 8, 7
      %s190 = sshll.u32 1, %s189
      %s191 = ssub.s32 %s190, 1
      %s192 = smul.u32 %s142, 128
      %s193 = sshra.s32 %s192, 4
      %s194 = scalar_lea.vmem [#allocation2], %s193
      %s195 = smul.u32 %s142, 128
      %s196 = sshra.s32 %s195, 4
      %s197 = scalar_lea.vmem %s2, %s196
      %v198 = vld [vmem:[%s197] sm:%s191]
      %199 = vst [vmem:[%s194] sm:%s191] %v198
    $region49: #{custom-call.98} parent=1 // pred_fallthru
      _
    %p201 = scmp.gt.s32.totalorder 8, 0
    // Predicated region
    $region68: #{custom-call.98} parent=1 // pred_check
      %p202 = pneg %p201
    $region69: #{custom-call.98} parent=1 // pred_check_branch
      %204 = sbr.rel (%p202) target = $region71
    $region70: #{custom-call.98} parent=1 // pred_region
      %s205 = sshra.s32 8, 3
      %p206 = scmp.gt.s32.totalorder %s205, 0
      // Predicated region
      $region72: #{custom-call.98} parent=70 // pred_check
        %p207 = pneg %p206
      $region73: #{custom-call.98} parent=70 // pred_check_branch
        %209 = sbr.rel (%p207) target = $region75
      $region74: #{custom-call.98} parent=70 // pred_region
        %s210 = ssub.s32 %s205, 1
        %s211 = smul.u32 %s210, 128
        %s212 = sshra.s32 %s211, 4
        %s213 = scalar_lea.vmem %s3, %s212
        %v214 = vld [vmem:[%s3] sm:$0xff]
        // While loop
        $region76: #{custom-call.98} parent=74 // loop_pre_header
          _
        $region77: #{custom-call.98} parent=74 // loop_header
          %s215 = sphi %s3, %s237
          %s216 = sphi [#allocation3], %s238
          %v217 = vphi %v214, %v239
          %s218 = ssub.s32 %s213, 64
          %p219 = scmp.gt.s32.totalorder %s215, %s218
        $region78: #{custom-call.98} parent=74 // loop_header_branch
          %221 = sbr.rel (%p219) target = $region82
        $region79: #{custom-call.98} parent=74 // loop_body
          %222 = vst [vmem:[%s216] sm:$0xff] %v217
          %v223 = vld [vmem:[%s215 + $0x8] sm:$0xff]
          %224 = vst [vmem:[%s216 + $0x8] sm:$0xff] %v223
          %v225 = vld [vmem:[%s215 + $0x10] sm:$0xff]
          %226 = vst [vmem:[%s216 + $0x10] sm:$0xff] %v225
          %v227 = vld [vmem:[%s215 + $0x18] sm:$0xff]
          %228 = vst [vmem:[%s216 + $0x18] sm:$0xff] %v227
          %v229 = vld [vmem:[%s215 + $0x20] sm:$0xff]
          %230 = vst [vmem:[%s216 + $0x20] sm:$0xff] %v229
          %v231 = vld [vmem:[%s215 + $0x28] sm:$0xff]
          %232 = vst [vmem:[%s216 + $0x28] sm:$0xff] %v231
          %v233 = vld [vmem:[%s215 + $0x30] sm:$0xff]
          %234 = vst [vmem:[%s216 + $0x30] sm:$0xff] %v233
          %v235 = vld [vmem:[%s215 + $0x38] sm:$0xff]
          %236 = vst [vmem:[%s216 + $0x38] sm:$0xff] %v235
        $region80: #{custom-call.98} parent=74 // loop_footer
          %s237 = scalar_lea.vmem %s215, 64
          %s238 = scalar_lea.vmem %s216, 64
          %v239 = vld [vmem:[%s215 + $0x40] sm:$0xff]
        $region81: #{custom-call.98} parent=74 // loop_footer_branch
          %240 = sbr.rel target = $region77
        $region82: #{custom-call.98} parent=74 // loop_exit
          _
        // While loop
        $region83: #{custom-call.98} parent=74 // loop_pre_header
          _
        $region84: #{custom-call.98} parent=74 // loop_header
          %s241 = sphi %s215, %s249
          %s242 = sphi %s216, %s250
          %v243 = vphi %v217, %v243
          %p244 = scmp.gt.s32.totalorder %s241, %s213
        $region85: #{custom-call.98} parent=74 // loop_header_branch
          %246 = sbr.rel (%p244) target = $region89
        $region86: #{custom-call.98} parent=74 // loop_body
          %v247 = vld [vmem:[%s241] sm:$0xff]
          %248 = vst [vmem:[%s242] sm:$0xff] %v247
        $region87: #{custom-call.98} parent=74 // loop_footer
          %s249 = scalar_lea.vmem %s241, 8
          %s250 = scalar_lea.vmem %s242, 8
        $region88: #{custom-call.98} parent=74 // loop_footer_branch
          %251 = sbr.rel target = $region84
        $region89: #{custom-call.98} parent=74 // loop_exit
          _
      $region75: #{custom-call.98} parent=70 // pred_fallthru
        _
      %s252 = sand.u32 8, 7
      %s253 = sshll.u32 1, %s252
      %s254 = ssub.s32 %s253, 1
      %s255 = smul.u32 %s205, 128
      %s256 = sshra.s32 %s255, 4
      %s257 = scalar_lea.vmem [#allocation3], %s256
      %s258 = smul.u32 %s205, 128
      %s259 = sshra.s32 %s258, 4
      %s260 = scalar_lea.vmem %s3, %s259
      %v261 = vld [vmem:[%s260] sm:%s254]
      %262 = vst [vmem:[%s257] sm:%s254] %v261
    $region71: #{custom-call.98} parent=1 // pred_fallthru
      _
    %s263 = smov [#allocation12]
    %v264 = vld [vmem:[#allocation0] sm:$0xff]
    %265 = vst [vmem:[%s263] sm:$0xff] %v264
    %s266 = smov [#allocation13]
    %v267 = vld [vmem:[#allocation1] sm:$0xff]
    %268 = vst [vmem:[%s266] sm:$0xff] %v267
    %s269 = smov [#allocation14]
    %v270 = vld [vmem:[#allocation2] sm:$0xff]
    %271 = vst [vmem:[%s269] sm:$0xff] %v270
    %s272 = smov [#allocation15]
    %v273 = vld [vmem:[#allocation3] sm:$0xff]
    %274 = vst [vmem:[%s272] sm:$0xff] %v273
    %275 = vst [vmem:[#allocation8] sm:$0xff] 0.0
    %276 = vst [vmem:[#allocation9] sm:$0xff] 0.0
    %277 = vst [vmem:[#allocation10] sm:$0xff] 0.0
    %278 = vst [vmem:[#allocation11] sm:$0xff] 0.0
    %s279 = smov [#allocation8]
    %v280 = vlaneseq
    %v281 = vand.u32 %v280, 127
    %v282 = vmov %v281
    %v283 = vlaneseq
    %v284 = vshrl.u32 %v283, 7
    %v285 = vmov %v284
    %v286 = vld [vmem:[%s279] sm:$0xff]
    %vm289 = vcmp.eq.s32.totalorder %v285, %v282
    %v290 = vsel %vm289, 1.0, %v286
    %291 = vst [vmem:[%s279] sm:$0xff] %v290
    %s292 = smov [#allocation11]
    %v293 = vlaneseq
    %v294 = vand.u32 %v293, 127
    %v295 = vmov %v294
    %v296 = vlaneseq
    %v297 = vshrl.u32 %v296, 7
    %v298 = vmov %v297
    %v299 = vld [vmem:[%s292] sm:$0xff]
    %vm302 = vcmp.eq.s32.totalorder %v298, %v295
    %v303 = vsel %vm302, 1.0, %v299
    %304 = vst [vmem:[%s292] sm:$0xff] %v303
    // While loop
    $region90: #{custom-call.98} parent=1 // loop_pre_header
      _
    $region91: #{custom-call.98} parent=1 // loop_header
      %s306 = sphi 0, %s848
      %v307 = vlaneseq
      %v308 = vand.u32 %v307, 127
      %v309 = vmov %v308
      %v310 = vlaneseq
      %v311 = vshrl.u32 %v310, 7
      %v312 = vmov %v311
      %s313 = smov [#allocation12]
      %v314 = vlaneseq
      %v315 = vand.u32 %v314, 127
      %vm316 = vcmp.ge.s32.totalorder %v315, 0
      %vm317 = vcmp.lt.s32.totalorder %v315, 8
      %vm318 = vmand %vm316, %vm317
      %v319 = vld [vmem:[%s313] sm:$0xff]
      %v320 = vsel %vm318, %v319, 0.0
      %v321 = vmul.f32 %v320, %v320
      %vm324 = vcmp.eq.s32.totalorder %v312, %v309
      %v325 = vsel %vm324, 0.0, %v321
      %v326 = vlaneseq
      %v327 = vand.u32 %v326, 127
      %v328 = vmov %v327
      %v329 = vlaneseq
      %v330 = vshrl.u32 %v329, 7
      %v331 = vmov %v330
      %s332 = smov [#allocation13]
      %v333 = vlaneseq
      %v334 = vand.u32 %v333, 127
      %vm335 = vcmp.ge.s32.totalorder %v334, 0
      %vm336 = vcmp.lt.s32.totalorder %v334, 8
      %vm337 = vmand %vm335, %vm336
      %v338 = vld [vmem:[%s332] sm:$0xff]
      %v339 = vsel %vm337, %v338, 0.0
      %v340 = vmul.f32 %v339, %v339
      %v341 = vadd.f32 %v325, %v340
      %v342 = vadd.f32 %v321, %v340
      %v343 = vlaneseq
      %v344 = vand.u32 %v343, 127
      %v345 = vmov %v344
      %v346 = vlaneseq
      %v347 = vshrl.u32 %v346, 7
      %v348 = vmov %v347
      %s349 = smov [#allocation14]
      %v350 = vlaneseq
      %v351 = vand.u32 %v350, 127
      %vm352 = vcmp.ge.s32.totalorder %v351, 0
      %vm353 = vcmp.lt.s32.totalorder %v351, 8
      %vm354 = vmand %vm352, %vm353
      %v355 = vld [vmem:[%s349] sm:$0xff]
      %v356 = vsel %vm354, %v355, 0.0
      %v357 = vmul.f32 %v356, %v356
      %v358 = vadd.f32 %v341, %v357
      %v359 = vadd.f32 %v342, %v357
      %v360 = vlaneseq
      %v361 = vand.u32 %v360, 127
      %v362 = vmov %v361
      %v363 = vlaneseq
      %v364 = vshrl.u32 %v363, 7
      %v365 = vmov %v364
      %s366 = smov [#allocation15]
      %v367 = vlaneseq
      %v368 = vand.u32 %v367, 127
      %vm369 = vcmp.ge.s32.totalorder %v368, 0
      %vm370 = vcmp.lt.s32.totalorder %v368, 8
      %vm371 = vmand %vm369, %vm370
      %v372 = vld [vmem:[%s366] sm:$0xff]
      %v373 = vsel %vm371, %v372, 0.0
      %v374 = vmul.f32 %v373, %v373
      %vm377 = vcmp.eq.s32.totalorder %v365, %v362
      %v378 = vsel %vm377, 0.0, %v374
      %v379 = vadd.f32 %v358, %v378
      %v380 = vadd.f32 %v359, %v374
      %381 = vadd.xlane.f32.xlu0 %v380
      %v382 = vpop.xlane.xlu0 %381
      %v383 = vrot.slane %v382, 4
      %v384 = vadd.f32 %v382, %v383
      %v385 = vrot.slane %v384, 2
      %v386 = vadd.f32 %v384, %v385
      %v387 = vrot.slane %v386, 1
      %v388 = vadd.f32 %v386, %v387
      %389 = vadd.xlane.f32.xlu0 %v379
      %v390 = vpop.xlane.xlu0 %389
      %v391 = vrot.slane %v390, 4
      %v392 = vadd.f32 %v390, %v391
      %v393 = vrot.slane %v392, 2
      %v394 = vadd.f32 %v392, %v393
      %v395 = vrot.slane %v394, 1
      %v396 = vadd.f32 %v394, %v395
      %s397 = vtos %v396
      %s398 = vtos %v388
      %s399 = smul.f32 1e-10, %s398
      %p400 = scmp.le.f32.partialorder %s397, %s399
      %p401 = scmp.ge.s32.totalorder %s306, 15
      %p402 = por %p400, %p401
    $region92: #{custom-call.98} parent=1 // loop_header_branch
      %850 = sbr.rel (%p402) target = $region96
    $region93: #{custom-call.98} parent=1 // loop_body
      loop: start=0, step=1, limit=15
      $region97: #{custom-call.98} parent=93 // loop_pre_header
        _
      $region98: #{custom-call.98} parent=93 // loop_header
        %s404 = sphi 0, %s408
        %p405 = scmp.ge.s32.totalorder %s404, 15
      $region99: #{custom-call.98} parent=93 // loop_header_branch
        %407 = sbr.rel (%p405) target = $region103
      $region100: #{custom-call.98} parent=93 // loop_body
        #allocation16 [shape = 'f32[1024]{0}', space=vmem, size = 0x1000, scoped, tag = 'a_tl_diag vmem']
        #allocation17 [shape = 'f32[1024]{0}', space=vmem, size = 0x1000, scoped, tag = 'a_tr_diag vmem']
        #allocation18 [shape = 'f32[1024]{0}', space=vmem, size = 0x1000, scoped, tag = 'a_br_diag vmem']
        #allocation19 [shape = 'f32[1024]{0}', space=vmem, size = 0x1000, scoped, tag = 'rt1 vmem']
        #allocation20 [shape = 'f32[1024]{0}', space=vmem, size = 0x1000, scoped, tag = 'rt2 vmem']
        #allocation21 [shape = 'f32[1024]{0}', space=vmem, size = 0x1000, scoped, tag = 'c vmem']
        #allocation22 [shape = 'f32[1024]{0}', space=vmem, size = 0x1000, scoped, tag = 's vmem']
        #allocation23 [shape = 'f32[4096]{0}', space=vmem, size = 0x4000, scoped, tag = 'c broadcast']
        #allocation24 [shape = 'f32[4096]{0}', space=vmem, size = 0x4000, scoped, tag = 's broadcast']
        %s409 = smov [#allocation12]
        %s410 = smov [#allocation16]
        %v411 = vlaneseq
        %v412 = vand.u32 %v411, 127
        %v413 = vmov %v412
        %v414 = vlaneseq
        %v415 = vshrl.u32 %v414, 7
        %v416 = vmov %v415
        %v417 = vld [vmem:[%s409] sm:$0xff]
        %vm420 = vcmp.eq.s32.totalorder %v416, %v413
        %v421 = vsel %vm420, %v417, 0.0
        %v422 = vrot.slane %v421, 4
        %v423 = vadd.f32 %v421, %v422
        %v424 = vrot.slane %v423, 2
        %v425 = vadd.f32 %v423, %v424
        %v426 = vrot.slane %v425, 1
        %v427 = vadd.f32 %v425, %v426
        %428 = vst [vmem:[%s410] sm:$0x1] %v427
        %s429 = smov [#allocation13]
        %s430 = smov [#allocation17]
        %v431 = vlaneseq
        %v432 = vand.u32 %v431, 127
        %v433 = vmov %v432
        %v434 = vlaneseq
        %v435 = vshrl.u32 %v434, 7
        %v436 = vmov %v435
        %v437 = vld [vmem:[%s429] sm:$0xff]
        %vm440 = vcmp.eq.s32.totalorder %v436, %v433
        %v441 = vsel %vm440, %v437, 0.0
        %v442 = vrot.slane %v441, 4
        %v443 = vadd.f32 %v441, %v442
        %v444 = vrot.slane %v443, 2
        %v445 = vadd.f32 %v443, %v444
        %v446 = vrot.slane %v445, 1
        %v447 = vadd.f32 %v445, %v446
        %448 = vst [vmem:[%s430] sm:$0x1] %v447
        %s449 = smov [#allocation15]
        %s450 = smov [#allocation18]
        %v451 = vlaneseq
        %v452 = vand.u32 %v451, 127
        %v453 = vmov %v452
        %v454 = vlaneseq
        %v455 = vshrl.u32 %v454, 7
        %v456 = vmov %v455
        %v457 = vld [vmem:[%s449] sm:$0xff]
        %vm460 = vcmp.eq.s32.totalorder %v456, %v453
        %v461 = vsel %vm460, %v457, 0.0
        %v462 = vrot.slane %v461, 4
        %v463 = vadd.f32 %v461, %v462
        %v464 = vrot.slane %v463, 2
        %v465 = vadd.f32 %v463, %v464
        %v466 = vrot.slane %v465, 1
        %v467 = vadd.f32 %v465, %v466
        %468 = vst [vmem:[%s450] sm:$0x1] %v467
        %s469 = smov [#allocation21]
        %s470 = smov [#allocation22]
        %s471 = smov [#allocation16]
        %v472 = vld [vmem:[%s471] sm:$0xff]
        %s473 = smov [#allocation17]
        %v474 = vld [vmem:[%s473] sm:$0xff]
        %s475 = smov [#allocation18]
        %v476 = vld [vmem:[%s475] sm:$0xff]
        %v477 = vsub.f32 %v476, %v472
        %v478 = vmul.f32 2.0, %v474
        %v479 = vrcp.pop %v478
        %v480 = vmul.f32 %v477, %v479
        %vm481 = vcmp.ge.f32.partialorder %v480, 0.0
        %v482 = vmul.f32 %v480, %v480
        %v483 = vadd.f32 1.0, %v482
        %v484 = vrsqrt.pop %v483
        %v485 = vmul.f32 %v483, %v484
        %vm486 = vcmp.eq.f32.partialorder %v483, inf
        %v487 = vsel %vm486, %v483, %v485
        %vm488 = vcmp.eq.f32.partialorder %v483, 0.0
        %v489 = vand.u32 %v483, 2147483648
        %v490 = vsel %vm488, %v489, %v487
        %v491 = vxor.u32 %v490, 2147483648
        %v492 = vsel %vm481, %v490, %v491
        %v493 = vadd.f32 %v480, %v492
        %v494 = vrcp.pop %v493
        %v495 = vand.u32 2147483647, %v472
        %v496 = vand.u32 2147483647, %v474
        %v497 = vand.u32 2147483647, %v476
        %v498 = vmin.f32 %v495, %v497
        %v499 = vmul.f32 1.1920929e-08, %v498
        %vm500 = vcmp.le.f32.partialorder %v496, %v499
        %v501 = vsel %vm500, 0.0, %v494
        %v502 = vmul.f32 %v501, %v501
        %v503 = vadd.f32 1.0, %v502
        %v504 = vrsqrt.pop %v503
        %v505 = vmul.f32 %v501, %v504
        %v506 = vmul.f32 %v501, %v474
        %v507 = vsub.f32 %v472, %v506
        %v508 = vmul.f32 %v501, %v474
        %v509 = vadd.f32 %v476, %v508
        %s510 = smov [#allocation19]
        %511 = vst [vmem:[%s510] sm:$0xff] %v507
        %s512 = smov [#allocation20]
        %513 = vst [vmem:[%s512] sm:$0xff] %v509
        %s514 = smov %s469
        %515 = vst [vmem:[%s514] sm:$0xff] %v504
        %s516 = smov %s470
        %517 = vst [vmem:[%s516] sm:$0xff] %v505
        %s518 = smov [#allocation21]
        %v519 = vld [vmem:[%s518] ss:$0 sm:$0xff]
        %v520 = vlaneseq
        %v521 = vand.u32 %v520, 127
        %v522 = vmov %v521
        %v523 = vlaneseq
        %v524 = vshrl.u32 %v523, 7
        %v525 = vmov %v524
        %vm527 = vcmp.eq.s32.totalorder %v525, %v522
        %v528 = vsel %vm527, %v519, 0.0
        %529 = vadd.xlane.f32.xlu0 %v528
        %v530 = vpop.xlane.xlu0 %529
        %s531 = smov [#allocation23]
        %532 = vst [vmem:[%s531] sm:$0xff] %v530
        %s533 = smov [#allocation22]
        %v534 = vld [vmem:[%s533] ss:$0 sm:$0xff]
        %v535 = vlaneseq
        %v536 = vand.u32 %v535, 127
        %v537 = vmov %v536
        %v538 = vlaneseq
        %v539 = vshrl.u32 %v538, 7
        %v540 = vmov %v539
        %vm542 = vcmp.eq.s32.totalorder %v540, %v537
        %v543 = vsel %vm542, %v534, 0.0
        %544 = vadd.xlane.f32.xlu0 %v543
        %v545 = vpop.xlane.xlu0 %544
        %s546 = smov [#allocation24]
        %547 = vst [vmem:[%s546] sm:$0xff] %v545
        %s548 = smov [#allocation23]
        %v549 = vld [vmem:[%s548] sm:$0xff]
        %s550 = smov [#allocation24]
        %v551 = vld [vmem:[%s550] sm:$0xff]
        %s552 = smov [#allocation12]
        %s553 = smov [#allocation13]
        %s554 = smov [#allocation14]
        %s555 = smov [#allocation15]
        %v556 = vld [vmem:[%s552] sm:$0xff]
        %v557 = vld [vmem:[%s553] sm:$0xff]
        %v558 = vld [vmem:[%s554] sm:$0xff]
        %v559 = vld [vmem:[%s555] sm:$0xff]
        %v560 = vmul.f32 %v549, %v556
        %v561 = vmul.f32 %v551, %v558
        %v562 = vsub.f32 %v560, %v561
        %v563 = vmul.f32 %v549, %v557
        %v564 = vmul.f32 %v551, %v559
        %v565 = vsub.f32 %v563, %v564
        %v566 = vmul.f32 %v551, %v556
        %v567 = vmul.f32 %v549, %v558
        %v568 = vadd.f32 %v566, %v567
        %v569 = vmul.f32 %v551, %v557
        %v570 = vmul.f32 %v549, %v559
        %v571 = vadd.f32 %v569, %v570
        %572 = vst [vmem:[%s552] sm:$0xff] %v562
        %573 = vst [vmem:[%s553] sm:$0xff] %v565
        %574 = vst [vmem:[%s554] sm:$0xff] %v568
        %575 = vst [vmem:[%s555] sm:$0xff] %v571
        %s576 = smov [#allocation21]
        %v577 = vld [vmem:[%s576] ss:$0 sm:$0xff]
        %s578 = smov [#allocation22]
        %v579 = vld [vmem:[%s578] ss:$0 sm:$0xff]
        %s580 = smov [#allocation12]
        %s581 = smov [#allocation13]
        %s582 = smov [#allocation14]
        %s583 = smov [#allocation15]
        %v584 = vld [vmem:[%s580] sm:$0xff]
        %v585 = vld [vmem:[%s581] sm:$0xff]
        %v586 = vld [vmem:[%s582] sm:$0xff]
        %v587 = vld [vmem:[%s583] sm:$0xff]
        %v588 = vmul.f32 %v577, %v584
        %v589 = vmul.f32 %v579, %v585
        %v590 = vsub.f32 %v588, %v589
        %v591 = vmul.f32 %v579, %v584
        %v592 = vmul.f32 %v577, %v585
        %v593 = vadd.f32 %v591, %v592
        %v594 = vmul.f32 %v577, %v586
        %v595 = vmul.f32 %v579, %v587
        %v596 = vsub.f32 %v594, %v595
        %v597 = vmul.f32 %v579, %v586
        %v598 = vmul.f32 %v577, %v587
        %v599 = vadd.f32 %v597, %v598
        %600 = vst [vmem:[%s580] sm:$0xff] %v590
        %601 = vst [vmem:[%s581] sm:$0xff] %v593
        %602 = vst [vmem:[%s582] sm:$0xff] %v596
        %603 = vst [vmem:[%s583] sm:$0xff] %v599
        %s604 = smov [#allocation12]
        %s605 = smov [#allocation19]
        %v606 = vlaneseq
        %v607 = vand.u32 %v606, 127
        %v608 = vmov %v607
        %v609 = vlaneseq
        %v610 = vshrl.u32 %v609, 7
        %v611 = vmov %v610
        %v612 = vld [vmem:[%s605] ss:$0 sm:$0xff]
        %v613 = vld [vmem:[%s604] sm:$0xff]
        %vm616 = vcmp.eq.s32.totalorder %v611, %v608
        %v617 = vsel %vm616, %v612, %v613
        %618 = vst [vmem:[%s604] sm:$0xff] %v617
        %s619 = smov [#allocation13]
        %v620 = vlaneseq
        %v621 = vand.u32 %v620, 127
        %v622 = vmov %v621
        %v623 = vlaneseq
        %v624 = vshrl.u32 %v623, 7
        %v625 = vmov %v624
        %v626 = vld [vmem:[%s619] sm:$0xff]
        %vm629 = vcmp.eq.s32.totalorder %v625, %v622
        %v630 = vsel %vm629, 0.0, %v626
        %631 = vst [vmem:[%s619] sm:$0xff] %v630
        %s632 = smov [#allocation14]
        %v633 = vlaneseq
        %v634 = vand.u32 %v633, 127
        %v635 = vmov %v634
        %v636 = vlaneseq
        %v637 = vshrl.u32 %v636, 7
        %v638 = vmov %v637
        %v639 = vld [vmem:[%s632] sm:$0xff]
        %vm642 = vcmp.eq.s32.totalorder %v638, %v635
        %v643 = vsel %vm642, 0.0, %v639
        %644 = vst [vmem:[%s632] sm:$0xff] %v643
        %s645 = smov [#allocation15]
        %s646 = smov [#allocation20]
        %v647 = vlaneseq
        %v648 = vand.u32 %v647, 127
        %v649 = vmov %v648
        %v650 = vlaneseq
        %v651 = vshrl.u32 %v650, 7
        %v652 = vmov %v651
        %v653 = vld [vmem:[%s646] ss:$0 sm:$0xff]
        %v654 = vld [vmem:[%s645] sm:$0xff]
        %vm657 = vcmp.eq.s32.totalorder %v652, %v649
        %v658 = vsel %vm657, %v653, %v654
        %659 = vst [vmem:[%s645] sm:$0xff] %v658
        %s660 = smov [#allocation12]
        %s661 = smov [#allocation13]
        %v662 = vld [vmem:[%s661] sm:$0xff]
        %663 = vrot.lane.b32.xlu0 %v662, 1
        %v664 = vpop.permute.xlu0 %663
        %v665 = vld [vmem:[%s660] sm:$0xff]
        %v666 = vld [vmem:[%s660] sm:$0xff]
        %667 = vrot.lane.b32.xlu0 %v666, 1
        %v668 = vpop.permute.xlu0 %667
        %v669 = vlaneseq
        %v670 = vand.u32 %v669, 127
        %vm671 = vcmp.eq.s32.totalorder %v670, 0
        %v672 = vsel %vm671, %v666, %v668
        %v673 = vlaneseq
        %v674 = vand.u32 %v673, 127
        %vm675 = vcmp.eq.s32.totalorder %v674, 1
        %v676 = vsel %vm675, %v664, %v672
        %v677 = vlaneseq
        %v678 = vand.u32 %v677, 127
        %vm679 = vcmp.ge.s32.totalorder %v678, 0
        %vm680 = vcmp.lt.s32.totalorder %v678, 8
        %vm681 = vmand %vm679, %vm680
        %v682 = vsel %vm681, %v676, 0.0
        %v683 = vld [vmem:[%s661] sm:$0xff]
        %684 = vrot.lane.b32.xlu0 %v683, 127
        %v685 = vpop.permute.xlu0 %684
        %v686 = vlaneseq
        %v687 = vand.u32 %v686, 127
        %vm688 = vcmp.eq.s32.totalorder %v687, 7
        %v689 = vsel %vm688, %v665, %v685
        %690 = vst [vmem:[%s660] sm:$0xff] %v682
        %691 = vst [vmem:[%s661] sm:$0xff] %v689
        %s692 = smov [#allocation14]
        %s693 = smov [#allocation15]
        %v694 = vld [vmem:[%s693] sm:$0xff]
        %695 = vrot.lane.b32.xlu0 %v694, 1
        %v696 = vpop.permute.xlu0 %695
        %v697 = vld [vmem:[%s692] sm:$0xff]
        %v698 = vld [vmem:[%s692] sm:$0xff]
        %699 = vrot.lane.b32.xlu0 %v698, 1
        %v700 = vpop.permute.xlu0 %699
        %v701 = vlaneseq
        %v702 = vand.u32 %v701, 127
        %vm703 = vcmp.eq.s32.totalorder %v702, 0
        %v704 = vsel %vm703, %v698, %v700
        %v705 = vlaneseq
        %v706 = vand.u32 %v705, 127
        %vm707 = vcmp.eq.s32.totalorder %v706, 1
        %v708 = vsel %vm707, %v696, %v704
        %v709 = vlaneseq
        %v710 = vand.u32 %v709, 127
        %vm711 = vcmp.ge.s32.totalorder %v710, 0
        %vm712 = vcmp.lt.s32.totalorder %v710, 8
        %vm713 = vmand %vm711, %vm712
        %v714 = vsel %vm713, %v708, 0.0
        %v715 = vld [vmem:[%s693] sm:$0xff]
        %716 = vrot.lane.b32.xlu0 %v715, 127
        %v717 = vpop.permute.xlu0 %716
        %v718 = vlaneseq
        %v719 = vand.u32 %v718, 127
        %vm720 = vcmp.eq.s32.totalorder %v719, 7
        %v721 = vsel %vm720, %v697, %v717
        %722 = vst [vmem:[%s692] sm:$0xff] %v714
        %723 = vst [vmem:[%s693] sm:$0xff] %v721
        %s724 = smov [#allocation12]
        %s725 = smov [#allocation14]
        %v726 = vld [vmem:[%s724] ss:$0 sm:$0xff]
        %s728 = scalar_lea.vmem %s724, 4294967295
        %v729 = vld [vmem:[%s728] sm:$0xfe]
        %v730 = vlaneseq
        %v731 = vshrl.u32 %v730, 7
        %vm732 = vcmp.eq.s32.totalorder %v731, 0
        %v733 = vsel %vm732, %v726, %v729
        %s734 = scalar_lea.vmem %s724, 7
        %v735 = vld [vmem:[%s734] ss:$0 sm:$0xff]
        %736 = vst [vmem:[%s724] sm:$0xff] %v733
        %v737 = vld [vmem:[%s725] ss:$0 sm:$0xff]
        %s738 = scalar_lea.vmem %s724, 1
        %739 = vst [vmem:[%s738] sm:$0x1] %v737
        %s740 = scalar_lea.vmem %s725, 1
        %v741 = vld [vmem:[%s740] sm:$0x7f]
        %v742 = vlaneseq
        %v743 = vshrl.u32 %v742, 7
        %vm744 = vcmp.eq.s32.totalorder %v743, 7
        %v745 = vsel %vm744, %v735, %v741
        %v746 = vld [vmem:[%s725] ss:$0 sm:$0xff]
        %747 = vst [vmem:[%s725] sm:$0xff] %v745
        %s748 = smov [#allocation13]
        %s749 = smov [#allocation15]
        %v750 = vld [vmem:[%s748] ss:$0 sm:$0xff]
        %s752 = scalar_lea.vmem %s748, 4294967295
        %v753 = vld [vmem:[%s752] sm:$0xfe]
        %v754 = vlaneseq
        %v755 = vshrl.u32 %v754, 7
        %vm756 = vcmp.eq.s32.totalorder %v755, 0
        %v757 = vsel %vm756, %v750, %v753
        %s758 = scalar_lea.vmem %s748, 7
        %v759 = vld [vmem:[%s758] ss:$0 sm:$0xff]
        %760 = vst [vmem:[%s748] sm:$0xff] %v757
        %v761 = vld [vmem:[%s749] ss:$0 sm:$0xff]
        %s762 = scalar_lea.vmem %s748, 1
        %763 = vst [vmem:[%s762] sm:$0x1] %v761
        %s764 = scalar_lea.vmem %s749, 1
        %v765 = vld [vmem:[%s764] sm:$0x7f]
        %v766 = vlaneseq
        %v767 = vshrl.u32 %v766, 7
        %vm768 = vcmp.eq.s32.totalorder %v767, 7
        %v769 = vsel %vm768, %v759, %v765
        %v770 = vld [vmem:[%s749] ss:$0 sm:$0xff]
        %771 = vst [vmem:[%s749] sm:$0xff] %v769
        %s772 = smov [#allocation23]
        %v773 = vld [vmem:[%s772] sm:$0xff]
        %s774 = smov [#allocation24]
        %v775 = vld [vmem:[%s774] sm:$0xff]
        %s776 = smov [#allocation8]
        %s777 = smov [#allocation9]
        %s778 = smov [#allocation10]
        %s779 = smov [#allocation11]
        %v780 = vld [vmem:[%s776] sm:$0xff]
        %v781 = vld [vmem:[%s777] sm:$0xff]
        %v782 = vld [vmem:[%s778] sm:$0xff]
        %v783 = vld [vmem:[%s779] sm:$0xff]
        %v784 = vmul.f32 %v773, %v780
        %v785 = vmul.f32 %v775, %v782
        %v786 = vsub.f32 %v784, %v785
        %v787 = vmul.f32 %v773, %v781
        %v788 = vmul.f32 %v775, %v783
        %v789 = vsub.f32 %v787, %v788
        %v790 = vmul.f32 %v775, %v780
        %v791 = vmul.f32 %v773, %v782
        %v792 = vadd.f32 %v790, %v791
        %v793 = vmul.f32 %v775, %v781
        %v794 = vmul.f32 %v773, %v783
        %v795 = vadd.f32 %v793, %v794
        %796 = vst [vmem:[%s776] sm:$0xff] %v786
        %797 = vst [vmem:[%s777] sm:$0xff] %v789
        %798 = vst [vmem:[%s778] sm:$0xff] %v792
        %799 = vst [vmem:[%s779] sm:$0xff] %v795
        %s800 = smov [#allocation8]
        %s801 = smov [#allocation10]
        %v802 = vld [vmem:[%s800] ss:$0 sm:$0xff]
        %s804 = scalar_lea.vmem %s800, 4294967295
        %v805 = vld [vmem:[%s804] sm:$0xfe]
        %v806 = vlaneseq
        %v807 = vshrl.u32 %v806, 7
        %vm808 = vcmp.eq.s32.totalorder %v807, 0
        %v809 = vsel %vm808, %v802, %v805
        %s810 = scalar_lea.vmem %s800, 7
        %v811 = vld [vmem:[%s810] ss:$0 sm:$0xff]
        %812 = vst [vmem:[%s800] sm:$0xff] %v809
        %v813 = vld [vmem:[%s801] ss:$0 sm:$0xff]
        %s814 = scalar_lea.vmem %s800, 1
        %815 = vst [vmem:[%s814] sm:$0x1] %v813
        %s816 = scalar_lea.vmem %s801, 1
        %v817 = vld [vmem:[%s816] sm:$0x7f]
        %v818 = vlaneseq
        %v819 = vshrl.u32 %v818, 7
        %vm820 = vcmp.eq.s32.totalorder %v819, 7
        %v821 = vsel %vm820, %v811, %v817
        %v822 = vld [vmem:[%s801] ss:$0 sm:$0xff]
        %823 = vst [vmem:[%s801] sm:$0xff] %v821
        %s824 = smov [#allocation9]
        %s825 = smov [#allocation11]
        %v826 = vld [vmem:[%s824] ss:$0 sm:$0xff]
        %s828 = scalar_lea.vmem %s824, 4294967295
        %v829 = vld [vmem:[%s828] sm:$0xfe]
        %v830 = vlaneseq
        %v831 = vshrl.u32 %v830, 7
        %vm832 = vcmp.eq.s32.totalorder %v831, 0
        %v833 = vsel %vm832, %v826, %v829
        %s834 = scalar_lea.vmem %s824, 7
        %v835 = vld [vmem:[%s834] ss:$0 sm:$0xff]
        %836 = vst [vmem:[%s824] sm:$0xff] %v833
        %v837 = vld [vmem:[%s825] ss:$0 sm:$0xff]
        %s838 = scalar_lea.vmem %s824, 1
        %839 = vst [vmem:[%s838] sm:$0x1] %v837
        %s840 = scalar_lea.vmem %s825, 1
        %v841 = vld [vmem:[%s840] sm:$0x7f]
        %v842 = vlaneseq
        %v843 = vshrl.u32 %v842, 7
        %vm844 = vcmp.eq.s32.totalorder %v843, 7
        %v845 = vsel %vm844, %v835, %v841
        %v846 = vld [vmem:[%s825] ss:$0 sm:$0xff]
        %847 = vst [vmem:[%s825] sm:$0xff] %v845
      $region101: #{custom-call.98} parent=93 // loop_footer
        %s408 = sadd.s32 1, %s404
      $region102: #{custom-call.98} parent=93 // loop_footer_branch
        %403 = sbr.rel target = $region98
      $region103: #{custom-call.98} parent=93 // loop_exit
        _
      %s848 = sadd.s32 %s306, 1
    $region94: #{custom-call.98} parent=1 // loop_footer
      _
    $region95: #{custom-call.98} parent=1 // loop_footer_branch
      %305 = sbr.rel target = $region91
    $region96: #{custom-call.98} parent=1 // loop_exit
      _
    %s851 = smov [#allocation12]
    %s852 = smov [#allocation4]
    %v853 = vlaneseq
    %v854 = vand.u32 %v853, 127
    %v855 = vmov %v854
    %v856 = vlaneseq
    %v857 = vshrl.u32 %v856, 7
    %v858 = vmov %v857
    %v859 = vld [vmem:[%s851] sm:$0xff]
    %vm862 = vcmp.eq.s32.totalorder %v858, %v855
    %v863 = vsel %vm862, %v859, 0.0
    %v864 = vrot.slane %v863, 4
    %v865 = vadd.f32 %v863, %v864
    %v866 = vrot.slane %v865, 2
    %v867 = vadd.f32 %v865, %v866
    %v868 = vrot.slane %v867, 1
    %v869 = vadd.f32 %v867, %v868
    %870 = vst [vmem:[%s852] sm:$0x1] %v869
    %s871 = smov [#allocation15]
    %s872 = smov [#allocation6]
    %v873 = vlaneseq
    %v874 = vand.u32 %v873, 127
    %v875 = vmov %v874
    %v876 = vlaneseq
    %v877 = vshrl.u32 %v876, 7
    %v878 = vmov %v877
    %v879 = vld [vmem:[%s871] sm:$0xff]
    %vm882 = vcmp.eq.s32.totalorder %v878, %v875
    %v883 = vsel %vm882, %v879, 0.0
    %v884 = vrot.slane %v883, 4
    %v885 = vadd.f32 %v883, %v884
    %v886 = vrot.slane %v885, 2
    %v887 = vadd.f32 %v885, %v886
    %v888 = vrot.slane %v887, 1
    %v889 = vadd.f32 %v887, %v888
    %890 = vst [vmem:[%s872] sm:$0x1] %v889
    %s892 = sshll.u32 1, 1
    %s893 = ssub.s32 %s892, 1
    %v895 = vld [vmem:[#allocation4] sm:%s893]
    %s896 = sshll.u32 1, 1
    %s897 = ssub.s32 %s896, 1
    %898 = vst [vmem:[#allocation5] sm:%s897] %v895
    %s900 = sshll.u32 1, 1
    %s901 = ssub.s32 %s900, 1
    %v903 = vld [vmem:[#allocation6] sm:%s901]
    %s904 = sshll.u32 1, 1
    %s905 = ssub.s32 %s904, 1
    %906 = vst [vmem:[#allocation7] sm:%s905] %v903
    // Predicated region
    $region104: #{custom-call.98} parent=1 // pred_check
      _
    $region105: #{custom-call.98} parent=1 // pred_check_branch
      %908 = sbr.rel (0) target = $region107
    $region106: #{custom-call.98} parent=1 // pred_region
      %p910 = scmp.gt.s32.totalorder 1, 0
      // Predicated region
      $region108: #{custom-call.98} parent=106 // pred_check
        %p911 = pneg %p910
      $region109: #{custom-call.98} parent=106 // pred_check_branch
        %913 = sbr.rel (%p911) target = $region111
      $region110: #{custom-call.98} parent=106 // pred_region
        %s914 = sshra.s32 1, 3
        %p915 = scmp.gt.s32.totalorder %s914, 0
        // Predicated region
        $region112: #{custom-call.98} parent=110 // pred_check
          %p916 = pneg %p915
        $region113: #{custom-call.98} parent=110 // pred_check_branch
          %918 = sbr.rel (%p916) target = $region115
        $region114: #{custom-call.98} parent=110 // pred_region
          %s919 = ssub.s32 %s914, 1
          %s920 = smul.u32 %s919, 128
          %s921 = sshra.s32 %s920, 4
          %s922 = scalar_lea.vmem [#allocation5], %s921
          %v923 = vld [vmem:[#allocation5] sm:$0xff]
          // While loop
          $region116: #{custom-call.98} parent=114 // loop_pre_header
            _
          $region117: #{custom-call.98} parent=114 // loop_header
            %s924 = sphi [#allocation5], %s946
            %s925 = sphi %s4, %s947
            %v926 = vphi %v923, %v948
            %s927 = ssub.s32 %s922, 64
            %p928 = scmp.gt.s32.totalorder %s924, %s927
          $region118: #{custom-call.98} parent=114 // loop_header_branch
            %930 = sbr.rel (%p928) target = $region122
          $region119: #{custom-call.98} parent=114 // loop_body
            %931 = vst [vmem:[%s925] sm:$0xff] %v926
            %v932 = vld [vmem:[%s924 + $0x8] sm:$0xff]
            %933 = vst [vmem:[%s925 + $0x8] sm:$0xff] %v932
            %v934 = vld [vmem:[%s924 + $0x10] sm:$0xff]
            %935 = vst [vmem:[%s925 + $0x10] sm:$0xff] %v934
            %v936 = vld [vmem:[%s924 + $0x18] sm:$0xff]
            %937 = vst [vmem:[%s925 + $0x18] sm:$0xff] %v936
            %v938 = vld [vmem:[%s924 + $0x20] sm:$0xff]
            %939 = vst [vmem:[%s925 + $0x20] sm:$0xff] %v938
            %v940 = vld [vmem:[%s924 + $0x28] sm:$0xff]
            %941 = vst [vmem:[%s925 + $0x28] sm:$0xff] %v940
            %v942 = vld [vmem:[%s924 + $0x30] sm:$0xff]
            %943 = vst [vmem:[%s925 + $0x30] sm:$0xff] %v942
            %v944 = vld [vmem:[%s924 + $0x38] sm:$0xff]
            %945 = vst [vmem:[%s925 + $0x38] sm:$0xff] %v944
          $region120: #{custom-call.98} parent=114 // loop_footer
            %s946 = scalar_lea.vmem %s924, 64
            %s947 = scalar_lea.vmem %s925, 64
            %v948 = vld [vmem:[%s924 + $0x40] sm:$0xff]
          $region121: #{custom-call.98} parent=114 // loop_footer_branch
            %949 = sbr.rel target = $region117
          $region122: #{custom-call.98} parent=114 // loop_exit
            _
          // While loop
          $region123: #{custom-call.98} parent=114 // loop_pre_header
            _
          $region124: #{custom-call.98} parent=114 // loop_header
            %s950 = sphi %s924, %s958
            %s951 = sphi %s925, %s959
            %v952 = vphi %v926, %v952
            %p953 = scmp.gt.s32.totalorder %s950, %s922
          $region125: #{custom-call.98} parent=114 // loop_header_branch
            %955 = sbr.rel (%p953) target = $region129
          $region126: #{custom-call.98} parent=114 // loop_body
            %v956 = vld [vmem:[%s950] sm:$0xff]
            %957 = vst [vmem:[%s951] sm:$0xff] %v956
          $region127: #{custom-call.98} parent=114 // loop_footer
            %s958 = scalar_lea.vmem %s950, 8
            %s959 = scalar_lea.vmem %s951, 8
          $region128: #{custom-call.98} parent=114 // loop_footer_branch
            %960 = sbr.rel target = $region124
          $region129: #{custom-call.98} parent=114 // loop_exit
            _
        $region115: #{custom-call.98} parent=110 // pred_fallthru
          _
        %s961 = sand.u32 1, 7
        %s962 = sshll.u32 1, %s961
        %s963 = ssub.s32 %s962, 1
        %s964 = smul.u32 %s914, 128
        %s965 = sshra.s32 %s964, 4
        %s966 = scalar_lea.vmem %s4, %s965
        %s967 = smul.u32 %s914, 128
        %s968 = sshra.s32 %s967, 4
        %s969 = scalar_lea.vmem [#allocation5], %s968
        %v970 = vld [vmem:[%s969] sm:%s963]
        %971 = vst [vmem:[%s966] sm:%s963] %v970
      $region111: #{custom-call.98} parent=106 // pred_fallthru
        _
    $region107: #{custom-call.98} parent=1 // pred_fallthru
      _
    // Predicated region
    $region130: #{custom-call.98} parent=1 // pred_check
      _
    $region131: #{custom-call.98} parent=1 // pred_check_branch
      %973 = sbr.rel (0) target = $region133
    $region132: #{custom-call.98} parent=1 // pred_region
      %p975 = scmp.gt.s32.totalorder 1, 0
      // Predicated region
      $region134: #{custom-call.98} parent=132 // pred_check
        %p976 = pneg %p975
      $region135: #{custom-call.98} parent=132 // pred_check_branch
        %978 = sbr.rel (%p976) target = $region137
      $region136: #{custom-call.98} parent=132 // pred_region
        %s979 = sshra.s32 1, 3
        %p980 = scmp.gt.s32.totalorder %s979, 0
        // Predicated region
        $region138: #{custom-call.98} parent=136 // pred_check
          %p981 = pneg %p980
        $region139: #{custom-call.98} parent=136 // pred_check_branch
          %983 = sbr.rel (%p981) target = $region141
        $region140: #{custom-call.98} parent=136 // pred_region
          %s984 = ssub.s32 %s979, 1
          %s985 = smul.u32 %s984, 128
          %s986 = sshra.s32 %s985, 4
          %s987 = scalar_lea.vmem [#allocation7], %s986
          %v988 = vld [vmem:[#allocation7] sm:$0xff]
          // While loop
          $region142: #{custom-call.98} parent=140 // loop_pre_header
            _
          $region143: #{custom-call.98} parent=140 // loop_header
            %s989 = sphi [#allocation7], %s1011
            %s990 = sphi %s5, %s1012
            %v991 = vphi %v988, %v1013
            %s992 = ssub.s32 %s987, 64
            %p993 = scmp.gt.s32.totalorder %s989, %s992
          $region144: #{custom-call.98} parent=140 // loop_header_branch
            %995 = sbr.rel (%p993) target = $region148
          $region145: #{custom-call.98} parent=140 // loop_body
            %996 = vst [vmem:[%s990] sm:$0xff] %v991
            %v997 = vld [vmem:[%s989 + $0x8] sm:$0xff]
            %998 = vst [vmem:[%s990 + $0x8] sm:$0xff] %v997
            %v999 = vld [vmem:[%s989 + $0x10] sm:$0xff]
            %1000 = vst [vmem:[%s990 + $0x10] sm:$0xff] %v999
            %v1001 = vld [vmem:[%s989 + $0x18] sm:$0xff]
            %1002 = vst [vmem:[%s990 + $0x18] sm:$0xff] %v1001
            %v1003 = vld [vmem:[%s989 + $0x20] sm:$0xff]
            %1004 = vst [vmem:[%s990 + $0x20] sm:$0xff] %v1003
            %v1005 = vld [vmem:[%s989 + $0x28] sm:$0xff]
            %1006 = vst [vmem:[%s990 + $0x28] sm:$0xff] %v1005
            %v1007 = vld [vmem:[%s989 + $0x30] sm:$0xff]
            %1008 = vst [vmem:[%s990 + $0x30] sm:$0xff] %v1007
            %v1009 = vld [vmem:[%s989 + $0x38] sm:$0xff]
            %1010 = vst [vmem:[%s990 + $0x38] sm:$0xff] %v1009
          $region146: #{custom-call.98} parent=140 // loop_footer
            %s1011 = scalar_lea.vmem %s989, 64
            %s1012 = scalar_lea.vmem %s990, 64
            %v1013 = vld [vmem:[%s989 + $0x40] sm:$0xff]
          $region147: #{custom-call.98} parent=140 // loop_footer_branch
            %1014 = sbr.rel target = $region143
          $region148: #{custom-call.98} parent=140 // loop_exit
            _
          // While loop
          $region149: #{custom-call.98} parent=140 // loop_pre_header
            _
          $region150: #{custom-call.98} parent=140 // loop_header
            %s1015 = sphi %s989, %s1023
            %s1016 = sphi %s990, %s1024
            %v1017 = vphi %v991, %v1017
            %p1018 = scmp.gt.s32.totalorder %s1015, %s987
          $region151: #{custom-call.98} parent=140 // loop_header_branch
            %1020 = sbr.rel (%p1018) target = $region155
          $region152: #{custom-call.98} parent=140 // loop_body
            %v1021 = vld [vmem:[%s1015] sm:$0xff]
            %1022 = vst [vmem:[%s1016] sm:$0xff] %v1021
          $region153: #{custom-call.98} parent=140 // loop_footer
            %s1023 = scalar_lea.vmem %s1015, 8
            %s1024 = scalar_lea.vmem %s1016, 8
          $region154: #{custom-call.98} parent=140 // loop_footer_branch
            %1025 = sbr.rel target = $region150
          $region155: #{custom-call.98} parent=140 // loop_exit
            _
        $region141: #{custom-call.98} parent=136 // pred_fallthru
          _
        %s1026 = sand.u32 1, 7
        %s1027 = sshll.u32 1, %s1026
        %s1028 = ssub.s32 %s1027, 1
        %s1029 = smul.u32 %s979, 128
        %s1030 = sshra.s32 %s1029, 4
        %s1031 = scalar_lea.vmem %s5, %s1030
        %s1032 = smul.u32 %s979, 128
        %s1033 = sshra.s32 %s1032, 4
        %s1034 = scalar_lea.vmem [#allocation7], %s1033
        %v1035 = vld [vmem:[%s1034] sm:%s1028]
        %1036 = vst [vmem:[%s1031] sm:%s1028] %v1035
      $region137: #{custom-call.98} parent=132 // pred_fallthru
        _
    $region133: #{custom-call.98} parent=1 // pred_fallthru
      _
    %p1038 = scmp.gt.s32.totalorder 8, 0
    // Predicated region
    $region156: #{custom-call.98} parent=1 // pred_check
      %p1039 = pneg %p1038
    $region157: #{custom-call.98} parent=1 // pred_check_branch
      %1041 = sbr.rel (%p1039) target = $region159
    $region158: #{custom-call.98} parent=1 // pred_region
      %s1042 = sshra.s32 8, 3
      %p1043 = scmp.gt.s32.totalorder %s1042, 0
      // Predicated region
      $region160: #{custom-call.98} parent=158 // pred_check
        %p1044 = pneg %p1043
      $region161: #{custom-call.98} parent=158 // pred_check_branch
        %1046 = sbr.rel (%p1044) target = $region163
      $region162: #{custom-call.98} parent=158 // pred_region
        %s1047 = ssub.s32 %s1042, 1
        %s1048 = smul.u32 %s1047, 128
        %s1049 = sshra.s32 %s1048, 4
        %s1050 = scalar_lea.vmem [#allocation8], %s1049
        %v1051 = vld [vmem:[#allocation8] sm:$0xff]
        // While loop
        $region164: #{custom-call.98} parent=162 // loop_pre_header
          _
        $region165: #{custom-call.98} parent=162 // loop_header
          %s1052 = sphi [#allocation8], %s1074
          %s1053 = sphi %s6, %s1075
          %v1054 = vphi %v1051, %v1076
          %s1055 = ssub.s32 %s1050, 64
          %p1056 = scmp.gt.s32.totalorder %s1052, %s1055
        $region166: #{custom-call.98} parent=162 // loop_header_branch
          %1058 = sbr.rel (%p1056) target = $region170
        $region167: #{custom-call.98} parent=162 // loop_body
          %1059 = vst [vmem:[%s1053] sm:$0xff] %v1054
          %v1060 = vld [vmem:[%s1052 + $0x8] sm:$0xff]
          %1061 = vst [vmem:[%s1053 + $0x8] sm:$0xff] %v1060
          %v1062 = vld [vmem:[%s1052 + $0x10] sm:$0xff]
          %1063 = vst [vmem:[%s1053 + $0x10] sm:$0xff] %v1062
          %v1064 = vld [vmem:[%s1052 + $0x18] sm:$0xff]
          %1065 = vst [vmem:[%s1053 + $0x18] sm:$0xff] %v1064
          %v1066 = vld [vmem:[%s1052 + $0x20] sm:$0xff]
          %1067 = vst [vmem:[%s1053 + $0x20] sm:$0xff] %v1066
          %v1068 = vld [vmem:[%s1052 + $0x28] sm:$0xff]
          %1069 = vst [vmem:[%s1053 + $0x28] sm:$0xff] %v1068
          %v1070 = vld [vmem:[%s1052 + $0x30] sm:$0xff]
          %1071 = vst [vmem:[%s1053 + $0x30] sm:$0xff] %v1070
          %v1072 = vld [vmem:[%s1052 + $0x38] sm:$0xff]
          %1073 = vst [vmem:[%s1053 + $0x38] sm:$0xff] %v1072
        $region168: #{custom-call.98} parent=162 // loop_footer
          %s1074 = scalar_lea.vmem %s1052, 64
          %s1075 = scalar_lea.vmem %s1053, 64
          %v1076 = vld [vmem:[%s1052 + $0x40] sm:$0xff]
        $region169: #{custom-call.98} parent=162 // loop_footer_branch
          %1077 = sbr.rel target = $region165
        $region170: #{custom-call.98} parent=162 // loop_exit
          _
        // While loop
        $region171: #{custom-call.98} parent=162 // loop_pre_header
          _
        $region172: #{custom-call.98} parent=162 // loop_header
          %s1078 = sphi %s1052, %s1086
          %s1079 = sphi %s1053, %s1087
          %v1080 = vphi %v1054, %v1080
          %p1081 = scmp.gt.s32.totalorder %s1078, %s1050
        $region173: #{custom-call.98} parent=162 // loop_header_branch
          %1083 = sbr.rel (%p1081) target = $region177
        $region174: #{custom-call.98} parent=162 // loop_body
          %v1084 = vld [vmem:[%s1078] sm:$0xff]
          %1085 = vst [vmem:[%s1079] sm:$0xff] %v1084
        $region175: #{custom-call.98} parent=162 // loop_footer
          %s1086 = scalar_lea.vmem %s1078, 8
          %s1087 = scalar_lea.vmem %s1079, 8
        $region176: #{custom-call.98} parent=162 // loop_footer_branch
          %1088 = sbr.rel target = $region172
        $region177: #{custom-call.98} parent=162 // loop_exit
          _
      $region163: #{custom-call.98} parent=158 // pred_fallthru
        _
      %s1089 = sand.u32 8, 7
      %s1090 = sshll.u32 1, %s1089
      %s1091 = ssub.s32 %s1090, 1
      %s1092 = smul.u32 %s1042, 128
      %s1093 = sshra.s32 %s1092, 4
      %s1094 = scalar_lea.vmem %s6, %s1093
      %s1095 = smul.u32 %s1042, 128
      %s1096 = sshra.s32 %s1095, 4
      %s1097 = scalar_lea.vmem [#allocation8], %s1096
      %v1098 = vld [vmem:[%s1097] sm:%s1091]
      %1099 = vst [vmem:[%s1094] sm:%s1091] %v1098
    $region159: #{custom-call.98} parent=1 // pred_fallthru
      _
    %p1101 = scmp.gt.s32.totalorder 8, 0
    // Predicated region
    $region178: #{custom-call.98} parent=1 // pred_check
      %p1102 = pneg %p1101
    $region179: #{custom-call.98} parent=1 // pred_check_branch
      %1104 = sbr.rel (%p1102) target = $region181
    $region180: #{custom-call.98} parent=1 // pred_region
      %s1105 = sshra.s32 8, 3
      %p1106 = scmp.gt.s32.totalorder %s1105, 0
      // Predicated region
      $region182: #{custom-call.98} parent=180 // pred_check
        %p1107 = pneg %p1106
      $region183: #{custom-call.98} parent=180 // pred_check_branch
        %1109 = sbr.rel (%p1107) target = $region185
      $region184: #{custom-call.98} parent=180 // pred_region
        %s1110 = ssub.s32 %s1105, 1
        %s1111 = smul.u32 %s1110, 128
        %s1112 = sshra.s32 %s1111, 4
        %s1113 = scalar_lea.vmem [#allocation9], %s1112
        %v1114 = vld [vmem:[#allocation9] sm:$0xff]
        // While loop
        $region186: #{custom-call.98} parent=184 // loop_pre_header
          _
        $region187: #{custom-call.98} parent=184 // loop_header
          %s1115 = sphi [#allocation9], %s1137
          %s1116 = sphi %s7, %s1138
          %v1117 = vphi %v1114, %v1139
          %s1118 = ssub.s32 %s1113, 64
          %p1119 = scmp.gt.s32.totalorder %s1115, %s1118
        $region188: #{custom-call.98} parent=184 // loop_header_branch
          %1121 = sbr.rel (%p1119) target = $region192
        $region189: #{custom-call.98} parent=184 // loop_body
          %1122 = vst [vmem:[%s1116] sm:$0xff] %v1117
          %v1123 = vld [vmem:[%s1115 + $0x8] sm:$0xff]
          %1124 = vst [vmem:[%s1116 + $0x8] sm:$0xff] %v1123
          %v1125 = vld [vmem:[%s1115 + $0x10] sm:$0xff]
          %1126 = vst [vmem:[%s1116 + $0x10] sm:$0xff] %v1125
          %v1127 = vld [vmem:[%s1115 + $0x18] sm:$0xff]
          %1128 = vst [vmem:[%s1116 + $0x18] sm:$0xff] %v1127
          %v1129 = vld [vmem:[%s1115 + $0x20] sm:$0xff]
          %1130 = vst [vmem:[%s1116 + $0x20] sm:$0xff] %v1129
          %v1131 = vld [vmem:[%s1115 + $0x28] sm:$0xff]
          %1132 = vst [vmem:[%s1116 + $0x28] sm:$0xff] %v1131
          %v1133 = vld [vmem:[%s1115 + $0x30] sm:$0xff]
          %1134 = vst [vmem:[%s1116 + $0x30] sm:$0xff] %v1133
          %v1135 = vld [vmem:[%s1115 + $0x38] sm:$0xff]
          %1136 = vst [vmem:[%s1116 + $0x38] sm:$0xff] %v1135
        $region190: #{custom-call.98} parent=184 // loop_footer
          %s1137 = scalar_lea.vmem %s1115, 64
          %s1138 = scalar_lea.vmem %s1116, 64
          %v1139 = vld [vmem:[%s1115 + $0x40] sm:$0xff]
        $region191: #{custom-call.98} parent=184 // loop_footer_branch
          %1140 = sbr.rel target = $region187
        $region192: #{custom-call.98} parent=184 // loop_exit
          _
        // While loop
        $region193: #{custom-call.98} parent=184 // loop_pre_header
          _
        $region194: #{custom-call.98} parent=184 // loop_header
          %s1141 = sphi %s1115, %s1149
          %s1142 = sphi %s1116, %s1150
          %v1143 = vphi %v1117, %v1143
          %p1144 = scmp.gt.s32.totalorder %s1141, %s1113
        $region195: #{custom-call.98} parent=184 // loop_header_branch
          %1146 = sbr.rel (%p1144) target = $region199
        $region196: #{custom-call.98} parent=184 // loop_body
          %v1147 = vld [vmem:[%s1141] sm:$0xff]
          %1148 = vst [vmem:[%s1142] sm:$0xff] %v1147
        $region197: #{custom-call.98} parent=184 // loop_footer
          %s1149 = scalar_lea.vmem %s1141, 8
          %s1150 = scalar_lea.vmem %s1142, 8
        $region198: #{custom-call.98} parent=184 // loop_footer_branch
          %1151 = sbr.rel target = $region194
        $region199: #{custom-call.98} parent=184 // loop_exit
          _
      $region185: #{custom-call.98} parent=180 // pred_fallthru
        _
      %s1152 = sand.u32 8, 7
      %s1153 = sshll.u32 1, %s1152
      %s1154 = ssub.s32 %s1153, 1
      %s1155 = smul.u32 %s1105, 128
      %s1156 = sshra.s32 %s1155, 4
      %s1157 = scalar_lea.vmem %s7, %s1156
      %s1158 = smul.u32 %s1105, 128
      %s1159 = sshra.s32 %s1158, 4
      %s1160 = scalar_lea.vmem [#allocation9], %s1159
      %v1161 = vld [vmem:[%s1160] sm:%s1154]
      %1162 = vst [vmem:[%s1157] sm:%s1154] %v1161
    $region181: #{custom-call.98} parent=1 // pred_fallthru
      _
    %p1164 = scmp.gt.s32.totalorder 8, 0
    // Predicated region
    $region200: #{custom-call.98} parent=1 // pred_check
      %p1165 = pneg %p1164
    $region201: #{custom-call.98} parent=1 // pred_check_branch
      %1167 = sbr.rel (%p1165) target = $region203
    $region202: #{custom-call.98} parent=1 // pred_region
      %s1168 = sshra.s32 8, 3
      %p1169 = scmp.gt.s32.totalorder %s1168, 0
      // Predicated region
      $region204: #{custom-call.98} parent=202 // pred_check
        %p1170 = pneg %p1169
      $region205: #{custom-call.98} parent=202 // pred_check_branch
        %1172 = sbr.rel (%p1170) target = $region207
      $region206: #{custom-call.98} parent=202 // pred_region
        %s1173 = ssub.s32 %s1168, 1
        %s1174 = smul.u32 %s1173, 128
        %s1175 = sshra.s32 %s1174, 4
        %s1176 = scalar_lea.vmem [#allocation10], %s1175
        %v1177 = vld [vmem:[#allocation10] sm:$0xff]
        // While loop
        $region208: #{custom-call.98} parent=206 // loop_pre_header
          _
        $region209: #{custom-call.98} parent=206 // loop_header
          %s1178 = sphi [#allocation10], %s1200
          %s1179 = sphi %s8, %s1201
          %v1180 = vphi %v1177, %v1202
          %s1181 = ssub.s32 %s1176, 64
          %p1182 = scmp.gt.s32.totalorder %s1178, %s1181
        $region210: #{custom-call.98} parent=206 // loop_header_branch
          %1184 = sbr.rel (%p1182) target = $region214
        $region211: #{custom-call.98} parent=206 // loop_body
          %1185 = vst [vmem:[%s1179] sm:$0xff] %v1180
          %v1186 = vld [vmem:[%s1178 + $0x8] sm:$0xff]
          %1187 = vst [vmem:[%s1179 + $0x8] sm:$0xff] %v1186
          %v1188 = vld [vmem:[%s1178 + $0x10] sm:$0xff]
          %1189 = vst [vmem:[%s1179 + $0x10] sm:$0xff] %v1188
          %v1190 = vld [vmem:[%s1178 + $0x18] sm:$0xff]
          %1191 = vst [vmem:[%s1179 + $0x18] sm:$0xff] %v1190
          %v1192 = vld [vmem:[%s1178 + $0x20] sm:$0xff]
          %1193 = vst [vmem:[%s1179 + $0x20] sm:$0xff] %v1192
          %v1194 = vld [vmem:[%s1178 + $0x28] sm:$0xff]
          %1195 = vst [vmem:[%s1179 + $0x28] sm:$0xff] %v1194
          %v1196 = vld [vmem:[%s1178 + $0x30] sm:$0xff]
          %1197 = vst [vmem:[%s1179 + $0x30] sm:$0xff] %v1196
          %v1198 = vld [vmem:[%s1178 + $0x38] sm:$0xff]
          %1199 = vst [vmem:[%s1179 + $0x38] sm:$0xff] %v1198
        $region212: #{custom-call.98} parent=206 // loop_footer
          %s1200 = scalar_lea.vmem %s1178, 64
          %s1201 = scalar_lea.vmem %s1179, 64
          %v1202 = vld [vmem:[%s1178 + $0x40] sm:$0xff]
        $region213: #{custom-call.98} parent=206 // loop_footer_branch
          %1203 = sbr.rel target = $region209
        $region214: #{custom-call.98} parent=206 // loop_exit
          _
        // While loop
        $region215: #{custom-call.98} parent=206 // loop_pre_header
          _
        $region216: #{custom-call.98} parent=206 // loop_header
          %s1204 = sphi %s1178, %s1212
          %s1205 = sphi %s1179, %s1213
          %v1206 = vphi %v1180, %v1206
          %p1207 = scmp.gt.s32.totalorder %s1204, %s1176
        $region217: #{custom-call.98} parent=206 // loop_header_branch
          %1209 = sbr.rel (%p1207) target = $region221
        $region218: #{custom-call.98} parent=206 // loop_body
          %v1210 = vld [vmem:[%s1204] sm:$0xff]
          %1211 = vst [vmem:[%s1205] sm:$0xff] %v1210
        $region219: #{custom-call.98} parent=206 // loop_footer
          %s1212 = scalar_lea.vmem %s1204, 8
          %s1213 = scalar_lea.vmem %s1205, 8
        $region220: #{custom-call.98} parent=206 // loop_footer_branch
          %1214 = sbr.rel target = $region216
        $region221: #{custom-call.98} parent=206 // loop_exit
          _
      $region207: #{custom-call.98} parent=202 // pred_fallthru
        _
      %s1215 = sand.u32 8, 7
      %s1216 = sshll.u32 1, %s1215
      %s1217 = ssub.s32 %s1216, 1
      %s1218 = smul.u32 %s1168, 128
      %s1219 = sshra.s32 %s1218, 4
      %s1220 = scalar_lea.vmem %s8, %s1219
      %s1221 = smul.u32 %s1168, 128
      %s1222 = sshra.s32 %s1221, 4
      %s1223 = scalar_lea.vmem [#allocation10], %s1222
      %v1224 = vld [vmem:[%s1223] sm:%s1217]
      %1225 = vst [vmem:[%s1220] sm:%s1217] %v1224
    $region203: #{custom-call.98} parent=1 // pred_fallthru
      _
    %p1227 = scmp.gt.s32.totalorder 8, 0
    // Predicated region
    $region222: #{custom-call.98} parent=1 // pred_check
      %p1228 = pneg %p1227
    $region223: #{custom-call.98} parent=1 // pred_check_branch
      %1230 = sbr.rel (%p1228) target = $region225
    $region224: #{custom-call.98} parent=1 // pred_region
      %s1231 = sshra.s32 8, 3
      %p1232 = scmp.gt.s32.totalorder %s1231, 0
      // Predicated region
      $region226: #{custom-call.98} parent=224 // pred_check
        %p1233 = pneg %p1232
      $region227: #{custom-call.98} parent=224 // pred_check_branch
        %1235 = sbr.rel (%p1233) target = $region229
      $region228: #{custom-call.98} parent=224 // pred_region
        %s1236 = ssub.s32 %s1231, 1
        %s1237 = smul.u32 %s1236, 128
        %s1238 = sshra.s32 %s1237, 4
        %s1239 = scalar_lea.vmem [#allocation11], %s1238
        %v1240 = vld [vmem:[#allocation11] sm:$0xff]
        // While loop
        $region230: #{custom-call.98} parent=228 // loop_pre_header
          _
        $region231: #{custom-call.98} parent=228 // loop_header
          %s1241 = sphi [#allocation11], %s1263
          %s1242 = sphi %s9, %s1264
          %v1243 = vphi %v1240, %v1265
          %s1244 = ssub.s32 %s1239, 64
          %p1245 = scmp.gt.s32.totalorder %s1241, %s1244
        $region232: #{custom-call.98} parent=228 // loop_header_branch
          %1247 = sbr.rel (%p1245) target = $region236
        $region233: #{custom-call.98} parent=228 // loop_body
          %1248 = vst [vmem:[%s1242] sm:$0xff] %v1243
          %v1249 = vld [vmem:[%s1241 + $0x8] sm:$0xff]
          %1250 = vst [vmem:[%s1242 + $0x8] sm:$0xff] %v1249
          %v1251 = vld [vmem:[%s1241 + $0x10] sm:$0xff]
          %1252 = vst [vmem:[%s1242 + $0x10] sm:$0xff] %v1251
          %v1253 = vld [vmem:[%s1241 + $0x18] sm:$0xff]
          %1254 = vst [vmem:[%s1242 + $0x18] sm:$0xff] %v1253
          %v1255 = vld [vmem:[%s1241 + $0x20] sm:$0xff]
          %1256 = vst [vmem:[%s1242 + $0x20] sm:$0xff] %v1255
          %v1257 = vld [vmem:[%s1241 + $0x28] sm:$0xff]
          %1258 = vst [vmem:[%s1242 + $0x28] sm:$0xff] %v1257
          %v1259 = vld [vmem:[%s1241 + $0x30] sm:$0xff]
          %1260 = vst [vmem:[%s1242 + $0x30] sm:$0xff] %v1259
          %v1261 = vld [vmem:[%s1241 + $0x38] sm:$0xff]
          %1262 = vst [vmem:[%s1242 + $0x38] sm:$0xff] %v1261
        $region234: #{custom-call.98} parent=228 // loop_footer
          %s1263 = scalar_lea.vmem %s1241, 64
          %s1264 = scalar_lea.vmem %s1242, 64
          %v1265 = vld [vmem:[%s1241 + $0x40] sm:$0xff]
        $region235: #{custom-call.98} parent=228 // loop_footer_branch
          %1266 = sbr.rel target = $region231
        $region236: #{custom-call.98} parent=228 // loop_exit
          _
        // While loop
        $region237: #{custom-call.98} parent=228 // loop_pre_header
          _
        $region238: #{custom-call.98} parent=228 // loop_header
          %s1267 = sphi %s1241, %s1275
          %s1268 = sphi %s1242, %s1276
          %v1269 = vphi %v1243, %v1269
          %p1270 = scmp.gt.s32.totalorder %s1267, %s1239
        $region239: #{custom-call.98} parent=228 // loop_header_branch
          %1272 = sbr.rel (%p1270) target = $region243
        $region240: #{custom-call.98} parent=228 // loop_body
          %v1273 = vld [vmem:[%s1267] sm:$0xff]
          %1274 = vst [vmem:[%s1268] sm:$0xff] %v1273
        $region241: #{custom-call.98} parent=228 // loop_footer
          %s1275 = scalar_lea.vmem %s1267, 8
          %s1276 = scalar_lea.vmem %s1268, 8
        $region242: #{custom-call.98} parent=228 // loop_footer_branch
          %1277 = sbr.rel target = $region238
        $region243: #{custom-call.98} parent=228 // loop_exit
          _
      $region229: #{custom-call.98} parent=224 // pred_fallthru
        _
      %s1278 = sand.u32 8, 7
      %s1279 = sshll.u32 1, %s1278
      %s1280 = ssub.s32 %s1279, 1
      %s1281 = smul.u32 %s1231, 128
      %s1282 = sshra.s32 %s1281, 4
      %s1283 = scalar_lea.vmem %s9, %s1282
      %s1284 = smul.u32 %s1231, 128
      %s1285 = sshra.s32 %s1284, 4
      %s1286 = scalar_lea.vmem [#allocation11], %s1285
      %v1287 = vld [vmem:[%s1286] sm:%s1280]
      %1288 = vst [vmem:[%s1283] sm:%s1280] %v1287
    $region225: #{custom-call.98} parent=1 // pred_fallthru
      _
    // Predicated region
    $region244: #{custom-call.98} parent=1 // pred_check
      _
    $region245: #{custom-call.98} parent=1 // pred_check_branch
      %1290 = sbr.rel (0) target = $region247
    $region246: #{custom-call.98} parent=1 // pred_region
      _
    $region247: #{custom-call.98} parent=1 // pred_fallthru
      _
    // Predicated region
    $region248: #{custom-call.98} parent=1 // pred_check
      _
    $region249: #{custom-call.98} parent=1 // pred_check_branch
      %1292 = sbr.rel (0) target = $region251
    $region250: #{custom-call.98} parent=1 // pred_region
      _
    $region251: #{custom-call.98} parent=1 // pred_fallthru
      _

// kernel: reverse.3
$region0: #{reverse.3}
  %s0 = inlined_call_operand.vmem [shape: f32[16], index: 0, kind: input, shape index: {}]
  %s1 = inlined_call_operand.vmem [shape: f32[16], index: 1, kind: output, shape index: {}]
  %v2 = vlaneseq
  %v3 = vsub.s32 15, %v2
  %4 = vset.pattern.permute.xlu0 %v3
  $region1: #{reverse.3} parent=0
    #allocation0 [shape = 'u8[8192]{0}', space=vmem, size = 0x2000, scoped, tag = 'operand span for operand 0']
    #allocation1 [shape = 'u8[1024]{0}', space=vmem, size = 0x400, scoped, tag = 'packed  for operand 0']
    #allocation2 [shape = 'u8[4096]{0}', space=vmem, size = 0x1000, scoped, tag = 'operand span for operand 1']
    #allocation3 [shape = 'u8[512]{0}', space=vmem, size = 0x400, scoped, tag = 'packed  for operand 1']
    %s5 = scalar_lea.vmem [#allocation1], 1
    // Predicated region
    $region2: #{reverse.3} parent=1 // pred_check
      _
    $region3: #{reverse.3} parent=1 // pred_check_branch
      %7 = sbr.rel (0) target = $region5
    $region4: #{reverse.3} parent=1 // pred_region
      // Predicated region
      $region6: #{reverse.3} parent=4 // pred_check
        _
      $region7: #{reverse.3} parent=4 // pred_check_branch
        %9 = sbr.rel target = $region9
      $region8: #{reverse.3} parent=4 // pred_region
        // Predicated region
        $region21: #{reverse.3} parent=8 // pred_check
          _
        $region22: #{reverse.3} parent=8 // pred_check_branch
          %25 = sbr.rel (0) target = $region24
        $region23: #{reverse.3} parent=8 // pred_region
          %s27 = ssub.s32 2, 1
          loop: start=0, step=1, limit=1
          $region25: #{reverse.3} parent=23 // loop_pre_header
            _
          $region26: #{reverse.3} parent=23 // loop_header
            %s29 = sphi 0, %s33
            %p30 = scmp.ge.s32.totalorder %s29, 1
            %s34 = sphi %s0, %s0
            %s35 = sphi %s5, %s5
          $region27: #{reverse.3} parent=23 // loop_header_branch
            %32 = sbr.rel (%p30) target = $region31
          $region28: #{reverse.3} parent=23 // loop_body
            %v36 = vld [vmem:[%s34] sm:%s27]
            %37 = vst [vmem:[%s35] sm:%s27] %v36
          $region29: #{reverse.3} parent=23 // loop_footer
            %s33 = sadd.s32 1, %s29
          $region30: #{reverse.3} parent=23 // loop_footer_branch
            %28 = sbr.rel target = $region26
          $region31: #{reverse.3} parent=23 // loop_exit
            _
        $region24: #{reverse.3} parent=8 // pred_fallthru
          _
      $region9: #{reverse.3} parent=4 // pred_fallthru
        _
      // Predicated region
      $region10: #{reverse.3} parent=4 // pred_check
        _
      $region11: #{reverse.3} parent=4 // pred_check_branch
        %11 = sbr.rel (0) target = $region13
      $region12: #{reverse.3} parent=4 // pred_region
        %s13 = ssub.s32 2, 1
        loop: start=0, step=1, limit=1
        $region14: #{reverse.3} parent=12 // loop_pre_header
          _
        $region15: #{reverse.3} parent=12 // loop_header
          %s15 = sphi 0, %s19
          %p16 = scmp.ge.s32.totalorder %s15, 1
          %s20 = sphi %s0, %s0
          %s21 = sphi %s5, %s5
        $region16: #{reverse.3} parent=12 // loop_header_branch
          %18 = sbr.rel (%p16) target = $region20
        $region17: #{reverse.3} parent=12 // loop_body
          %v22 = vld [vmem:[%s20] sm:%s13]
          %23 = vst [vmem:[%s21] sm:%s13] %v22
        $region18: #{reverse.3} parent=12 // loop_footer
          %s19 = sadd.s32 1, %s15
        $region19: #{reverse.3} parent=12 // loop_footer_branch
          %14 = sbr.rel target = $region15
        $region20: #{reverse.3} parent=12 // loop_exit
          _
      $region13: #{reverse.3} parent=4 // pred_fallthru
        _
    $region5: #{reverse.3} parent=1 // pred_fallthru
      _
    %38 = vnop
    %s40 = sshll.u32 1, 1
    %s41 = ssub.s32 %s40, 1
    %s42 = scalar_lea.vmem [#allocation1], 1
    %v43 = vld [vmem:[%s42] sm:%s41]
    %s44 = scalar_lea.vmem [#allocation0], 8
    %45 = vst [vmem:[%s44] sm:%s41] %v43
    %v46 = vld [vmem:[#allocation1] sm:%s41]
    %47 = vst [vmem:[#allocation0] sm:%s41] %v46
    %s48 = scalar_lea.vmem [#allocation0], 7
    %v49 = vld [vmem:[%s48] ss:$-1 sm:$0xff]
    %v50 = vrot.slane %v49, 7
    %51 = vperm.xlu0 %4, %v50
    %v52 = vpop.permute.xlu0 %51
    %53 = vst [vmem:[#allocation2] sm:$0xff] %v52
    %s54 = scalar_lea.vmem [#allocation0], 8
    %s55 = scalar_lea.vmem %s54, 7 [#allocation0]
    %v56 = vld [vmem:[%s55] ss:$-1 sm:$0xff]
    %v57 = vrot.slane %v56, 7
    %58 = vperm.xlu0 %4, %v57
    %v59 = vpop.permute.xlu0 %58
    %v60 = vlaneseq
    %v61 = vshrl.u32 %v60, 7
    %vm62 = vcmp.lt.s32.totalorder %v61, 1
    %63 = vst.msk [vmem:[#allocation2] sm:$0xff] %vm62, %v59
    %s65 = sshll.u32 1, 1
    %s66 = ssub.s32 %s65, 1
    %v68 = vld [vmem:[#allocation2] sm:%s66]
    %s69 = sshll.u32 1, 1
    %s70 = ssub.s32 %s69, 1
    %71 = vst [vmem:[#allocation3] sm:%s70] %v68
    // Predicated region
    $region32: #{reverse.3} parent=1 // pred_check
      _
    $region33: #{reverse.3} parent=1 // pred_check_branch
      %73 = sbr.rel (0) target = $region35
    $region34: #{reverse.3} parent=1 // pred_region
      // Predicated region
      $region36: #{reverse.3} parent=34 // pred_check
        _
      $region37: #{reverse.3} parent=34 // pred_check_branch
        %75 = sbr.rel target = $region39
      $region38: #{reverse.3} parent=34 // pred_region
        // Predicated region
        $region51: #{reverse.3} parent=38 // pred_check
          _
        $region52: #{reverse.3} parent=38 // pred_check_branch
          %91 = sbr.rel (0) target = $region54
        $region53: #{reverse.3} parent=38 // pred_region
          %s93 = ssub.s32 2, 1
          loop: start=0, step=1, limit=1
          $region55: #{reverse.3} parent=53 // loop_pre_header
            _
          $region56: #{reverse.3} parent=53 // loop_header
            %s95 = sphi 0, %s99
            %p96 = scmp.ge.s32.totalorder %s95, 1
            %s100 = sphi [#allocation3], [#allocation3]
            %s101 = sphi %s1, %s1
          $region57: #{reverse.3} parent=53 // loop_header_branch
            %98 = sbr.rel (%p96) target = $region61
          $region58: #{reverse.3} parent=53 // loop_body
            %v102 = vld [vmem:[%s100] sm:%s93]
            %103 = vst [vmem:[%s101] sm:%s93] %v102
          $region59: #{reverse.3} parent=53 // loop_footer
            %s99 = sadd.s32 1, %s95
          $region60: #{reverse.3} parent=53 // loop_footer_branch
            %94 = sbr.rel target = $region56
          $region61: #{reverse.3} parent=53 // loop_exit
            _
        $region54: #{reverse.3} parent=38 // pred_fallthru
          _
      $region39: #{reverse.3} parent=34 // pred_fallthru
        _
      // Predicated region
      $region40: #{reverse.3} parent=34 // pred_check
        _
      $region41: #{reverse.3} parent=34 // pred_check_branch
        %77 = sbr.rel (0) target = $region43
      $region42: #{reverse.3} parent=34 // pred_region
        %s79 = ssub.s32 2, 1
        loop: start=0, step=1, limit=1
        $region44: #{reverse.3} parent=42 // loop_pre_header
          _
        $region45: #{reverse.3} parent=42 // loop_header
          %s81 = sphi 0, %s85
          %p82 = scmp.ge.s32.totalorder %s81, 1
          %s86 = sphi [#allocation3], [#allocation3]
          %s87 = sphi %s1, %s1
        $region46: #{reverse.3} parent=42 // loop_header_branch
          %84 = sbr.rel (%p82) target = $region50
        $region47: #{reverse.3} parent=42 // loop_body
          %v88 = vld [vmem:[%s86] sm:%s79]
          %89 = vst [vmem:[%s87] sm:%s79] %v88
        $region48: #{reverse.3} parent=42 // loop_footer
          %s85 = sadd.s32 1, %s81
        $region49: #{reverse.3} parent=42 // loop_footer_branch
          %80 = sbr.rel target = $region45
        $region50: #{reverse.3} parent=42 // loop_exit
          _
      $region43: #{reverse.3} parent=34 // pred_fallthru
        _
    $region35: #{reverse.3} parent=1 // pred_fallthru
      _
    %104 = vnop

// kernel: custom-call.19
$region0: #{custom-call.19}
  %s0 = inlined_call_operand.vmem [shape: f32[16,16], index: 0, kind: input, shape index: {}]
  %s1 = inlined_call_operand.vmem [shape: f32[16,16], index: 1, kind: output, shape index: {0}]
  %s2 = inlined_call_operand.vmem [shape: f32[16], index: 2, kind: output, shape index: {1}]
  %3 = xla_tuple %s1, %s2
  $region1: #{custom-call.19} parent=0
    #allocation0 [shape = 'u8[8192]{0}', space=vmem, size = 0x2000, scoped, tag = 'operand span for operand 0']
    #allocation1 [shape = 'u8[8192]{0}', space=vmem, size = 0x2000, scoped, tag = 'operand span for operand 1']
    #allocation2 [shape = 'u8[4096]{0}', space=vmem, size = 0x1000, scoped, tag = 'operand span for operand 2']
    #allocation3 [shape = 'u8[512]{0}', space=vmem, size = 0x400, scoped, tag = 'packed  for operand 2']
    #allocation4 [shape = 'f32[16,128]{1,0}', space=vmem, size = 0x2000, scoped, tag = 'scratch for Householder reflectors']
    // Predicated region
    $region2: #{custom-call.19} parent=1 // pred_check
      _
    $region3: #{custom-call.19} parent=1 // pred_check_branch
      %5 = sbr.rel (0) target = $region5
    $region4: #{custom-call.19} parent=1 // pred_region
      // Predicated region
      $region6: #{custom-call.19} parent=4 // pred_check
        _
      $region7: #{custom-call.19} parent=4 // pred_check_branch
        %7 = sbr.rel (0) target = $region9
      $region8: #{custom-call.19} parent=4 // pred_region
        // Predicated region
        $region21: #{custom-call.19} parent=8 // pred_check
          _
        $region22: #{custom-call.19} parent=8 // pred_check_branch
          %25 = sbr.rel (0) target = $region24
        $region23: #{custom-call.19} parent=8 // pred_region
          loop: start=0, step=1, limit=1
          $region25: #{custom-call.19} parent=23 // loop_pre_header
            _
          $region26: #{custom-call.19} parent=23 // loop_header
            %s27 = sphi 0, %s31
            %p28 = scmp.ge.s32.totalorder %s27, 1
            %s32 = sphi %s0, %s0
            %s33 = sphi [#allocation0], [#allocation0]
          $region27: #{custom-call.19} parent=23 // loop_header_branch
            %30 = sbr.rel (%p28) target = $region31
          $region28: #{custom-call.19} parent=23 // loop_body
            %v34 = vld [vmem:[%s32] sm:$0xff]
            %35 = vst [vmem:[%s33] sm:$0xff] %v34
            %v36 = vld [vmem:[%s32 + $0x8] sm:$0xff]
            %37 = vst [vmem:[%s33 + $0x8] sm:$0xff] %v36
          $region29: #{custom-call.19} parent=23 // loop_footer
            %s31 = sadd.s32 1, %s27
          $region30: #{custom-call.19} parent=23 // loop_footer_branch
            %26 = sbr.rel target = $region26
          $region31: #{custom-call.19} parent=23 // loop_exit
            _
        $region24: #{custom-call.19} parent=8 // pred_fallthru
          _
        // Predicated region
        $region32: #{custom-call.19} parent=8 // pred_check
          _
        $region33: #{custom-call.19} parent=8 // pred_check_branch
          %39 = sbr.rel target = $region35
        $region34: #{custom-call.19} parent=8 // pred_region
          _
        $region35: #{custom-call.19} parent=8 // pred_fallthru
          _
      $region9: #{custom-call.19} parent=4 // pred_fallthru
        _
      // Predicated region
      $region10: #{custom-call.19} parent=4 // pred_check
        _
      $region11: #{custom-call.19} parent=4 // pred_check_branch
        %9 = sbr.rel target = $region13
      $region12: #{custom-call.19} parent=4 // pred_region
        %s11 = ssub.s32 256, 1
        loop: start=0, step=1, limit=1
        $region14: #{custom-call.19} parent=12 // loop_pre_header
          _
        $region15: #{custom-call.19} parent=12 // loop_header
          %s13 = sphi 0, %s17
          %p14 = scmp.ge.s32.totalorder %s13, 1
          %s18 = sphi %s0, %s0
          %s19 = sphi [#allocation0], [#allocation0]
        $region16: #{custom-call.19} parent=12 // loop_header_branch
          %16 = sbr.rel (%p14) target = $region20
        $region17: #{custom-call.19} parent=12 // loop_body
          %v20 = vld [vmem:[%s18] sm:%s11]
          %21 = vst [vmem:[%s19] sm:%s11] %v20
          %v22 = vld [vmem:[%s18 + $0x8] sm:%s11]
          %23 = vst [vmem:[%s19 + $0x8] sm:%s11] %v22
        $region18: #{custom-call.19} parent=12 // loop_footer
          %s17 = sadd.s32 1, %s13
        $region19: #{custom-call.19} parent=12 // loop_footer_branch
          %12 = sbr.rel target = $region15
        $region20: #{custom-call.19} parent=12 // loop_exit
          _
      $region13: #{custom-call.19} parent=4 // pred_fallthru
        _
    $region5: #{custom-call.19} parent=1 // pred_fallthru
      _
    %40 = vnop
    %v41 = vld [vmem:[#allocation0] sm:$0xff]
    %42 = vst [vmem:[#allocation1] sm:$0xff] %v41
    %s43 = scalar_lea.vmem [#allocation1], 8
    %s44 = scalar_lea.vmem [#allocation0], 8
    %v45 = vld [vmem:[%s44] sm:$0xff]
    %46 = vst [vmem:[%s43] sm:$0xff] %v45
    %47 = vst [vmem:[#allocation2] sm:$0x1] 0.0
    loop: start=0, step=1, limit=16
    $region36: #{custom-call.19} parent=1 // loop_pre_header
      _
    $region37: #{custom-call.19} parent=1 // loop_header
      %s49 = sphi 0, %s53
      %p50 = scmp.ge.s32.totalorder %s49, 16
    $region38: #{custom-call.19} parent=1 // loop_header_branch
      %52 = sbr.rel (%p50) target = $region42
    $region39: #{custom-call.19} parent=1 // loop_body
      %v54 = vld [vmem:[#allocation1] sm:$0xff]
      %v55 = vlaneseq
      %v56 = vshrl.u32 %v55, 7
      %v58 = vstv %s49
      %vm59 = vcmp.gt.s32.totalorder %v56, %v58
      %v60 = vsel %vm59, %v54, 0.0
      %v61 = vmul.f32 %v60, %v60
      %s62 = scalar_lea.vmem [#allocation1], 8
      %v63 = vld [vmem:[%s62] sm:$0xff]
      %v64 = vlaneseq
      %v65 = vshrl.u32 %v64, 7
      %v66 = vadd.s32 %v65, 8
      %v67 = vstv %s49
      %vm68 = vcmp.gt.s32.totalorder %v66, %v67
      %vm69 = vcmp.lt.s32.totalorder %v66, 16
      %vm70 = vmand %vm68, %vm69
      %v71 = vsel %vm70, %v63, 0.0
      %v72 = vmul.f32 %v71, %v71
      %v73 = vadd.f32 %v61, %v72
      %v74 = vrot.slane %v73, 4
      %v75 = vadd.f32 %v73, %v74
      %v76 = vrot.slane %v75, 2
      %v77 = vadd.f32 %v75, %v76
      %v78 = vrot.slane %v77, 1
      %v79 = vadd.f32 %v77, %v78
      %v80 = vrsqrt.pop %v79
      %v81 = vmul.f32 %v79, %v80
      %vm82 = vcmp.eq.f32.partialorder %v79, inf
      %v83 = vsel %vm82, %v79, %v81
      %vm84 = vcmp.eq.f32.partialorder %v79, 0.0
      %v85 = vand.u32 %v79, 2147483648
      %v86 = vsel %vm84, %v85, %v83
      %vm87 = vcmp.eq.f32.partialorder %v79, 0.0
      %s88 = sshrl.u32 %s49, 3
      %s89 = sand.u32 %s49, 7
      %s90 = smul.addr %s88, 8
      %s91 = sadd.s32 %s89, %s90
      %s92 = scalar_lea.vmem [#allocation1], %s91
      %v93 = vld [vmem:[%s92] ss:$0 sm:$0xff]
      %v94 = vand.u32 2147483647, %v93
      %v95 = vmax.f32 %v94, 0.0
      %v96 = vand.u32 2147483647, %v86
      %v97 = vmax.f32 %v95, %v96
      %v98 = vrcp.pop %v97
      %v99 = vmul.f32 %v94, %v98
      %v100 = vmul.f32 %v99, %v99
      %v101 = vrcp.pop %v97
      %v102 = vmul.f32 0.0, %v101
      %v103 = vmul.f32 %v102, %v102
      %v104 = vadd.f32 %v100, %v103
      %v105 = vrcp.pop %v97
      %v106 = vmul.f32 %v96, %v105
      %v107 = vmul.f32 %v106, %v106
      %v108 = vadd.f32 %v104, %v107
      %vm109 = vcmp.eq.f32.partialorder %v97, 0.0
      %v110 = vrsqrt.pop %v108
      %v111 = vmul.f32 %v108, %v110
      %vm112 = vcmp.eq.f32.partialorder %v108, inf
      %v113 = vsel %vm112, %v108, %v111
      %vm114 = vcmp.eq.f32.partialorder %v108, 0.0
      %v115 = vand.u32 %v108, 2147483648
      %v116 = vsel %vm114, %v115, %v113
      %v117 = vmul.f32 %v97, %v116
      %v118 = vsel %vm109, 0.0, %v117
      %vm119 = vcmp.lt.f32.partialorder %v93, 0.0
      %v120 = vxor.u32 %v118, 2147483648
      %v121 = vsel %vm119, %v118, %v120
      %v122 = vsub.f32 %v121, %v93
      %v123 = vrcp.pop %v121
      %v124 = vmul.f32 %v122, %v123
      %v125 = vsel %vm87, %v93, %v121
      %v126 = vsel %vm87, 0.0, %v124
      %v127 = vsub.f32 %v93, %v125
      %s128 = smov [#allocation1]
      %v129 = vlaneseq
      %v130 = vshrl.u32 %v129, 7
      %v131 = vmov %v130
      %v132 = vld [vmem:[%s128] sm:$0xff]
      %v134 = vstv %s49
      %vm135 = vcmp.gt.s32.totalorder %v131, %v134
      %v136 = vsel %vm135, %v132, 0.0
      %v137 = vrcp.pop %v127
      %v138 = vmul.f32 %v136, %v137
      %v139 = vsel %vm87, 0.0, %v138
      %v140 = vstv %s49
      %v141 = vlaneseq
      %v142 = vand.u32 %v141, 127
      %vm143 = vcmp.eq.s32.totalorder %v142, %v140
      %v144 = vsel %vm143, %v139, 0.0
      %145 = vadd.xlane.f32.xlu0 %v144
      %v146 = vpop.xlane.xlu0 %145
      %147 = vst [vmem:[#allocation4] sm:$0xff] %v146
      %s148 = scalar_lea.vmem %s128, 8
      %v149 = vld [vmem:[%s148] sm:$0xff]
      %v150 = vadd.s32 %v131, 8
      %v151 = vstv %s49
      %vm152 = vcmp.gt.s32.totalorder %v150, %v151
      %vm153 = vcmp.lt.s32.totalorder %v150, 16
      %vm154 = vmand %vm152, %vm153
      %v155 = vsel %vm154, %v149, 0.0
      %v156 = vrcp.pop %v127
      %v157 = vmul.f32 %v155, %v156
      %v158 = vsel %vm87, 0.0, %v157
      %v159 = vstv %s49
      %v160 = vlaneseq
      %v161 = vand.u32 %v160, 127
      %vm162 = vcmp.eq.s32.totalorder %v161, %v159
      %v163 = vsel %vm162, %v158, 0.0
      %164 = vadd.xlane.f32.xlu0 %v163
      %v165 = vpop.xlane.xlu0 %164
      %s166 = scalar_lea.vmem [#allocation4], 8
      %167 = vst [vmem:[%s166] sm:$0xff] %v165
      %s168 = scalar_lea.vmem [#allocation4], %s49
      %169 = vst [vmem:[%s168] sm:$0x1] 1.0
      %v170 = vstv %s49
      %v171 = vlaneseq
      %v172 = vand.u32 %v171, 127
      %vm173 = vcmp.eq.s32.totalorder %v172, %v170
      %v174 = vsel %vm173, %v126, 0.0
      %175 = vadd.xlane.f32.xlu0 %v174
      %v176 = vpop.xlane.xlu0 %175
      %v177 = vstv %s49
      %v178 = vlaneseq
      %v179 = vand.u32 %v178, 127
      %vm180 = vcmp.eq.s32.totalorder %v179, %v177
      %v181 = vld [vmem:[#allocation2] ss:$0 sm:$0xff]
      %v182 = vsel %vm180, %v176, %v181
      %183 = vst [vmem:[#allocation2] sm:$0x1] %v182
      %s184 = smov [#allocation1]
      %s185 = smov [#allocation4]
      %v186 = vlaneseq
      %v187 = vshrl.u32 %v186, 7
      %v188 = vmov %v187
      %v190 = vld [vmem:[%s185] sm:$0xff]
      %v191 = vld [vmem:[%s184] sm:$0xff]
      %v192 = vmul.f32 %v190, %v191
      %v193 = vadd.s32 %v188, 8
      %s194 = scalar_lea.vmem %s185, 8
      %v195 = vld [vmem:[%s194] sm:$0xff]
      %s196 = scalar_lea.vmem %s184, 8
      %v197 = vld [vmem:[%s196] sm:$0xff]
      %v198 = vmul.f32 %v195, %v197
      %vm199 = vcmp.lt.s32.totalorder %v193, 16
      %v200 = vsel %vm199, %v198, 0.0
      %v201 = vadd.f32 %v192, %v200
      %v202 = vrot.slane %v201, 4
      %v203 = vadd.f32 %v201, %v202
      %v204 = vrot.slane %v203, 2
      %v205 = vadd.f32 %v203, %v204
      %v206 = vrot.slane %v205, 1
      %v207 = vadd.f32 %v205, %v206
      %s208 = smov %s184
      %s209 = smov %s185
      %v210 = vlaneseq
      %v211 = vshrl.u32 %v210, 7
      %v212 = vmov %v211
      %v213 = vmul.f32 %v207, %v176
      %v215 = vlaneseq
      %v216 = vand.u32 %v215, 127
      %v217 = vld [vmem:[%s209] sm:$0xff]
      %v218 = vmul.f32 %v217, %v213
      %v219 = vld [vmem:[%s208] sm:$0xff]
      %v220 = vstv %s49
      %vm221 = vcmp.gt.s32.totalorder %v216, %v220
      %v222 = vsub.f32 %v219, %v218
      %v223 = vsel %vm221, %v222, %v219
      %v224 = vstv %s49
      %v225 = vlaneseq
      %v226 = vand.u32 %v225, 127
      %vm227 = vcmp.eq.s32.totalorder %v226, %v224
      %v228 = vstv %s49
      %vm229 = vcmp.ge.s32.totalorder %v212, %v228
      %vm230 = vmand %vm227, %vm229
      %v231 = vsel %vm230, %v217, %v223
      %232 = vst [vmem:[%s208] sm:$0xff] %v231
      %v233 = vadd.s32 %v212, 8
      %v234 = vlaneseq
      %v235 = vand.u32 %v234, 127
      %s236 = scalar_lea.vmem %s209, 8
      %v237 = vld [vmem:[%s236] sm:$0xff]
      %v238 = vmul.f32 %v237, %v213
      %s239 = scalar_lea.vmem %s208, 8
      %v240 = vld [vmem:[%s239] sm:$0xff]
      %v241 = vstv %s49
      %vm242 = vcmp.gt.s32.totalorder %v235, %v241
      %v243 = vsub.f32 %v240, %v238
      %v244 = vsel %vm242, %v243, %v240
      %v245 = vstv %s49
      %v246 = vlaneseq
      %v247 = vand.u32 %v246, 127
      %vm248 = vcmp.eq.s32.totalorder %v247, %v245
      %v249 = vstv %s49
      %vm250 = vcmp.ge.s32.totalorder %v233, %v249
      %vm251 = vmand %vm248, %vm250
      %v252 = vsel %vm251, %v237, %v244
      %253 = vst [vmem:[%s239] sm:$0xff] %v252
      %s254 = scalar_lea.vmem %s208, %s49
      %v255 = vld [vmem:[%s254] ss:$0 sm:$0xff]
      %v256 = vstv %s49
      %v257 = vlaneseq
      %v258 = vand.u32 %v257, 127
      %vm259 = vcmp.eq.s32.totalorder %v258, %v256
      %v260 = vsel %vm259, %v125, %v255
      %261 = vst [vmem:[%s254] sm:$0x1] %v260
    $region40: #{custom-call.19} parent=1 // loop_footer
      %s53 = sadd.s32 1, %s49
    $region41: #{custom-call.19} parent=1 // loop_footer_branch
      %48 = sbr.rel target = $region37
    $region42: #{custom-call.19} parent=1 // loop_exit
      _
    %s263 = sshll.u32 1, 1
    %s264 = ssub.s32 %s263, 1
    %v266 = vld [vmem:[#allocation2] sm:%s264]
    %s267 = sshll.u32 1, 1
    %s268 = ssub.s32 %s267, 1
    %269 = vst [vmem:[#allocation3] sm:%s268] %v266
    // Predicated region
    $region43: #{custom-call.19} parent=1 // pred_check
      _
    $region44: #{custom-call.19} parent=1 // pred_check_branch
      %271 = sbr.rel (0) target = $region46
    $region45: #{custom-call.19} parent=1 // pred_region
      // Predicated region
      $region47: #{custom-call.19} parent=45 // pred_check
        _
      $region48: #{custom-call.19} parent=45 // pred_check_branch
        %273 = sbr.rel (0) target = $region50
      $region49: #{custom-call.19} parent=45 // pred_region
        // Predicated region
        $region62: #{custom-call.19} parent=49 // pred_check
          _
        $region63: #{custom-call.19} parent=49 // pred_check_branch
          %291 = sbr.rel (0) target = $region65
        $region64: #{custom-call.19} parent=49 // pred_region
          loop: start=0, step=1, limit=1
          $region66: #{custom-call.19} parent=64 // loop_pre_header
            _
          $region67: #{custom-call.19} parent=64 // loop_header
            %s293 = sphi 0, %s297
            %p294 = scmp.ge.s32.totalorder %s293, 1
            %s298 = sphi [#allocation1], [#allocation1]
            %s299 = sphi %s1, %s1
          $region68: #{custom-call.19} parent=64 // loop_header_branch
            %296 = sbr.rel (%p294) target = $region72
          $region69: #{custom-call.19} parent=64 // loop_body
            %v300 = vld [vmem:[%s298] sm:$0xff]
            %301 = vst [vmem:[%s299] sm:$0xff] %v300
            %v302 = vld [vmem:[%s298 + $0x8] sm:$0xff]
            %303 = vst [vmem:[%s299 + $0x8] sm:$0xff] %v302
          $region70: #{custom-call.19} parent=64 // loop_footer
            %s297 = sadd.s32 1, %s293
          $region71: #{custom-call.19} parent=64 // loop_footer_branch
            %292 = sbr.rel target = $region67
          $region72: #{custom-call.19} parent=64 // loop_exit
            _
        $region65: #{custom-call.19} parent=49 // pred_fallthru
          _
        // Predicated region
        $region73: #{custom-call.19} parent=49 // pred_check
          _
        $region74: #{custom-call.19} parent=49 // pred_check_branch
          %305 = sbr.rel target = $region76
        $region75: #{custom-call.19} parent=49 // pred_region
          _
        $region76: #{custom-call.19} parent=49 // pred_fallthru
          _
      $region50: #{custom-call.19} parent=45 // pred_fallthru
        _
      // Predicated region
      $region51: #{custom-call.19} parent=45 // pred_check
        _
      $region52: #{custom-call.19} parent=45 // pred_check_branch
        %275 = sbr.rel target = $region54
      $region53: #{custom-call.19} parent=45 // pred_region
        %s277 = ssub.s32 256, 1
        loop: start=0, step=1, limit=1
        $region55: #{custom-call.19} parent=53 // loop_pre_header
          _
        $region56: #{custom-call.19} parent=53 // loop_header
          %s279 = sphi 0, %s283
          %p280 = scmp.ge.s32.totalorder %s279, 1
          %s284 = sphi [#allocation1], [#allocation1]
          %s285 = sphi %s1, %s1
        $region57: #{custom-call.19} parent=53 // loop_header_branch
          %282 = sbr.rel (%p280) target = $region61
        $region58: #{custom-call.19} parent=53 // loop_body
          %v286 = vld [vmem:[%s284] sm:%s277]
          %287 = vst [vmem:[%s285] sm:%s277] %v286
          %v288 = vld [vmem:[%s284 + $0x8] sm:%s277]
          %289 = vst [vmem:[%s285 + $0x8] sm:%s277] %v288
        $region59: #{custom-call.19} parent=53 // loop_footer
          %s283 = sadd.s32 1, %s279
        $region60: #{custom-call.19} parent=53 // loop_footer_branch
          %278 = sbr.rel target = $region56
        $region61: #{custom-call.19} parent=53 // loop_exit
          _
      $region54: #{custom-call.19} parent=45 // pred_fallthru
        _
    $region46: #{custom-call.19} parent=1 // pred_fallthru
      _
    %306 = vnop
    // Predicated region
    $region77: #{custom-call.19} parent=1 // pred_check
      _
    $region78: #{custom-call.19} parent=1 // pred_check_branch
      %308 = sbr.rel (0) target = $region80
    $region79: #{custom-call.19} parent=1 // pred_region
      // Predicated region
      $region81: #{custom-call.19} parent=79 // pred_check
        _
      $region82: #{custom-call.19} parent=79 // pred_check_branch
        %310 = sbr.rel (0) target = $region84
      $region83: #{custom-call.19} parent=79 // pred_region
        // Predicated region
        $region85: #{custom-call.19} parent=83 // pred_check
          _
        $region86: #{custom-call.19} parent=83 // pred_check_branch
          %312 = sbr.rel target = $region88
        $region87: #{custom-call.19} parent=83 // pred_region
          // Predicated region
          $region100: #{custom-call.19} parent=87 // pred_check
            _
          $region101: #{custom-call.19} parent=87 // pred_check_branch
            %328 = sbr.rel (0) target = $region103
          $region102: #{custom-call.19} parent=87 // pred_region
            %s330 = ssub.s32 2, 1
            loop: start=0, step=1, limit=1
            $region104: #{custom-call.19} parent=102 // loop_pre_header
              _
            $region105: #{custom-call.19} parent=102 // loop_header
              %s332 = sphi 0, %s336
              %p333 = scmp.ge.s32.totalorder %s332, 1
              %s337 = sphi [#allocation3], [#allocation3]
              %s338 = sphi %s2, %s2
            $region106: #{custom-call.19} parent=102 // loop_header_branch
              %335 = sbr.rel (%p333) target = $region110
            $region107: #{custom-call.19} parent=102 // loop_body
              %v339 = vld [vmem:[%s337] sm:%s330]
              %340 = vst [vmem:[%s338] sm:%s330] %v339
            $region108: #{custom-call.19} parent=102 // loop_footer
              %s336 = sadd.s32 1, %s332
            $region109: #{custom-call.19} parent=102 // loop_footer_branch
              %331 = sbr.rel target = $region105
            $region110: #{custom-call.19} parent=102 // loop_exit
              _
          $region103: #{custom-call.19} parent=87 // pred_fallthru
            _
        $region88: #{custom-call.19} parent=83 // pred_fallthru
          _
        // Predicated region
        $region89: #{custom-call.19} parent=83 // pred_check
          _
        $region90: #{custom-call.19} parent=83 // pred_check_branch
          %314 = sbr.rel (0) target = $region92
        $region91: #{custom-call.19} parent=83 // pred_region
          %s316 = ssub.s32 2, 1
          loop: start=0, step=1, limit=1
          $region93: #{custom-call.19} parent=91 // loop_pre_header
            _
          $region94: #{custom-call.19} parent=91 // loop_header
            %s318 = sphi 0, %s322
            %p319 = scmp.ge.s32.totalorder %s318, 1
            %s323 = sphi [#allocation3], [#allocation3]
            %s324 = sphi %s2, %s2
          $region95: #{custom-call.19} parent=91 // loop_header_branch
            %321 = sbr.rel (%p319) target = $region99
          $region96: #{custom-call.19} parent=91 // loop_body
            %v325 = vld [vmem:[%s323] sm:%s316]
            %326 = vst [vmem:[%s324] sm:%s316] %v325
          $region97: #{custom-call.19} parent=91 // loop_footer
            %s322 = sadd.s32 1, %s318
          $region98: #{custom-call.19} parent=91 // loop_footer_branch
            %317 = sbr.rel target = $region94
          $region99: #{custom-call.19} parent=91 // loop_exit
            _
        $region92: #{custom-call.19} parent=83 // pred_fallthru
          _
      $region84: #{custom-call.19} parent=79 // pred_fallthru
        _
      %341 = vnop
    $region80: #{custom-call.19} parent=1 // pred_fallthru
      _
    // Predicated region
    $region111: #{custom-call.19} parent=1 // pred_check
      _
    $region112: #{custom-call.19} parent=1 // pred_check_branch
      %343 = sbr.rel (0) target = $region114
    $region113: #{custom-call.19} parent=1 // pred_region
      _
    $region114: #{custom-call.19} parent=1 // pred_fallthru
      _

// kernel: unfolded_net_forward.7
$region0: #{unfolded_net_forward.7}
  #allocation0 [shape = 'u32[]', space=smem, size = 0x4, offset = 0x4, fixed_abs, tag = 'smem constant byte address 0x4 - core index']
  #allocation1 [shape = 'u32[144,128]{1,0:T(1,128)}', space=vmem, size = 0x12000, scoped, tag = 'internal scratch']
  #allocation2 [shape = 'f32[1]{0:T(128)S(6)}', space=smem, size = 0x200, scoped, tag = 'scoped memory for unfolded_net_forward.7']
  %s0 = inlined_call_operand.vmem [shape: f32[16,16], index: 0, kind: input, shape index: {}]
  %s1 = inlined_call_operand.vmem [shape: f32[1,16], index: 1, kind: input, shape index: {}]
  %s2 = inlined_call_operand.vmem [shape: f32[16,128], index: 2, kind: input, shape index: {}]
  %s3 = inlined_call_operand.vmem [shape: f32[16,128], index: 3, kind: input, shape index: {}]
  %s4 = inlined_call_operand.vmem [shape: f32[16,128], index: 4, kind: input, shape index: {}]
  %s5 = inlined_call_operand.vmem [shape: f32[16,128], index: 5, kind: input, shape index: {}, may-alias: {5,8}]
  %s6 = inlined_call_operand.<no memory space> [shape: f32[1], index: 6, kind: input, shape index: {}]
  %s7 = inlined_call_operand.vmem [shape: f32[16,128], index: 7, kind: output, shape index: {0}]
  %s8 = inlined_call_operand.vmem [shape: f32[16,128], index: 8, kind: output, shape index: {1}, may-alias: {5,8}]
  %9 = xla_tuple %s7, %s8
  %s10 = sld [smem:[#allocation0]]
  $region46: #{unfolded_net_forward.7} parent=0
    _
  %s12 = ssub.s32 1, %s10
  %s13 = scalar_select 0, %s12, %s10
  %14 = sst [smem:[#allocation2]] %s6
  // Predicated region
  $region2: #{unfolded_net_forward.7} parent=0 // pred_check
    _
  $region3: #{unfolded_net_forward.7} parent=0 // pred_check_branch
    %16 = sbr.rel (0) target = $region5
  $region4: #{unfolded_net_forward.7} parent=0 // pred_region
    _
  $region5: #{unfolded_net_forward.7} parent=0 // pred_fallthru
    _
  // Predicated region
  $region6: #{unfolded_net_forward.7} parent=0 // pred_check
    _
  $region7: #{unfolded_net_forward.7} parent=0 // pred_check_branch
    %18 = sbr.rel (0) target = $region9
  $region8: #{unfolded_net_forward.7} parent=0 // pred_region
    _
  $region9: #{unfolded_net_forward.7} parent=0 // pred_fallthru
    _
  // Predicated region
  $region10: #{unfolded_net_forward.7} parent=0 // pred_check
    _
  $region11: #{unfolded_net_forward.7} parent=0 // pred_check_branch
    %20 = sbr.rel (0) target = $region13
  $region12: #{unfolded_net_forward.7} parent=0 // pred_region
    _
  $region13: #{unfolded_net_forward.7} parent=0 // pred_fallthru
    _
  // Predicated region
  $region14: #{unfolded_net_forward.7} parent=0 // pred_check
    _
  $region15: #{unfolded_net_forward.7} parent=0 // pred_check_branch
    %22 = sbr.rel (0) target = $region17
  $region16: #{unfolded_net_forward.7} parent=0 // pred_region
    _
  $region17: #{unfolded_net_forward.7} parent=0 // pred_fallthru
    _
  // Predicated region
  $region18: #{unfolded_net_forward.7} parent=0 // pred_check
    _
  $region19: #{unfolded_net_forward.7} parent=0 // pred_check_branch
    %24 = sbr.rel (0) target = $region21
  $region20: #{unfolded_net_forward.7} parent=0 // pred_region
    _
  $region21: #{unfolded_net_forward.7} parent=0 // pred_fallthru
    _
  // Predicated region
  $region22: #{unfolded_net_forward.7} parent=0 // pred_check
    _
  $region23: #{unfolded_net_forward.7} parent=0 // pred_check_branch
    %26 = sbr.rel (0) target = $region25
  $region24: #{unfolded_net_forward.7} parent=0 // pred_region
    _
  $region25: #{unfolded_net_forward.7} parent=0 // pred_fallthru
    _
  // Predicated region
  $region26: #{unfolded_net_forward.7} parent=0 // pred_check
    _
  $region27: #{unfolded_net_forward.7} parent=0 // pred_check_branch
    %28 = sbr.rel (0) target = $region29
  $region28: #{unfolded_net_forward.7} parent=0 // pred_region
    _
  $region29: #{unfolded_net_forward.7} parent=0 // pred_fallthru
    _
  %s29 = sld [smem:[#allocation2]]
  %v30 = vld [vmem:[%s1] sm:$0x1]
  %vm31 = vcmask 122880
  %v32 = vsel %vm31, %v30, -inf
  %33 = vmax.xlane.f32.xlu0 %v32
  %v34 = vpop.xlane.xlu0 %33
  %v35 = vstv %s29
  %v36 = vmul.f32 %v35, %v34
  %v37 = vsub.f32 %v30, %v36
  %v38 = vmax.f32 %v37, 0.0
  %v39 = vld [vmem:[%s0] sm:$0xff]
  %v40 = vld [vmem:[%s0 + $0x8] sm:$0xff]
  %v42 = vlaneseq
  %v43 = vshrl.u32 %v42, 7
  %v44 = vsub.s32 0, %v43
  %v45 = vrot.slane %v38, %v44
  %v47 = vmul.f32 %v39, %v45
  %v48 = vmul.f32 %v40, %v45
  %v49 = vld [vmem:[%s2] sm:$0xff]
  %v50 = vld [vmem:[%s2 + $0x8] sm:$0xff]
  %vm51 = vcmask 130048
  %v53 = vsel %vm51, %v47, 0
  %v56 = vsel %vm51, %v48, 0
  %58 = vmatprep.subr.mxu0 0.0
  %59 = vmatpush1.msra.mxu0 0.0
  %60 = vmatprep.subr.mxu0 0.0
  %61 = vmatpush1.msra.mxu0 0.0
  %62 = vmatprep.subr.mxu0 0.0
  %63 = vmatpush1.msra.mxu0 0.0
  %64 = vmatprep.subr.mxu0 0.0
  %65 = vmatpush1.msra.mxu0 0.0
  %66 = vmatprep.subr.mxu0 0.0
  %67 = vmatpush1.msra.mxu0 0.0
  %68 = vmatprep.subr.mxu0 0.0
  %69 = vmatpush1.msra.mxu0 0.0
  %70 = vmatprep.subr.mxu0 0.0
  %71 = vmatpush1.msra.mxu0 0.0
  %72 = vmatprep.subr.mxu0 0.0
  %73 = vmatpush1.msra.mxu0 0.0
  %74 = vmatprep.subr.mxu0 0.0
  %75 = vmatpush1.msra.mxu0 0.0
  %76 = vmatprep.subr.mxu0 0.0
  %77 = vmatpush1.msra.mxu0 0.0
  %78 = vmatprep.subr.mxu0 0.0
  %79 = vmatpush1.msra.mxu0 0.0
  %80 = vmatprep.subr.mxu0 0.0
  %81 = vmatpush1.msra.mxu0 0.0
  %82 = vmatprep.subr.mxu0 0.0
  %83 = vmatpush1.msra.mxu0 0.0
  %84 = vmatprep.subr.mxu0 0.0
  %85 = vmatpush1.msra.mxu0 0.0
  %86 = vmatprep.subr.mxu0 0.0
  %87 = vmatpush1.msra.mxu0 %v50
  %88 = vmatprep.subr.mxu0 0.0
  %89 = vmatpush1.msra.mxu0 %v49
  %90 = vmatprep.subr.mxu0 0.0
  %91 = vmatpush2.msra.mxu0 0.0
  %92 = vmatprep.subr.mxu0 0.0
  %93 = vmatpush2.msra.mxu0 0.0
  %94 = vmatprep.subr.mxu0 0.0
  %95 = vmatpush2.msra.mxu0 0.0
  %96 = vmatprep.subr.mxu0 0.0
  %97 = vmatpush2.msra.mxu0 0.0
  %98 = vmatprep.subr.mxu0 0.0
  %99 = vmatpush2.msra.mxu0 0.0
  %100 = vmatprep.subr.mxu0 0.0
  %101 = vmatpush2.msra.mxu0 0.0
  %102 = vmatprep.subr.mxu0 0.0
  %103 = vmatpush2.msra.mxu0 0.0
  %104 = vmatprep.subr.mxu0 0.0
  %105 = vmatpush2.msra.mxu0 0.0
  %106 = vmatprep.subr.mxu0 0.0
  %107 = vmatpush2.msra.mxu0 0.0
  %108 = vmatprep.subr.mxu0 0.0
  %109 = vmatpush2.msra.mxu0 0.0
  %110 = vmatprep.subr.mxu0 0.0
  %111 = vmatpush2.msra.mxu0 0.0
  %112 = vmatprep.subr.mxu0 0.0
  %113 = vmatpush2.msra.mxu0 0.0
  %114 = vmatprep.subr.mxu0 0.0
  %115 = vmatpush2.msra.mxu0 0.0
  %116 = vmatprep.subr.mxu0 0.0
  %117 = vmatpush2.msra.mxu0 0.0
  %118 = vmatprep.subr.mxu0 0.0
  %119 = vmatpush2.msra.mxu0 0.0
  %120 = vmatprep.subr.mxu0 0.0
  %121 = vmatpush2.msra.mxu0 0.0
  %122 = vmatprep.mubr.f32.mxu0 0.0
  %123 = vmatmul.mubr.f32.gmra.mxu0 %v53
  %v124 = vpop.f32.mrf.mxu0
  %v125 = vadd.f32 0.0, %v124
  %v126 = vpop.f32.mrf.mxu0
  %127 = vmatprep.mubr.f32.mxu0 0.0
  %128 = vmatmul.mubr.f32.gmra.mxu0 %v56
  %v129 = vpop.f32.mrf.mxu0
  %v130 = vadd.f32 0.0, %v129
  %v131 = vpop.f32.mrf.mxu0
  %132 = vdwg.mxu0
  %133 = vst [vmem:[%s7] sm:$0xff] %v125
  %134 = vst [vmem:[%s7 + $0x8] sm:$0xff] %v130
  %v135 = vld [vmem:[%s5] sm:$0xff]
  %v136 = vld [vmem:[%s5 + $0x8] sm:$0xff]
  %v137 = vstv %s29
  %v138 = vrcp.pop %v137
  %s139 = vtos %v138
  %v140 = vld [vmem:[%s3] sm:$0xff]
  %v141 = vld [vmem:[%s3 + $0x8] sm:$0xff]
  %v142 = vld [vmem:[%s4] sm:$0xff]
  %v143 = vld [vmem:[%s4 + $0x8] sm:$0xff]
  %v144 = vmul.f32 %v142, %v125
  %v145 = vmul.f32 %v143, %v130
  %v146 = vsub.f32 %v140, %v144
  %v147 = vsub.f32 %v141, %v145
  %v148 = vstv %s139
  %v149 = vmul.f32 %v148, %v146
  %v150 = vmul.f32 %v148, %v147
  %v151 = vadd.f32 %v135, %v149
  %v152 = vadd.f32 %v136, %v150
  %153 = vst [vmem:[%s8] sm:$0xff] %v151
  %154 = vst [vmem:[%s8 + $0x8] sm:$0xff] %v152
  // Predicated region
  $region30: #{unfolded_net_forward.7} parent=0 // pred_check
    _
  $region31: #{unfolded_net_forward.7} parent=0 // pred_check_branch
    %156 = sbr.rel (0) target = $region33
  $region32: #{unfolded_net_forward.7} parent=0 // pred_region
    _
  $region33: #{unfolded_net_forward.7} parent=0 // pred_fallthru
    _
  // Predicated region
  $region34: #{unfolded_net_forward.7} parent=0 // pred_check
    _
  $region35: #{unfolded_net_forward.7} parent=0 // pred_check_branch
    %158 = sbr.rel (0) target = $region37
  $region36: #{unfolded_net_forward.7} parent=0 // pred_region
    _
  $region37: #{unfolded_net_forward.7} parent=0 // pred_fallthru
    _
  // Predicated region
  $region38: #{unfolded_net_forward.7} parent=0 // pred_check
    _
  $region39: #{unfolded_net_forward.7} parent=0 // pred_check_branch
    %160 = sbr.rel (0) target = $region41
  $region40: #{unfolded_net_forward.7} parent=0 // pred_region
    _
  $region41: #{unfolded_net_forward.7} parent=0 // pred_fallthru
    _
  // Predicated region
  $region42: #{unfolded_net_forward.7} parent=0 // pred_check
    _
  $region43: #{unfolded_net_forward.7} parent=0 // pred_check_branch
    %162 = sbr.rel (0) target = $region45
  $region44: #{unfolded_net_forward.7} parent=0 // pred_region
    _
  $region45: #{unfolded_net_forward.7} parent=0 // pred_fallthru
    _

// kernel: unfolded_net_forward.5
$region0: #{unfolded_net_forward.5}
  #allocation0 [shape = 'u32[]', space=smem, size = 0x4, offset = 0x4, fixed_abs, tag = 'smem constant byte address 0x4 - core index']
  #allocation1 [shape = 'u32[144,128]{1,0:T(1,128)}', space=vmem, size = 0x12000, scoped, tag = 'internal scratch']
  #allocation2 [shape = 'f32[1]{0:T(128)S(6)}', space=smem, size = 0x200, scoped, tag = 'scoped memory for unfolded_net_forward.5']
  #allocation3 [shape = 'f32[1]{0:T(128)S(6)}', space=smem, size = 0x200, scoped, tag = 'scoped memory for unfolded_net_forward.5']
  #allocation4 [shape = 'f32[1]{0:T(128)S(6)}', space=smem, size = 0x200, scoped, tag = 'scoped memory for unfolded_net_forward.5']
  #allocation5 [shape = 'f32[1]{0:T(128)S(6)}', space=smem, size = 0x200, scoped, tag = 'scoped memory for unfolded_net_forward.5']
  %s0 = inlined_call_operand.vmem [shape: f32[16,16], index: 0, kind: input, shape index: {}]
  %s1 = inlined_call_operand.vmem [shape: f32[1,16], index: 1, kind: input, shape index: {}]
  %s2 = inlined_call_operand.vmem [shape: f32[16,128], index: 2, kind: input, shape index: {}]
  %s3 = inlined_call_operand.vmem [shape: f32[16,128], index: 3, kind: input, shape index: {}]
  %s4 = inlined_call_operand.vmem [shape: f32[16,128], index: 4, kind: input, shape index: {}]
  %s5 = inlined_call_operand.vmem [shape: f32[16,128], index: 5, kind: input, shape index: {}, may-alias: {5,15}]
  %s6 = inlined_call_operand.vmem [shape: f32[16,128], index: 6, kind: input, shape index: {}]
  %s7 = inlined_call_operand.vmem [shape: f32[16,128], index: 7, kind: input, shape index: {}]
  %s8 = inlined_call_operand.vmem [shape: f32[9], index: 8, kind: input, shape index: {}]
  %s9 = inlined_call_operand.<no memory space> [shape: f32[1], index: 9, kind: input, shape index: {}]
  %s10 = inlined_call_operand.vmem [shape: f32[9], index: 10, kind: input, shape index: {}]
  %s11 = inlined_call_operand.<no memory space> [shape: f32[1], index: 11, kind: input, shape index: {}]
  %s12 = inlined_call_operand.<no memory space> [shape: f32[1], index: 12, kind: input, shape index: {}]
  %s13 = inlined_call_operand.<no memory space> [shape: f32[1], index: 13, kind: input, shape index: {}]
  %s14 = inlined_call_operand.vmem [shape: f32[16,128], index: 14, kind: output, shape index: {0}]
  %s15 = inlined_call_operand.vmem [shape: f32[16,128], index: 15, kind: output, shape index: {1}, may-alias: {5,15}]
  %16 = xla_tuple %s14, %s15
  %s17 = sld [smem:[#allocation0]]
  $region82: #{unfolded_net_forward.5} parent=0
    _
  %s19 = ssub.s32 1, %s17
  %s20 = scalar_select 0, %s19, %s17
  %21 = sst [smem:[#allocation2]] %s9
  %22 = sst [smem:[#allocation3]] %s11
  %23 = sst [smem:[#allocation4]] %s12
  %24 = sst [smem:[#allocation5]] %s13
  $region1: #{unfolded_net_forward.5} parent=0
    #allocation6 [shape = 'u8[512]{0}', space=smem, size = 0x200, scoped, tag = 'input window, operand 8, single buffered']
    #allocation7 [shape = 's32[1]{0}', space=sflag, size = 0x4, scoped, tag = 'scoped memory for unfolded_net_forward.5']
    #allocation8 [shape = 'u8[512]{0}', space=smem, size = 0x200, scoped, tag = 'input window, operand 10, single buffered']
    #allocation9 [shape = 's32[1]{0}', space=sflag, size = 0x4, scoped, tag = 'scoped memory for unfolded_net_forward.5']
    %25 = vsyncpa [#allocation7], 0
    %26 = vsyncpa [#allocation9], 0
    // Predicated region
    $region2: #{unfolded_net_forward.5} parent=1 // pred_check
      _
    $region3: #{unfolded_net_forward.5} parent=1 // pred_check_branch
      %28 = sbr.rel (0) target = $region5
    $region4: #{unfolded_net_forward.5} parent=1 // pred_region
      _
    $region5: #{unfolded_net_forward.5} parent=1 // pred_fallthru
      _
    // Predicated region
    $region6: #{unfolded_net_forward.5} parent=1 // pred_check
      _
    $region7: #{unfolded_net_forward.5} parent=1 // pred_check_branch
      %30 = sbr.rel (0) target = $region9
    $region8: #{unfolded_net_forward.5} parent=1 // pred_region
      _
    $region9: #{unfolded_net_forward.5} parent=1 // pred_fallthru
      _
    // Predicated region
    $region10: #{unfolded_net_forward.5} parent=1 // pred_check
      _
    $region11: #{unfolded_net_forward.5} parent=1 // pred_check_branch
      %32 = sbr.rel (0) target = $region13
    $region12: #{unfolded_net_forward.5} parent=1 // pred_region
      _
    $region13: #{unfolded_net_forward.5} parent=1 // pred_fallthru
      _
    // Predicated region
    $region14: #{unfolded_net_forward.5} parent=1 // pred_check
      _
    $region15: #{unfolded_net_forward.5} parent=1 // pred_check_branch
      %34 = sbr.rel (0) target = $region17
    $region16: #{unfolded_net_forward.5} parent=1 // pred_region
      _
    $region17: #{unfolded_net_forward.5} parent=1 // pred_fallthru
      _
    // Predicated region
    $region18: #{unfolded_net_forward.5} parent=1 // pred_check
      _
    $region19: #{unfolded_net_forward.5} parent=1 // pred_check_branch
      %36 = sbr.rel (0) target = $region21
    $region20: #{unfolded_net_forward.5} parent=1 // pred_region
      _
    $region21: #{unfolded_net_forward.5} parent=1 // pred_fallthru
      _
    // Predicated region
    $region22: #{unfolded_net_forward.5} parent=1 // pred_check
      _
    $region23: #{unfolded_net_forward.5} parent=1 // pred_check_branch
      %38 = sbr.rel (0) target = $region25
    $region24: #{unfolded_net_forward.5} parent=1 // pred_region
      _
    $region25: #{unfolded_net_forward.5} parent=1 // pred_fallthru
      _
    // Predicated region
    $region26: #{unfolded_net_forward.5} parent=1 // pred_check
      _
    $region27: #{unfolded_net_forward.5} parent=1 // pred_check_branch
      %40 = sbr.rel (0) target = $region29
    $region28: #{unfolded_net_forward.5} parent=1 // pred_region
      _
    $region29: #{unfolded_net_forward.5} parent=1 // pred_fallthru
      _
    // Predicated region
    $region30: #{unfolded_net_forward.5} parent=1 // pred_check
      _
    $region31: #{unfolded_net_forward.5} parent=1 // pred_check_branch
      %42 = sbr.rel (0) target = $region33
    $region32: #{unfolded_net_forward.5} parent=1 // pred_region
      _
    $region33: #{unfolded_net_forward.5} parent=1 // pred_fallthru
      _
    // Predicated region
    $region34: #{unfolded_net_forward.5} parent=1 // pred_check
      _
    $region35: #{unfolded_net_forward.5} parent=1 // pred_check_branch
      %44 = sbr.rel (0) target = $region37
    $region36: #{unfolded_net_forward.5} parent=1 // pred_region
      %s46 = ssub.s32 16, 16
      %47 = vsyncadd [#allocation7], %s46
      %s49 = sshll.u32 %s8, 4
      %s50 = int_to_ptr.vmem [resolvable:$true] %s49
      %52 = dma.vmem_to_smem %s50, 16, [#allocation6], [#allocation7]
    $region37: #{unfolded_net_forward.5} parent=1 // pred_fallthru
      _
    // Predicated region
    $region38: #{unfolded_net_forward.5} parent=1 // pred_check
      _
    $region39: #{unfolded_net_forward.5} parent=1 // pred_check_branch
      %54 = sbr.rel (0) target = $region41
    $region40: #{unfolded_net_forward.5} parent=1 // pred_region
      _
    $region41: #{unfolded_net_forward.5} parent=1 // pred_fallthru
      _
    // Predicated region
    $region42: #{unfolded_net_forward.5} parent=1 // pred_check
      _
    $region43: #{unfolded_net_forward.5} parent=1 // pred_check_branch
      %56 = sbr.rel (0) target = $region45
    $region44: #{unfolded_net_forward.5} parent=1 // pred_region
      %s58 = ssub.s32 16, 16
      %59 = vsyncadd [#allocation9], %s58
      %s61 = sshll.u32 %s10, 4
      %s62 = int_to_ptr.vmem [resolvable:$true] %s61
      %64 = dma.vmem_to_smem %s62, 16, [#allocation8], [#allocation9]
    $region45: #{unfolded_net_forward.5} parent=1 // pred_fallthru
      _
    // Predicated region
    $region46: #{unfolded_net_forward.5} parent=1 // pred_check
      _
    $region47: #{unfolded_net_forward.5} parent=1 // pred_check_branch
      %66 = sbr.rel (0) target = $region49
    $region48: #{unfolded_net_forward.5} parent=1 // pred_region
      _
    $region49: #{unfolded_net_forward.5} parent=1 // pred_fallthru
      _
    // Predicated region
    $region50: #{unfolded_net_forward.5} parent=1 // pred_check
      _
    $region51: #{unfolded_net_forward.5} parent=1 // pred_check_branch
      %68 = sbr.rel (0) target = $region53
    $region52: #{unfolded_net_forward.5} parent=1 // pred_region
      _
    $region53: #{unfolded_net_forward.5} parent=1 // pred_fallthru
      _
    // Predicated region
    $region54: #{unfolded_net_forward.5} parent=1 // pred_check
      _
    $region55: #{unfolded_net_forward.5} parent=1 // pred_check_branch
      %70 = sbr.rel (0) target = $region57
    $region56: #{unfolded_net_forward.5} parent=1 // pred_region
      _
    $region57: #{unfolded_net_forward.5} parent=1 // pred_fallthru
      _
    // Predicated region
    $region58: #{unfolded_net_forward.5} parent=1 // pred_check
      _
    $region59: #{unfolded_net_forward.5} parent=1 // pred_check_branch
      %72 = sbr.rel (0) target = $region61
    $region60: #{unfolded_net_forward.5} parent=1 // pred_region
      %73 = dma.done [#allocation7], 16
    $region61: #{unfolded_net_forward.5} parent=1 // pred_fallthru
      _
    // Predicated region
    $region62: #{unfolded_net_forward.5} parent=1 // pred_check
      _
    $region63: #{unfolded_net_forward.5} parent=1 // pred_check_branch
      %75 = sbr.rel (0) target = $region65
    $region64: #{unfolded_net_forward.5} parent=1 // pred_region
      %76 = dma.done [#allocation9], 16
    $region65: #{unfolded_net_forward.5} parent=1 // pred_fallthru
      _
    %77 = sfence
    %s78 = sld [smem:[#allocation4]]
    %s79 = sld [smem:[#allocation5]]
    %v80 = vld [vmem:[%s1] sm:$0x1]
    %vm81 = vcmask 122880
    %v82 = vsel %vm81, %v80, -inf
    %83 = vmax.xlane.f32.xlu0 %v82
    %v84 = vpop.xlane.xlu0 %83
    %v85 = vstv %s78
    %v86 = vmul.f32 %v85, %v84
    %v87 = vsub.f32 %v80, %v86
    %v88 = vmax.f32 %v87, 0.0
    %v89 = vld [vmem:[%s0] sm:$0xff]
    %v90 = vld [vmem:[%s0 + $0x8] sm:$0xff]
    %v92 = vlaneseq
    %v93 = vshrl.u32 %v92, 7
    %v94 = vsub.s32 0, %v93
    %v95 = vrot.slane %v88, %v94
    %v97 = vmul.f32 %v89, %v95
    %v98 = vmul.f32 %v90, %v95
    %v99 = vld [vmem:[%s2] sm:$0xff]
    %v100 = vld [vmem:[%s2 + $0x8] sm:$0xff]
    %vm101 = vcmask 130048
    %v103 = vsel %vm101, %v97, 0
    %v106 = vsel %vm101, %v98, 0
    %108 = vmatprep.subr.mxu0 0.0
    %109 = vmatpush1.msra.mxu0 0.0
    %110 = vmatprep.subr.mxu0 0.0
    %111 = vmatpush1.msra.mxu0 0.0
    %112 = vmatprep.subr.mxu0 0.0
    %113 = vmatpush1.msra.mxu0 0.0
    %114 = vmatprep.subr.mxu0 0.0
    %115 = vmatpush1.msra.mxu0 0.0
    %116 = vmatprep.subr.mxu0 0.0
    %117 = vmatpush1.msra.mxu0 0.0
    %118 = vmatprep.subr.mxu0 0.0
    %119 = vmatpush1.msra.mxu0 0.0
    %120 = vmatprep.subr.mxu0 0.0
    %121 = vmatpush1.msra.mxu0 0.0
    %122 = vmatprep.subr.mxu0 0.0
    %123 = vmatpush1.msra.mxu0 0.0
    %124 = vmatprep.subr.mxu0 0.0
    %125 = vmatpush1.msra.mxu0 0.0
    %126 = vmatprep.subr.mxu0 0.0
    %127 = vmatpush1.msra.mxu0 0.0
    %128 = vmatprep.subr.mxu0 0.0
    %129 = vmatpush1.msra.mxu0 0.0
    %130 = vmatprep.subr.mxu0 0.0
    %131 = vmatpush1.msra.mxu0 0.0
    %132 = vmatprep.subr.mxu0 0.0
    %133 = vmatpush1.msra.mxu0 0.0
    %134 = vmatprep.subr.mxu0 0.0
    %135 = vmatpush1.msra.mxu0 0.0
    %136 = vmatprep.subr.mxu0 0.0
    %137 = vmatpush1.msra.mxu0 %v100
    %138 = vmatprep.subr.mxu0 0.0
    %139 = vmatpush1.msra.mxu0 %v99
    %140 = vmatprep.subr.mxu0 0.0
    %141 = vmatpush2.msra.mxu0 0.0
    %142 = vmatprep.subr.mxu0 0.0
    %143 = vmatpush2.msra.mxu0 0.0
    %144 = vmatprep.subr.mxu0 0.0
    %145 = vmatpush2.msra.mxu0 0.0
    %146 = vmatprep.subr.mxu0 0.0
    %147 = vmatpush2.msra.mxu0 0.0
    %148 = vmatprep.subr.mxu0 0.0
    %149 = vmatpush2.msra.mxu0 0.0
    %150 = vmatprep.subr.mxu0 0.0
    %151 = vmatpush2.msra.mxu0 0.0
    %152 = vmatprep.subr.mxu0 0.0
    %153 = vmatpush2.msra.mxu0 0.0
    %154 = vmatprep.subr.mxu0 0.0
    %155 = vmatpush2.msra.mxu0 0.0
    %156 = vmatprep.subr.mxu0 0.0
    %157 = vmatpush2.msra.mxu0 0.0
    %158 = vmatprep.subr.mxu0 0.0
    %159 = vmatpush2.msra.mxu0 0.0
    %160 = vmatprep.subr.mxu0 0.0
    %161 = vmatpush2.msra.mxu0 0.0
    %162 = vmatprep.subr.mxu0 0.0
    %163 = vmatpush2.msra.mxu0 0.0
    %164 = vmatprep.subr.mxu0 0.0
    %165 = vmatpush2.msra.mxu0 0.0
    %166 = vmatprep.subr.mxu0 0.0
    %167 = vmatpush2.msra.mxu0 0.0
    %168 = vmatprep.subr.mxu0 0.0
    %169 = vmatpush2.msra.mxu0 0.0
    %170 = vmatprep.subr.mxu0 0.0
    %171 = vmatpush2.msra.mxu0 0.0
    %172 = vmatprep.mubr.f32.mxu0 0.0
    %173 = vmatmul.mubr.f32.gmra.mxu0 %v103
    %v174 = vpop.f32.mrf.mxu0
    %v175 = vadd.f32 0.0, %v174
    %v176 = vpop.f32.mrf.mxu0
    %177 = vmatprep.mubr.f32.mxu0 0.0
    %178 = vmatmul.mubr.f32.gmra.mxu0 %v106
    %v179 = vpop.f32.mrf.mxu0
    %v180 = vadd.f32 0.0, %v179
    %v181 = vpop.f32.mrf.mxu0
    %182 = vdwg.mxu0
    %v183 = vld [vmem:[%s3] sm:$0xff]
    %v184 = vld [vmem:[%s3 + $0x8] sm:$0xff]
    %v185 = vld [vmem:[%s4] sm:$0xff]
    %v186 = vld [vmem:[%s4 + $0x8] sm:$0xff]
    %v187 = vmul.f32 %v185, %v175
    %v188 = vmul.f32 %v186, %v180
    %v189 = vld [vmem:[%s5] sm:$0xff]
    %v190 = vld [vmem:[%s5 + $0x8] sm:$0xff]
    %v191 = vstv %s78
    %v192 = vrcp.pop %v191
    %s193 = vtos %v192
    %v194 = vsub.f32 %v183, %v187
    %v195 = vsub.f32 %v184, %v188
    %v196 = vstv %s193
    %v197 = vmul.f32 %v196, %v194
    %v198 = vmul.f32 %v196, %v195
    %v199 = vadd.f32 %v189, %v197
    %v200 = vadd.f32 %v190, %v198
    %201 = vst [vmem:[%s15] sm:$0xff] %v199
    %202 = vst [vmem:[%s15 + $0x8] sm:$0xff] %v200
    %v203 = vlaneseq
    %v204 = vshrl.u32 %v203, 7
    %v205 = vadd.s32 %v204, 8
    %v206 = vadd.s32 %v204, 16
    %v207 = vadd.s32 %v204, 24
    %vm208 = vcmp.lt.s32.totalorder %v204, 16
    %vm209 = vcmp.lt.s32.totalorder %v205, 16
    %vm210 = vcmp.lt.s32.totalorder %v206, 16
    %vm211 = vcmp.lt.s32.totalorder %v207, 16
    %v212 = vsel %vm208, 1, 0
    %v213 = vsel %vm209, 1, 0
    %v214 = vsel %vm210, 1, 0
    %v215 = vsel %vm211, 1, 0
    %v216 = vcvt.s32.f32 %v212
    %v217 = vcvt.s32.f32 %v213
    %v218 = vcvt.s32.f32 %v214
    %v219 = vcvt.s32.f32 %v215
    %v220 = vsub.f32 1.0, %v216
    %v221 = vsub.f32 1.0, %v217
    %v222 = vsub.f32 1.0, %v218
    %v223 = vsub.f32 1.0, %v219
    %vm224 = vcmp.lt.s32.totalorder %v204, 0
    %v225 = vsub.s32 0, %v204
    %v226 = vsel %vm224, %v225, %v204
    %v227 = vshrl.u32 %v226, 4
    %v228 = vand.u32 %v226, 15
    %v229 = vsub.s32 0, %v228
    %v230 = vsel %vm224, %v229, %v228
    %vm231 = vcmp.lt.s32.totalorder %v205, 0
    %v232 = vsub.s32 0, %v205
    %v233 = vsel %vm231, %v232, %v205
    %v234 = vshrl.u32 %v233, 4
    %v235 = vand.u32 %v233, 15
    %v236 = vsub.s32 0, %v235
    %v237 = vsel %vm231, %v236, %v235
    %vm238 = vcmp.lt.s32.totalorder %v206, 0
    %v239 = vsub.s32 0, %v206
    %v240 = vsel %vm238, %v239, %v206
    %v241 = vshrl.u32 %v240, 4
    %v242 = vand.u32 %v240, 15
    %v243 = vsub.s32 0, %v242
    %v244 = vsel %vm238, %v243, %v242
    %vm245 = vcmp.lt.s32.totalorder %v207, 0
    %v246 = vsub.s32 0, %v207
    %v247 = vsel %vm245, %v246, %v207
    %v248 = vshrl.u32 %v247, 4
    %v249 = vand.u32 %v247, 15
    %v250 = vsub.s32 0, %v249
    %v251 = vsel %vm245, %v250, %v249
    %vm252 = vcmp.ne.s32.totalorder %v230, 0
    %vm253 = vcmp.ne.s32.totalorder %v237, 0
    %vm254 = vcmp.ne.s32.totalorder %v244, 0
    %vm255 = vcmp.ne.s32.totalorder %v251, 0
    %vm256 = vcmp.lt.s32.totalorder %v230, 0
    %vm257 = vcmp.lt.s32.totalorder %v237, 0
    %vm258 = vcmp.lt.s32.totalorder %v244, 0
    %vm259 = vcmp.lt.s32.totalorder %v251, 0
    %vm260 = vmand %vm256, %vm252
    %vm261 = vmand %vm257, %vm253
    %vm262 = vmand %vm258, %vm254
    %vm263 = vmand %vm259, %vm255
    %v264 = vadd.s32 %v230, 16
    %v265 = vadd.s32 %v237, 16
    %v266 = vadd.s32 %v244, 16
    %v267 = vadd.s32 %v251, 16
    %v268 = vsel %vm260, %v264, %v230
    %v269 = vsel %vm261, %v265, %v237
    %v270 = vsel %vm262, %v266, %v244
    %v271 = vsel %vm263, %v267, %v251
    %v272 = vlaneseq
    %v273 = vand.u32 %v272, 127
    %v274 = vrot.slane %v183, 7
    %v275 = vrot.slane %v184, 7
    %v276 = vrot.slane %v187, 7
    %v277 = vrot.slane %v188, 7
    %vm278 = vcmp.lt.s32.totalorder %v204, 1
    %v279 = vsel %vm278, %v276, %v277
    %v280 = vsel %vm278, %v275, %v276
    %v281 = vsel %vm278, %v274, %v275
    %v282 = vsel %vm278, %v277, %v274
    %v283 = vadd.s32 %v268, 4294967295
    %v284 = vadd.s32 %v269, 4294967295
    %v285 = vadd.s32 %v270, 4294967295
    %v286 = vadd.s32 %v271, 4294967295
    %vm287 = vcmp.ge.s32.totalorder %v283, 0
    %vm288 = vcmp.ge.s32.totalorder %v284, 0
    %vm289 = vcmp.ge.s32.totalorder %v285, 0
    %vm290 = vcmp.ge.s32.totalorder %v286, 0
    %vm291 = vcmp.lt.s32.totalorder %v283, 16
    %vm292 = vcmp.lt.s32.totalorder %v284, 16
    %vm293 = vcmp.lt.s32.totalorder %v285, 16
    %vm294 = vcmp.lt.s32.totalorder %v286, 16
    %vm295 = vmand %vm287, %vm291
    %vm296 = vmand %vm288, %vm292
    %vm297 = vmand %vm289, %vm293
    %vm298 = vmand %vm290, %vm294
    %v299 = vsel %vm295, 1, 0
    %v300 = vsel %vm296, 1, 0
    %v301 = vsel %vm297, 1, 0
    %v302 = vsel %vm298, 1, 0
    %vm303 = vcmp.eq.s32.totalorder %v299, 1
    %vm304 = vcmp.eq.s32.totalorder %v300, 1
    %vm305 = vcmp.eq.s32.totalorder %v301, 1
    %vm306 = vcmp.eq.s32.totalorder %v302, 1
    %v307 = vsel %vm303, %v282, 0.0
    %v308 = vsel %vm304, %v281, 0.0
    %v309 = vsel %vm305, %v280, 0.0
    %v310 = vsel %vm306, %v279, 0.0
    %311 = vrot.lane.b32.xlu0 %v307, 1
    %v312 = vpop.permute.xlu0 %311
    %313 = vrot.lane.b32.xlu0 %v308, 1
    %v314 = vpop.permute.xlu0 %313
    %315 = vrot.lane.b32.xlu0 %v309, 1
    %v316 = vpop.permute.xlu0 %315
    %317 = vrot.lane.b32.xlu0 %v310, 1
    %v318 = vpop.permute.xlu0 %317
    %v319 = vadd.s32 %v273, 4294967295
    %vm320 = vcmp.ge.s32.totalorder %v319, 0
    %vm321 = vcmp.lt.s32.totalorder %v319, 128
    %vm322 = vmand %vm320, %vm321
    %v323 = vsel %vm322, 1, 0
    %vm324 = vcmp.eq.s32.totalorder %v323, 1
    %v325 = vsel %vm324, %v312, 0.0
    %v326 = vsel %vm324, %v314, 0.0
    %v327 = vsel %vm324, %v316, 0.0
    %v328 = vsel %vm324, %v318, 0.0
    %s329 = sld [smem:[#allocation6]]
    %v330 = vstv %s329
    %v331 = vmul.f32 %v330, %v216
    %v332 = vmul.f32 %v330, %v217
    %v333 = vmul.f32 %v330, %v218
    %v334 = vmul.f32 %v330, %v219
    %s335 = sld [smem:[#allocation8]]
    %v336 = vstv %s335
    %v337 = vmul.f32 %v336, %v220
    %v338 = vmul.f32 %v336, %v221
    %v339 = vmul.f32 %v336, %v222
    %v340 = vmul.f32 %v336, %v223
    %v341 = vadd.f32 %v331, %v337
    %v342 = vadd.f32 %v332, %v338
    %v343 = vadd.f32 %v333, %v339
    %v344 = vadd.f32 %v334, %v340
    %v345 = vmul.f32 %v341, %v325
    %v346 = vmul.f32 %v342, %v326
    %v347 = vmul.f32 %v343, %v327
    %v348 = vmul.f32 %v344, %v328
    %v349 = vadd.f32 %v345, 0.0
    %v350 = vadd.f32 %v346, 0.0
    %v351 = vadd.f32 %v347, 0.0
    %v352 = vadd.f32 %v348, 0.0
    %s353 = sld [smem:[#allocation6 + $0x1]]
    %v354 = vstv %s353
    %v355 = vmul.f32 %v354, %v216
    %v356 = vmul.f32 %v354, %v217
    %v357 = vmul.f32 %v354, %v218
    %v358 = vmul.f32 %v354, %v219
    %s359 = sld [smem:[#allocation8 + $0x1]]
    %v360 = vstv %s359
    %v361 = vmul.f32 %v360, %v220
    %v362 = vmul.f32 %v360, %v221
    %v363 = vmul.f32 %v360, %v222
    %v364 = vmul.f32 %v360, %v223
    %v365 = vadd.f32 %v355, %v361
    %v366 = vadd.f32 %v356, %v362
    %v367 = vadd.f32 %v357, %v363
    %v368 = vadd.f32 %v358, %v364
    %v369 = vmul.f32 %v365, %v307
    %v370 = vmul.f32 %v366, %v308
    %v371 = vmul.f32 %v367, %v309
    %v372 = vmul.f32 %v368, %v310
    %v373 = vadd.f32 %v349, %v369
    %v374 = vadd.f32 %v350, %v370
    %v375 = vadd.f32 %v351, %v371
    %v376 = vadd.f32 %v352, %v372
    %377 = vrot.lane.b32.xlu0 %v307, 127
    %v378 = vpop.permute.xlu0 %377
    %379 = vrot.lane.b32.xlu0 %v308, 127
    %v380 = vpop.permute.xlu0 %379
    %381 = vrot.lane.b32.xlu0 %v309, 127
    %v382 = vpop.permute.xlu0 %381
    %383 = vrot.lane.b32.xlu0 %v310, 127
    %v384 = vpop.permute.xlu0 %383
    %v385 = vadd.s32 %v273, 1
    %vm386 = vcmp.ge.s32.totalorder %v385, 0
    %vm387 = vcmp.lt.s32.totalorder %v385, 128
    %vm388 = vmand %vm386, %vm387
    %v389 = vsel %vm388, 1, 0
    %vm390 = vcmp.eq.s32.totalorder %v389, 1
    %v391 = vsel %vm390, %v378, 0.0
    %v392 = vsel %vm390, %v380, 0.0
    %v393 = vsel %vm390, %v382, 0.0
    %v394 = vsel %vm390, %v384, 0.0
    %s395 = sld [smem:[#allocation6 + $0x2]]
    %v396 = vstv %s395
    %v397 = vmul.f32 %v396, %v216
    %v398 = vmul.f32 %v396, %v217
    %v399 = vmul.f32 %v396, %v218
    %v400 = vmul.f32 %v396, %v219
    %s401 = sld [smem:[#allocation8 + $0x2]]
    %v402 = vstv %s401
    %v403 = vmul.f32 %v402, %v220
    %v404 = vmul.f32 %v402, %v221
    %v405 = vmul.f32 %v402, %v222
    %v406 = vmul.f32 %v402, %v223
    %v407 = vadd.f32 %v397, %v403
    %v408 = vadd.f32 %v398, %v404
    %v409 = vadd.f32 %v399, %v405
    %v410 = vadd.f32 %v400, %v406
    %v411 = vmul.f32 %v407, %v391
    %v412 = vmul.f32 %v408, %v392
    %v413 = vmul.f32 %v409, %v393
    %v414 = vmul.f32 %v410, %v394
    %v415 = vadd.f32 %v373, %v411
    %v416 = vadd.f32 %v374, %v412
    %v417 = vadd.f32 %v375, %v413
    %v418 = vadd.f32 %v376, %v414
    %419 = vrot.lane.b32.xlu0 %v183, 1
    %v420 = vpop.permute.xlu0 %419
    %421 = vrot.lane.b32.xlu0 %v184, 1
    %v422 = vpop.permute.xlu0 %421
    %423 = vrot.lane.b32.xlu0 %v187, 1
    %v424 = vpop.permute.xlu0 %423
    %425 = vrot.lane.b32.xlu0 %v188, 1
    %v426 = vpop.permute.xlu0 %425
    %v427 = vsel %vm324, %v420, 0.0
    %v428 = vsel %vm324, %v422, 0.0
    %v429 = vsel %vm324, %v424, 0.0
    %v430 = vsel %vm324, %v426, 0.0
    %s431 = sld [smem:[#allocation6 + $0x3]]
    %v432 = vstv %s431
    %v433 = vmul.f32 %v432, %v216
    %v434 = vmul.f32 %v432, %v217
    %v435 = vmul.f32 %v432, %v218
    %v436 = vmul.f32 %v432, %v219
    %s437 = sld [smem:[#allocation8 + $0x3]]
    %v438 = vstv %s437
    %v439 = vmul.f32 %v438, %v220
    %v440 = vmul.f32 %v438, %v221
    %v441 = vmul.f32 %v438, %v222
    %v442 = vmul.f32 %v438, %v223
    %v443 = vadd.f32 %v433, %v439
    %v444 = vadd.f32 %v434, %v440
    %v445 = vadd.f32 %v435, %v441
    %v446 = vadd.f32 %v436, %v442
    %v447 = vmul.f32 %v443, %v427
    %v448 = vmul.f32 %v444, %v428
    %v449 = vmul.f32 %v445, %v429
    %v450 = vmul.f32 %v446, %v430
    %v451 = vadd.f32 %v415, %v447
    %v452 = vadd.f32 %v416, %v448
    %v453 = vadd.f32 %v417, %v449
    %v454 = vadd.f32 %v418, %v450
    %s455 = sld [smem:[#allocation6 + $0x4]]
    %v456 = vstv %s455
    %v457 = vmul.f32 %v456, %v216
    %v458 = vmul.f32 %v456, %v217
    %v459 = vmul.f32 %v456, %v218
    %v460 = vmul.f32 %v456, %v219
    %s461 = sld [smem:[#allocation8 + $0x4]]
    %v462 = vstv %s461
    %v463 = vmul.f32 %v462, %v220
    %v464 = vmul.f32 %v462, %v221
    %v465 = vmul.f32 %v462, %v222
    %v466 = vmul.f32 %v462, %v223
    %v467 = vadd.f32 %v457, %v463
    %v468 = vadd.f32 %v458, %v464
    %v469 = vadd.f32 %v459, %v465
    %v470 = vadd.f32 %v460, %v466
    %v471 = vmul.f32 %v467, %v183
    %v472 = vmul.f32 %v468, %v184
    %v473 = vmul.f32 %v469, %v187
    %v474 = vmul.f32 %v470, %v188
    %v475 = vadd.f32 %v451, %v471
    %v476 = vadd.f32 %v452, %v472
    %v477 = vadd.f32 %v453, %v473
    %v478 = vadd.f32 %v454, %v474
    %479 = vrot.lane.b32.xlu0 %v183, 127
    %v480 = vpop.permute.xlu0 %479
    %481 = vrot.lane.b32.xlu0 %v184, 127
    %v482 = vpop.permute.xlu0 %481
    %483 = vrot.lane.b32.xlu0 %v187, 127
    %v484 = vpop.permute.xlu0 %483
    %485 = vrot.lane.b32.xlu0 %v188, 127
    %v486 = vpop.permute.xlu0 %485
    %v487 = vsel %vm390, %v480, 0.0
    %v488 = vsel %vm390, %v482, 0.0
    %v489 = vsel %vm390, %v484, 0.0
    %v490 = vsel %vm390, %v486, 0.0
    %s491 = sld [smem:[#allocation6 + $0x5]]
    %v492 = vstv %s491
    %v493 = vmul.f32 %v492, %v216
    %v494 = vmul.f32 %v492, %v217
    %v495 = vmul.f32 %v492, %v218
    %v496 = vmul.f32 %v492, %v219
    %s497 = sld [smem:[#allocation8 + $0x5]]
    %v498 = vstv %s497
    %v499 = vmul.f32 %v498, %v220
    %v500 = vmul.f32 %v498, %v221
    %v501 = vmul.f32 %v498, %v222
    %v502 = vmul.f32 %v498, %v223
    %v503 = vadd.f32 %v493, %v499
    %v504 = vadd.f32 %v494, %v500
    %v505 = vadd.f32 %v495, %v501
    %v506 = vadd.f32 %v496, %v502
    %v507 = vmul.f32 %v503, %v487
    %v508 = vmul.f32 %v504, %v488
    %v509 = vmul.f32 %v505, %v489
    %v510 = vmul.f32 %v506, %v490
    %v511 = vadd.f32 %v475, %v507
    %v512 = vadd.f32 %v476, %v508
    %v513 = vadd.f32 %v477, %v509
    %v514 = vadd.f32 %v478, %v510
    %v515 = vrot.slane %v183, 1
    %v516 = vrot.slane %v184, 1
    %v517 = vrot.slane %v187, 1
    %v518 = vrot.slane %v188, 1
    %vm519 = vcmp.lt.s32.totalorder %v204, 7
    %v520 = vsel %vm519, %v517, %v518
    %v521 = vsel %vm519, %v516, %v517
    %v522 = vsel %vm519, %v515, %v516
    %v523 = vsel %vm519, %v518, %v515
    %v524 = vadd.s32 %v268, 1
    %v525 = vadd.s32 %v269, 1
    %v526 = vadd.s32 %v270, 1
    %v527 = vadd.s32 %v271, 1
    %vm528 = vcmp.ge.s32.totalorder %v524, 0
    %vm529 = vcmp.ge.s32.totalorder %v525, 0
    %vm530 = vcmp.ge.s32.totalorder %v526, 0
    %vm531 = vcmp.ge.s32.totalorder %v527, 0
    %vm532 = vcmp.lt.s32.totalorder %v524, 16
    %vm533 = vcmp.lt.s32.totalorder %v525, 16
    %vm534 = vcmp.lt.s32.totalorder %v526, 16
    %vm535 = vcmp.lt.s32.totalorder %v527, 16
    %vm536 = vmand %vm528, %vm532
    %vm537 = vmand %vm529, %vm533
    %vm538 = vmand %vm530, %vm534
    %vm539 = vmand %vm531, %vm535
    %v540 = vsel %vm536, 1, 0
    %v541 = vsel %vm537, 1, 0
    %v542 = vsel %vm538, 1, 0
    %v543 = vsel %vm539, 1, 0
    %vm544 = vcmp.eq.s32.totalorder %v540, 1
    %vm545 = vcmp.eq.s32.totalorder %v541, 1
    %vm546 = vcmp.eq.s32.totalorder %v542, 1
    %vm547 = vcmp.eq.s32.totalorder %v543, 1
    %v548 = vsel %vm544, %v522, 0.0
    %v549 = vsel %vm545, %v521, 0.0
    %v550 = vsel %vm546, %v520, 0.0
    %v551 = vsel %vm547, %v523, 0.0
    %552 = vrot.lane.b32.xlu0 %v548, 1
    %v553 = vpop.permute.xlu0 %552
    %554 = vrot.lane.b32.xlu0 %v549, 1
    %v555 = vpop.permute.xlu0 %554
    %556 = vrot.lane.b32.xlu0 %v550, 1
    %v557 = vpop.permute.xlu0 %556
    %558 = vrot.lane.b32.xlu0 %v551, 1
    %v559 = vpop.permute.xlu0 %558
    %v560 = vsel %vm324, %v553, 0.0
    %v561 = vsel %vm324, %v555, 0.0
    %v562 = vsel %vm324, %v557, 0.0
    %v563 = vsel %vm324, %v559, 0.0
    %s564 = sld [smem:[#allocation6 + $0x6]]
    %v565 = vstv %s564
    %v566 = vmul.f32 %v565, %v216
    %v567 = vmul.f32 %v565, %v217
    %v568 = vmul.f32 %v565, %v218
    %v569 = vmul.f32 %v565, %v219
    %s570 = sld [smem:[#allocation8 + $0x6]]
    %v571 = vstv %s570
    %v572 = vmul.f32 %v571, %v220
    %v573 = vmul.f32 %v571, %v221
    %v574 = vmul.f32 %v571, %v222
    %v575 = vmul.f32 %v571, %v223
    %v576 = vadd.f32 %v566, %v572
    %v577 = vadd.f32 %v567, %v573
    %v578 = vadd.f32 %v568, %v574
    %v579 = vadd.f32 %v569, %v575
    %v580 = vmul.f32 %v576, %v560
    %v581 = vmul.f32 %v577, %v561
    %v582 = vmul.f32 %v578, %v562
    %v583 = vmul.f32 %v579, %v563
    %v584 = vadd.f32 %v511, %v580
    %v585 = vadd.f32 %v512, %v581
    %v586 = vadd.f32 %v513, %v582
    %v587 = vadd.f32 %v514, %v583
    %s588 = sld [smem:[#allocation6 + $0x7]]
    %v589 = vstv %s588
    %v590 = vmul.f32 %v589, %v216
    %v591 = vmul.f32 %v589, %v217
    %v592 = vmul.f32 %v589, %v218
    %v593 = vmul.f32 %v589, %v219
    %s594 = sld [smem:[#allocation8 + $0x7]]
    %v595 = vstv %s594
    %v596 = vmul.f32 %v595, %v220
    %v597 = vmul.f32 %v595, %v221
    %v598 = vmul.f32 %v595, %v222
    %v599 = vmul.f32 %v595, %v223
    %v600 = vadd.f32 %v590, %v596
    %v601 = vadd.f32 %v591, %v597
    %v602 = vadd.f32 %v592, %v598
    %v603 = vadd.f32 %v593, %v599
    %v604 = vmul.f32 %v600, %v548
    %v605 = vmul.f32 %v601, %v549
    %v606 = vmul.f32 %v602, %v550
    %v607 = vmul.f32 %v603, %v551
    %v608 = vadd.f32 %v584, %v604
    %v609 = vadd.f32 %v585, %v605
    %v610 = vadd.f32 %v586, %v606
    %v611 = vadd.f32 %v587, %v607
    %612 = vrot.lane.b32.xlu0 %v548, 127
    %v613 = vpop.permute.xlu0 %612
    %614 = vrot.lane.b32.xlu0 %v549, 127
    %v615 = vpop.permute.xlu0 %614
    %616 = vrot.lane.b32.xlu0 %v550, 127
    %v617 = vpop.permute.xlu0 %616
    %618 = vrot.lane.b32.xlu0 %v551, 127
    %v619 = vpop.permute.xlu0 %618
    %v620 = vsel %vm390, %v613, 0.0
    %v621 = vsel %vm390, %v615, 0.0
    %v622 = vsel %vm390, %v617, 0.0
    %v623 = vsel %vm390, %v619, 0.0
    %s624 = sld [smem:[#allocation6 + $0x8]]
    %v625 = vstv %s624
    %v626 = vmul.f32 %v625, %v216
    %v627 = vmul.f32 %v625, %v217
    %v628 = vmul.f32 %v625, %v218
    %v629 = vmul.f32 %v625, %v219
    %s630 = sld [smem:[#allocation8 + $0x8]]
    %v631 = vstv %s630
    %v632 = vmul.f32 %v631, %v220
    %v633 = vmul.f32 %v631, %v221
    %v634 = vmul.f32 %v631, %v222
    %v635 = vmul.f32 %v631, %v223
    %v636 = vadd.f32 %v626, %v632
    %v637 = vadd.f32 %v627, %v633
    %v638 = vadd.f32 %v628, %v634
    %v639 = vadd.f32 %v629, %v635
    %v640 = vmul.f32 %v636, %v620
    %v641 = vmul.f32 %v637, %v621
    %v642 = vmul.f32 %v638, %v622
    %v643 = vmul.f32 %v639, %v623
    %v644 = vadd.f32 %v608, %v640
    %v645 = vadd.f32 %v609, %v641
    %v646 = vadd.f32 %v610, %v642
    %v647 = vadd.f32 %v611, %v643
    %v648 = vadd.f32 %v644, %v646
    %v649 = vadd.f32 %v645, %v647
    %v650 = vmul.f32 %v185, %v199
    %v651 = vmul.f32 %v186, %v200
    %v652 = vld [vmem:[%s6] sm:$0xff]
    %v653 = vld [vmem:[%s6 + $0x8] sm:$0xff]
    %v654 = vstv %s79
    %v655 = vmul.f32 %v652, %v654
    %v656 = vmul.f32 %v653, %v654
    %v657 = vmul.f32 %v650, %v655
    %v658 = vmul.f32 %v651, %v656
    %v659 = vld [vmem:[%s7] sm:$0xff]
    %v660 = vld [vmem:[%s7 + $0x8] sm:$0xff]
    %v661 = vadd.f32 %v657, %v659
    %v662 = vadd.f32 %v658, %v660
    %v663 = vadd.f32 %v175, %v648
    %v664 = vadd.f32 %v180, %v649
    %s665 = sld [smem:[#allocation2]]
    %v666 = vstv %s665
    %v667 = vadd.f32 %v663, %v666
    %v668 = vadd.f32 %v664, %v666
    %s669 = sld [smem:[#allocation3]]
    %v670 = vstv %s669
    %v671 = vadd.f32 %v667, %v670
    %v672 = vadd.f32 %v668, %v670
    %v673 = vadd.f32 %v671, %v661
    %v674 = vadd.f32 %v672, %v662
    %675 = vst [vmem:[%s14] sm:$0xff] %v673
    %676 = vst [vmem:[%s14 + $0x8] sm:$0xff] %v674
    // Predicated region
    $region66: #{unfolded_net_forward.5} parent=1 // pred_check
      _
    $region67: #{unfolded_net_forward.5} parent=1 // pred_check_branch
      %678 = sbr.rel (0) target = $region69
    $region68: #{unfolded_net_forward.5} parent=1 // pred_region
      _
    $region69: #{unfolded_net_forward.5} parent=1 // pred_fallthru
      _
    // Predicated region
    $region70: #{unfolded_net_forward.5} parent=1 // pred_check
      _
    $region71: #{unfolded_net_forward.5} parent=1 // pred_check_branch
      %680 = sbr.rel (0) target = $region73
    $region72: #{unfolded_net_forward.5} parent=1 // pred_region
      _
    $region73: #{unfolded_net_forward.5} parent=1 // pred_fallthru
      _
    // Predicated region
    $region74: #{unfolded_net_forward.5} parent=1 // pred_check
      _
    $region75: #{unfolded_net_forward.5} parent=1 // pred_check_branch
      %682 = sbr.rel (0) target = $region77
    $region76: #{unfolded_net_forward.5} parent=1 // pred_region
      _
    $region77: #{unfolded_net_forward.5} parent=1 // pred_fallthru
      _
    // Predicated region
    $region78: #{unfolded_net_forward.5} parent=1 // pred_check
      _
    $region79: #{unfolded_net_forward.5} parent=1 // pred_check_branch
      %684 = sbr.rel (0) target = $region81
    $region80: #{unfolded_net_forward.5} parent=1 // pred_region
      _
    $region81: #{unfolded_net_forward.5} parent=1 // pred_fallthru
      _
    %685 = vsyncpa [#allocation7], 1
    %686 = vsyncpa [#allocation9], 1

</llo_original>
